<compile_context>
chip_gen: v5e
topology: v5e:2x2
jax: 0.10.0
libtpu: 0.0.40
codegen_flags: <defaults>
</compile_context>

<pallas_src>
import jax
import jax.numpy as jnp
import numpy as np
from jax.experimental import pallas as pl
from jax.experimental.pallas import tpu as pltpu


def _conv_block2_kernel(x_ref, w1_ref, g1_ref, b1_ref, w2_ref, g2_ref, b2_ref,
                        out_ref, xpad_ref, hpad_ref, p1_ref, p2_ref):
    """Fused Conv3x3+BN+ReLU -> Conv3x3+BN+ReLU -> channel concat.

    x_ref   : (N, H, W, Cin)          input, NHWC, VMEM
    w1_ref  : (9*Cin, Cmid)           conv1 weight, im2col-flattened (ky,kx,cin)
    g1_ref  : (1, Cmid)  b1_ref: (1, Cmid)   BN1 gamma / beta
    w2_ref  : (9*Cmid, Cout)          conv2 weight, im2col-flattened
    g2_ref  : (1, Cout)  b2_ref: (1, Cout)   BN2 gamma / beta
    out_ref : (Cin+Cout, N*H*W)       channel-major, lane-dense output
    xpad_ref: (N, H+2, W+2, Cin)      VMEM scratch (padded input, stage 1)
    hpad_ref: (N, H+2, W+2, Cmid)     VMEM scratch (padded hidden, stage 2)
    p1_ref  : (N*H*W, 9*Cin)          VMEM scratch (im2col patches, stage 1)
    p2_ref  : (N*H*W, 9*Cmid)         VMEM scratch (im2col patches, stage 2)
    """
    N, H, W, Cin = x_ref.shape
    Cmid = w1_ref.shape[-1]
    Cout = w2_ref.shape[-1]
    M = N * H * W

    def conv3x3_bn_relu(x_nhwc, pad_ref, patch_ref, w_ref, g_ref, b_ref):
        cin = x_nhwc.shape[-1]
        # Zero-pad (stride 1, pad 1) entirely inside VMEM: no extra HBM pass.
        pad_ref[...] = jnp.zeros_like(pad_ref)
        pad_ref[:, 1:H + 1, 1:W + 1, :] = x_nhwc
        xpad = pad_ref[...]

        # im2col: build one (M, 9*cin) patch matrix and do a single MXU matmul
        # with K = 9*cin instead of 9 tiny K = cin matmuls.
        for ky in range(3):
            for kx in range(3):
                j = ky * 3 + kx
                patch_ref[:, j * cin:(j + 1) * cin] = (
                    xpad[:, ky:ky + H, kx:kx + W, :].reshape(M, cin))
        acc = jnp.dot(patch_ref[...], w_ref[...],
                      preferred_element_type=jnp.float32)        # (M, cout)

        # NOTE: the Conv2d bias is intentionally NOT added -- it is exactly
        # cancelled by the training-mode BatchNorm mean subtraction below.
        # BatchNorm (training mode, biased variance, eps=1e-5) + ReLU, with
        # gamma folded into the inverse std (single per-channel scale).
        mean = jnp.mean(acc, axis=0, keepdims=True)
        centered = acc - mean
        var = jnp.mean(centered * centered, axis=0, keepdims=True)
        scale = g_ref[...] * jax.lax.rsqrt(var + 1e-5)
        return jnp.maximum(centered * scale + b_ref[...], 0.0)   # (M, cout)

    h = conv3x3_bn_relu(x_ref[...], xpad_ref, p1_ref, w1_ref, g1_ref, b1_ref)
    x1 = conv3x3_bn_relu(h.reshape(N, H, W, Cmid), hpad_ref, p2_ref,
                         w2_ref, g2_ref, b2_ref)

    # Fused channel concat (torch.cat((x, x1), dim=1)), stored channel-major so
    # the lane dimension is M = N*H*W (multiple of 128 at these sizes) and the
    # stores are unmasked / lane-dense.
    out_ref[0:Cin, :] = x_ref[...].reshape(M, Cin).T
    out_ref[Cin:Cin + Cout, :] = x1.T


def conv_block2_forward(x_nchw, params):
    """Full Conv_block2 forward. Input/output are NCHW (PyTorch convention)."""
    N, Cin, H, W = x_nchw.shape
    Cmid = params["w1"].shape[-1]
    Cout = params["w2"].shape[-1]
    M = N * H * W

    x_nhwc = jnp.transpose(x_nchw, (0, 2, 3, 1))               # NCHW -> NHWC
    w1f = params["w1"].reshape(9 * Cin, Cmid)                  # (ky,kx,cin) flat
    w2f = params["w2"].reshape(9 * Cmid, Cout)
    g1 = params["g1"].reshape(1, Cmid)
    be1 = params["be1"].reshape(1, Cmid)
    g2 = params["g2"].reshape(1, Cout)
    be2 = params["be2"].reshape(1, Cout)

    vmem = pl.BlockSpec(memory_space=pltpu.MemorySpace.VMEM)
    flops = 2 * M * (9 * Cin) * Cmid + 2 * M * (9 * Cmid) * Cout
    bytes_accessed = 4 * (x_nhwc.size + (Cin + Cout) * M + w1f.size + w2f.size
                          + 2 * (Cmid + Cout))

    out_cm = pl.pallas_call(
        _conv_block2_kernel,
        out_shape=jax.ShapeDtypeStruct((Cin + Cout, M), jnp.float32),
        in_specs=[vmem] * 7,
        out_specs=vmem,
        scratch_shapes=[
            pltpu.VMEM((N, H + 2, W + 2, Cin), jnp.float32),
            pltpu.VMEM((N, H + 2, W + 2, Cmid), jnp.float32),
            pltpu.VMEM((M, 9 * Cin), jnp.float32),
            pltpu.VMEM((M, 9 * Cmid), jnp.float32),
        ],
        compiler_params=pltpu.CompilerParams(
            vmem_limit_bytes=32 * 1024 * 1024),
        cost_estimate=pl.CostEstimate(
            flops=flops, transcendentals=Cmid + Cout,
            bytes_accessed=bytes_accessed),
    )(x_nhwc, w1f, g1, be1, w2f, g2, be2)

    # (Cin+Cout, N*H*W) -> (N, Cin+Cout, H, W): already NCHW memory order per
    # channel; just split M and move channels behind batch.
    return jnp.transpose(out_cm.reshape(Cin + Cout, N, H, W), (1, 0, 2, 3))


def _reference_forward(x_nchw, params):
    """Pure-JAX (XLA) reference, including the (BN-cancelled) conv bias."""
    def conv_bn_relu(x, w, b, g, be):
        y = jax.lax.conv_general_dilated(
            x, w, window_strides=(1, 1), padding="SAME",
            dimension_numbers=("NHWC", "HWIO", "NHWC"),
        ) + b
        mean = jnp.mean(y, axis=(0, 1, 2), keepdims=True)
        var = jnp.mean((y - mean) ** 2, axis=(0, 1, 2), keepdims=True)
        y = (y - mean) * jax.lax.rsqrt(var + 1e-5) * g + be
        return jnp.maximum(y, 0.0)

    x = jnp.transpose(x_nchw, (0, 2, 3, 1))
    h = conv_bn_relu(x, params["w1"], params["b1"], params["g1"], params["be1"])
    x1 = conv_bn_relu(h, params["w2"], params["b2"], params["g2"], params["be2"])
    return jnp.transpose(jnp.concatenate([x, x1], axis=-1), (0, 3, 1, 2))


def make_params(key, ch_in, ch_out):
    c_mid = ch_out // 2
    ks = jax.random.split(key, 8)
    # Conv weights in HWIO layout (kh, kw, cin, cout); BN gamma/beta per channel.
    return {
        "w1": jax.random.normal(ks[0], (3, 3, ch_in, c_mid), jnp.float32) * 0.1,
        "b1": jax.random.normal(ks[1], (c_mid,), jnp.float32) * 0.1,
        "g1": 1.0 + 0.1 * jax.random.normal(ks[2], (c_mid,), jnp.float32),
        "be1": 0.1 * jax.random.normal(ks[3], (c_mid,), jnp.float32),
        "w2": jax.random.normal(ks[4], (3, 3, c_mid, ch_out), jnp.float32) * 0.1,
        "b2": jax.random.normal(ks[5], (ch_out,), jnp.float32) * 0.1,
        "g2": 1.0 + 0.1 * jax.random.normal(ks[6], (ch_out,), jnp.float32),
        "be2": 0.1 * jax.random.normal(ks[7], (ch_out,), jnp.float32),
    }


if __name__ == "__main__":
    key = jax.random.PRNGKey(0)
    k_x, k_p = jax.random.split(key)

    N, ch_in, H, W = 2, 4, 16, 16
    ch_out = 8

    x = jax.random.normal(k_x, (N, ch_in, H, W), jnp.float32)  # NCHW like PyTorch
    params = make_params(k_p, ch_in, ch_out)

    out = jax.jit(conv_block2_forward)(x, params)
    out = jax.block_until_ready(out)

    assert out.shape == (N, ch_in + ch_out, H, W), out.shape

    ref = jax.jit(_reference_forward)(x, params)
    np.testing.assert_allclose(np.asarray(out), np.asarray(ref), rtol=1e-3, atol=1e-3)

    print("KERNEL_OK")
</pallas_src>

<mosaic_0001>
module attributes {stable_mosaic.version = 11 : i64} {
  func.func @_conv_block2_kernel(%arg0: memref<2x16x16x4xf32, #tpu.memory_space<vmem>>, %arg1: memref<36x4xf32, #tpu.memory_space<vmem>>, %arg2: memref<1x4xf32, #tpu.memory_space<vmem>>, %arg3: memref<1x4xf32, #tpu.memory_space<vmem>>, %arg4: memref<36x8xf32, #tpu.memory_space<vmem>>, %arg5: memref<1x8xf32, #tpu.memory_space<vmem>>, %arg6: memref<1x8xf32, #tpu.memory_space<vmem>>, %arg7: memref<12x512xf32, #tpu.memory_space<vmem>>, %arg8: memref<2x18x18x4xf32, #tpu.memory_space<vmem>>, %arg9: memref<2x18x18x4xf32, #tpu.memory_space<vmem>>, %arg10: memref<512x36xf32, #tpu.memory_space<vmem>>, %arg11: memref<512x36xf32, #tpu.memory_space<vmem>>) attributes {dimension_semantics = [], scalar_prefetch = 0 : i64, scratch_operands = 4 : i64, tpu.core_type = #tpu.core_type<tc>} {
    %c0 = arith.constant 0 : index
    %c0_0 = arith.constant 0 : index
    %c0_1 = arith.constant 0 : index
    %c0_2 = arith.constant 0 : index
    %0 = vector.load %arg0[%c0, %c0_0, %c0_1, %c0_2] : memref<2x16x16x4xf32, #tpu.memory_space<vmem>>, vector<2x16x16x4xf32>
    %cst = arith.constant 0.000000e+00 : f32
    %1 = vector.broadcast %cst : f32 to vector<2x18x18x4xf32>
    %c0_3 = arith.constant 0 : index
    %c0_4 = arith.constant 0 : index
    %c0_5 = arith.constant 0 : index
    %c0_6 = arith.constant 0 : index
    %2 = vector.load %arg8[%c0_3, %c0_4, %c0_5, %c0_6] : memref<2x18x18x4xf32, #tpu.memory_space<vmem>>, vector<2x18x18x4xf32>
    tpu.vector_store %arg8[%c0_3, %c0_4, %c0_5, %c0_6], %1 {strides = array<i32>} : memref<2x18x18x4xf32, #tpu.memory_space<vmem>>, vector<2x18x18x4xf32>,
    %c0_7 = arith.constant 0 : index
    %c1 = arith.constant 1 : index
    %c1_8 = arith.constant 1 : index
    %c0_9 = arith.constant 0 : index
    %3 = vector.load %arg8[%c0_7, %c1, %c1_8, %c0_9] : memref<2x18x18x4xf32, #tpu.memory_space<vmem>>, vector<2x16x16x4xf32>
    tpu.vector_store %arg8[%c0_7, %c1, %c1_8, %c0_9], %0 {strides = array<i32>} : memref<2x18x18x4xf32, #tpu.memory_space<vmem>>, vector<2x16x16x4xf32>,
    %c0_10 = arith.constant 0 : index
    %c0_11 = arith.constant 0 : index
    %c0_12 = arith.constant 0 : index
    %c0_13 = arith.constant 0 : index
    %4 = vector.load %arg8[%c0_10, %c0_11, %c0_12, %c0_13] : memref<2x18x18x4xf32, #tpu.memory_space<vmem>>, vector<2x18x18x4xf32>
    %5 = vector.extract_strided_slice %4 {offsets = [0, 0, 0, 0], sizes = [2, 16, 16, 4], strides = [1, 1, 1, 1]} : vector<2x18x18x4xf32> to vector<2x16x16x4xf32>
    %6 = vector.shape_cast %5 : vector<2x16x16x4xf32> to vector<512x4xf32>
    %c0_14 = arith.constant 0 : index
    %c0_15 = arith.constant 0 : index
    %7 = vector.load %arg10[%c0_14, %c0_15] : memref<512x36xf32, #tpu.memory_space<vmem>>, vector<512x4xf32>
    tpu.vector_store %arg10[%c0_14, %c0_15], %6 {strides = array<i32>} : memref<512x36xf32, #tpu.memory_space<vmem>>, vector<512x4xf32>,
    %8 = vector.extract_strided_slice %4 {offsets = [0, 0, 1, 0], sizes = [2, 16, 16, 4], strides = [1, 1, 1, 1]} : vector<2x18x18x4xf32> to vector<2x16x16x4xf32>
    %9 = vector.shape_cast %8 : vector<2x16x16x4xf32> to vector<512x4xf32>
    %c0_16 = arith.constant 0 : index
    %c4 = arith.constant 4 : index
    %10 = vector.load %arg10[%c0_16, %c4] : memref<512x36xf32, #tpu.memory_space<vmem>>, vector<512x4xf32>
    tpu.vector_store %arg10[%c0_16, %c4], %9 {strides = array<i32>} : memref<512x36xf32, #tpu.memory_space<vmem>>, vector<512x4xf32>,
    %11 = vector.extract_strided_slice %4 {offsets = [0, 0, 2, 0], sizes = [2, 16, 16, 4], strides = [1, 1, 1, 1]} : vector<2x18x18x4xf32> to vector<2x16x16x4xf32>
    %12 = vector.shape_cast %11 : vector<2x16x16x4xf32> to vector<512x4xf32>
    %c0_17 = arith.constant 0 : index
    %c8 = arith.constant 8 : index
    %13 = vector.load %arg10[%c0_17, %c8] : memref<512x36xf32, #tpu.memory_space<vmem>>, vector<512x4xf32>
    tpu.vector_store %arg10[%c0_17, %c8], %12 {strides = array<i32>} : memref<512x36xf32, #tpu.memory_space<vmem>>, vector<512x4xf32>,
    %14 = vector.extract_strided_slice %4 {offsets = [0, 1, 0, 0], sizes = [2, 16, 16, 4], strides = [1, 1, 1, 1]} : vector<2x18x18x4xf32> to vector<2x16x16x4xf32>
    %15 = vector.shape_cast %14 : vector<2x16x16x4xf32> to vector<512x4xf32>
    %c0_18 = arith.constant 0 : index
    %c12 = arith.constant 12 : index
    %16 = vector.load %arg10[%c0_18, %c12] : memref<512x36xf32, #tpu.memory_space<vmem>>, vector<512x4xf32>
    tpu.vector_store %arg10[%c0_18, %c12], %15 {strides = array<i32>} : memref<512x36xf32, #tpu.memory_space<vmem>>, vector<512x4xf32>,
    %17 = vector.extract_strided_slice %4 {offsets = [0, 1, 1, 0], sizes = [2, 16, 16, 4], strides = [1, 1, 1, 1]} : vector<2x18x18x4xf32> to vector<2x16x16x4xf32>
    %18 = vector.shape_cast %17 : vector<2x16x16x4xf32> to vector<512x4xf32>
    %c0_19 = arith.constant 0 : index
    %c16 = arith.constant 16 : index
    %19 = vector.load %arg10[%c0_19, %c16] : memref<512x36xf32, #tpu.memory_space<vmem>>, vector<512x4xf32>
    tpu.vector_store %arg10[%c0_19, %c16], %18 {strides = array<i32>} : memref<512x36xf32, #tpu.memory_space<vmem>>, vector<512x4xf32>,
    %20 = vector.extract_strided_slice %4 {offsets = [0, 1, 2, 0], sizes = [2, 16, 16, 4], strides = [1, 1, 1, 1]} : vector<2x18x18x4xf32> to vector<2x16x16x4xf32>
    %21 = vector.shape_cast %20 : vector<2x16x16x4xf32> to vector<512x4xf32>
    %c0_20 = arith.constant 0 : index
    %c20 = arith.constant 20 : index
    %22 = vector.load %arg10[%c0_20, %c20] : memref<512x36xf32, #tpu.memory_space<vmem>>, vector<512x4xf32>
    tpu.vector_store %arg10[%c0_20, %c20], %21 {strides = array<i32>} : memref<512x36xf32, #tpu.memory_space<vmem>>, vector<512x4xf32>,
    %23 = vector.extract_strided_slice %4 {offsets = [0, 2, 0, 0], sizes = [2, 16, 16, 4], strides = [1, 1, 1, 1]} : vector<2x18x18x4xf32> to vector<2x16x16x4xf32>
    %24 = vector.shape_cast %23 : vector<2x16x16x4xf32> to vector<512x4xf32>
    %c0_21 = arith.constant 0 : index
    %c24 = arith.constant 24 : index
    %25 = vector.load %arg10[%c0_21, %c24] : memref<512x36xf32, #tpu.memory_space<vmem>>, vector<512x4xf32>
    tpu.vector_store %arg10[%c0_21, %c24], %24 {strides = array<i32>} : memref<512x36xf32, #tpu.memory_space<vmem>>, vector<512x4xf32>,
    %26 = vector.extract_strided_slice %4 {offsets = [0, 2, 1, 0], sizes = [2, 16, 16, 4], strides = [1, 1, 1, 1]} : vector<2x18x18x4xf32> to vector<2x16x16x4xf32>
    %27 = vector.shape_cast %26 : vector<2x16x16x4xf32> to vector<512x4xf32>
    %c0_22 = arith.constant 0 : index
    %c28 = arith.constant 28 : index
    %28 = vector.load %arg10[%c0_22, %c28] : memref<512x36xf32, #tpu.memory_space<vmem>>, vector<512x4xf32>
    tpu.vector_store %arg10[%c0_22, %c28], %27 {strides = array<i32>} : memref<512x36xf32, #tpu.memory_space<vmem>>, vector<512x4xf32>,
    %29 = vector.extract_strided_slice %4 {offsets = [0, 2, 2, 0], sizes = [2, 16, 16, 4], strides = [1, 1, 1, 1]} : vector<2x18x18x4xf32> to vector<2x16x16x4xf32>
    %30 = vector.shape_cast %29 : vector<2x16x16x4xf32> to vector<512x4xf32>
    %c0_23 = arith.constant 0 : index
    %c32 = arith.constant 32 : index
    %31 = vector.load %arg10[%c0_23, %c32] : memref<512x36xf32, #tpu.memory_space<vmem>>, vector<512x4xf32>
    tpu.vector_store %arg10[%c0_23, %c32], %30 {strides = array<i32>} : memref<512x36xf32, #tpu.memory_space<vmem>>, vector<512x4xf32>,
    %c0_24 = arith.constant 0 : index
    %c0_25 = arith.constant 0 : index
    %32 = vector.load %arg10[%c0_24, %c0_25] : memref<512x36xf32, #tpu.memory_space<vmem>>, vector<512x36xf32>
    %c0_26 = arith.constant 0 : index
    %c0_27 = arith.constant 0 : index
    %33 = vector.load %arg1[%c0_26, %c0_27] : memref<36x4xf32, #tpu.memory_space<vmem>>, vector<36x4xf32>
    %cst_28 = arith.constant dense<0.000000e+00> : vector<512x4xf32>
    %34 = tpu.matmul %32, %33, %cst_28 {dimension_numbers = #tpu.dot_dimension_numbers<[1], [0], [0], [1], [0, 0, 1, 1], [], []>} : vector<512x36xf32>, vector<36x4xf32>, vector<512x4xf32> -> vector<512x4xf32>
    %cst_29 = arith.constant dense<0.000000e+00> : vector<4xf32>
    %35 = vector.multi_reduction <add>, %34, %cst_29 [0] : vector<512x4xf32> to vector<4xf32>
    %36 = vector.shape_cast %35 : vector<4xf32> to vector<1x4xf32>
    %cst_30 = arith.constant 5.120000e+02 : f32
    %37 = vector.broadcast %cst_30 : f32 to vector<1x4xf32>
    %38 = arith.divf %36, %37 : vector<1x4xf32>
    %39 = vector.broadcast %38 : vector<1x4xf32> to vector<512x4xf32>
    %40 = arith.subf %34, %39 : vector<512x4xf32>
    %41 = arith.mulf %40, %40 : vector<512x4xf32>
    %cst_31 = arith.constant dense<0.000000e+00> : vector<4xf32>
    %42 = vector.multi_reduction <add>, %41, %cst_31 [0] : vector<512x4xf32> to vector<4xf32>
    %43 = vector.shape_cast %42 : vector<4xf32> to vector<1x4xf32>
    %cst_32 = arith.constant 5.120000e+02 : f32
    %44 = vector.broadcast %cst_32 : f32 to vector<1x4xf32>
    %45 = arith.divf %43, %44 : vector<1x4xf32>
    %c0_33 = arith.constant 0 : index
    %c0_34 = arith.constant 0 : index
    %46 = vector.load %arg2[%c0_33, %c0_34] : memref<1x4xf32, #tpu.memory_space<vmem>>, vector<1x4xf32>
    %cst_35 = arith.constant 9.99999974E-6 : f32
    %47 = vector.broadcast %cst_35 : f32 to vector<1x4xf32>
    %48 = arith.addf %45, %47 : vector<1x4xf32>
    %49 = math.rsqrt %48 : vector<1x4xf32>
    %50 = arith.mulf %46, %49 : vector<1x4xf32>
    %51 = vector.broadcast %50 : vector<1x4xf32> to vector<512x4xf32>
    %52 = arith.mulf %40, %51 : vector<512x4xf32>
    %c0_36 = arith.constant 0 : index
    %c0_37 = arith.constant 0 : index
    %53 = vector.load %arg3[%c0_36, %c0_37] : memref<1x4xf32, #tpu.memory_space<vmem>>, vector<1x4xf32>
    %54 = vector.broadcast %53 : vector<1x4xf32> to vector<512x4xf32>
    %55 = arith.addf %52, %54 : vector<512x4xf32>
    %cst_38 = arith.constant 0.000000e+00 : f32
    %56 = vector.broadcast %cst_38 : f32 to vector<512x4xf32>
    %57 = arith.maximumf %55, %56 : vector<512x4xf32>
    %58 = vector.shape_cast %57 : vector<512x4xf32> to vector<2x16x16x4xf32>
    %cst_39 = arith.constant 0.000000e+00 : f32
    %59 = vector.broadcast %cst_39 : f32 to vector<2x18x18x4xf32>
    %c0_40 = arith.constant 0 : index
    %c0_41 = arith.constant 0 : index
    %c0_42 = arith.constant 0 : index
    %c0_43 = arith.constant 0 : index
    %60 = vector.load %arg9[%c0_40, %c0_41, %c0_42, %c0_43] : memref<2x18x18x4xf32, #tpu.memory_space<vmem>>, vector<2x18x18x4xf32>
    tpu.vector_store %arg9[%c0_40, %c0_41, %c0_42, %c0_43], %59 {strides = array<i32>} : memref<2x18x18x4xf32, #tpu.memory_space<vmem>>, vector<2x18x18x4xf32>,
    %c0_44 = arith.constant 0 : index
    %c1_45 = arith.constant 1 : index
    %c1_46 = arith.constant 1 : index
    %c0_47 = arith.constant 0 : index
    %61 = vector.load %arg9[%c0_44, %c1_45, %c1_46, %c0_47] : memref<2x18x18x4xf32, #tpu.memory_space<vmem>>, vector<2x16x16x4xf32>
    tpu.vector_store %arg9[%c0_44, %c1_45, %c1_46, %c0_47], %58 {strides = array<i32>} : memref<2x18x18x4xf32, #tpu.memory_space<vmem>>, vector<2x16x16x4xf32>,
    %c0_48 = arith.constant 0 : index
    %c0_49 = arith.constant 0 : index
    %c0_50 = arith.constant 0 : index
    %c0_51 = arith.constant 0 : index
    %62 = vector.load %arg9[%c0_48, %c0_49, %c0_50, %c0_51] : memref<2x18x18x4xf32, #tpu.memory_space<vmem>>, vector<2x18x18x4xf32>
    %63 = vector.extract_strided_slice %62 {offsets = [0, 0, 0, 0], sizes = [2, 16, 16, 4], strides = [1, 1, 1, 1]} : vector<2x18x18x4xf32> to vector<2x16x16x4xf32>
    %64 = vector.shape_cast %63 : vector<2x16x16x4xf32> to vector<512x4xf32>
    %c0_52 = arith.constant 0 : index
    %c0_53 = arith.constant 0 : index
    %65 = vector.load %arg11[%c0_52, %c0_53] : memref<512x36xf32, #tpu.memory_space<vmem>>, vector<512x4xf32>
    tpu.vector_store %arg11[%c0_52, %c0_53], %64 {strides = array<i32>} : memref<512x36xf32, #tpu.memory_space<vmem>>, vector<512x4xf32>,
    %66 = vector.extract_strided_slice %62 {offsets = [0, 0, 1, 0], sizes = [2, 16, 16, 4], strides = [1, 1, 1, 1]} : vector<2x18x18x4xf32> to vector<2x16x16x4xf32>
    %67 = vector.shape_cast %66 : vector<2x16x16x4xf32> to vector<512x4xf32>
    %c0_54 = arith.constant 0 : index
    %c4_55 = arith.constant 4 : index
    %68 = vector.load %arg11[%c0_54, %c4_55] : memref<512x36xf32, #tpu.memory_space<vmem>>, vector<512x4xf32>
    tpu.vector_store %arg11[%c0_54, %c4_55], %67 {strides = array<i32>} : memref<512x36xf32, #tpu.memory_space<vmem>>, vector<512x4xf32>,
    %69 = vector.extract_strided_slice %62 {offsets = [0, 0, 2, 0], sizes = [2, 16, 16, 4], strides = [1, 1, 1, 1]} : vector<2x18x18x4xf32> to vector<2x16x16x4xf32>
    %70 = vector.shape_cast %69 : vector<2x16x16x4xf32> to vector<512x4xf32>
    %c0_56 = arith.constant 0 : index
    %c8_57 = arith.constant 8 : index
    %71 = vector.load %arg11[%c0_56, %c8_57] : memref<512x36xf32, #tpu.memory_space<vmem>>, vector<512x4xf32>
    tpu.vector_store %arg11[%c0_56, %c8_57], %70 {strides = array<i32>} : memref<512x36xf32, #tpu.memory_space<vmem>>, vector<512x4xf32>,
    %72 = vector.extract_strided_slice %62 {offsets = [0, 1, 0, 0], sizes = [2, 16, 16, 4], strides = [1, 1, 1, 1]} : vector<2x18x18x4xf32> to vector<2x16x16x4xf32>
    %73 = vector.shape_cast %72 : vector<2x16x16x4xf32> to vector<512x4xf32>
    %c0_58 = arith.constant 0 : index
    %c12_59 = arith.constant 12 : index
    %74 = vector.load %arg11[%c0_58, %c12_59] : memref<512x36xf32, #tpu.memory_space<vmem>>, vector<512x4xf32>
    tpu.vector_store %arg11[%c0_58, %c12_59], %73 {strides = array<i32>} : memref<512x36xf32, #tpu.memory_space<vmem>>, vector<512x4xf32>,
    %75 = vector.extract_strided_slice %62 {offsets = [0, 1, 1, 0], sizes = [2, 16, 16, 4], strides = [1, 1, 1, 1]} : vector<2x18x18x4xf32> to vector<2x16x16x4xf32>
    %76 = vector.shape_cast %75 : vector<2x16x16x4xf32> to vector<512x4xf32>
    %c0_60 = arith.constant 0 : index
    %c16_61 = arith.constant 16 : index
    %77 = vector.load %arg11[%c0_60, %c16_61] : memref<512x36xf32, #tpu.memory_space<vmem>>, vector<512x4xf32>
    tpu.vector_store %arg11[%c0_60, %c16_61], %76 {strides = array<i32>} : memref<512x36xf32, #tpu.memory_space<vmem>>, vector<512x4xf32>,
    %78 = vector.extract_strided_slice %62 {offsets = [0, 1, 2, 0], sizes = [2, 16, 16, 4], strides = [1, 1, 1, 1]} : vector<2x18x18x4xf32> to vector<2x16x16x4xf32>
    %79 = vector.shape_cast %78 : vector<2x16x16x4xf32> to vector<512x4xf32>
    %c0_62 = arith.constant 0 : index
    %c20_63 = arith.constant 20 : index
    %80 = vector.load %arg11[%c0_62, %c20_63] : memref<512x36xf32, #tpu.memory_space<vmem>>, vector<512x4xf32>
    tpu.vector_store %arg11[%c0_62, %c20_63], %79 {strides = array<i32>} : memref<512x36xf32, #tpu.memory_space<vmem>>, vector<512x4xf32>,
    %81 = vector.extract_strided_slice %62 {offsets = [0, 2, 0, 0], sizes = [2, 16, 16, 4], strides = [1, 1, 1, 1]} : vector<2x18x18x4xf32> to vector<2x16x16x4xf32>
    %82 = vector.shape_cast %81 : vector<2x16x16x4xf32> to vector<512x4xf32>
    %c0_64 = arith.constant 0 : index
    %c24_65 = arith.constant 24 : index
    %83 = vector.load %arg11[%c0_64, %c24_65] : memref<512x36xf32, #tpu.memory_space<vmem>>, vector<512x4xf32>
    tpu.vector_store %arg11[%c0_64, %c24_65], %82 {strides = array<i32>} : memref<512x36xf32, #tpu.memory_space<vmem>>, vector<512x4xf32>,
    %84 = vector.extract_strided_slice %62 {offsets = [0, 2, 1, 0], sizes = [2, 16, 16, 4], strides = [1, 1, 1, 1]} : vector<2x18x18x4xf32> to vector<2x16x16x4xf32>
    %85 = vector.shape_cast %84 : vector<2x16x16x4xf32> to vector<512x4xf32>
    %c0_66 = arith.constant 0 : index
    %c28_67 = arith.constant 28 : index
    %86 = vector.load %arg11[%c0_66, %c28_67] : memref<512x36xf32, #tpu.memory_space<vmem>>, vector<512x4xf32>
    tpu.vector_store %arg11[%c0_66, %c28_67], %85 {strides = array<i32>} : memref<512x36xf32, #tpu.memory_space<vmem>>, vector<512x4xf32>,
    %87 = vector.extract_strided_slice %62 {offsets = [0, 2, 2, 0], sizes = [2, 16, 16, 4], strides = [1, 1, 1, 1]} : vector<2x18x18x4xf32> to vector<2x16x16x4xf32>
    %88 = vector.shape_cast %87 : vector<2x16x16x4xf32> to vector<512x4xf32>
    %c0_68 = arith.constant 0 : index
    %c32_69 = arith.constant 32 : index
    %89 = vector.load %arg11[%c0_68, %c32_69] : memref<512x36xf32, #tpu.memory_space<vmem>>, vector<512x4xf32>
    tpu.vector_store %arg11[%c0_68, %c32_69], %88 {strides = array<i32>} : memref<512x36xf32, #tpu.memory_space<vmem>>, vector<512x4xf32>,
    %c0_70 = arith.constant 0 : index
    %c0_71 = arith.constant 0 : index
    %90 = vector.load %arg11[%c0_70, %c0_71] : memref<512x36xf32, #tpu.memory_space<vmem>>, vector<512x36xf32>
    %c0_72 = arith.constant 0 : index
    %c0_73 = arith.constant 0 : index
    %91 = vector.load %arg4[%c0_72, %c0_73] : memref<36x8xf32, #tpu.memory_space<vmem>>, vector<36x8xf32>
    %cst_74 = arith.constant dense<0.000000e+00> : vector<512x8xf32>
    %92 = tpu.matmul %90, %91, %cst_74 {dimension_numbers = #tpu.dot_dimension_numbers<[1], [0], [0], [1], [0, 0, 1, 1], [], []>} : vector<512x36xf32>, vector<36x8xf32>, vector<512x8xf32> -> vector<512x8xf32>
    %cst_75 = arith.constant dense<0.000000e+00> : vector<8xf32>
    %93 = vector.multi_reduction <add>, %92, %cst_75 [0] : vector<512x8xf32> to vector<8xf32>
    %94 = vector.shape_cast %93 : vector<8xf32> to vector<1x8xf32>
    %cst_76 = arith.constant 5.120000e+02 : f32
    %95 = vector.broadcast %cst_76 : f32 to vector<1x8xf32>
    %96 = arith.divf %94, %95 : vector<1x8xf32>
    %97 = vector.broadcast %96 : vector<1x8xf32> to vector<512x8xf32>
    %98 = arith.subf %92, %97 : vector<512x8xf32>
    %99 = arith.mulf %98, %98 : vector<512x8xf32>
    %cst_77 = arith.constant dense<0.000000e+00> : vector<8xf32>
    %100 = vector.multi_reduction <add>, %99, %cst_77 [0] : vector<512x8xf32> to vector<8xf32>
    %101 = vector.shape_cast %100 : vector<8xf32> to vector<1x8xf32>
    %cst_78 = arith.constant 5.120000e+02 : f32
    %102 = vector.broadcast %cst_78 : f32 to vector<1x8xf32>
    %103 = arith.divf %101, %102 : vector<1x8xf32>
    %c0_79 = arith.constant 0 : index
    %c0_80 = arith.constant 0 : index
    %104 = vector.load %arg5[%c0_79, %c0_80] : memref<1x8xf32, #tpu.memory_space<vmem>>, vector<1x8xf32>
    %cst_81 = arith.constant 9.99999974E-6 : f32
    %105 = vector.broadcast %cst_81 : f32 to vector<1x8xf32>
    %106 = arith.addf %103, %105 : vector<1x8xf32>
    %107 = math.rsqrt %106 : vector<1x8xf32>
    %108 = arith.mulf %104, %107 : vector<1x8xf32>
    %109 = vector.broadcast %108 : vector<1x8xf32> to vector<512x8xf32>
    %110 = arith.mulf %98, %109 : vector<512x8xf32>
    %c0_82 = arith.constant 0 : index
    %c0_83 = arith.constant 0 : index
    %111 = vector.load %arg6[%c0_82, %c0_83] : memref<1x8xf32, #tpu.memory_space<vmem>>, vector<1x8xf32>
    %112 = vector.broadcast %111 : vector<1x8xf32> to vector<512x8xf32>
    %113 = arith.addf %110, %112 : vector<512x8xf32>
    %cst_84 = arith.constant 0.000000e+00 : f32
    %114 = vector.broadcast %cst_84 : f32 to vector<512x8xf32>
    %115 = arith.maximumf %113, %114 : vector<512x8xf32>
    %c0_85 = arith.constant 0 : index
    %c0_86 = arith.constant 0 : index
    %c0_87 = arith.constant 0 : index
    %c0_88 = arith.constant 0 : index
    %116 = vector.load %arg0[%c0_85, %c0_86, %c0_87, %c0_88] : memref<2x16x16x4xf32, #tpu.memory_space<vmem>>, vector<2x16x16x4xf32>
    %117 = vector.shape_cast %116 : vector<2x16x16x4xf32> to vector<512x4xf32>
    %118 = tpu.transpose %117, [1, 0] : vector<512x4xf32> -> vector<4x512xf32>
    %c0_89 = arith.constant 0 : index
    %c0_90 = arith.constant 0 : index
    %119 = vector.load %arg7[%c0_89, %c0_90] : memref<12x512xf32, #tpu.memory_space<vmem>>, vector<4x512xf32>
    tpu.vector_store %arg7[%c0_89, %c0_90], %118 {strides = array<i32>} : memref<12x512xf32, #tpu.memory_space<vmem>>, vector<4x512xf32>,
    %120 = tpu.transpose %115, [1, 0] : vector<512x8xf32> -> vector<8x512xf32>
    %c4_91 = arith.constant 4 : index
    %c0_92 = arith.constant 0 : index
    %121 = vector.load %arg7[%c4_91, %c0_92] : memref<12x512xf32, #tpu.memory_space<vmem>>, vector<8x512xf32>
    tpu.vector_store %arg7[%c4_91, %c0_92], %120 {strides = array<i32>} : memref<12x512xf32, #tpu.memory_space<vmem>>, vector<8x512xf32>,
    return
  }
}

</mosaic_0001>

<llo_original>
// kernel: conv_block2_forward.1
$region0: #{conv_block2_forward.1}
  #allocation0 [shape = 'u32[]', space=smem, size = 0x4, offset = 0x4, fixed_abs, tag = 'smem constant byte address 0x4 - core index']
  #allocation1 [shape = 'u32[72,128]{1,0:T(1,128)}', space=vmem, size = 0x9000, scoped, tag = 'internal scratch']
  #allocation2 [shape = 'f32[2,18,18,4]{3,2,1,0:T(8,128)}', space=vmem, size = 0x6c000, scoped, tag = 'scratch operand']
  #allocation3 [shape = 'f32[2,18,18,4]{3,2,1,0:T(8,128)}', space=vmem, size = 0x6c000, scoped, tag = 'scratch operand']
  #allocation4 [shape = 'f32[512,36]{1,0:T(8,128)}', space=vmem, size = 0x40000, scoped, tag = 'scratch operand']
  #allocation5 [shape = 'f32[512,36]{1,0:T(8,128)}', space=vmem, size = 0x40000, scoped, tag = 'scratch operand']
  %s0 = inlined_call_operand.vmem [shape: f32[2,16,16,4], index: 0, kind: input, shape index: {}]
  %s1 = inlined_call_operand.vmem [shape: f32[36,4], index: 1, kind: input, shape index: {}]
  %s2 = inlined_call_operand.vmem [shape: f32[1,4], index: 2, kind: input, shape index: {}]
  %s3 = inlined_call_operand.vmem [shape: f32[1,4], index: 3, kind: input, shape index: {}]
  %s4 = inlined_call_operand.vmem [shape: f32[36,8], index: 4, kind: input, shape index: {}]
  %s5 = inlined_call_operand.vmem [shape: f32[1,8], index: 5, kind: input, shape index: {}]
  %s6 = inlined_call_operand.vmem [shape: f32[1,8], index: 6, kind: input, shape index: {}]
  %s7 = inlined_call_operand.vmem [shape: f32[12,512], index: 7, kind: output, shape index: {}]
  %s8 = sld [smem:[#allocation0]]
  $region38: #{conv_block2_forward.1} parent=0
    _
  %s10 = ssub.s32 1, %s8
  %s11 = scalar_select 0, %s10, %s8
  // Predicated region
  $region2: #{conv_block2_forward.1} parent=0 // pred_check
    _
  $region3: #{conv_block2_forward.1} parent=0 // pred_check_branch
    %13 = sbr.rel (0) target = $region5
  $region4: #{conv_block2_forward.1} parent=0 // pred_region
    _
  $region5: #{conv_block2_forward.1} parent=0 // pred_fallthru
    _
  // Predicated region
  $region6: #{conv_block2_forward.1} parent=0 // pred_check
    _
  $region7: #{conv_block2_forward.1} parent=0 // pred_check_branch
    %15 = sbr.rel (0) target = $region9
  $region8: #{conv_block2_forward.1} parent=0 // pred_region
    _
  $region9: #{conv_block2_forward.1} parent=0 // pred_fallthru
    _
  // Predicated region
  $region10: #{conv_block2_forward.1} parent=0 // pred_check
    _
  $region11: #{conv_block2_forward.1} parent=0 // pred_check_branch
    %17 = sbr.rel (0) target = $region13
  $region12: #{conv_block2_forward.1} parent=0 // pred_region
    _
  $region13: #{conv_block2_forward.1} parent=0 // pred_fallthru
    _
  // Predicated region
  $region14: #{conv_block2_forward.1} parent=0 // pred_check
    _
  $region15: #{conv_block2_forward.1} parent=0 // pred_check_branch
    %19 = sbr.rel (0) target = $region17
  $region16: #{conv_block2_forward.1} parent=0 // pred_region
    _
  $region17: #{conv_block2_forward.1} parent=0 // pred_fallthru
    _
  // Predicated region
  $region18: #{conv_block2_forward.1} parent=0 // pred_check
    _
  $region19: #{conv_block2_forward.1} parent=0 // pred_check_branch
    %21 = sbr.rel (0) target = $region21
  $region20: #{conv_block2_forward.1} parent=0 // pred_region
    _
  $region21: #{conv_block2_forward.1} parent=0 // pred_fallthru
    _
  // Predicated region
  $region22: #{conv_block2_forward.1} parent=0 // pred_check
    _
  $region23: #{conv_block2_forward.1} parent=0 // pred_check_branch
    %23 = sbr.rel (0) target = $region25
  $region24: #{conv_block2_forward.1} parent=0 // pred_region
    _
  $region25: #{conv_block2_forward.1} parent=0 // pred_fallthru
    _
  // Predicated region
  $region26: #{conv_block2_forward.1} parent=0 // pred_check
    _
  $region27: #{conv_block2_forward.1} parent=0 // pred_check_branch
    %25 = sbr.rel (0) target = $region29
  $region28: #{conv_block2_forward.1} parent=0 // pred_region
    _
  $region29: #{conv_block2_forward.1} parent=0 // pred_fallthru
    _
  %v26 = vld [vmem:[%s0] sm:$0xff]
  %v27 = vld [vmem:[%s0 + $0x8] sm:$0xff]
  %v28 = vld [vmem:[%s0 + $0x10] sm:$0xff]
  %v29 = vld [vmem:[%s0 + $0x18] sm:$0xff]
  %v30 = vld [vmem:[%s0 + $0x20] sm:$0xff]
  %v31 = vld [vmem:[%s0 + $0x28] sm:$0xff]
  %v32 = vld [vmem:[%s0 + $0x30] sm:$0xff]
  %v33 = vld [vmem:[%s0 + $0x38] sm:$0xff]
  %v34 = vld [vmem:[%s0 + $0x40] sm:$0xff]
  %v35 = vld [vmem:[%s0 + $0x48] sm:$0xff]
  %v36 = vld [vmem:[%s0 + $0x50] sm:$0xff]
  %v37 = vld [vmem:[%s0 + $0x58] sm:$0xff]
  %v38 = vld [vmem:[%s0 + $0x60] sm:$0xff]
  %v39 = vld [vmem:[%s0 + $0x68] sm:$0xff]
  %v40 = vld [vmem:[%s0 + $0x70] sm:$0xff]
  %v41 = vld [vmem:[%s0 + $0x78] sm:$0xff]
  %v42 = vld [vmem:[%s0 + $0x80] sm:$0xff]
  %v43 = vld [vmem:[%s0 + $0x88] sm:$0xff]
  %v44 = vld [vmem:[%s0 + $0x90] sm:$0xff]
  %v45 = vld [vmem:[%s0 + $0x98] sm:$0xff]
  %v46 = vld [vmem:[%s0 + $0xa0] sm:$0xff]
  %v47 = vld [vmem:[%s0 + $0xa8] sm:$0xff]
  %v48 = vld [vmem:[%s0 + $0xb0] sm:$0xff]
  %v49 = vld [vmem:[%s0 + $0xb8] sm:$0xff]
  %v50 = vld [vmem:[%s0 + $0xc0] sm:$0xff]
  %v51 = vld [vmem:[%s0 + $0xc8] sm:$0xff]
  %v52 = vld [vmem:[%s0 + $0xd0] sm:$0xff]
  %v53 = vld [vmem:[%s0 + $0xd8] sm:$0xff]
  %v54 = vld [vmem:[%s0 + $0xe0] sm:$0xff]
  %v55 = vld [vmem:[%s0 + $0xe8] sm:$0xff]
  %v56 = vld [vmem:[%s0 + $0xf0] sm:$0xff]
  %v57 = vld [vmem:[%s0 + $0xf8] sm:$0xff]
  %v58 = vld [vmem:[%s0 + $0x100] sm:$0xff]
  %v59 = vld [vmem:[%s0 + $0x108] sm:$0xff]
  %v60 = vld [vmem:[%s0 + $0x110] sm:$0xff]
  %v61 = vld [vmem:[%s0 + $0x118] sm:$0xff]
  %v62 = vld [vmem:[%s0 + $0x120] sm:$0xff]
  %v63 = vld [vmem:[%s0 + $0x128] sm:$0xff]
  %v64 = vld [vmem:[%s0 + $0x130] sm:$0xff]
  %v65 = vld [vmem:[%s0 + $0x138] sm:$0xff]
  %v66 = vld [vmem:[%s0 + $0x140] sm:$0xff]
  %v67 = vld [vmem:[%s0 + $0x148] sm:$0xff]
  %v68 = vld [vmem:[%s0 + $0x150] sm:$0xff]
  %v69 = vld [vmem:[%s0 + $0x158] sm:$0xff]
  %v70 = vld [vmem:[%s0 + $0x160] sm:$0xff]
  %v71 = vld [vmem:[%s0 + $0x168] sm:$0xff]
  %v72 = vld [vmem:[%s0 + $0x170] sm:$0xff]
  %v73 = vld [vmem:[%s0 + $0x178] sm:$0xff]
  %v74 = vld [vmem:[%s0 + $0x180] sm:$0xff]
  %v75 = vld [vmem:[%s0 + $0x188] sm:$0xff]
  %v76 = vld [vmem:[%s0 + $0x190] sm:$0xff]
  %v77 = vld [vmem:[%s0 + $0x198] sm:$0xff]
  %v78 = vld [vmem:[%s0 + $0x1a0] sm:$0xff]
  %v79 = vld [vmem:[%s0 + $0x1a8] sm:$0xff]
  %v80 = vld [vmem:[%s0 + $0x1b0] sm:$0xff]
  %v81 = vld [vmem:[%s0 + $0x1b8] sm:$0xff]
  %v82 = vld [vmem:[%s0 + $0x1c0] sm:$0xff]
  %v83 = vld [vmem:[%s0 + $0x1c8] sm:$0xff]
  %v84 = vld [vmem:[%s0 + $0x1d0] sm:$0xff]
  %v85 = vld [vmem:[%s0 + $0x1d8] sm:$0xff]
  %v86 = vld [vmem:[%s0 + $0x1e0] sm:$0xff]
  %v87 = vld [vmem:[%s0 + $0x1e8] sm:$0xff]
  %v88 = vld [vmem:[%s0 + $0x1f0] sm:$0xff]
  %v89 = vld [vmem:[%s0 + $0x1f8] sm:$0xff]
  %vm90 = vcmask 31744
  %91 = vst.msk [vmem:[#allocation2] sm:$0xff] %vm90, 0.0
  %92 = vst.msk [vmem:[#allocation2 + $0x8] sm:$0xff] %vm90, 0.0
  %vm93 = vcmask 25600
  %94 = vst.msk [vmem:[#allocation2 + $0x10] sm:$0x3] %vm93, 0.0
  %95 = vst.msk [vmem:[#allocation2 + $0x18] sm:$0xff] %vm90, 0.0
  %96 = vst.msk [vmem:[#allocation2 + $0x20] sm:$0xff] %vm90, 0.0
  %97 = vst.msk [vmem:[#allocation2 + $0x28] sm:$0x3] %vm93, 0.0
  %98 = vst.msk [vmem:[#allocation2 + $0x30] sm:$0xff] %vm90, 0.0
  %99 = vst.msk [vmem:[#allocation2 + $0x38] sm:$0xff] %vm90, 0.0
  %100 = vst.msk [vmem:[#allocation2 + $0x40] sm:$0x3] %vm93, 0.0
  %101 = vst.msk [vmem:[#allocation2 + $0x48] sm:$0xff] %vm90, 0.0
  %102 = vst.msk [vmem:[#allocation2 + $0x50] sm:$0xff] %vm90, 0.0
  %103 = vst.msk [vmem:[#allocation2 + $0x58] sm:$0x3] %vm93, 0.0
  %104 = vst.msk [vmem:[#allocation2 + $0x60] sm:$0xff] %vm90, 0.0
  %105 = vst.msk [vmem:[#allocation2 + $0x68] sm:$0xff] %vm90, 0.0
  %106 = vst.msk [vmem:[#allocation2 + $0x70] sm:$0x3] %vm93, 0.0
  %107 = vst.msk [vmem:[#allocation2 + $0x78] sm:$0xff] %vm90, 0.0
  %108 = vst.msk [vmem:[#allocation2 + $0x80] sm:$0xff] %vm90, 0.0
  %109 = vst.msk [vmem:[#allocation2 + $0x88] sm:$0x3] %vm93, 0.0
  %110 = vst.msk [vmem:[#allocation2 + $0x90] sm:$0xff] %vm90, 0.0
  %111 = vst.msk [vmem:[#allocation2 + $0x98] sm:$0xff] %vm90, 0.0
  %112 = vst.msk [vmem:[#allocation2 + $0xa0] sm:$0x3] %vm93, 0.0
  %113 = vst.msk [vmem:[#allocation2 + $0xa8] sm:$0xff] %vm90, 0.0
  %114 = vst.msk [vmem:[#allocation2 + $0xb0] sm:$0xff] %vm90, 0.0
  %115 = vst.msk [vmem:[#allocation2 + $0xb8] sm:$0x3] %vm93, 0.0
  %116 = vst.msk [vmem:[#allocation2 + $0xc0] sm:$0xff] %vm90, 0.0
  %117 = vst.msk [vmem:[#allocation2 + $0xc8] sm:$0xff] %vm90, 0.0
  %118 = vst.msk [vmem:[#allocation2 + $0xd0] sm:$0x3] %vm93, 0.0
  %119 = vst.msk [vmem:[#allocation2 + $0xd8] sm:$0xff] %vm90, 0.0
  %120 = vst.msk [vmem:[#allocation2 + $0xe0] sm:$0xff] %vm90, 0.0
  %121 = vst.msk [vmem:[#allocation2 + $0xe8] sm:$0x3] %vm93, 0.0
  %122 = vst.msk [vmem:[#allocation2 + $0xf0] sm:$0xff] %vm90, 0.0
  %123 = vst.msk [vmem:[#allocation2 + $0xf8] sm:$0xff] %vm90, 0.0
  %124 = vst.msk [vmem:[#allocation2 + $0x100] sm:$0x3] %vm93, 0.0
  %125 = vst.msk [vmem:[#allocation2 + $0x108] sm:$0xff] %vm90, 0.0
  %126 = vst.msk [vmem:[#allocation2 + $0x110] sm:$0xff] %vm90, 0.0
  %127 = vst.msk [vmem:[#allocation2 + $0x118] sm:$0x3] %vm93, 0.0
  %128 = vst.msk [vmem:[#allocation2 + $0x120] sm:$0xff] %vm90, 0.0
  %129 = vst.msk [vmem:[#allocation2 + $0x128] sm:$0xff] %vm90, 0.0
  %130 = vst.msk [vmem:[#allocation2 + $0x130] sm:$0x3] %vm93, 0.0
  %131 = vst.msk [vmem:[#allocation2 + $0x138] sm:$0xff] %vm90, 0.0
  %132 = vst.msk [vmem:[#allocation2 + $0x140] sm:$0xff] %vm90, 0.0
  %133 = vst.msk [vmem:[#allocation2 + $0x148] sm:$0x3] %vm93, 0.0
  %134 = vst.msk [vmem:[#allocation2 + $0x150] sm:$0xff] %vm90, 0.0
  %135 = vst.msk [vmem:[#allocation2 + $0x158] sm:$0xff] %vm90, 0.0
  %136 = vst.msk [vmem:[#allocation2 + $0x160] sm:$0x3] %vm93, 0.0
  %137 = vst.msk [vmem:[#allocation2 + $0x168] sm:$0xff] %vm90, 0.0
  %138 = vst.msk [vmem:[#allocation2 + $0x170] sm:$0xff] %vm90, 0.0
  %139 = vst.msk [vmem:[#allocation2 + $0x178] sm:$0x3] %vm93, 0.0
  %140 = vst.msk [vmem:[#allocation2 + $0x180] sm:$0xff] %vm90, 0.0
  %141 = vst.msk [vmem:[#allocation2 + $0x188] sm:$0xff] %vm90, 0.0
  %142 = vst.msk [vmem:[#allocation2 + $0x190] sm:$0x3] %vm93, 0.0
  %143 = vst.msk [vmem:[#allocation2 + $0x198] sm:$0xff] %vm90, 0.0
  %144 = vst.msk [vmem:[#allocation2 + $0x1a0] sm:$0xff] %vm90, 0.0
  %145 = vst.msk [vmem:[#allocation2 + $0x1a8] sm:$0x3] %vm93, 0.0
  %146 = vst.msk [vmem:[#allocation2 + $0x1b0] sm:$0xff] %vm90, 0.0
  %147 = vst.msk [vmem:[#allocation2 + $0x1b8] sm:$0xff] %vm90, 0.0
  %148 = vst.msk [vmem:[#allocation2 + $0x1c0] sm:$0x3] %vm93, 0.0
  %149 = vst.msk [vmem:[#allocation2 + $0x1c8] sm:$0xff] %vm90, 0.0
  %150 = vst.msk [vmem:[#allocation2 + $0x1d0] sm:$0xff] %vm90, 0.0
  %151 = vst.msk [vmem:[#allocation2 + $0x1d8] sm:$0x3] %vm93, 0.0
  %152 = vst.msk [vmem:[#allocation2 + $0x1e0] sm:$0xff] %vm90, 0.0
  %153 = vst.msk [vmem:[#allocation2 + $0x1e8] sm:$0xff] %vm90, 0.0
  %154 = vst.msk [vmem:[#allocation2 + $0x1f0] sm:$0x3] %vm93, 0.0
  %155 = vst.msk [vmem:[#allocation2 + $0x1f8] sm:$0xff] %vm90, 0.0
  %156 = vst.msk [vmem:[#allocation2 + $0x200] sm:$0xff] %vm90, 0.0
  %157 = vst.msk [vmem:[#allocation2 + $0x208] sm:$0x3] %vm93, 0.0
  %158 = vst.msk [vmem:[#allocation2 + $0x210] sm:$0xff] %vm90, 0.0
  %159 = vst.msk [vmem:[#allocation2 + $0x218] sm:$0xff] %vm90, 0.0
  %160 = vst.msk [vmem:[#allocation2 + $0x220] sm:$0x3] %vm93, 0.0
  %161 = vst.msk [vmem:[#allocation2 + $0x228] sm:$0xff] %vm90, 0.0
  %162 = vst.msk [vmem:[#allocation2 + $0x230] sm:$0xff] %vm90, 0.0
  %163 = vst.msk [vmem:[#allocation2 + $0x238] sm:$0x3] %vm93, 0.0
  %164 = vst.msk [vmem:[#allocation2 + $0x240] sm:$0xff] %vm90, 0.0
  %165 = vst.msk [vmem:[#allocation2 + $0x248] sm:$0xff] %vm90, 0.0
  %166 = vst.msk [vmem:[#allocation2 + $0x250] sm:$0x3] %vm93, 0.0
  %167 = vst.msk [vmem:[#allocation2 + $0x258] sm:$0xff] %vm90, 0.0
  %168 = vst.msk [vmem:[#allocation2 + $0x260] sm:$0xff] %vm90, 0.0
  %169 = vst.msk [vmem:[#allocation2 + $0x268] sm:$0x3] %vm93, 0.0
  %170 = vst.msk [vmem:[#allocation2 + $0x270] sm:$0xff] %vm90, 0.0
  %171 = vst.msk [vmem:[#allocation2 + $0x278] sm:$0xff] %vm90, 0.0
  %172 = vst.msk [vmem:[#allocation2 + $0x280] sm:$0x3] %vm93, 0.0
  %173 = vst.msk [vmem:[#allocation2 + $0x288] sm:$0xff] %vm90, 0.0
  %174 = vst.msk [vmem:[#allocation2 + $0x290] sm:$0xff] %vm90, 0.0
  %175 = vst.msk [vmem:[#allocation2 + $0x298] sm:$0x3] %vm93, 0.0
  %176 = vst.msk [vmem:[#allocation2 + $0x2a0] sm:$0xff] %vm90, 0.0
  %177 = vst.msk [vmem:[#allocation2 + $0x2a8] sm:$0xff] %vm90, 0.0
  %178 = vst.msk [vmem:[#allocation2 + $0x2b0] sm:$0x3] %vm93, 0.0
  %179 = vst.msk [vmem:[#allocation2 + $0x2b8] sm:$0xff] %vm90, 0.0
  %180 = vst.msk [vmem:[#allocation2 + $0x2c0] sm:$0xff] %vm90, 0.0
  %181 = vst.msk [vmem:[#allocation2 + $0x2c8] sm:$0x3] %vm93, 0.0
  %182 = vst.msk [vmem:[#allocation2 + $0x2d0] sm:$0xff] %vm90, 0.0
  %183 = vst.msk [vmem:[#allocation2 + $0x2d8] sm:$0xff] %vm90, 0.0
  %184 = vst.msk [vmem:[#allocation2 + $0x2e0] sm:$0x3] %vm93, 0.0
  %185 = vst.msk [vmem:[#allocation2 + $0x2e8] sm:$0xff] %vm90, 0.0
  %186 = vst.msk [vmem:[#allocation2 + $0x2f0] sm:$0xff] %vm90, 0.0
  %187 = vst.msk [vmem:[#allocation2 + $0x2f8] sm:$0x3] %vm93, 0.0
  %188 = vst.msk [vmem:[#allocation2 + $0x300] sm:$0xff] %vm90, 0.0
  %189 = vst.msk [vmem:[#allocation2 + $0x308] sm:$0xff] %vm90, 0.0
  %190 = vst.msk [vmem:[#allocation2 + $0x310] sm:$0x3] %vm93, 0.0
  %191 = vst.msk [vmem:[#allocation2 + $0x318] sm:$0xff] %vm90, 0.0
  %192 = vst.msk [vmem:[#allocation2 + $0x320] sm:$0xff] %vm90, 0.0
  %193 = vst.msk [vmem:[#allocation2 + $0x328] sm:$0x3] %vm93, 0.0
  %194 = vst.msk [vmem:[#allocation2 + $0x330] sm:$0xff] %vm90, 0.0
  %195 = vst.msk [vmem:[#allocation2 + $0x338] sm:$0xff] %vm90, 0.0
  %196 = vst.msk [vmem:[#allocation2 + $0x340] sm:$0x3] %vm93, 0.0
  %197 = vst.msk [vmem:[#allocation2 + $0x348] sm:$0xff] %vm90, 0.0
  %198 = vst.msk [vmem:[#allocation2 + $0x350] sm:$0xff] %vm90, 0.0
  %199 = vst.msk [vmem:[#allocation2 + $0x358] sm:$0x3] %vm93, 0.0
  %s200 = scalar_lea.vmem [#allocation2], 24
  %201 = vst.msk [vmem:[%s200 + $0x1] sm:$0xff] %vm90, %v26
  %202 = vst.msk [vmem:[%s200 + $0x9] sm:$0xff] %vm90, %v27
  %203 = vst.msk [vmem:[%s200 + $0x19] sm:$0xff] %vm90, %v28
  %204 = vst.msk [vmem:[%s200 + $0x21] sm:$0xff] %vm90, %v29
  %205 = vst.msk [vmem:[%s200 + $0x31] sm:$0xff] %vm90, %v30
  %206 = vst.msk [vmem:[%s200 + $0x39] sm:$0xff] %vm90, %v31
  %207 = vst.msk [vmem:[%s200 + $0x49] sm:$0xff] %vm90, %v32
  %208 = vst.msk [vmem:[%s200 + $0x51] sm:$0xff] %vm90, %v33
  %209 = vst.msk [vmem:[%s200 + $0x61] sm:$0xff] %vm90, %v34
  %210 = vst.msk [vmem:[%s200 + $0x69] sm:$0xff] %vm90, %v35
  %211 = vst.msk [vmem:[%s200 + $0x79] sm:$0xff] %vm90, %v36
  %212 = vst.msk [vmem:[%s200 + $0x81] sm:$0xff] %vm90, %v37
  %213 = vst.msk [vmem:[%s200 + $0x91] sm:$0xff] %vm90, %v38
  %214 = vst.msk [vmem:[%s200 + $0x99] sm:$0xff] %vm90, %v39
  %215 = vst.msk [vmem:[%s200 + $0xa9] sm:$0xff] %vm90, %v40
  %216 = vst.msk [vmem:[%s200 + $0xb1] sm:$0xff] %vm90, %v41
  %217 = vst.msk [vmem:[%s200 + $0xc1] sm:$0xff] %vm90, %v42
  %218 = vst.msk [vmem:[%s200 + $0xc9] sm:$0xff] %vm90, %v43
  %219 = vst.msk [vmem:[%s200 + $0xd9] sm:$0xff] %vm90, %v44
  %220 = vst.msk [vmem:[%s200 + $0xe1] sm:$0xff] %vm90, %v45
  %221 = vst.msk [vmem:[%s200 + $0xf1] sm:$0xff] %vm90, %v46
  %222 = vst.msk [vmem:[%s200 + $0xf9] sm:$0xff] %vm90, %v47
  %223 = vst.msk [vmem:[%s200 + $0x109] sm:$0xff] %vm90, %v48
  %224 = vst.msk [vmem:[%s200 + $0x111] sm:$0xff] %vm90, %v49
  %225 = vst.msk [vmem:[%s200 + $0x121] sm:$0xff] %vm90, %v50
  %226 = vst.msk [vmem:[%s200 + $0x129] sm:$0xff] %vm90, %v51
  %227 = vst.msk [vmem:[%s200 + $0x139] sm:$0xff] %vm90, %v52
  %228 = vst.msk [vmem:[%s200 + $0x141] sm:$0xff] %vm90, %v53
  %229 = vst.msk [vmem:[%s200 + $0x151] sm:$0xff] %vm90, %v54
  %230 = vst.msk [vmem:[%s200 + $0x159] sm:$0xff] %vm90, %v55
  %231 = vst.msk [vmem:[%s200 + $0x169] sm:$0xff] %vm90, %v56
  %232 = vst.msk [vmem:[%s200 + $0x171] sm:$0xff] %vm90, %v57
  %233 = vst.msk [vmem:[%s200 + $0x1b1] sm:$0xff] %vm90, %v58
  %234 = vst.msk [vmem:[%s200 + $0x1b9] sm:$0xff] %vm90, %v59
  %235 = vst.msk [vmem:[%s200 + $0x1c9] sm:$0xff] %vm90, %v60
  %236 = vst.msk [vmem:[%s200 + $0x1d1] sm:$0xff] %vm90, %v61
  %237 = vst.msk [vmem:[%s200 + $0x1e1] sm:$0xff] %vm90, %v62
  %238 = vst.msk [vmem:[%s200 + $0x1e9] sm:$0xff] %vm90, %v63
  %239 = vst.msk [vmem:[%s200 + $0x1f9] sm:$0xff] %vm90, %v64
  %240 = vst.msk [vmem:[%s200 + $0x201] sm:$0xff] %vm90, %v65
  %241 = vst.msk [vmem:[%s200 + $0x211] sm:$0xff] %vm90, %v66
  %242 = vst.msk [vmem:[%s200 + $0x219] sm:$0xff] %vm90, %v67
  %243 = vst.msk [vmem:[%s200 + $0x229] sm:$0xff] %vm90, %v68
  %244 = vst.msk [vmem:[%s200 + $0x231] sm:$0xff] %vm90, %v69
  %245 = vst.msk [vmem:[%s200 + $0x241] sm:$0xff] %vm90, %v70
  %246 = vst.msk [vmem:[%s200 + $0x249] sm:$0xff] %vm90, %v71
  %247 = vst.msk [vmem:[%s200 + $0x259] sm:$0xff] %vm90, %v72
  %248 = vst.msk [vmem:[%s200 + $0x261] sm:$0xff] %vm90, %v73
  %249 = vst.msk [vmem:[%s200 + $0x271] sm:$0xff] %vm90, %v74
  %250 = vst.msk [vmem:[%s200 + $0x279] sm:$0xff] %vm90, %v75
  %251 = vst.msk [vmem:[%s200 + $0x289] sm:$0xff] %vm90, %v76
  %252 = vst.msk [vmem:[%s200 + $0x291] sm:$0xff] %vm90, %v77
  %253 = vst.msk [vmem:[%s200 + $0x2a1] sm:$0xff] %vm90, %v78
  %254 = vst.msk [vmem:[%s200 + $0x2a9] sm:$0xff] %vm90, %v79
  %255 = vst.msk [vmem:[%s200 + $0x2b9] sm:$0xff] %vm90, %v80
  %256 = vst.msk [vmem:[%s200 + $0x2c1] sm:$0xff] %vm90, %v81
  %257 = vst.msk [vmem:[%s200 + $0x2d1] sm:$0xff] %vm90, %v82
  %258 = vst.msk [vmem:[%s200 + $0x2d9] sm:$0xff] %vm90, %v83
  %259 = vst.msk [vmem:[%s200 + $0x2e9] sm:$0xff] %vm90, %v84
  %260 = vst.msk [vmem:[%s200 + $0x2f1] sm:$0xff] %vm90, %v85
  %261 = vst.msk [vmem:[%s200 + $0x301] sm:$0xff] %vm90, %v86
  %262 = vst.msk [vmem:[%s200 + $0x309] sm:$0xff] %vm90, %v87
  %263 = vst.msk [vmem:[%s200 + $0x319] sm:$0xff] %vm90, %v88
  %264 = vst.msk [vmem:[%s200 + $0x321] sm:$0xff] %vm90, %v89
  %v265 = vld [vmem:[#allocation2] sm:$0xff]
  %v266 = vld [vmem:[#allocation2 + $0x8] sm:$0xff]
  %v267 = vld [vmem:[#allocation2 + $0x10] sm:$0x3]
  %v268 = vld [vmem:[#allocation2 + $0x18] sm:$0xff]
  %v269 = vld [vmem:[#allocation2 + $0x20] sm:$0xff]
  %v270 = vld [vmem:[#allocation2 + $0x28] sm:$0x3]
  %v271 = vld [vmem:[#allocation2 + $0x30] sm:$0xff]
  %v272 = vld [vmem:[#allocation2 + $0x38] sm:$0xff]
  %v273 = vld [vmem:[#allocation2 + $0x40] sm:$0x3]
  %v274 = vld [vmem:[#allocation2 + $0x48] sm:$0xff]
  %v275 = vld [vmem:[#allocation2 + $0x50] sm:$0xff]
  %v276 = vld [vmem:[#allocation2 + $0x58] sm:$0x3]
  %v277 = vld [vmem:[#allocation2 + $0x60] sm:$0xff]
  %v278 = vld [vmem:[#allocation2 + $0x68] sm:$0xff]
  %v279 = vld [vmem:[#allocation2 + $0x70] sm:$0x3]
  %v280 = vld [vmem:[#allocation2 + $0x78] sm:$0xff]
  %v281 = vld [vmem:[#allocation2 + $0x80] sm:$0xff]
  %v282 = vld [vmem:[#allocation2 + $0x88] sm:$0x3]
  %v283 = vld [vmem:[#allocation2 + $0x90] sm:$0xff]
  %v284 = vld [vmem:[#allocation2 + $0x98] sm:$0xff]
  %v285 = vld [vmem:[#allocation2 + $0xa0] sm:$0x3]
  %v286 = vld [vmem:[#allocation2 + $0xa8] sm:$0xff]
  %v287 = vld [vmem:[#allocation2 + $0xb0] sm:$0xff]
  %v288 = vld [vmem:[#allocation2 + $0xb8] sm:$0x3]
  %v289 = vld [vmem:[#allocation2 + $0xc0] sm:$0xff]
  %v290 = vld [vmem:[#allocation2 + $0xc8] sm:$0xff]
  %v291 = vld [vmem:[#allocation2 + $0xd0] sm:$0x3]
  %v292 = vld [vmem:[#allocation2 + $0xd8] sm:$0xff]
  %v293 = vld [vmem:[#allocation2 + $0xe0] sm:$0xff]
  %v294 = vld [vmem:[#allocation2 + $0xe8] sm:$0x3]
  %v295 = vld [vmem:[#allocation2 + $0xf0] sm:$0xff]
  %v296 = vld [vmem:[#allocation2 + $0xf8] sm:$0xff]
  %v297 = vld [vmem:[#allocation2 + $0x100] sm:$0x3]
  %v298 = vld [vmem:[#allocation2 + $0x108] sm:$0xff]
  %v299 = vld [vmem:[#allocation2 + $0x110] sm:$0xff]
  %v300 = vld [vmem:[#allocation2 + $0x118] sm:$0x3]
  %v301 = vld [vmem:[#allocation2 + $0x120] sm:$0xff]
  %v302 = vld [vmem:[#allocation2 + $0x128] sm:$0xff]
  %v303 = vld [vmem:[#allocation2 + $0x130] sm:$0x3]
  %v304 = vld [vmem:[#allocation2 + $0x138] sm:$0xff]
  %v305 = vld [vmem:[#allocation2 + $0x140] sm:$0xff]
  %v306 = vld [vmem:[#allocation2 + $0x148] sm:$0x3]
  %v307 = vld [vmem:[#allocation2 + $0x150] sm:$0xff]
  %v308 = vld [vmem:[#allocation2 + $0x158] sm:$0xff]
  %v309 = vld [vmem:[#allocation2 + $0x160] sm:$0x3]
  %v310 = vld [vmem:[#allocation2 + $0x168] sm:$0xff]
  %v311 = vld [vmem:[#allocation2 + $0x170] sm:$0xff]
  %v312 = vld [vmem:[#allocation2 + $0x178] sm:$0x3]
  %v313 = vld [vmem:[#allocation2 + $0x180] sm:$0xff]
  %v314 = vld [vmem:[#allocation2 + $0x188] sm:$0xff]
  %v315 = vld [vmem:[#allocation2 + $0x190] sm:$0x3]
  %v316 = vld [vmem:[#allocation2 + $0x198] sm:$0xff]
  %v317 = vld [vmem:[#allocation2 + $0x1a0] sm:$0xff]
  %v318 = vld [vmem:[#allocation2 + $0x1a8] sm:$0x3]
  %v319 = vld [vmem:[#allocation2 + $0x1b0] sm:$0xff]
  %v320 = vld [vmem:[#allocation2 + $0x1b8] sm:$0xff]
  %v321 = vld [vmem:[#allocation2 + $0x1c0] sm:$0x3]
  %v322 = vld [vmem:[#allocation2 + $0x1c8] sm:$0xff]
  %v323 = vld [vmem:[#allocation2 + $0x1d0] sm:$0xff]
  %v324 = vld [vmem:[#allocation2 + $0x1d8] sm:$0x3]
  %v325 = vld [vmem:[#allocation2 + $0x1e0] sm:$0xff]
  %v326 = vld [vmem:[#allocation2 + $0x1e8] sm:$0xff]
  %v327 = vld [vmem:[#allocation2 + $0x1f0] sm:$0x3]
  %v328 = vld [vmem:[#allocation2 + $0x1f8] sm:$0xff]
  %v329 = vld [vmem:[#allocation2 + $0x200] sm:$0xff]
  %v330 = vld [vmem:[#allocation2 + $0x208] sm:$0x3]
  %v331 = vld [vmem:[#allocation2 + $0x210] sm:$0xff]
  %v332 = vld [vmem:[#allocation2 + $0x218] sm:$0xff]
  %v333 = vld [vmem:[#allocation2 + $0x220] sm:$0x3]
  %v334 = vld [vmem:[#allocation2 + $0x228] sm:$0xff]
  %v335 = vld [vmem:[#allocation2 + $0x230] sm:$0xff]
  %v336 = vld [vmem:[#allocation2 + $0x238] sm:$0x3]
  %v337 = vld [vmem:[#allocation2 + $0x240] sm:$0xff]
  %v338 = vld [vmem:[#allocation2 + $0x248] sm:$0xff]
  %v339 = vld [vmem:[#allocation2 + $0x250] sm:$0x3]
  %v340 = vld [vmem:[#allocation2 + $0x258] sm:$0xff]
  %v341 = vld [vmem:[#allocation2 + $0x260] sm:$0xff]
  %v342 = vld [vmem:[#allocation2 + $0x268] sm:$0x3]
  %v343 = vld [vmem:[#allocation2 + $0x270] sm:$0xff]
  %v344 = vld [vmem:[#allocation2 + $0x278] sm:$0xff]
  %v345 = vld [vmem:[#allocation2 + $0x280] sm:$0x3]
  %v346 = vld [vmem:[#allocation2 + $0x288] sm:$0xff]
  %v347 = vld [vmem:[#allocation2 + $0x290] sm:$0xff]
  %v348 = vld [vmem:[#allocation2 + $0x298] sm:$0x3]
  %v349 = vld [vmem:[#allocation2 + $0x2a0] sm:$0xff]
  %v350 = vld [vmem:[#allocation2 + $0x2a8] sm:$0xff]
  %v351 = vld [vmem:[#allocation2 + $0x2b0] sm:$0x3]
  %v352 = vld [vmem:[#allocation2 + $0x2b8] sm:$0xff]
  %v353 = vld [vmem:[#allocation2 + $0x2c0] sm:$0xff]
  %v354 = vld [vmem:[#allocation2 + $0x2c8] sm:$0x3]
  %v355 = vld [vmem:[#allocation2 + $0x2d0] sm:$0xff]
  %v356 = vld [vmem:[#allocation2 + $0x2d8] sm:$0xff]
  %v357 = vld [vmem:[#allocation2 + $0x2e0] sm:$0x3]
  %v358 = vld [vmem:[#allocation2 + $0x2e8] sm:$0xff]
  %v359 = vld [vmem:[#allocation2 + $0x2f0] sm:$0xff]
  %v360 = vld [vmem:[#allocation2 + $0x2f8] sm:$0x3]
  %v361 = vld [vmem:[#allocation2 + $0x300] sm:$0xff]
  %v362 = vld [vmem:[#allocation2 + $0x308] sm:$0xff]
  %v363 = vld [vmem:[#allocation2 + $0x310] sm:$0x3]
  %v364 = vld [vmem:[#allocation2 + $0x318] sm:$0xff]
  %v365 = vld [vmem:[#allocation2 + $0x320] sm:$0xff]
  %v366 = vld [vmem:[#allocation2 + $0x328] sm:$0x3]
  %v367 = vld [vmem:[#allocation2 + $0x330] sm:$0xff]
  %v368 = vld [vmem:[#allocation2 + $0x338] sm:$0xff]
  %v369 = vld [vmem:[#allocation2 + $0x340] sm:$0x3]
  %v370 = vld [vmem:[#allocation2 + $0x348] sm:$0xff]
  %v371 = vld [vmem:[#allocation2 + $0x350] sm:$0xff]
  %v372 = vld [vmem:[#allocation2 + $0x358] sm:$0x3]
  %373 = vst.msk [vmem:[#allocation4] sm:$0xff] %vm90, %v265
  %374 = vst.msk [vmem:[#allocation4 + $0x8] sm:$0xff] %vm90, %v266
  %375 = vst.msk [vmem:[#allocation4 + $0x10] sm:$0xff] %vm90, %v268
  %376 = vst.msk [vmem:[#allocation4 + $0x18] sm:$0xff] %vm90, %v269
  %377 = vst.msk [vmem:[#allocation4 + $0x20] sm:$0xff] %vm90, %v271
  %378 = vst.msk [vmem:[#allocation4 + $0x28] sm:$0xff] %vm90, %v272
  %379 = vst.msk [vmem:[#allocation4 + $0x30] sm:$0xff] %vm90, %v274
  %380 = vst.msk [vmem:[#allocation4 + $0x38] sm:$0xff] %vm90, %v275
  %381 = vst.msk [vmem:[#allocation4 + $0x40] sm:$0xff] %vm90, %v277
  %382 = vst.msk [vmem:[#allocation4 + $0x48] sm:$0xff] %vm90, %v278
  %383 = vst.msk [vmem:[#allocation4 + $0x50] sm:$0xff] %vm90, %v280
  %384 = vst.msk [vmem:[#allocation4 + $0x58] sm:$0xff] %vm90, %v281
  %385 = vst.msk [vmem:[#allocation4 + $0x60] sm:$0xff] %vm90, %v283
  %386 = vst.msk [vmem:[#allocation4 + $0x68] sm:$0xff] %vm90, %v284
  %387 = vst.msk [vmem:[#allocation4 + $0x70] sm:$0xff] %vm90, %v286
  %388 = vst.msk [vmem:[#allocation4 + $0x78] sm:$0xff] %vm90, %v287
  %389 = vst.msk [vmem:[#allocation4 + $0x80] sm:$0xff] %vm90, %v289
  %390 = vst.msk [vmem:[#allocation4 + $0x88] sm:$0xff] %vm90, %v290
  %391 = vst.msk [vmem:[#allocation4 + $0x90] sm:$0xff] %vm90, %v292
  %392 = vst.msk [vmem:[#allocation4 + $0x98] sm:$0xff] %vm90, %v293
  %393 = vst.msk [vmem:[#allocation4 + $0xa0] sm:$0xff] %vm90, %v295
  %394 = vst.msk [vmem:[#allocation4 + $0xa8] sm:$0xff] %vm90, %v296
  %395 = vst.msk [vmem:[#allocation4 + $0xb0] sm:$0xff] %vm90, %v298
  %396 = vst.msk [vmem:[#allocation4 + $0xb8] sm:$0xff] %vm90, %v299
  %397 = vst.msk [vmem:[#allocation4 + $0xc0] sm:$0xff] %vm90, %v301
  %398 = vst.msk [vmem:[#allocation4 + $0xc8] sm:$0xff] %vm90, %v302
  %399 = vst.msk [vmem:[#allocation4 + $0xd0] sm:$0xff] %vm90, %v304
  %400 = vst.msk [vmem:[#allocation4 + $0xd8] sm:$0xff] %vm90, %v305
  %401 = vst.msk [vmem:[#allocation4 + $0xe0] sm:$0xff] %vm90, %v307
  %402 = vst.msk [vmem:[#allocation4 + $0xe8] sm:$0xff] %vm90, %v308
  %403 = vst.msk [vmem:[#allocation4 + $0xf0] sm:$0xff] %vm90, %v310
  %404 = vst.msk [vmem:[#allocation4 + $0xf8] sm:$0xff] %vm90, %v311
  %405 = vst.msk [vmem:[#allocation4 + $0x100] sm:$0xff] %vm90, %v319
  %406 = vst.msk [vmem:[#allocation4 + $0x108] sm:$0xff] %vm90, %v320
  %407 = vst.msk [vmem:[#allocation4 + $0x110] sm:$0xff] %vm90, %v322
  %408 = vst.msk [vmem:[#allocation4 + $0x118] sm:$0xff] %vm90, %v323
  %409 = vst.msk [vmem:[#allocation4 + $0x120] sm:$0xff] %vm90, %v325
  %410 = vst.msk [vmem:[#allocation4 + $0x128] sm:$0xff] %vm90, %v326
  %411 = vst.msk [vmem:[#allocation4 + $0x130] sm:$0xff] %vm90, %v328
  %412 = vst.msk [vmem:[#allocation4 + $0x138] sm:$0xff] %vm90, %v329
  %413 = vst.msk [vmem:[#allocation4 + $0x140] sm:$0xff] %vm90, %v331
  %414 = vst.msk [vmem:[#allocation4 + $0x148] sm:$0xff] %vm90, %v332
  %415 = vst.msk [vmem:[#allocation4 + $0x150] sm:$0xff] %vm90, %v334
  %416 = vst.msk [vmem:[#allocation4 + $0x158] sm:$0xff] %vm90, %v335
  %417 = vst.msk [vmem:[#allocation4 + $0x160] sm:$0xff] %vm90, %v337
  %418 = vst.msk [vmem:[#allocation4 + $0x168] sm:$0xff] %vm90, %v338
  %419 = vst.msk [vmem:[#allocation4 + $0x170] sm:$0xff] %vm90, %v340
  %420 = vst.msk [vmem:[#allocation4 + $0x178] sm:$0xff] %vm90, %v341
  %421 = vst.msk [vmem:[#allocation4 + $0x180] sm:$0xff] %vm90, %v343
  %422 = vst.msk [vmem:[#allocation4 + $0x188] sm:$0xff] %vm90, %v344
  %423 = vst.msk [vmem:[#allocation4 + $0x190] sm:$0xff] %vm90, %v346
  %424 = vst.msk [vmem:[#allocation4 + $0x198] sm:$0xff] %vm90, %v347
  %425 = vst.msk [vmem:[#allocation4 + $0x1a0] sm:$0xff] %vm90, %v349
  %426 = vst.msk [vmem:[#allocation4 + $0x1a8] sm:$0xff] %vm90, %v350
  %427 = vst.msk [vmem:[#allocation4 + $0x1b0] sm:$0xff] %vm90, %v352
  %428 = vst.msk [vmem:[#allocation4 + $0x1b8] sm:$0xff] %vm90, %v353
  %429 = vst.msk [vmem:[#allocation4 + $0x1c0] sm:$0xff] %vm90, %v355
  %430 = vst.msk [vmem:[#allocation4 + $0x1c8] sm:$0xff] %vm90, %v356
  %431 = vst.msk [vmem:[#allocation4 + $0x1d0] sm:$0xff] %vm90, %v358
  %432 = vst.msk [vmem:[#allocation4 + $0x1d8] sm:$0xff] %vm90, %v359
  %433 = vst.msk [vmem:[#allocation4 + $0x1e0] sm:$0xff] %vm90, %v361
  %434 = vst.msk [vmem:[#allocation4 + $0x1e8] sm:$0xff] %vm90, %v362
  %435 = vst.msk [vmem:[#allocation4 + $0x1f0] sm:$0xff] %vm90, %v364
  %436 = vst.msk [vmem:[#allocation4 + $0x1f8] sm:$0xff] %vm90, %v365
  %vm533 = vcmask 1046528
  %v534 = vrot.slane %v265, 1
  %v535 = vrot.slane %v266, 1
  %v536 = vsel %vm533, %v534, %v535
  %v537 = vrot.slane %v267, 1
  %v538 = vsel %vm533, %v535, %v537
  %v539 = vrot.slane %v268, 1
  %v540 = vrot.slane %v269, 1
  %v541 = vsel %vm533, %v539, %v540
  %v542 = vrot.slane %v270, 1
  %v543 = vsel %vm533, %v540, %v542
  %v544 = vrot.slane %v271, 1
  %v545 = vrot.slane %v272, 1
  %v546 = vsel %vm533, %v544, %v545
  %v547 = vrot.slane %v273, 1
  %v548 = vsel %vm533, %v545, %v547
  %v549 = vrot.slane %v274, 1
  %v550 = vrot.slane %v275, 1
  %v551 = vsel %vm533, %v549, %v550
  %v552 = vrot.slane %v276, 1
  %v553 = vsel %vm533, %v550, %v552
  %v554 = vrot.slane %v277, 1
  %v555 = vrot.slane %v278, 1
  %v556 = vsel %vm533, %v554, %v555
  %v557 = vrot.slane %v279, 1
  %v558 = vsel %vm533, %v555, %v557
  %v559 = vrot.slane %v280, 1
  %v560 = vrot.slane %v281, 1
  %v561 = vsel %vm533, %v559, %v560
  %v562 = vrot.slane %v282, 1
  %v563 = vsel %vm533, %v560, %v562
  %v564 = vrot.slane %v283, 1
  %v565 = vrot.slane %v284, 1
  %v566 = vsel %vm533, %v564, %v565
  %v567 = vrot.slane %v285, 1
  %v568 = vsel %vm533, %v565, %v567
  %v569 = vrot.slane %v286, 1
  %v570 = vrot.slane %v287, 1
  %v571 = vsel %vm533, %v569, %v570
  %v572 = vrot.slane %v288, 1
  %v573 = vsel %vm533, %v570, %v572
  %v574 = vrot.slane %v289, 1
  %v575 = vrot.slane %v290, 1
  %v576 = vsel %vm533, %v574, %v575
  %v577 = vrot.slane %v291, 1
  %v578 = vsel %vm533, %v575, %v577
  %v579 = vrot.slane %v292, 1
  %v580 = vrot.slane %v293, 1
  %v581 = vsel %vm533, %v579, %v580
  %v582 = vrot.slane %v294, 1
  %v583 = vsel %vm533, %v580, %v582
  %v584 = vrot.slane %v295, 1
  %v585 = vrot.slane %v296, 1
  %v586 = vsel %vm533, %v584, %v585
  %v587 = vrot.slane %v297, 1
  %v588 = vsel %vm533, %v585, %v587
  %v589 = vrot.slane %v298, 1
  %v590 = vrot.slane %v299, 1
  %v591 = vsel %vm533, %v589, %v590
  %v592 = vrot.slane %v300, 1
  %v593 = vsel %vm533, %v590, %v592
  %v594 = vrot.slane %v301, 1
  %v595 = vrot.slane %v302, 1
  %v596 = vsel %vm533, %v594, %v595
  %v597 = vrot.slane %v303, 1
  %v598 = vsel %vm533, %v595, %v597
  %v599 = vrot.slane %v304, 1
  %v600 = vrot.slane %v305, 1
  %v601 = vsel %vm533, %v599, %v600
  %v602 = vrot.slane %v306, 1
  %v603 = vsel %vm533, %v600, %v602
  %v604 = vrot.slane %v307, 1
  %v605 = vrot.slane %v308, 1
  %v606 = vsel %vm533, %v604, %v605
  %v607 = vrot.slane %v309, 1
  %v608 = vsel %vm533, %v605, %v607
  %v609 = vrot.slane %v310, 1
  %v610 = vrot.slane %v311, 1
  %v611 = vsel %vm533, %v609, %v610
  %v612 = vrot.slane %v312, 1
  %v613 = vsel %vm533, %v610, %v612
  %v614 = vrot.slane %v319, 1
  %v615 = vrot.slane %v320, 1
  %v616 = vsel %vm533, %v614, %v615
  %v617 = vrot.slane %v321, 1
  %v618 = vsel %vm533, %v615, %v617
  %v619 = vrot.slane %v322, 1
  %v620 = vrot.slane %v323, 1
  %v621 = vsel %vm533, %v619, %v620
  %v622 = vrot.slane %v324, 1
  %v623 = vsel %vm533, %v620, %v622
  %v624 = vrot.slane %v325, 1
  %v625 = vrot.slane %v326, 1
  %v626 = vsel %vm533, %v624, %v625
  %v627 = vrot.slane %v327, 1
  %v628 = vsel %vm533, %v625, %v627
  %v629 = vrot.slane %v328, 1
  %v630 = vrot.slane %v329, 1
  %v631 = vsel %vm533, %v629, %v630
  %v632 = vrot.slane %v330, 1
  %v633 = vsel %vm533, %v630, %v632
  %v634 = vrot.slane %v331, 1
  %v635 = vrot.slane %v332, 1
  %v636 = vsel %vm533, %v634, %v635
  %v637 = vrot.slane %v333, 1
  %v638 = vsel %vm533, %v635, %v637
  %v639 = vrot.slane %v334, 1
  %v640 = vrot.slane %v335, 1
  %v641 = vsel %vm533, %v639, %v640
  %v642 = vrot.slane %v336, 1
  %v643 = vsel %vm533, %v640, %v642
  %v644 = vrot.slane %v337, 1
  %v645 = vrot.slane %v338, 1
  %v646 = vsel %vm533, %v644, %v645
  %v647 = vrot.slane %v339, 1
  %v648 = vsel %vm533, %v645, %v647
  %v649 = vrot.slane %v340, 1
  %v650 = vrot.slane %v341, 1
  %v651 = vsel %vm533, %v649, %v650
  %v652 = vrot.slane %v342, 1
  %v653 = vsel %vm533, %v650, %v652
  %v654 = vrot.slane %v343, 1
  %v655 = vrot.slane %v344, 1
  %v656 = vsel %vm533, %v654, %v655
  %v657 = vrot.slane %v345, 1
  %v658 = vsel %vm533, %v655, %v657
  %v659 = vrot.slane %v346, 1
  %v660 = vrot.slane %v347, 1
  %v661 = vsel %vm533, %v659, %v660
  %v662 = vrot.slane %v348, 1
  %v663 = vsel %vm533, %v660, %v662
  %v664 = vrot.slane %v349, 1
  %v665 = vrot.slane %v350, 1
  %v666 = vsel %vm533, %v664, %v665
  %v667 = vrot.slane %v351, 1
  %v668 = vsel %vm533, %v665, %v667
  %v669 = vrot.slane %v352, 1
  %v670 = vrot.slane %v353, 1
  %v671 = vsel %vm533, %v669, %v670
  %v672 = vrot.slane %v354, 1
  %v673 = vsel %vm533, %v670, %v672
  %v674 = vrot.slane %v355, 1
  %v675 = vrot.slane %v356, 1
  %v676 = vsel %vm533, %v674, %v675
  %v677 = vrot.slane %v357, 1
  %v678 = vsel %vm533, %v675, %v677
  %v679 = vrot.slane %v358, 1
  %v680 = vrot.slane %v359, 1
  %v681 = vsel %vm533, %v679, %v680
  %v682 = vrot.slane %v360, 1
  %v683 = vsel %vm533, %v680, %v682
  %v684 = vrot.slane %v361, 1
  %v685 = vrot.slane %v362, 1
  %v686 = vsel %vm533, %v684, %v685
  %v687 = vrot.slane %v363, 1
  %v688 = vsel %vm533, %v685, %v687
  %v689 = vrot.slane %v364, 1
  %v690 = vrot.slane %v365, 1
  %v691 = vsel %vm533, %v689, %v690
  %v692 = vrot.slane %v366, 1
  %v693 = vsel %vm533, %v690, %v692
  %694 = vrot.lane.b32.xlu0 %v536, 4
  %v695 = vpop.permute.xlu0 %694
  %696 = vrot.lane.b32.xlu0 %v538, 4
  %v697 = vpop.permute.xlu0 %696
  %698 = vrot.lane.b32.xlu0 %v541, 4
  %v699 = vpop.permute.xlu0 %698
  %700 = vrot.lane.b32.xlu0 %v543, 4
  %v701 = vpop.permute.xlu0 %700
  %702 = vrot.lane.b32.xlu0 %v546, 4
  %v703 = vpop.permute.xlu0 %702
  %704 = vrot.lane.b32.xlu0 %v548, 4
  %v705 = vpop.permute.xlu0 %704
  %706 = vrot.lane.b32.xlu0 %v551, 4
  %v707 = vpop.permute.xlu0 %706
  %708 = vrot.lane.b32.xlu0 %v553, 4
  %v709 = vpop.permute.xlu0 %708
  %710 = vrot.lane.b32.xlu0 %v556, 4
  %v711 = vpop.permute.xlu0 %710
  %712 = vrot.lane.b32.xlu0 %v558, 4
  %v713 = vpop.permute.xlu0 %712
  %714 = vrot.lane.b32.xlu0 %v561, 4
  %v715 = vpop.permute.xlu0 %714
  %716 = vrot.lane.b32.xlu0 %v563, 4
  %v717 = vpop.permute.xlu0 %716
  %718 = vrot.lane.b32.xlu0 %v566, 4
  %v719 = vpop.permute.xlu0 %718
  %720 = vrot.lane.b32.xlu0 %v568, 4
  %v721 = vpop.permute.xlu0 %720
  %722 = vrot.lane.b32.xlu0 %v571, 4
  %v723 = vpop.permute.xlu0 %722
  %724 = vrot.lane.b32.xlu0 %v573, 4
  %v725 = vpop.permute.xlu0 %724
  %726 = vrot.lane.b32.xlu0 %v576, 4
  %v727 = vpop.permute.xlu0 %726
  %728 = vrot.lane.b32.xlu0 %v578, 4
  %v729 = vpop.permute.xlu0 %728
  %730 = vrot.lane.b32.xlu0 %v581, 4
  %v731 = vpop.permute.xlu0 %730
  %732 = vrot.lane.b32.xlu0 %v583, 4
  %v733 = vpop.permute.xlu0 %732
  %734 = vrot.lane.b32.xlu0 %v586, 4
  %v735 = vpop.permute.xlu0 %734
  %736 = vrot.lane.b32.xlu0 %v588, 4
  %v737 = vpop.permute.xlu0 %736
  %738 = vrot.lane.b32.xlu0 %v591, 4
  %v739 = vpop.permute.xlu0 %738
  %740 = vrot.lane.b32.xlu0 %v593, 4
  %v741 = vpop.permute.xlu0 %740
  %742 = vrot.lane.b32.xlu0 %v596, 4
  %v743 = vpop.permute.xlu0 %742
  %744 = vrot.lane.b32.xlu0 %v598, 4
  %v745 = vpop.permute.xlu0 %744
  %746 = vrot.lane.b32.xlu0 %v601, 4
  %v747 = vpop.permute.xlu0 %746
  %748 = vrot.lane.b32.xlu0 %v603, 4
  %v749 = vpop.permute.xlu0 %748
  %750 = vrot.lane.b32.xlu0 %v606, 4
  %v751 = vpop.permute.xlu0 %750
  %752 = vrot.lane.b32.xlu0 %v608, 4
  %v753 = vpop.permute.xlu0 %752
  %754 = vrot.lane.b32.xlu0 %v611, 4
  %v755 = vpop.permute.xlu0 %754
  %756 = vrot.lane.b32.xlu0 %v613, 4
  %v757 = vpop.permute.xlu0 %756
  %758 = vrot.lane.b32.xlu0 %v616, 4
  %v759 = vpop.permute.xlu0 %758
  %760 = vrot.lane.b32.xlu0 %v618, 4
  %v761 = vpop.permute.xlu0 %760
  %762 = vrot.lane.b32.xlu0 %v621, 4
  %v763 = vpop.permute.xlu0 %762
  %764 = vrot.lane.b32.xlu0 %v623, 4
  %v765 = vpop.permute.xlu0 %764
  %766 = vrot.lane.b32.xlu0 %v626, 4
  %v767 = vpop.permute.xlu0 %766
  %768 = vrot.lane.b32.xlu0 %v628, 4
  %v769 = vpop.permute.xlu0 %768
  %770 = vrot.lane.b32.xlu0 %v631, 4
  %v771 = vpop.permute.xlu0 %770
  %772 = vrot.lane.b32.xlu0 %v633, 4
  %v773 = vpop.permute.xlu0 %772
  %774 = vrot.lane.b32.xlu0 %v636, 4
  %v775 = vpop.permute.xlu0 %774
  %776 = vrot.lane.b32.xlu0 %v638, 4
  %v777 = vpop.permute.xlu0 %776
  %778 = vrot.lane.b32.xlu0 %v641, 4
  %v779 = vpop.permute.xlu0 %778
  %780 = vrot.lane.b32.xlu0 %v643, 4
  %v781 = vpop.permute.xlu0 %780
  %782 = vrot.lane.b32.xlu0 %v646, 4
  %v783 = vpop.permute.xlu0 %782
  %784 = vrot.lane.b32.xlu0 %v648, 4
  %v785 = vpop.permute.xlu0 %784
  %786 = vrot.lane.b32.xlu0 %v651, 4
  %v787 = vpop.permute.xlu0 %786
  %788 = vrot.lane.b32.xlu0 %v653, 4
  %v789 = vpop.permute.xlu0 %788
  %790 = vrot.lane.b32.xlu0 %v656, 4
  %v791 = vpop.permute.xlu0 %790
  %792 = vrot.lane.b32.xlu0 %v658, 4
  %v793 = vpop.permute.xlu0 %792
  %794 = vrot.lane.b32.xlu0 %v661, 4
  %v795 = vpop.permute.xlu0 %794
  %796 = vrot.lane.b32.xlu0 %v663, 4
  %v797 = vpop.permute.xlu0 %796
  %798 = vrot.lane.b32.xlu0 %v666, 4
  %v799 = vpop.permute.xlu0 %798
  %800 = vrot.lane.b32.xlu0 %v668, 4
  %v801 = vpop.permute.xlu0 %800
  %802 = vrot.lane.b32.xlu0 %v671, 4
  %v803 = vpop.permute.xlu0 %802
  %804 = vrot.lane.b32.xlu0 %v673, 4
  %v805 = vpop.permute.xlu0 %804
  %806 = vrot.lane.b32.xlu0 %v676, 4
  %v807 = vpop.permute.xlu0 %806
  %808 = vrot.lane.b32.xlu0 %v678, 4
  %v809 = vpop.permute.xlu0 %808
  %810 = vrot.lane.b32.xlu0 %v681, 4
  %v811 = vpop.permute.xlu0 %810
  %812 = vrot.lane.b32.xlu0 %v683, 4
  %v813 = vpop.permute.xlu0 %812
  %814 = vrot.lane.b32.xlu0 %v686, 4
  %v815 = vpop.permute.xlu0 %814
  %816 = vrot.lane.b32.xlu0 %v688, 4
  %v817 = vpop.permute.xlu0 %816
  %818 = vrot.lane.b32.xlu0 %v691, 4
  %v819 = vpop.permute.xlu0 %818
  %820 = vrot.lane.b32.xlu0 %v693, 4
  %v821 = vpop.permute.xlu0 %820
  %vm886 = vcmask 64544
  %887 = vst.msk [vmem:[#allocation4] sm:$0xff] %vm886, %v695
  %888 = vst.msk [vmem:[#allocation4 + $0x8] sm:$0xff] %vm886, %v697
  %889 = vst.msk [vmem:[#allocation4 + $0x10] sm:$0xff] %vm886, %v699
  %890 = vst.msk [vmem:[#allocation4 + $0x18] sm:$0xff] %vm886, %v701
  %891 = vst.msk [vmem:[#allocation4 + $0x20] sm:$0xff] %vm886, %v703
  %892 = vst.msk [vmem:[#allocation4 + $0x28] sm:$0xff] %vm886, %v705
  %893 = vst.msk [vmem:[#allocation4 + $0x30] sm:$0xff] %vm886, %v707
  %894 = vst.msk [vmem:[#allocation4 + $0x38] sm:$0xff] %vm886, %v709
  %895 = vst.msk [vmem:[#allocation4 + $0x40] sm:$0xff] %vm886, %v711
  %896 = vst.msk [vmem:[#allocation4 + $0x48] sm:$0xff] %vm886, %v713
  %897 = vst.msk [vmem:[#allocation4 + $0x50] sm:$0xff] %vm886, %v715
  %898 = vst.msk [vmem:[#allocation4 + $0x58] sm:$0xff] %vm886, %v717
  %899 = vst.msk [vmem:[#allocation4 + $0x60] sm:$0xff] %vm886, %v719
  %900 = vst.msk [vmem:[#allocation4 + $0x68] sm:$0xff] %vm886, %v721
  %901 = vst.msk [vmem:[#allocation4 + $0x70] sm:$0xff] %vm886, %v723
  %902 = vst.msk [vmem:[#allocation4 + $0x78] sm:$0xff] %vm886, %v725
  %903 = vst.msk [vmem:[#allocation4 + $0x80] sm:$0xff] %vm886, %v727
  %904 = vst.msk [vmem:[#allocation4 + $0x88] sm:$0xff] %vm886, %v729
  %905 = vst.msk [vmem:[#allocation4 + $0x90] sm:$0xff] %vm886, %v731
  %906 = vst.msk [vmem:[#allocation4 + $0x98] sm:$0xff] %vm886, %v733
  %907 = vst.msk [vmem:[#allocation4 + $0xa0] sm:$0xff] %vm886, %v735
  %908 = vst.msk [vmem:[#allocation4 + $0xa8] sm:$0xff] %vm886, %v737
  %909 = vst.msk [vmem:[#allocation4 + $0xb0] sm:$0xff] %vm886, %v739
  %910 = vst.msk [vmem:[#allocation4 + $0xb8] sm:$0xff] %vm886, %v741
  %911 = vst.msk [vmem:[#allocation4 + $0xc0] sm:$0xff] %vm886, %v743
  %912 = vst.msk [vmem:[#allocation4 + $0xc8] sm:$0xff] %vm886, %v745
  %913 = vst.msk [vmem:[#allocation4 + $0xd0] sm:$0xff] %vm886, %v747
  %914 = vst.msk [vmem:[#allocation4 + $0xd8] sm:$0xff] %vm886, %v749
  %915 = vst.msk [vmem:[#allocation4 + $0xe0] sm:$0xff] %vm886, %v751
  %916 = vst.msk [vmem:[#allocation4 + $0xe8] sm:$0xff] %vm886, %v753
  %917 = vst.msk [vmem:[#allocation4 + $0xf0] sm:$0xff] %vm886, %v755
  %918 = vst.msk [vmem:[#allocation4 + $0xf8] sm:$0xff] %vm886, %v757
  %919 = vst.msk [vmem:[#allocation4 + $0x100] sm:$0xff] %vm886, %v759
  %920 = vst.msk [vmem:[#allocation4 + $0x108] sm:$0xff] %vm886, %v761
  %921 = vst.msk [vmem:[#allocation4 + $0x110] sm:$0xff] %vm886, %v763
  %922 = vst.msk [vmem:[#allocation4 + $0x118] sm:$0xff] %vm886, %v765
  %923 = vst.msk [vmem:[#allocation4 + $0x120] sm:$0xff] %vm886, %v767
  %924 = vst.msk [vmem:[#allocation4 + $0x128] sm:$0xff] %vm886, %v769
  %925 = vst.msk [vmem:[#allocation4 + $0x130] sm:$0xff] %vm886, %v771
  %926 = vst.msk [vmem:[#allocation4 + $0x138] sm:$0xff] %vm886, %v773
  %927 = vst.msk [vmem:[#allocation4 + $0x140] sm:$0xff] %vm886, %v775
  %928 = vst.msk [vmem:[#allocation4 + $0x148] sm:$0xff] %vm886, %v777
  %929 = vst.msk [vmem:[#allocation4 + $0x150] sm:$0xff] %vm886, %v779
  %930 = vst.msk [vmem:[#allocation4 + $0x158] sm:$0xff] %vm886, %v781
  %931 = vst.msk [vmem:[#allocation4 + $0x160] sm:$0xff] %vm886, %v783
  %932 = vst.msk [vmem:[#allocation4 + $0x168] sm:$0xff] %vm886, %v785
  %933 = vst.msk [vmem:[#allocation4 + $0x170] sm:$0xff] %vm886, %v787
  %934 = vst.msk [vmem:[#allocation4 + $0x178] sm:$0xff] %vm886, %v789
  %935 = vst.msk [vmem:[#allocation4 + $0x180] sm:$0xff] %vm886, %v791
  %936 = vst.msk [vmem:[#allocation4 + $0x188] sm:$0xff] %vm886, %v793
  %937 = vst.msk [vmem:[#allocation4 + $0x190] sm:$0xff] %vm886, %v795
  %938 = vst.msk [vmem:[#allocation4 + $0x198] sm:$0xff] %vm886, %v797
  %939 = vst.msk [vmem:[#allocation4 + $0x1a0] sm:$0xff] %vm886, %v799
  %940 = vst.msk [vmem:[#allocation4 + $0x1a8] sm:$0xff] %vm886, %v801
  %941 = vst.msk [vmem:[#allocation4 + $0x1b0] sm:$0xff] %vm886, %v803
  %942 = vst.msk [vmem:[#allocation4 + $0x1b8] sm:$0xff] %vm886, %v805
  %943 = vst.msk [vmem:[#allocation4 + $0x1c0] sm:$0xff] %vm886, %v807
  %944 = vst.msk [vmem:[#allocation4 + $0x1c8] sm:$0xff] %vm886, %v809
  %945 = vst.msk [vmem:[#allocation4 + $0x1d0] sm:$0xff] %vm886, %v811
  %946 = vst.msk [vmem:[#allocation4 + $0x1d8] sm:$0xff] %vm886, %v813
  %947 = vst.msk [vmem:[#allocation4 + $0x1e0] sm:$0xff] %vm886, %v815
  %948 = vst.msk [vmem:[#allocation4 + $0x1e8] sm:$0xff] %vm886, %v817
  %949 = vst.msk [vmem:[#allocation4 + $0x1f0] sm:$0xff] %vm886, %v819
  %950 = vst.msk [vmem:[#allocation4 + $0x1f8] sm:$0xff] %vm886, %v821
  %vm951 = vcmask 1045504
  %v952 = vrot.slane %v265, 2
  %v953 = vrot.slane %v266, 2
  %v954 = vsel %vm951, %v952, %v953
  %v955 = vrot.slane %v267, 2
  %v956 = vsel %vm951, %v953, %v955
  %v957 = vrot.slane %v268, 2
  %v958 = vrot.slane %v269, 2
  %v959 = vsel %vm951, %v957, %v958
  %v960 = vrot.slane %v270, 2
  %v961 = vsel %vm951, %v958, %v960
  %v962 = vrot.slane %v271, 2
  %v963 = vrot.slane %v272, 2
  %v964 = vsel %vm951, %v962, %v963
  %v965 = vrot.slane %v273, 2
  %v966 = vsel %vm951, %v963, %v965
  %v967 = vrot.slane %v274, 2
  %v968 = vrot.slane %v275, 2
  %v969 = vsel %vm951, %v967, %v968
  %v970 = vrot.slane %v276, 2
  %v971 = vsel %vm951, %v968, %v970
  %v972 = vrot.slane %v277, 2
  %v973 = vrot.slane %v278, 2
  %v974 = vsel %vm951, %v972, %v973
  %v975 = vrot.slane %v279, 2
  %v976 = vsel %vm951, %v973, %v975
  %v977 = vrot.slane %v280, 2
  %v978 = vrot.slane %v281, 2
  %v979 = vsel %vm951, %v977, %v978
  %v980 = vrot.slane %v282, 2
  %v981 = vsel %vm951, %v978, %v980
  %v982 = vrot.slane %v283, 2
  %v983 = vrot.slane %v284, 2
  %v984 = vsel %vm951, %v982, %v983
  %v985 = vrot.slane %v285, 2
  %v986 = vsel %vm951, %v983, %v985
  %v987 = vrot.slane %v286, 2
  %v988 = vrot.slane %v287, 2
  %v989 = vsel %vm951, %v987, %v988
  %v990 = vrot.slane %v288, 2
  %v991 = vsel %vm951, %v988, %v990
  %v992 = vrot.slane %v289, 2
  %v993 = vrot.slane %v290, 2
  %v994 = vsel %vm951, %v992, %v993
  %v995 = vrot.slane %v291, 2
  %v996 = vsel %vm951, %v993, %v995
  %v997 = vrot.slane %v292, 2
  %v998 = vrot.slane %v293, 2
  %v999 = vsel %vm951, %v997, %v998
  %v1000 = vrot.slane %v294, 2
  %v1001 = vsel %vm951, %v998, %v1000
  %v1002 = vrot.slane %v295, 2
  %v1003 = vrot.slane %v296, 2
  %v1004 = vsel %vm951, %v1002, %v1003
  %v1005 = vrot.slane %v297, 2
  %v1006 = vsel %vm951, %v1003, %v1005
  %v1007 = vrot.slane %v298, 2
  %v1008 = vrot.slane %v299, 2
  %v1009 = vsel %vm951, %v1007, %v1008
  %v1010 = vrot.slane %v300, 2
  %v1011 = vsel %vm951, %v1008, %v1010
  %v1012 = vrot.slane %v301, 2
  %v1013 = vrot.slane %v302, 2
  %v1014 = vsel %vm951, %v1012, %v1013
  %v1015 = vrot.slane %v303, 2
  %v1016 = vsel %vm951, %v1013, %v1015
  %v1017 = vrot.slane %v304, 2
  %v1018 = vrot.slane %v305, 2
  %v1019 = vsel %vm951, %v1017, %v1018
  %v1020 = vrot.slane %v306, 2
  %v1021 = vsel %vm951, %v1018, %v1020
  %v1022 = vrot.slane %v307, 2
  %v1023 = vrot.slane %v308, 2
  %v1024 = vsel %vm951, %v1022, %v1023
  %v1025 = vrot.slane %v309, 2
  %v1026 = vsel %vm951, %v1023, %v1025
  %v1027 = vrot.slane %v310, 2
  %v1028 = vrot.slane %v311, 2
  %v1029 = vsel %vm951, %v1027, %v1028
  %v1030 = vrot.slane %v312, 2
  %v1031 = vsel %vm951, %v1028, %v1030
  %v1032 = vrot.slane %v319, 2
  %v1033 = vrot.slane %v320, 2
  %v1034 = vsel %vm951, %v1032, %v1033
  %v1035 = vrot.slane %v321, 2
  %v1036 = vsel %vm951, %v1033, %v1035
  %v1037 = vrot.slane %v322, 2
  %v1038 = vrot.slane %v323, 2
  %v1039 = vsel %vm951, %v1037, %v1038
  %v1040 = vrot.slane %v324, 2
  %v1041 = vsel %vm951, %v1038, %v1040
  %v1042 = vrot.slane %v325, 2
  %v1043 = vrot.slane %v326, 2
  %v1044 = vsel %vm951, %v1042, %v1043
  %v1045 = vrot.slane %v327, 2
  %v1046 = vsel %vm951, %v1043, %v1045
  %v1047 = vrot.slane %v328, 2
  %v1048 = vrot.slane %v329, 2
  %v1049 = vsel %vm951, %v1047, %v1048
  %v1050 = vrot.slane %v330, 2
  %v1051 = vsel %vm951, %v1048, %v1050
  %v1052 = vrot.slane %v331, 2
  %v1053 = vrot.slane %v332, 2
  %v1054 = vsel %vm951, %v1052, %v1053
  %v1055 = vrot.slane %v333, 2
  %v1056 = vsel %vm951, %v1053, %v1055
  %v1057 = vrot.slane %v334, 2
  %v1058 = vrot.slane %v335, 2
  %v1059 = vsel %vm951, %v1057, %v1058
  %v1060 = vrot.slane %v336, 2
  %v1061 = vsel %vm951, %v1058, %v1060
  %v1062 = vrot.slane %v337, 2
  %v1063 = vrot.slane %v338, 2
  %v1064 = vsel %vm951, %v1062, %v1063
  %v1065 = vrot.slane %v339, 2
  %v1066 = vsel %vm951, %v1063, %v1065
  %v1067 = vrot.slane %v340, 2
  %v1068 = vrot.slane %v341, 2
  %v1069 = vsel %vm951, %v1067, %v1068
  %v1070 = vrot.slane %v342, 2
  %v1071 = vsel %vm951, %v1068, %v1070
  %v1072 = vrot.slane %v343, 2
  %v1073 = vrot.slane %v344, 2
  %v1074 = vsel %vm951, %v1072, %v1073
  %v1075 = vrot.slane %v345, 2
  %v1076 = vsel %vm951, %v1073, %v1075
  %v1077 = vrot.slane %v346, 2
  %v1078 = vrot.slane %v347, 2
  %v1079 = vsel %vm951, %v1077, %v1078
  %v1080 = vrot.slane %v348, 2
  %v1081 = vsel %vm951, %v1078, %v1080
  %v1082 = vrot.slane %v349, 2
  %v1083 = vrot.slane %v350, 2
  %v1084 = vsel %vm951, %v1082, %v1083
  %v1085 = vrot.slane %v351, 2
  %v1086 = vsel %vm951, %v1083, %v1085
  %v1087 = vrot.slane %v352, 2
  %v1088 = vrot.slane %v353, 2
  %v1089 = vsel %vm951, %v1087, %v1088
  %v1090 = vrot.slane %v354, 2
  %v1091 = vsel %vm951, %v1088, %v1090
  %v1092 = vrot.slane %v355, 2
  %v1093 = vrot.slane %v356, 2
  %v1094 = vsel %vm951, %v1092, %v1093
  %v1095 = vrot.slane %v357, 2
  %v1096 = vsel %vm951, %v1093, %v1095
  %v1097 = vrot.slane %v358, 2
  %v1098 = vrot.slane %v359, 2
  %v1099 = vsel %vm951, %v1097, %v1098
  %v1100 = vrot.slane %v360, 2
  %v1101 = vsel %vm951, %v1098, %v1100
  %v1102 = vrot.slane %v361, 2
  %v1103 = vrot.slane %v362, 2
  %v1104 = vsel %vm951, %v1102, %v1103
  %v1105 = vrot.slane %v363, 2
  %v1106 = vsel %vm951, %v1103, %v1105
  %v1107 = vrot.slane %v364, 2
  %v1108 = vrot.slane %v365, 2
  %v1109 = vsel %vm951, %v1107, %v1108
  %v1110 = vrot.slane %v366, 2
  %v1111 = vsel %vm951, %v1108, %v1110
  %1112 = vrot.lane.b32.xlu0 %v954, 8
  %v1113 = vpop.permute.xlu0 %1112
  %1114 = vrot.lane.b32.xlu0 %v956, 8
  %v1115 = vpop.permute.xlu0 %1114
  %1116 = vrot.lane.b32.xlu0 %v959, 8
  %v1117 = vpop.permute.xlu0 %1116
  %1118 = vrot.lane.b32.xlu0 %v961, 8
  %v1119 = vpop.permute.xlu0 %1118
  %1120 = vrot.lane.b32.xlu0 %v964, 8
  %v1121 = vpop.permute.xlu0 %1120
  %1122 = vrot.lane.b32.xlu0 %v966, 8
  %v1123 = vpop.permute.xlu0 %1122
  %1124 = vrot.lane.b32.xlu0 %v969, 8
  %v1125 = vpop.permute.xlu0 %1124
  %1126 = vrot.lane.b32.xlu0 %v971, 8
  %v1127 = vpop.permute.xlu0 %1126
  %1128 = vrot.lane.b32.xlu0 %v974, 8
  %v1129 = vpop.permute.xlu0 %1128
  %1130 = vrot.lane.b32.xlu0 %v976, 8
  %v1131 = vpop.permute.xlu0 %1130
  %1132 = vrot.lane.b32.xlu0 %v979, 8
  %v1133 = vpop.permute.xlu0 %1132
  %1134 = vrot.lane.b32.xlu0 %v981, 8
  %v1135 = vpop.permute.xlu0 %1134
  %1136 = vrot.lane.b32.xlu0 %v984, 8
  %v1137 = vpop.permute.xlu0 %1136
  %1138 = vrot.lane.b32.xlu0 %v986, 8
  %v1139 = vpop.permute.xlu0 %1138
  %1140 = vrot.lane.b32.xlu0 %v989, 8
  %v1141 = vpop.permute.xlu0 %1140
  %1142 = vrot.lane.b32.xlu0 %v991, 8
  %v1143 = vpop.permute.xlu0 %1142
  %1144 = vrot.lane.b32.xlu0 %v994, 8
  %v1145 = vpop.permute.xlu0 %1144
  %1146 = vrot.lane.b32.xlu0 %v996, 8
  %v1147 = vpop.permute.xlu0 %1146
  %1148 = vrot.lane.b32.xlu0 %v999, 8
  %v1149 = vpop.permute.xlu0 %1148
  %1150 = vrot.lane.b32.xlu0 %v1001, 8
  %v1151 = vpop.permute.xlu0 %1150
  %1152 = vrot.lane.b32.xlu0 %v1004, 8
  %v1153 = vpop.permute.xlu0 %1152
  %1154 = vrot.lane.b32.xlu0 %v1006, 8
  %v1155 = vpop.permute.xlu0 %1154
  %1156 = vrot.lane.b32.xlu0 %v1009, 8
  %v1157 = vpop.permute.xlu0 %1156
  %1158 = vrot.lane.b32.xlu0 %v1011, 8
  %v1159 = vpop.permute.xlu0 %1158
  %1160 = vrot.lane.b32.xlu0 %v1014, 8
  %v1161 = vpop.permute.xlu0 %1160
  %1162 = vrot.lane.b32.xlu0 %v1016, 8
  %v1163 = vpop.permute.xlu0 %1162
  %1164 = vrot.lane.b32.xlu0 %v1019, 8
  %v1165 = vpop.permute.xlu0 %1164
  %1166 = vrot.lane.b32.xlu0 %v1021, 8
  %v1167 = vpop.permute.xlu0 %1166
  %1168 = vrot.lane.b32.xlu0 %v1024, 8
  %v1169 = vpop.permute.xlu0 %1168
  %1170 = vrot.lane.b32.xlu0 %v1026, 8
  %v1171 = vpop.permute.xlu0 %1170
  %1172 = vrot.lane.b32.xlu0 %v1029, 8
  %v1173 = vpop.permute.xlu0 %1172
  %1174 = vrot.lane.b32.xlu0 %v1031, 8
  %v1175 = vpop.permute.xlu0 %1174
  %1176 = vrot.lane.b32.xlu0 %v1034, 8
  %v1177 = vpop.permute.xlu0 %1176
  %1178 = vrot.lane.b32.xlu0 %v1036, 8
  %v1179 = vpop.permute.xlu0 %1178
  %1180 = vrot.lane.b32.xlu0 %v1039, 8
  %v1181 = vpop.permute.xlu0 %1180
  %1182 = vrot.lane.b32.xlu0 %v1041, 8
  %v1183 = vpop.permute.xlu0 %1182
  %1184 = vrot.lane.b32.xlu0 %v1044, 8
  %v1185 = vpop.permute.xlu0 %1184
  %1186 = vrot.lane.b32.xlu0 %v1046, 8
  %v1187 = vpop.permute.xlu0 %1186
  %1188 = vrot.lane.b32.xlu0 %v1049, 8
  %v1189 = vpop.permute.xlu0 %1188
  %1190 = vrot.lane.b32.xlu0 %v1051, 8
  %v1191 = vpop.permute.xlu0 %1190
  %1192 = vrot.lane.b32.xlu0 %v1054, 8
  %v1193 = vpop.permute.xlu0 %1192
  %1194 = vrot.lane.b32.xlu0 %v1056, 8
  %v1195 = vpop.permute.xlu0 %1194
  %1196 = vrot.lane.b32.xlu0 %v1059, 8
  %v1197 = vpop.permute.xlu0 %1196
  %1198 = vrot.lane.b32.xlu0 %v1061, 8
  %v1199 = vpop.permute.xlu0 %1198
  %1200 = vrot.lane.b32.xlu0 %v1064, 8
  %v1201 = vpop.permute.xlu0 %1200
  %1202 = vrot.lane.b32.xlu0 %v1066, 8
  %v1203 = vpop.permute.xlu0 %1202
  %1204 = vrot.lane.b32.xlu0 %v1069, 8
  %v1205 = vpop.permute.xlu0 %1204
  %1206 = vrot.lane.b32.xlu0 %v1071, 8
  %v1207 = vpop.permute.xlu0 %1206
  %1208 = vrot.lane.b32.xlu0 %v1074, 8
  %v1209 = vpop.permute.xlu0 %1208
  %1210 = vrot.lane.b32.xlu0 %v1076, 8
  %v1211 = vpop.permute.xlu0 %1210
  %1212 = vrot.lane.b32.xlu0 %v1079, 8
  %v1213 = vpop.permute.xlu0 %1212
  %1214 = vrot.lane.b32.xlu0 %v1081, 8
  %v1215 = vpop.permute.xlu0 %1214
  %1216 = vrot.lane.b32.xlu0 %v1084, 8
  %v1217 = vpop.permute.xlu0 %1216
  %1218 = vrot.lane.b32.xlu0 %v1086, 8
  %v1219 = vpop.permute.xlu0 %1218
  %1220 = vrot.lane.b32.xlu0 %v1089, 8
  %v1221 = vpop.permute.xlu0 %1220
  %1222 = vrot.lane.b32.xlu0 %v1091, 8
  %v1223 = vpop.permute.xlu0 %1222
  %1224 = vrot.lane.b32.xlu0 %v1094, 8
  %v1225 = vpop.permute.xlu0 %1224
  %1226 = vrot.lane.b32.xlu0 %v1096, 8
  %v1227 = vpop.permute.xlu0 %1226
  %1228 = vrot.lane.b32.xlu0 %v1099, 8
  %v1229 = vpop.permute.xlu0 %1228
  %1230 = vrot.lane.b32.xlu0 %v1101, 8
  %v1231 = vpop.permute.xlu0 %1230
  %1232 = vrot.lane.b32.xlu0 %v1104, 8
  %v1233 = vpop.permute.xlu0 %1232
  %1234 = vrot.lane.b32.xlu0 %v1106, 8
  %v1235 = vpop.permute.xlu0 %1234
  %1236 = vrot.lane.b32.xlu0 %v1109, 8
  %v1237 = vpop.permute.xlu0 %1236
  %1238 = vrot.lane.b32.xlu0 %v1111, 8
  %v1239 = vpop.permute.xlu0 %1238
  %vm1304 = vcmask 97344
  %1305 = vst.msk [vmem:[#allocation4] sm:$0xff] %vm1304, %v1113
  %1306 = vst.msk [vmem:[#allocation4 + $0x8] sm:$0xff] %vm1304, %v1115
  %1307 = vst.msk [vmem:[#allocation4 + $0x10] sm:$0xff] %vm1304, %v1117
  %1308 = vst.msk [vmem:[#allocation4 + $0x18] sm:$0xff] %vm1304, %v1119
  %1309 = vst.msk [vmem:[#allocation4 + $0x20] sm:$0xff] %vm1304, %v1121
  %1310 = vst.msk [vmem:[#allocation4 + $0x28] sm:$0xff] %vm1304, %v1123
  %1311 = vst.msk [vmem:[#allocation4 + $0x30] sm:$0xff] %vm1304, %v1125
  %1312 = vst.msk [vmem:[#allocation4 + $0x38] sm:$0xff] %vm1304, %v1127
  %1313 = vst.msk [vmem:[#allocation4 + $0x40] sm:$0xff] %vm1304, %v1129
  %1314 = vst.msk [vmem:[#allocation4 + $0x48] sm:$0xff] %vm1304, %v1131
  %1315 = vst.msk [vmem:[#allocation4 + $0x50] sm:$0xff] %vm1304, %v1133
  %1316 = vst.msk [vmem:[#allocation4 + $0x58] sm:$0xff] %vm1304, %v1135
  %1317 = vst.msk [vmem:[#allocation4 + $0x60] sm:$0xff] %vm1304, %v1137
  %1318 = vst.msk [vmem:[#allocation4 + $0x68] sm:$0xff] %vm1304, %v1139
  %1319 = vst.msk [vmem:[#allocation4 + $0x70] sm:$0xff] %vm1304, %v1141
  %1320 = vst.msk [vmem:[#allocation4 + $0x78] sm:$0xff] %vm1304, %v1143
  %1321 = vst.msk [vmem:[#allocation4 + $0x80] sm:$0xff] %vm1304, %v1145
  %1322 = vst.msk [vmem:[#allocation4 + $0x88] sm:$0xff] %vm1304, %v1147
  %1323 = vst.msk [vmem:[#allocation4 + $0x90] sm:$0xff] %vm1304, %v1149
  %1324 = vst.msk [vmem:[#allocation4 + $0x98] sm:$0xff] %vm1304, %v1151
  %1325 = vst.msk [vmem:[#allocation4 + $0xa0] sm:$0xff] %vm1304, %v1153
  %1326 = vst.msk [vmem:[#allocation4 + $0xa8] sm:$0xff] %vm1304, %v1155
  %1327 = vst.msk [vmem:[#allocation4 + $0xb0] sm:$0xff] %vm1304, %v1157
  %1328 = vst.msk [vmem:[#allocation4 + $0xb8] sm:$0xff] %vm1304, %v1159
  %1329 = vst.msk [vmem:[#allocation4 + $0xc0] sm:$0xff] %vm1304, %v1161
  %1330 = vst.msk [vmem:[#allocation4 + $0xc8] sm:$0xff] %vm1304, %v1163
  %1331 = vst.msk [vmem:[#allocation4 + $0xd0] sm:$0xff] %vm1304, %v1165
  %1332 = vst.msk [vmem:[#allocation4 + $0xd8] sm:$0xff] %vm1304, %v1167
  %1333 = vst.msk [vmem:[#allocation4 + $0xe0] sm:$0xff] %vm1304, %v1169
  %1334 = vst.msk [vmem:[#allocation4 + $0xe8] sm:$0xff] %vm1304, %v1171
  %1335 = vst.msk [vmem:[#allocation4 + $0xf0] sm:$0xff] %vm1304, %v1173
  %1336 = vst.msk [vmem:[#allocation4 + $0xf8] sm:$0xff] %vm1304, %v1175
  %1337 = vst.msk [vmem:[#allocation4 + $0x100] sm:$0xff] %vm1304, %v1177
  %1338 = vst.msk [vmem:[#allocation4 + $0x108] sm:$0xff] %vm1304, %v1179
  %1339 = vst.msk [vmem:[#allocation4 + $0x110] sm:$0xff] %vm1304, %v1181
  %1340 = vst.msk [vmem:[#allocation4 + $0x118] sm:$0xff] %vm1304, %v1183
  %1341 = vst.msk [vmem:[#allocation4 + $0x120] sm:$0xff] %vm1304, %v1185
  %1342 = vst.msk [vmem:[#allocation4 + $0x128] sm:$0xff] %vm1304, %v1187
  %1343 = vst.msk [vmem:[#allocation4 + $0x130] sm:$0xff] %vm1304, %v1189
  %1344 = vst.msk [vmem:[#allocation4 + $0x138] sm:$0xff] %vm1304, %v1191
  %1345 = vst.msk [vmem:[#allocation4 + $0x140] sm:$0xff] %vm1304, %v1193
  %1346 = vst.msk [vmem:[#allocation4 + $0x148] sm:$0xff] %vm1304, %v1195
  %1347 = vst.msk [vmem:[#allocation4 + $0x150] sm:$0xff] %vm1304, %v1197
  %1348 = vst.msk [vmem:[#allocation4 + $0x158] sm:$0xff] %vm1304, %v1199
  %1349 = vst.msk [vmem:[#allocation4 + $0x160] sm:$0xff] %vm1304, %v1201
  %1350 = vst.msk [vmem:[#allocation4 + $0x168] sm:$0xff] %vm1304, %v1203
  %1351 = vst.msk [vmem:[#allocation4 + $0x170] sm:$0xff] %vm1304, %v1205
  %1352 = vst.msk [vmem:[#allocation4 + $0x178] sm:$0xff] %vm1304, %v1207
  %1353 = vst.msk [vmem:[#allocation4 + $0x180] sm:$0xff] %vm1304, %v1209
  %1354 = vst.msk [vmem:[#allocation4 + $0x188] sm:$0xff] %vm1304, %v1211
  %1355 = vst.msk [vmem:[#allocation4 + $0x190] sm:$0xff] %vm1304, %v1213
  %1356 = vst.msk [vmem:[#allocation4 + $0x198] sm:$0xff] %vm1304, %v1215
  %1357 = vst.msk [vmem:[#allocation4 + $0x1a0] sm:$0xff] %vm1304, %v1217
  %1358 = vst.msk [vmem:[#allocation4 + $0x1a8] sm:$0xff] %vm1304, %v1219
  %1359 = vst.msk [vmem:[#allocation4 + $0x1b0] sm:$0xff] %vm1304, %v1221
  %1360 = vst.msk [vmem:[#allocation4 + $0x1b8] sm:$0xff] %vm1304, %v1223
  %1361 = vst.msk [vmem:[#allocation4 + $0x1c0] sm:$0xff] %vm1304, %v1225
  %1362 = vst.msk [vmem:[#allocation4 + $0x1c8] sm:$0xff] %vm1304, %v1227
  %1363 = vst.msk [vmem:[#allocation4 + $0x1d0] sm:$0xff] %vm1304, %v1229
  %1364 = vst.msk [vmem:[#allocation4 + $0x1d8] sm:$0xff] %vm1304, %v1231
  %1365 = vst.msk [vmem:[#allocation4 + $0x1e0] sm:$0xff] %vm1304, %v1233
  %1366 = vst.msk [vmem:[#allocation4 + $0x1e8] sm:$0xff] %vm1304, %v1235
  %1367 = vst.msk [vmem:[#allocation4 + $0x1f0] sm:$0xff] %vm1304, %v1237
  %1368 = vst.msk [vmem:[#allocation4 + $0x1f8] sm:$0xff] %vm1304, %v1239
  %1373 = vrot.lane.b32.xlu0 %v268, 12
  %v1374 = vpop.permute.xlu0 %1373
  %1375 = vrot.lane.b32.xlu0 %v269, 12
  %v1376 = vpop.permute.xlu0 %1375
  %1377 = vrot.lane.b32.xlu0 %v271, 12
  %v1378 = vpop.permute.xlu0 %1377
  %1379 = vrot.lane.b32.xlu0 %v272, 12
  %v1380 = vpop.permute.xlu0 %1379
  %1381 = vrot.lane.b32.xlu0 %v274, 12
  %v1382 = vpop.permute.xlu0 %1381
  %1383 = vrot.lane.b32.xlu0 %v275, 12
  %v1384 = vpop.permute.xlu0 %1383
  %1385 = vrot.lane.b32.xlu0 %v277, 12
  %v1386 = vpop.permute.xlu0 %1385
  %1387 = vrot.lane.b32.xlu0 %v278, 12
  %v1388 = vpop.permute.xlu0 %1387
  %1389 = vrot.lane.b32.xlu0 %v280, 12
  %v1390 = vpop.permute.xlu0 %1389
  %1391 = vrot.lane.b32.xlu0 %v281, 12
  %v1392 = vpop.permute.xlu0 %1391
  %1393 = vrot.lane.b32.xlu0 %v283, 12
  %v1394 = vpop.permute.xlu0 %1393
  %1395 = vrot.lane.b32.xlu0 %v284, 12
  %v1396 = vpop.permute.xlu0 %1395
  %1397 = vrot.lane.b32.xlu0 %v286, 12
  %v1398 = vpop.permute.xlu0 %1397
  %1399 = vrot.lane.b32.xlu0 %v287, 12
  %v1400 = vpop.permute.xlu0 %1399
  %1401 = vrot.lane.b32.xlu0 %v289, 12
  %v1402 = vpop.permute.xlu0 %1401
  %1403 = vrot.lane.b32.xlu0 %v290, 12
  %v1404 = vpop.permute.xlu0 %1403
  %1405 = vrot.lane.b32.xlu0 %v292, 12
  %v1406 = vpop.permute.xlu0 %1405
  %1407 = vrot.lane.b32.xlu0 %v293, 12
  %v1408 = vpop.permute.xlu0 %1407
  %1409 = vrot.lane.b32.xlu0 %v295, 12
  %v1410 = vpop.permute.xlu0 %1409
  %1411 = vrot.lane.b32.xlu0 %v296, 12
  %v1412 = vpop.permute.xlu0 %1411
  %1413 = vrot.lane.b32.xlu0 %v298, 12
  %v1414 = vpop.permute.xlu0 %1413
  %1415 = vrot.lane.b32.xlu0 %v299, 12
  %v1416 = vpop.permute.xlu0 %1415
  %1417 = vrot.lane.b32.xlu0 %v301, 12
  %v1418 = vpop.permute.xlu0 %1417
  %1419 = vrot.lane.b32.xlu0 %v302, 12
  %v1420 = vpop.permute.xlu0 %1419
  %1421 = vrot.lane.b32.xlu0 %v304, 12
  %v1422 = vpop.permute.xlu0 %1421
  %1423 = vrot.lane.b32.xlu0 %v305, 12
  %v1424 = vpop.permute.xlu0 %1423
  %1425 = vrot.lane.b32.xlu0 %v307, 12
  %v1426 = vpop.permute.xlu0 %1425
  %1427 = vrot.lane.b32.xlu0 %v308, 12
  %v1428 = vpop.permute.xlu0 %1427
  %1429 = vrot.lane.b32.xlu0 %v310, 12
  %v1430 = vpop.permute.xlu0 %1429
  %1431 = vrot.lane.b32.xlu0 %v311, 12
  %v1432 = vpop.permute.xlu0 %1431
  %1433 = vrot.lane.b32.xlu0 %v313, 12
  %v1434 = vpop.permute.xlu0 %1433
  %1435 = vrot.lane.b32.xlu0 %v314, 12
  %v1436 = vpop.permute.xlu0 %1435
  %1437 = vrot.lane.b32.xlu0 %v322, 12
  %v1438 = vpop.permute.xlu0 %1437
  %1439 = vrot.lane.b32.xlu0 %v323, 12
  %v1440 = vpop.permute.xlu0 %1439
  %1441 = vrot.lane.b32.xlu0 %v325, 12
  %v1442 = vpop.permute.xlu0 %1441
  %1443 = vrot.lane.b32.xlu0 %v326, 12
  %v1444 = vpop.permute.xlu0 %1443
  %1445 = vrot.lane.b32.xlu0 %v328, 12
  %v1446 = vpop.permute.xlu0 %1445
  %1447 = vrot.lane.b32.xlu0 %v329, 12
  %v1448 = vpop.permute.xlu0 %1447
  %1449 = vrot.lane.b32.xlu0 %v331, 12
  %v1450 = vpop.permute.xlu0 %1449
  %1451 = vrot.lane.b32.xlu0 %v332, 12
  %v1452 = vpop.permute.xlu0 %1451
  %1453 = vrot.lane.b32.xlu0 %v334, 12
  %v1454 = vpop.permute.xlu0 %1453
  %1455 = vrot.lane.b32.xlu0 %v335, 12
  %v1456 = vpop.permute.xlu0 %1455
  %1457 = vrot.lane.b32.xlu0 %v337, 12
  %v1458 = vpop.permute.xlu0 %1457
  %1459 = vrot.lane.b32.xlu0 %v338, 12
  %v1460 = vpop.permute.xlu0 %1459
  %1461 = vrot.lane.b32.xlu0 %v340, 12
  %v1462 = vpop.permute.xlu0 %1461
  %1463 = vrot.lane.b32.xlu0 %v341, 12
  %v1464 = vpop.permute.xlu0 %1463
  %1465 = vrot.lane.b32.xlu0 %v343, 12
  %v1466 = vpop.permute.xlu0 %1465
  %1467 = vrot.lane.b32.xlu0 %v344, 12
  %v1468 = vpop.permute.xlu0 %1467
  %1469 = vrot.lane.b32.xlu0 %v346, 12
  %v1470 = vpop.permute.xlu0 %1469
  %1471 = vrot.lane.b32.xlu0 %v347, 12
  %v1472 = vpop.permute.xlu0 %1471
  %1473 = vrot.lane.b32.xlu0 %v349, 12
  %v1474 = vpop.permute.xlu0 %1473
  %1475 = vrot.lane.b32.xlu0 %v350, 12
  %v1476 = vpop.permute.xlu0 %1475
  %1477 = vrot.lane.b32.xlu0 %v352, 12
  %v1478 = vpop.permute.xlu0 %1477
  %1479 = vrot.lane.b32.xlu0 %v353, 12
  %v1480 = vpop.permute.xlu0 %1479
  %1481 = vrot.lane.b32.xlu0 %v355, 12
  %v1482 = vpop.permute.xlu0 %1481
  %1483 = vrot.lane.b32.xlu0 %v356, 12
  %v1484 = vpop.permute.xlu0 %1483
  %1485 = vrot.lane.b32.xlu0 %v358, 12
  %v1486 = vpop.permute.xlu0 %1485
  %1487 = vrot.lane.b32.xlu0 %v359, 12
  %v1488 = vpop.permute.xlu0 %1487
  %1489 = vrot.lane.b32.xlu0 %v361, 12
  %v1490 = vpop.permute.xlu0 %1489
  %1491 = vrot.lane.b32.xlu0 %v362, 12
  %v1492 = vpop.permute.xlu0 %1491
  %1493 = vrot.lane.b32.xlu0 %v364, 12
  %v1494 = vpop.permute.xlu0 %1493
  %1495 = vrot.lane.b32.xlu0 %v365, 12
  %v1496 = vpop.permute.xlu0 %1495
  %1497 = vrot.lane.b32.xlu0 %v367, 12
  %v1498 = vpop.permute.xlu0 %1497
  %1499 = vrot.lane.b32.xlu0 %v368, 12
  %v1500 = vpop.permute.xlu0 %1499
  %vm1565 = vcmask 130144
  %1566 = vst.msk [vmem:[#allocation4] sm:$0xff] %vm1565, %v1374
  %1567 = vst.msk [vmem:[#allocation4 + $0x8] sm:$0xff] %vm1565, %v1376
  %1568 = vst.msk [vmem:[#allocation4 + $0x10] sm:$0xff] %vm1565, %v1378
  %1569 = vst.msk [vmem:[#allocation4 + $0x18] sm:$0xff] %vm1565, %v1380
  %1570 = vst.msk [vmem:[#allocation4 + $0x20] sm:$0xff] %vm1565, %v1382
  %1571 = vst.msk [vmem:[#allocation4 + $0x28] sm:$0xff] %vm1565, %v1384
  %1572 = vst.msk [vmem:[#allocation4 + $0x30] sm:$0xff] %vm1565, %v1386
  %1573 = vst.msk [vmem:[#allocation4 + $0x38] sm:$0xff] %vm1565, %v1388
  %1574 = vst.msk [vmem:[#allocation4 + $0x40] sm:$0xff] %vm1565, %v1390
  %1575 = vst.msk [vmem:[#allocation4 + $0x48] sm:$0xff] %vm1565, %v1392
  %1576 = vst.msk [vmem:[#allocation4 + $0x50] sm:$0xff] %vm1565, %v1394
  %1577 = vst.msk [vmem:[#allocation4 + $0x58] sm:$0xff] %vm1565, %v1396
  %1578 = vst.msk [vmem:[#allocation4 + $0x60] sm:$0xff] %vm1565, %v1398
  %1579 = vst.msk [vmem:[#allocation4 + $0x68] sm:$0xff] %vm1565, %v1400
  %1580 = vst.msk [vmem:[#allocation4 + $0x70] sm:$0xff] %vm1565, %v1402
  %1581 = vst.msk [vmem:[#allocation4 + $0x78] sm:$0xff] %vm1565, %v1404
  %1582 = vst.msk [vmem:[#allocation4 + $0x80] sm:$0xff] %vm1565, %v1406
  %1583 = vst.msk [vmem:[#allocation4 + $0x88] sm:$0xff] %vm1565, %v1408
  %1584 = vst.msk [vmem:[#allocation4 + $0x90] sm:$0xff] %vm1565, %v1410
  %1585 = vst.msk [vmem:[#allocation4 + $0x98] sm:$0xff] %vm1565, %v1412
  %1586 = vst.msk [vmem:[#allocation4 + $0xa0] sm:$0xff] %vm1565, %v1414
  %1587 = vst.msk [vmem:[#allocation4 + $0xa8] sm:$0xff] %vm1565, %v1416
  %1588 = vst.msk [vmem:[#allocation4 + $0xb0] sm:$0xff] %vm1565, %v1418
  %1589 = vst.msk [vmem:[#allocation4 + $0xb8] sm:$0xff] %vm1565, %v1420
  %1590 = vst.msk [vmem:[#allocation4 + $0xc0] sm:$0xff] %vm1565, %v1422
  %1591 = vst.msk [vmem:[#allocation4 + $0xc8] sm:$0xff] %vm1565, %v1424
  %1592 = vst.msk [vmem:[#allocation4 + $0xd0] sm:$0xff] %vm1565, %v1426
  %1593 = vst.msk [vmem:[#allocation4 + $0xd8] sm:$0xff] %vm1565, %v1428
  %1594 = vst.msk [vmem:[#allocation4 + $0xe0] sm:$0xff] %vm1565, %v1430
  %1595 = vst.msk [vmem:[#allocation4 + $0xe8] sm:$0xff] %vm1565, %v1432
  %1596 = vst.msk [vmem:[#allocation4 + $0xf0] sm:$0xff] %vm1565, %v1434
  %1597 = vst.msk [vmem:[#allocation4 + $0xf8] sm:$0xff] %vm1565, %v1436
  %1598 = vst.msk [vmem:[#allocation4 + $0x100] sm:$0xff] %vm1565, %v1438
  %1599 = vst.msk [vmem:[#allocation4 + $0x108] sm:$0xff] %vm1565, %v1440
  %1600 = vst.msk [vmem:[#allocation4 + $0x110] sm:$0xff] %vm1565, %v1442
  %1601 = vst.msk [vmem:[#allocation4 + $0x118] sm:$0xff] %vm1565, %v1444
  %1602 = vst.msk [vmem:[#allocation4 + $0x120] sm:$0xff] %vm1565, %v1446
  %1603 = vst.msk [vmem:[#allocation4 + $0x128] sm:$0xff] %vm1565, %v1448
  %1604 = vst.msk [vmem:[#allocation4 + $0x130] sm:$0xff] %vm1565, %v1450
  %1605 = vst.msk [vmem:[#allocation4 + $0x138] sm:$0xff] %vm1565, %v1452
  %1606 = vst.msk [vmem:[#allocation4 + $0x140] sm:$0xff] %vm1565, %v1454
  %1607 = vst.msk [vmem:[#allocation4 + $0x148] sm:$0xff] %vm1565, %v1456
  %1608 = vst.msk [vmem:[#allocation4 + $0x150] sm:$0xff] %vm1565, %v1458
  %1609 = vst.msk [vmem:[#allocation4 + $0x158] sm:$0xff] %vm1565, %v1460
  %1610 = vst.msk [vmem:[#allocation4 + $0x160] sm:$0xff] %vm1565, %v1462
  %1611 = vst.msk [vmem:[#allocation4 + $0x168] sm:$0xff] %vm1565, %v1464
  %1612 = vst.msk [vmem:[#allocation4 + $0x170] sm:$0xff] %vm1565, %v1466
  %1613 = vst.msk [vmem:[#allocation4 + $0x178] sm:$0xff] %vm1565, %v1468
  %1614 = vst.msk [vmem:[#allocation4 + $0x180] sm:$0xff] %vm1565, %v1470
  %1615 = vst.msk [vmem:[#allocation4 + $0x188] sm:$0xff] %vm1565, %v1472
  %1616 = vst.msk [vmem:[#allocation4 + $0x190] sm:$0xff] %vm1565, %v1474
  %1617 = vst.msk [vmem:[#allocation4 + $0x198] sm:$0xff] %vm1565, %v1476
  %1618 = vst.msk [vmem:[#allocation4 + $0x1a0] sm:$0xff] %vm1565, %v1478
  %1619 = vst.msk [vmem:[#allocation4 + $0x1a8] sm:$0xff] %vm1565, %v1480
  %1620 = vst.msk [vmem:[#allocation4 + $0x1b0] sm:$0xff] %vm1565, %v1482
  %1621 = vst.msk [vmem:[#allocation4 + $0x1b8] sm:$0xff] %vm1565, %v1484
  %1622 = vst.msk [vmem:[#allocation4 + $0x1c0] sm:$0xff] %vm1565, %v1486
  %1623 = vst.msk [vmem:[#allocation4 + $0x1c8] sm:$0xff] %vm1565, %v1488
  %1624 = vst.msk [vmem:[#allocation4 + $0x1d0] sm:$0xff] %vm1565, %v1490
  %1625 = vst.msk [vmem:[#allocation4 + $0x1d8] sm:$0xff] %vm1565, %v1492
  %1626 = vst.msk [vmem:[#allocation4 + $0x1e0] sm:$0xff] %vm1565, %v1494
  %1627 = vst.msk [vmem:[#allocation4 + $0x1e8] sm:$0xff] %vm1565, %v1496
  %1628 = vst.msk [vmem:[#allocation4 + $0x1f0] sm:$0xff] %vm1565, %v1498
  %1629 = vst.msk [vmem:[#allocation4 + $0x1f8] sm:$0xff] %vm1565, %v1500
  %v1632 = vrot.slane %v313, 1
  %v1633 = vrot.slane %v314, 1
  %v1634 = vsel %vm533, %v1632, %v1633
  %v1635 = vrot.slane %v315, 1
  %v1636 = vsel %vm533, %v1633, %v1635
  %v1637 = vrot.slane %v367, 1
  %v1638 = vrot.slane %v368, 1
  %v1639 = vsel %vm533, %v1637, %v1638
  %v1640 = vrot.slane %v369, 1
  %v1641 = vsel %vm533, %v1638, %v1640
  %1642 = vrot.lane.b32.xlu0 %v541, 16
  %v1643 = vpop.permute.xlu0 %1642
  %1644 = vrot.lane.b32.xlu0 %v543, 16
  %v1645 = vpop.permute.xlu0 %1644
  %1646 = vrot.lane.b32.xlu0 %v546, 16
  %v1647 = vpop.permute.xlu0 %1646
  %1648 = vrot.lane.b32.xlu0 %v548, 16
  %v1649 = vpop.permute.xlu0 %1648
  %1650 = vrot.lane.b32.xlu0 %v551, 16
  %v1651 = vpop.permute.xlu0 %1650
  %1652 = vrot.lane.b32.xlu0 %v553, 16
  %v1653 = vpop.permute.xlu0 %1652
  %1654 = vrot.lane.b32.xlu0 %v556, 16
  %v1655 = vpop.permute.xlu0 %1654
  %1656 = vrot.lane.b32.xlu0 %v558, 16
  %v1657 = vpop.permute.xlu0 %1656
  %1658 = vrot.lane.b32.xlu0 %v561, 16
  %v1659 = vpop.permute.xlu0 %1658
  %1660 = vrot.lane.b32.xlu0 %v563, 16
  %v1661 = vpop.permute.xlu0 %1660
  %1662 = vrot.lane.b32.xlu0 %v566, 16
  %v1663 = vpop.permute.xlu0 %1662
  %1664 = vrot.lane.b32.xlu0 %v568, 16
  %v1665 = vpop.permute.xlu0 %1664
  %1666 = vrot.lane.b32.xlu0 %v571, 16
  %v1667 = vpop.permute.xlu0 %1666
  %1668 = vrot.lane.b32.xlu0 %v573, 16
  %v1669 = vpop.permute.xlu0 %1668
  %1670 = vrot.lane.b32.xlu0 %v576, 16
  %v1671 = vpop.permute.xlu0 %1670
  %1672 = vrot.lane.b32.xlu0 %v578, 16
  %v1673 = vpop.permute.xlu0 %1672
  %1674 = vrot.lane.b32.xlu0 %v581, 16
  %v1675 = vpop.permute.xlu0 %1674
  %1676 = vrot.lane.b32.xlu0 %v583, 16
  %v1677 = vpop.permute.xlu0 %1676
  %1678 = vrot.lane.b32.xlu0 %v586, 16
  %v1679 = vpop.permute.xlu0 %1678
  %1680 = vrot.lane.b32.xlu0 %v588, 16
  %v1681 = vpop.permute.xlu0 %1680
  %1682 = vrot.lane.b32.xlu0 %v591, 16
  %v1683 = vpop.permute.xlu0 %1682
  %1684 = vrot.lane.b32.xlu0 %v593, 16
  %v1685 = vpop.permute.xlu0 %1684
  %1686 = vrot.lane.b32.xlu0 %v596, 16
  %v1687 = vpop.permute.xlu0 %1686
  %1688 = vrot.lane.b32.xlu0 %v598, 16
  %v1689 = vpop.permute.xlu0 %1688
  %1690 = vrot.lane.b32.xlu0 %v601, 16
  %v1691 = vpop.permute.xlu0 %1690
  %1692 = vrot.lane.b32.xlu0 %v603, 16
  %v1693 = vpop.permute.xlu0 %1692
  %1694 = vrot.lane.b32.xlu0 %v606, 16
  %v1695 = vpop.permute.xlu0 %1694
  %1696 = vrot.lane.b32.xlu0 %v608, 16
  %v1697 = vpop.permute.xlu0 %1696
  %1698 = vrot.lane.b32.xlu0 %v611, 16
  %v1699 = vpop.permute.xlu0 %1698
  %1700 = vrot.lane.b32.xlu0 %v613, 16
  %v1701 = vpop.permute.xlu0 %1700
  %1702 = vrot.lane.b32.xlu0 %v1634, 16
  %v1703 = vpop.permute.xlu0 %1702
  %1704 = vrot.lane.b32.xlu0 %v1636, 16
  %v1705 = vpop.permute.xlu0 %1704
  %1706 = vrot.lane.b32.xlu0 %v621, 16
  %v1707 = vpop.permute.xlu0 %1706
  %1708 = vrot.lane.b32.xlu0 %v623, 16
  %v1709 = vpop.permute.xlu0 %1708
  %1710 = vrot.lane.b32.xlu0 %v626, 16
  %v1711 = vpop.permute.xlu0 %1710
  %1712 = vrot.lane.b32.xlu0 %v628, 16
  %v1713 = vpop.permute.xlu0 %1712
  %1714 = vrot.lane.b32.xlu0 %v631, 16
  %v1715 = vpop.permute.xlu0 %1714
  %1716 = vrot.lane.b32.xlu0 %v633, 16
  %v1717 = vpop.permute.xlu0 %1716
  %1718 = vrot.lane.b32.xlu0 %v636, 16
  %v1719 = vpop.permute.xlu0 %1718
  %1720 = vrot.lane.b32.xlu0 %v638, 16
  %v1721 = vpop.permute.xlu0 %1720
  %1722 = vrot.lane.b32.xlu0 %v641, 16
  %v1723 = vpop.permute.xlu0 %1722
  %1724 = vrot.lane.b32.xlu0 %v643, 16
  %v1725 = vpop.permute.xlu0 %1724
  %1726 = vrot.lane.b32.xlu0 %v646, 16
  %v1727 = vpop.permute.xlu0 %1726
  %1728 = vrot.lane.b32.xlu0 %v648, 16
  %v1729 = vpop.permute.xlu0 %1728
  %1730 = vrot.lane.b32.xlu0 %v651, 16
  %v1731 = vpop.permute.xlu0 %1730
  %1732 = vrot.lane.b32.xlu0 %v653, 16
  %v1733 = vpop.permute.xlu0 %1732
  %1734 = vrot.lane.b32.xlu0 %v656, 16
  %v1735 = vpop.permute.xlu0 %1734
  %1736 = vrot.lane.b32.xlu0 %v658, 16
  %v1737 = vpop.permute.xlu0 %1736
  %1738 = vrot.lane.b32.xlu0 %v661, 16
  %v1739 = vpop.permute.xlu0 %1738
  %1740 = vrot.lane.b32.xlu0 %v663, 16
  %v1741 = vpop.permute.xlu0 %1740
  %1742 = vrot.lane.b32.xlu0 %v666, 16
  %v1743 = vpop.permute.xlu0 %1742
  %1744 = vrot.lane.b32.xlu0 %v668, 16
  %v1745 = vpop.permute.xlu0 %1744
  %1746 = vrot.lane.b32.xlu0 %v671, 16
  %v1747 = vpop.permute.xlu0 %1746
  %1748 = vrot.lane.b32.xlu0 %v673, 16
  %v1749 = vpop.permute.xlu0 %1748
  %1750 = vrot.lane.b32.xlu0 %v676, 16
  %v1751 = vpop.permute.xlu0 %1750
  %1752 = vrot.lane.b32.xlu0 %v678, 16
  %v1753 = vpop.permute.xlu0 %1752
  %1754 = vrot.lane.b32.xlu0 %v681, 16
  %v1755 = vpop.permute.xlu0 %1754
  %1756 = vrot.lane.b32.xlu0 %v683, 16
  %v1757 = vpop.permute.xlu0 %1756
  %1758 = vrot.lane.b32.xlu0 %v686, 16
  %v1759 = vpop.permute.xlu0 %1758
  %1760 = vrot.lane.b32.xlu0 %v688, 16
  %v1761 = vpop.permute.xlu0 %1760
  %1762 = vrot.lane.b32.xlu0 %v691, 16
  %v1763 = vpop.permute.xlu0 %1762
  %1764 = vrot.lane.b32.xlu0 %v693, 16
  %v1765 = vpop.permute.xlu0 %1764
  %1766 = vrot.lane.b32.xlu0 %v1639, 16
  %v1767 = vpop.permute.xlu0 %1766
  %1768 = vrot.lane.b32.xlu0 %v1641, 16
  %v1769 = vpop.permute.xlu0 %1768
  %vm1834 = vcmask 162944
  %1835 = vst.msk [vmem:[#allocation4] sm:$0xff] %vm1834, %v1643
  %1836 = vst.msk [vmem:[#allocation4 + $0x8] sm:$0xff] %vm1834, %v1645
  %1837 = vst.msk [vmem:[#allocation4 + $0x10] sm:$0xff] %vm1834, %v1647
  %1838 = vst.msk [vmem:[#allocation4 + $0x18] sm:$0xff] %vm1834, %v1649
  %1839 = vst.msk [vmem:[#allocation4 + $0x20] sm:$0xff] %vm1834, %v1651
  %1840 = vst.msk [vmem:[#allocation4 + $0x28] sm:$0xff] %vm1834, %v1653
  %1841 = vst.msk [vmem:[#allocation4 + $0x30] sm:$0xff] %vm1834, %v1655
  %1842 = vst.msk [vmem:[#allocation4 + $0x38] sm:$0xff] %vm1834, %v1657
  %1843 = vst.msk [vmem:[#allocation4 + $0x40] sm:$0xff] %vm1834, %v1659
  %1844 = vst.msk [vmem:[#allocation4 + $0x48] sm:$0xff] %vm1834, %v1661
  %1845 = vst.msk [vmem:[#allocation4 + $0x50] sm:$0xff] %vm1834, %v1663
  %1846 = vst.msk [vmem:[#allocation4 + $0x58] sm:$0xff] %vm1834, %v1665
  %1847 = vst.msk [vmem:[#allocation4 + $0x60] sm:$0xff] %vm1834, %v1667
  %1848 = vst.msk [vmem:[#allocation4 + $0x68] sm:$0xff] %vm1834, %v1669
  %1849 = vst.msk [vmem:[#allocation4 + $0x70] sm:$0xff] %vm1834, %v1671
  %1850 = vst.msk [vmem:[#allocation4 + $0x78] sm:$0xff] %vm1834, %v1673
  %1851 = vst.msk [vmem:[#allocation4 + $0x80] sm:$0xff] %vm1834, %v1675
  %1852 = vst.msk [vmem:[#allocation4 + $0x88] sm:$0xff] %vm1834, %v1677
  %1853 = vst.msk [vmem:[#allocation4 + $0x90] sm:$0xff] %vm1834, %v1679
  %1854 = vst.msk [vmem:[#allocation4 + $0x98] sm:$0xff] %vm1834, %v1681
  %1855 = vst.msk [vmem:[#allocation4 + $0xa0] sm:$0xff] %vm1834, %v1683
  %1856 = vst.msk [vmem:[#allocation4 + $0xa8] sm:$0xff] %vm1834, %v1685
  %1857 = vst.msk [vmem:[#allocation4 + $0xb0] sm:$0xff] %vm1834, %v1687
  %1858 = vst.msk [vmem:[#allocation4 + $0xb8] sm:$0xff] %vm1834, %v1689
  %1859 = vst.msk [vmem:[#allocation4 + $0xc0] sm:$0xff] %vm1834, %v1691
  %1860 = vst.msk [vmem:[#allocation4 + $0xc8] sm:$0xff] %vm1834, %v1693
  %1861 = vst.msk [vmem:[#allocation4 + $0xd0] sm:$0xff] %vm1834, %v1695
  %1862 = vst.msk [vmem:[#allocation4 + $0xd8] sm:$0xff] %vm1834, %v1697
  %1863 = vst.msk [vmem:[#allocation4 + $0xe0] sm:$0xff] %vm1834, %v1699
  %1864 = vst.msk [vmem:[#allocation4 + $0xe8] sm:$0xff] %vm1834, %v1701
  %1865 = vst.msk [vmem:[#allocation4 + $0xf0] sm:$0xff] %vm1834, %v1703
  %1866 = vst.msk [vmem:[#allocation4 + $0xf8] sm:$0xff] %vm1834, %v1705
  %1867 = vst.msk [vmem:[#allocation4 + $0x100] sm:$0xff] %vm1834, %v1707
  %1868 = vst.msk [vmem:[#allocation4 + $0x108] sm:$0xff] %vm1834, %v1709
  %1869 = vst.msk [vmem:[#allocation4 + $0x110] sm:$0xff] %vm1834, %v1711
  %1870 = vst.msk [vmem:[#allocation4 + $0x118] sm:$0xff] %vm1834, %v1713
  %1871 = vst.msk [vmem:[#allocation4 + $0x120] sm:$0xff] %vm1834, %v1715
  %1872 = vst.msk [vmem:[#allocation4 + $0x128] sm:$0xff] %vm1834, %v1717
  %1873 = vst.msk [vmem:[#allocation4 + $0x130] sm:$0xff] %vm1834, %v1719
  %1874 = vst.msk [vmem:[#allocation4 + $0x138] sm:$0xff] %vm1834, %v1721
  %1875 = vst.msk [vmem:[#allocation4 + $0x140] sm:$0xff] %vm1834, %v1723
  %1876 = vst.msk [vmem:[#allocation4 + $0x148] sm:$0xff] %vm1834, %v1725
  %1877 = vst.msk [vmem:[#allocation4 + $0x150] sm:$0xff] %vm1834, %v1727
  %1878 = vst.msk [vmem:[#allocation4 + $0x158] sm:$0xff] %vm1834, %v1729
  %1879 = vst.msk [vmem:[#allocation4 + $0x160] sm:$0xff] %vm1834, %v1731
  %1880 = vst.msk [vmem:[#allocation4 + $0x168] sm:$0xff] %vm1834, %v1733
  %1881 = vst.msk [vmem:[#allocation4 + $0x170] sm:$0xff] %vm1834, %v1735
  %1882 = vst.msk [vmem:[#allocation4 + $0x178] sm:$0xff] %vm1834, %v1737
  %1883 = vst.msk [vmem:[#allocation4 + $0x180] sm:$0xff] %vm1834, %v1739
  %1884 = vst.msk [vmem:[#allocation4 + $0x188] sm:$0xff] %vm1834, %v1741
  %1885 = vst.msk [vmem:[#allocation4 + $0x190] sm:$0xff] %vm1834, %v1743
  %1886 = vst.msk [vmem:[#allocation4 + $0x198] sm:$0xff] %vm1834, %v1745
  %1887 = vst.msk [vmem:[#allocation4 + $0x1a0] sm:$0xff] %vm1834, %v1747
  %1888 = vst.msk [vmem:[#allocation4 + $0x1a8] sm:$0xff] %vm1834, %v1749
  %1889 = vst.msk [vmem:[#allocation4 + $0x1b0] sm:$0xff] %vm1834, %v1751
  %1890 = vst.msk [vmem:[#allocation4 + $0x1b8] sm:$0xff] %vm1834, %v1753
  %1891 = vst.msk [vmem:[#allocation4 + $0x1c0] sm:$0xff] %vm1834, %v1755
  %1892 = vst.msk [vmem:[#allocation4 + $0x1c8] sm:$0xff] %vm1834, %v1757
  %1893 = vst.msk [vmem:[#allocation4 + $0x1d0] sm:$0xff] %vm1834, %v1759
  %1894 = vst.msk [vmem:[#allocation4 + $0x1d8] sm:$0xff] %vm1834, %v1761
  %1895 = vst.msk [vmem:[#allocation4 + $0x1e0] sm:$0xff] %vm1834, %v1763
  %1896 = vst.msk [vmem:[#allocation4 + $0x1e8] sm:$0xff] %vm1834, %v1765
  %1897 = vst.msk [vmem:[#allocation4 + $0x1f0] sm:$0xff] %vm1834, %v1767
  %1898 = vst.msk [vmem:[#allocation4 + $0x1f8] sm:$0xff] %vm1834, %v1769
  %v1899 = vrot.slane %v313, 2
  %v1900 = vrot.slane %v314, 2
  %v1901 = vsel %vm951, %v1899, %v1900
  %v1902 = vrot.slane %v315, 2
  %v1903 = vsel %vm951, %v1900, %v1902
  %v1904 = vrot.slane %v367, 2
  %v1905 = vrot.slane %v368, 2
  %v1906 = vsel %vm951, %v1904, %v1905
  %v1907 = vrot.slane %v369, 2
  %v1908 = vsel %vm951, %v1905, %v1907
  %1909 = vrot.lane.b32.xlu0 %v959, 20
  %v1910 = vpop.permute.xlu0 %1909
  %1911 = vrot.lane.b32.xlu0 %v961, 20
  %v1912 = vpop.permute.xlu0 %1911
  %1913 = vrot.lane.b32.xlu0 %v964, 20
  %v1914 = vpop.permute.xlu0 %1913
  %1915 = vrot.lane.b32.xlu0 %v966, 20
  %v1916 = vpop.permute.xlu0 %1915
  %1917 = vrot.lane.b32.xlu0 %v969, 20
  %v1918 = vpop.permute.xlu0 %1917
  %1919 = vrot.lane.b32.xlu0 %v971, 20
  %v1920 = vpop.permute.xlu0 %1919
  %1921 = vrot.lane.b32.xlu0 %v974, 20
  %v1922 = vpop.permute.xlu0 %1921
  %1923 = vrot.lane.b32.xlu0 %v976, 20
  %v1924 = vpop.permute.xlu0 %1923
  %1925 = vrot.lane.b32.xlu0 %v979, 20
  %v1926 = vpop.permute.xlu0 %1925
  %1927 = vrot.lane.b32.xlu0 %v981, 20
  %v1928 = vpop.permute.xlu0 %1927
  %1929 = vrot.lane.b32.xlu0 %v984, 20
  %v1930 = vpop.permute.xlu0 %1929
  %1931 = vrot.lane.b32.xlu0 %v986, 20
  %v1932 = vpop.permute.xlu0 %1931
  %1933 = vrot.lane.b32.xlu0 %v989, 20
  %v1934 = vpop.permute.xlu0 %1933
  %1935 = vrot.lane.b32.xlu0 %v991, 20
  %v1936 = vpop.permute.xlu0 %1935
  %1937 = vrot.lane.b32.xlu0 %v994, 20
  %v1938 = vpop.permute.xlu0 %1937
  %1939 = vrot.lane.b32.xlu0 %v996, 20
  %v1940 = vpop.permute.xlu0 %1939
  %1941 = vrot.lane.b32.xlu0 %v999, 20
  %v1942 = vpop.permute.xlu0 %1941
  %1943 = vrot.lane.b32.xlu0 %v1001, 20
  %v1944 = vpop.permute.xlu0 %1943
  %1945 = vrot.lane.b32.xlu0 %v1004, 20
  %v1946 = vpop.permute.xlu0 %1945
  %1947 = vrot.lane.b32.xlu0 %v1006, 20
  %v1948 = vpop.permute.xlu0 %1947
  %1949 = vrot.lane.b32.xlu0 %v1009, 20
  %v1950 = vpop.permute.xlu0 %1949
  %1951 = vrot.lane.b32.xlu0 %v1011, 20
  %v1952 = vpop.permute.xlu0 %1951
  %1953 = vrot.lane.b32.xlu0 %v1014, 20
  %v1954 = vpop.permute.xlu0 %1953
  %1955 = vrot.lane.b32.xlu0 %v1016, 20
  %v1956 = vpop.permute.xlu0 %1955
  %1957 = vrot.lane.b32.xlu0 %v1019, 20
  %v1958 = vpop.permute.xlu0 %1957
  %1959 = vrot.lane.b32.xlu0 %v1021, 20
  %v1960 = vpop.permute.xlu0 %1959
  %1961 = vrot.lane.b32.xlu0 %v1024, 20
  %v1962 = vpop.permute.xlu0 %1961
  %1963 = vrot.lane.b32.xlu0 %v1026, 20
  %v1964 = vpop.permute.xlu0 %1963
  %1965 = vrot.lane.b32.xlu0 %v1029, 20
  %v1966 = vpop.permute.xlu0 %1965
  %1967 = vrot.lane.b32.xlu0 %v1031, 20
  %v1968 = vpop.permute.xlu0 %1967
  %1969 = vrot.lane.b32.xlu0 %v1901, 20
  %v1970 = vpop.permute.xlu0 %1969
  %1971 = vrot.lane.b32.xlu0 %v1903, 20
  %v1972 = vpop.permute.xlu0 %1971
  %1973 = vrot.lane.b32.xlu0 %v1039, 20
  %v1974 = vpop.permute.xlu0 %1973
  %1975 = vrot.lane.b32.xlu0 %v1041, 20
  %v1976 = vpop.permute.xlu0 %1975
  %1977 = vrot.lane.b32.xlu0 %v1044, 20
  %v1978 = vpop.permute.xlu0 %1977
  %1979 = vrot.lane.b32.xlu0 %v1046, 20
  %v1980 = vpop.permute.xlu0 %1979
  %1981 = vrot.lane.b32.xlu0 %v1049, 20
  %v1982 = vpop.permute.xlu0 %1981
  %1983 = vrot.lane.b32.xlu0 %v1051, 20
  %v1984 = vpop.permute.xlu0 %1983
  %1985 = vrot.lane.b32.xlu0 %v1054, 20
  %v1986 = vpop.permute.xlu0 %1985
  %1987 = vrot.lane.b32.xlu0 %v1056, 20
  %v1988 = vpop.permute.xlu0 %1987
  %1989 = vrot.lane.b32.xlu0 %v1059, 20
  %v1990 = vpop.permute.xlu0 %1989
  %1991 = vrot.lane.b32.xlu0 %v1061, 20
  %v1992 = vpop.permute.xlu0 %1991
  %1993 = vrot.lane.b32.xlu0 %v1064, 20
  %v1994 = vpop.permute.xlu0 %1993
  %1995 = vrot.lane.b32.xlu0 %v1066, 20
  %v1996 = vpop.permute.xlu0 %1995
  %1997 = vrot.lane.b32.xlu0 %v1069, 20
  %v1998 = vpop.permute.xlu0 %1997
  %1999 = vrot.lane.b32.xlu0 %v1071, 20
  %v2000 = vpop.permute.xlu0 %1999
  %2001 = vrot.lane.b32.xlu0 %v1074, 20
  %v2002 = vpop.permute.xlu0 %2001
  %2003 = vrot.lane.b32.xlu0 %v1076, 20
  %v2004 = vpop.permute.xlu0 %2003
  %2005 = vrot.lane.b32.xlu0 %v1079, 20
  %v2006 = vpop.permute.xlu0 %2005
  %2007 = vrot.lane.b32.xlu0 %v1081, 20
  %v2008 = vpop.permute.xlu0 %2007
  %2009 = vrot.lane.b32.xlu0 %v1084, 20
  %v2010 = vpop.permute.xlu0 %2009
  %2011 = vrot.lane.b32.xlu0 %v1086, 20
  %v2012 = vpop.permute.xlu0 %2011
  %2013 = vrot.lane.b32.xlu0 %v1089, 20
  %v2014 = vpop.permute.xlu0 %2013
  %2015 = vrot.lane.b32.xlu0 %v1091, 20
  %v2016 = vpop.permute.xlu0 %2015
  %2017 = vrot.lane.b32.xlu0 %v1094, 20
  %v2018 = vpop.permute.xlu0 %2017
  %2019 = vrot.lane.b32.xlu0 %v1096, 20
  %v2020 = vpop.permute.xlu0 %2019
  %2021 = vrot.lane.b32.xlu0 %v1099, 20
  %v2022 = vpop.permute.xlu0 %2021
  %2023 = vrot.lane.b32.xlu0 %v1101, 20
  %v2024 = vpop.permute.xlu0 %2023
  %2025 = vrot.lane.b32.xlu0 %v1104, 20
  %v2026 = vpop.permute.xlu0 %2025
  %2027 = vrot.lane.b32.xlu0 %v1106, 20
  %v2028 = vpop.permute.xlu0 %2027
  %2029 = vrot.lane.b32.xlu0 %v1109, 20
  %v2030 = vpop.permute.xlu0 %2029
  %2031 = vrot.lane.b32.xlu0 %v1111, 20
  %v2032 = vpop.permute.xlu0 %2031
  %2033 = vrot.lane.b32.xlu0 %v1906, 20
  %v2034 = vpop.permute.xlu0 %2033
  %2035 = vrot.lane.b32.xlu0 %v1908, 20
  %v2036 = vpop.permute.xlu0 %2035
  %vm2101 = vcmask 195744
  %2102 = vst.msk [vmem:[#allocation4] sm:$0xff] %vm2101, %v1910
  %2103 = vst.msk [vmem:[#allocation4 + $0x8] sm:$0xff] %vm2101, %v1912
  %2104 = vst.msk [vmem:[#allocation4 + $0x10] sm:$0xff] %vm2101, %v1914
  %2105 = vst.msk [vmem:[#allocation4 + $0x18] sm:$0xff] %vm2101, %v1916
  %2106 = vst.msk [vmem:[#allocation4 + $0x20] sm:$0xff] %vm2101, %v1918
  %2107 = vst.msk [vmem:[#allocation4 + $0x28] sm:$0xff] %vm2101, %v1920
  %2108 = vst.msk [vmem:[#allocation4 + $0x30] sm:$0xff] %vm2101, %v1922
  %2109 = vst.msk [vmem:[#allocation4 + $0x38] sm:$0xff] %vm2101, %v1924
  %2110 = vst.msk [vmem:[#allocation4 + $0x40] sm:$0xff] %vm2101, %v1926
  %2111 = vst.msk [vmem:[#allocation4 + $0x48] sm:$0xff] %vm2101, %v1928
  %2112 = vst.msk [vmem:[#allocation4 + $0x50] sm:$0xff] %vm2101, %v1930
  %2113 = vst.msk [vmem:[#allocation4 + $0x58] sm:$0xff] %vm2101, %v1932
  %2114 = vst.msk [vmem:[#allocation4 + $0x60] sm:$0xff] %vm2101, %v1934
  %2115 = vst.msk [vmem:[#allocation4 + $0x68] sm:$0xff] %vm2101, %v1936
  %2116 = vst.msk [vmem:[#allocation4 + $0x70] sm:$0xff] %vm2101, %v1938
  %2117 = vst.msk [vmem:[#allocation4 + $0x78] sm:$0xff] %vm2101, %v1940
  %2118 = vst.msk [vmem:[#allocation4 + $0x80] sm:$0xff] %vm2101, %v1942
  %2119 = vst.msk [vmem:[#allocation4 + $0x88] sm:$0xff] %vm2101, %v1944
  %2120 = vst.msk [vmem:[#allocation4 + $0x90] sm:$0xff] %vm2101, %v1946
  %2121 = vst.msk [vmem:[#allocation4 + $0x98] sm:$0xff] %vm2101, %v1948
  %2122 = vst.msk [vmem:[#allocation4 + $0xa0] sm:$0xff] %vm2101, %v1950
  %2123 = vst.msk [vmem:[#allocation4 + $0xa8] sm:$0xff] %vm2101, %v1952
  %2124 = vst.msk [vmem:[#allocation4 + $0xb0] sm:$0xff] %vm2101, %v1954
  %2125 = vst.msk [vmem:[#allocation4 + $0xb8] sm:$0xff] %vm2101, %v1956
  %2126 = vst.msk [vmem:[#allocation4 + $0xc0] sm:$0xff] %vm2101, %v1958
  %2127 = vst.msk [vmem:[#allocation4 + $0xc8] sm:$0xff] %vm2101, %v1960
  %2128 = vst.msk [vmem:[#allocation4 + $0xd0] sm:$0xff] %vm2101, %v1962
  %2129 = vst.msk [vmem:[#allocation4 + $0xd8] sm:$0xff] %vm2101, %v1964
  %2130 = vst.msk [vmem:[#allocation4 + $0xe0] sm:$0xff] %vm2101, %v1966
  %2131 = vst.msk [vmem:[#allocation4 + $0xe8] sm:$0xff] %vm2101, %v1968
  %2132 = vst.msk [vmem:[#allocation4 + $0xf0] sm:$0xff] %vm2101, %v1970
  %2133 = vst.msk [vmem:[#allocation4 + $0xf8] sm:$0xff] %vm2101, %v1972
  %2134 = vst.msk [vmem:[#allocation4 + $0x100] sm:$0xff] %vm2101, %v1974
  %2135 = vst.msk [vmem:[#allocation4 + $0x108] sm:$0xff] %vm2101, %v1976
  %2136 = vst.msk [vmem:[#allocation4 + $0x110] sm:$0xff] %vm2101, %v1978
  %2137 = vst.msk [vmem:[#allocation4 + $0x118] sm:$0xff] %vm2101, %v1980
  %2138 = vst.msk [vmem:[#allocation4 + $0x120] sm:$0xff] %vm2101, %v1982
  %2139 = vst.msk [vmem:[#allocation4 + $0x128] sm:$0xff] %vm2101, %v1984
  %2140 = vst.msk [vmem:[#allocation4 + $0x130] sm:$0xff] %vm2101, %v1986
  %2141 = vst.msk [vmem:[#allocation4 + $0x138] sm:$0xff] %vm2101, %v1988
  %2142 = vst.msk [vmem:[#allocation4 + $0x140] sm:$0xff] %vm2101, %v1990
  %2143 = vst.msk [vmem:[#allocation4 + $0x148] sm:$0xff] %vm2101, %v1992
  %2144 = vst.msk [vmem:[#allocation4 + $0x150] sm:$0xff] %vm2101, %v1994
  %2145 = vst.msk [vmem:[#allocation4 + $0x158] sm:$0xff] %vm2101, %v1996
  %2146 = vst.msk [vmem:[#allocation4 + $0x160] sm:$0xff] %vm2101, %v1998
  %2147 = vst.msk [vmem:[#allocation4 + $0x168] sm:$0xff] %vm2101, %v2000
  %2148 = vst.msk [vmem:[#allocation4 + $0x170] sm:$0xff] %vm2101, %v2002
  %2149 = vst.msk [vmem:[#allocation4 + $0x178] sm:$0xff] %vm2101, %v2004
  %2150 = vst.msk [vmem:[#allocation4 + $0x180] sm:$0xff] %vm2101, %v2006
  %2151 = vst.msk [vmem:[#allocation4 + $0x188] sm:$0xff] %vm2101, %v2008
  %2152 = vst.msk [vmem:[#allocation4 + $0x190] sm:$0xff] %vm2101, %v2010
  %2153 = vst.msk [vmem:[#allocation4 + $0x198] sm:$0xff] %vm2101, %v2012
  %2154 = vst.msk [vmem:[#allocation4 + $0x1a0] sm:$0xff] %vm2101, %v2014
  %2155 = vst.msk [vmem:[#allocation4 + $0x1a8] sm:$0xff] %vm2101, %v2016
  %2156 = vst.msk [vmem:[#allocation4 + $0x1b0] sm:$0xff] %vm2101, %v2018
  %2157 = vst.msk [vmem:[#allocation4 + $0x1b8] sm:$0xff] %vm2101, %v2020
  %2158 = vst.msk [vmem:[#allocation4 + $0x1c0] sm:$0xff] %vm2101, %v2022
  %2159 = vst.msk [vmem:[#allocation4 + $0x1c8] sm:$0xff] %vm2101, %v2024
  %2160 = vst.msk [vmem:[#allocation4 + $0x1d0] sm:$0xff] %vm2101, %v2026
  %2161 = vst.msk [vmem:[#allocation4 + $0x1d8] sm:$0xff] %vm2101, %v2028
  %2162 = vst.msk [vmem:[#allocation4 + $0x1e0] sm:$0xff] %vm2101, %v2030
  %2163 = vst.msk [vmem:[#allocation4 + $0x1e8] sm:$0xff] %vm2101, %v2032
  %2164 = vst.msk [vmem:[#allocation4 + $0x1f0] sm:$0xff] %vm2101, %v2034
  %2165 = vst.msk [vmem:[#allocation4 + $0x1f8] sm:$0xff] %vm2101, %v2036
  %2170 = vrot.lane.b32.xlu0 %v271, 24
  %v2171 = vpop.permute.xlu0 %2170
  %2172 = vrot.lane.b32.xlu0 %v272, 24
  %v2173 = vpop.permute.xlu0 %2172
  %2174 = vrot.lane.b32.xlu0 %v274, 24
  %v2175 = vpop.permute.xlu0 %2174
  %2176 = vrot.lane.b32.xlu0 %v275, 24
  %v2177 = vpop.permute.xlu0 %2176
  %2178 = vrot.lane.b32.xlu0 %v277, 24
  %v2179 = vpop.permute.xlu0 %2178
  %2180 = vrot.lane.b32.xlu0 %v278, 24
  %v2181 = vpop.permute.xlu0 %2180
  %2182 = vrot.lane.b32.xlu0 %v280, 24
  %v2183 = vpop.permute.xlu0 %2182
  %2184 = vrot.lane.b32.xlu0 %v281, 24
  %v2185 = vpop.permute.xlu0 %2184
  %2186 = vrot.lane.b32.xlu0 %v283, 24
  %v2187 = vpop.permute.xlu0 %2186
  %2188 = vrot.lane.b32.xlu0 %v284, 24
  %v2189 = vpop.permute.xlu0 %2188
  %2190 = vrot.lane.b32.xlu0 %v286, 24
  %v2191 = vpop.permute.xlu0 %2190
  %2192 = vrot.lane.b32.xlu0 %v287, 24
  %v2193 = vpop.permute.xlu0 %2192
  %2194 = vrot.lane.b32.xlu0 %v289, 24
  %v2195 = vpop.permute.xlu0 %2194
  %2196 = vrot.lane.b32.xlu0 %v290, 24
  %v2197 = vpop.permute.xlu0 %2196
  %2198 = vrot.lane.b32.xlu0 %v292, 24
  %v2199 = vpop.permute.xlu0 %2198
  %2200 = vrot.lane.b32.xlu0 %v293, 24
  %v2201 = vpop.permute.xlu0 %2200
  %2202 = vrot.lane.b32.xlu0 %v295, 24
  %v2203 = vpop.permute.xlu0 %2202
  %2204 = vrot.lane.b32.xlu0 %v296, 24
  %v2205 = vpop.permute.xlu0 %2204
  %2206 = vrot.lane.b32.xlu0 %v298, 24
  %v2207 = vpop.permute.xlu0 %2206
  %2208 = vrot.lane.b32.xlu0 %v299, 24
  %v2209 = vpop.permute.xlu0 %2208
  %2210 = vrot.lane.b32.xlu0 %v301, 24
  %v2211 = vpop.permute.xlu0 %2210
  %2212 = vrot.lane.b32.xlu0 %v302, 24
  %v2213 = vpop.permute.xlu0 %2212
  %2214 = vrot.lane.b32.xlu0 %v304, 24
  %v2215 = vpop.permute.xlu0 %2214
  %2216 = vrot.lane.b32.xlu0 %v305, 24
  %v2217 = vpop.permute.xlu0 %2216
  %2218 = vrot.lane.b32.xlu0 %v307, 24
  %v2219 = vpop.permute.xlu0 %2218
  %2220 = vrot.lane.b32.xlu0 %v308, 24
  %v2221 = vpop.permute.xlu0 %2220
  %2222 = vrot.lane.b32.xlu0 %v310, 24
  %v2223 = vpop.permute.xlu0 %2222
  %2224 = vrot.lane.b32.xlu0 %v311, 24
  %v2225 = vpop.permute.xlu0 %2224
  %2226 = vrot.lane.b32.xlu0 %v313, 24
  %v2227 = vpop.permute.xlu0 %2226
  %2228 = vrot.lane.b32.xlu0 %v314, 24
  %v2229 = vpop.permute.xlu0 %2228
  %2230 = vrot.lane.b32.xlu0 %v316, 24
  %v2231 = vpop.permute.xlu0 %2230
  %2232 = vrot.lane.b32.xlu0 %v317, 24
  %v2233 = vpop.permute.xlu0 %2232
  %2234 = vrot.lane.b32.xlu0 %v325, 24
  %v2235 = vpop.permute.xlu0 %2234
  %2236 = vrot.lane.b32.xlu0 %v326, 24
  %v2237 = vpop.permute.xlu0 %2236
  %2238 = vrot.lane.b32.xlu0 %v328, 24
  %v2239 = vpop.permute.xlu0 %2238
  %2240 = vrot.lane.b32.xlu0 %v329, 24
  %v2241 = vpop.permute.xlu0 %2240
  %2242 = vrot.lane.b32.xlu0 %v331, 24
  %v2243 = vpop.permute.xlu0 %2242
  %2244 = vrot.lane.b32.xlu0 %v332, 24
  %v2245 = vpop.permute.xlu0 %2244
  %2246 = vrot.lane.b32.xlu0 %v334, 24
  %v2247 = vpop.permute.xlu0 %2246
  %2248 = vrot.lane.b32.xlu0 %v335, 24
  %v2249 = vpop.permute.xlu0 %2248
  %2250 = vrot.lane.b32.xlu0 %v337, 24
  %v2251 = vpop.permute.xlu0 %2250
  %2252 = vrot.lane.b32.xlu0 %v338, 24
  %v2253 = vpop.permute.xlu0 %2252
  %2254 = vrot.lane.b32.xlu0 %v340, 24
  %v2255 = vpop.permute.xlu0 %2254
  %2256 = vrot.lane.b32.xlu0 %v341, 24
  %v2257 = vpop.permute.xlu0 %2256
  %2258 = vrot.lane.b32.xlu0 %v343, 24
  %v2259 = vpop.permute.xlu0 %2258
  %2260 = vrot.lane.b32.xlu0 %v344, 24
  %v2261 = vpop.permute.xlu0 %2260
  %2262 = vrot.lane.b32.xlu0 %v346, 24
  %v2263 = vpop.permute.xlu0 %2262
  %2264 = vrot.lane.b32.xlu0 %v347, 24
  %v2265 = vpop.permute.xlu0 %2264
  %2266 = vrot.lane.b32.xlu0 %v349, 24
  %v2267 = vpop.permute.xlu0 %2266
  %2268 = vrot.lane.b32.xlu0 %v350, 24
  %v2269 = vpop.permute.xlu0 %2268
  %2270 = vrot.lane.b32.xlu0 %v352, 24
  %v2271 = vpop.permute.xlu0 %2270
  %2272 = vrot.lane.b32.xlu0 %v353, 24
  %v2273 = vpop.permute.xlu0 %2272
  %2274 = vrot.lane.b32.xlu0 %v355, 24
  %v2275 = vpop.permute.xlu0 %2274
  %2276 = vrot.lane.b32.xlu0 %v356, 24
  %v2277 = vpop.permute.xlu0 %2276
  %2278 = vrot.lane.b32.xlu0 %v358, 24
  %v2279 = vpop.permute.xlu0 %2278
  %2280 = vrot.lane.b32.xlu0 %v359, 24
  %v2281 = vpop.permute.xlu0 %2280
  %2282 = vrot.lane.b32.xlu0 %v361, 24
  %v2283 = vpop.permute.xlu0 %2282
  %2284 = vrot.lane.b32.xlu0 %v362, 24
  %v2285 = vpop.permute.xlu0 %2284
  %2286 = vrot.lane.b32.xlu0 %v364, 24
  %v2287 = vpop.permute.xlu0 %2286
  %2288 = vrot.lane.b32.xlu0 %v365, 24
  %v2289 = vpop.permute.xlu0 %2288
  %2290 = vrot.lane.b32.xlu0 %v367, 24
  %v2291 = vpop.permute.xlu0 %2290
  %2292 = vrot.lane.b32.xlu0 %v368, 24
  %v2293 = vpop.permute.xlu0 %2292
  %2294 = vrot.lane.b32.xlu0 %v370, 24
  %v2295 = vpop.permute.xlu0 %2294
  %2296 = vrot.lane.b32.xlu0 %v371, 24
  %v2297 = vpop.permute.xlu0 %2296
  %vm2362 = vcmask 228544
  %2363 = vst.msk [vmem:[#allocation4] sm:$0xff] %vm2362, %v2171
  %2364 = vst.msk [vmem:[#allocation4 + $0x8] sm:$0xff] %vm2362, %v2173
  %2365 = vst.msk [vmem:[#allocation4 + $0x10] sm:$0xff] %vm2362, %v2175
  %2366 = vst.msk [vmem:[#allocation4 + $0x18] sm:$0xff] %vm2362, %v2177
  %2367 = vst.msk [vmem:[#allocation4 + $0x20] sm:$0xff] %vm2362, %v2179
  %2368 = vst.msk [vmem:[#allocation4 + $0x28] sm:$0xff] %vm2362, %v2181
  %2369 = vst.msk [vmem:[#allocation4 + $0x30] sm:$0xff] %vm2362, %v2183
  %2370 = vst.msk [vmem:[#allocation4 + $0x38] sm:$0xff] %vm2362, %v2185
  %2371 = vst.msk [vmem:[#allocation4 + $0x40] sm:$0xff] %vm2362, %v2187
  %2372 = vst.msk [vmem:[#allocation4 + $0x48] sm:$0xff] %vm2362, %v2189
  %2373 = vst.msk [vmem:[#allocation4 + $0x50] sm:$0xff] %vm2362, %v2191
  %2374 = vst.msk [vmem:[#allocation4 + $0x58] sm:$0xff] %vm2362, %v2193
  %2375 = vst.msk [vmem:[#allocation4 + $0x60] sm:$0xff] %vm2362, %v2195
  %2376 = vst.msk [vmem:[#allocation4 + $0x68] sm:$0xff] %vm2362, %v2197
  %2377 = vst.msk [vmem:[#allocation4 + $0x70] sm:$0xff] %vm2362, %v2199
  %2378 = vst.msk [vmem:[#allocation4 + $0x78] sm:$0xff] %vm2362, %v2201
  %2379 = vst.msk [vmem:[#allocation4 + $0x80] sm:$0xff] %vm2362, %v2203
  %2380 = vst.msk [vmem:[#allocation4 + $0x88] sm:$0xff] %vm2362, %v2205
  %2381 = vst.msk [vmem:[#allocation4 + $0x90] sm:$0xff] %vm2362, %v2207
  %2382 = vst.msk [vmem:[#allocation4 + $0x98] sm:$0xff] %vm2362, %v2209
  %2383 = vst.msk [vmem:[#allocation4 + $0xa0] sm:$0xff] %vm2362, %v2211
  %2384 = vst.msk [vmem:[#allocation4 + $0xa8] sm:$0xff] %vm2362, %v2213
  %2385 = vst.msk [vmem:[#allocation4 + $0xb0] sm:$0xff] %vm2362, %v2215
  %2386 = vst.msk [vmem:[#allocation4 + $0xb8] sm:$0xff] %vm2362, %v2217
  %2387 = vst.msk [vmem:[#allocation4 + $0xc0] sm:$0xff] %vm2362, %v2219
  %2388 = vst.msk [vmem:[#allocation4 + $0xc8] sm:$0xff] %vm2362, %v2221
  %2389 = vst.msk [vmem:[#allocation4 + $0xd0] sm:$0xff] %vm2362, %v2223
  %2390 = vst.msk [vmem:[#allocation4 + $0xd8] sm:$0xff] %vm2362, %v2225
  %2391 = vst.msk [vmem:[#allocation4 + $0xe0] sm:$0xff] %vm2362, %v2227
  %2392 = vst.msk [vmem:[#allocation4 + $0xe8] sm:$0xff] %vm2362, %v2229
  %2393 = vst.msk [vmem:[#allocation4 + $0xf0] sm:$0xff] %vm2362, %v2231
  %2394 = vst.msk [vmem:[#allocation4 + $0xf8] sm:$0xff] %vm2362, %v2233
  %2395 = vst.msk [vmem:[#allocation4 + $0x100] sm:$0xff] %vm2362, %v2235
  %2396 = vst.msk [vmem:[#allocation4 + $0x108] sm:$0xff] %vm2362, %v2237
  %2397 = vst.msk [vmem:[#allocation4 + $0x110] sm:$0xff] %vm2362, %v2239
  %2398 = vst.msk [vmem:[#allocation4 + $0x118] sm:$0xff] %vm2362, %v2241
  %2399 = vst.msk [vmem:[#allocation4 + $0x120] sm:$0xff] %vm2362, %v2243
  %2400 = vst.msk [vmem:[#allocation4 + $0x128] sm:$0xff] %vm2362, %v2245
  %2401 = vst.msk [vmem:[#allocation4 + $0x130] sm:$0xff] %vm2362, %v2247
  %2402 = vst.msk [vmem:[#allocation4 + $0x138] sm:$0xff] %vm2362, %v2249
  %2403 = vst.msk [vmem:[#allocation4 + $0x140] sm:$0xff] %vm2362, %v2251
  %2404 = vst.msk [vmem:[#allocation4 + $0x148] sm:$0xff] %vm2362, %v2253
  %2405 = vst.msk [vmem:[#allocation4 + $0x150] sm:$0xff] %vm2362, %v2255
  %2406 = vst.msk [vmem:[#allocation4 + $0x158] sm:$0xff] %vm2362, %v2257
  %2407 = vst.msk [vmem:[#allocation4 + $0x160] sm:$0xff] %vm2362, %v2259
  %2408 = vst.msk [vmem:[#allocation4 + $0x168] sm:$0xff] %vm2362, %v2261
  %2409 = vst.msk [vmem:[#allocation4 + $0x170] sm:$0xff] %vm2362, %v2263
  %2410 = vst.msk [vmem:[#allocation4 + $0x178] sm:$0xff] %vm2362, %v2265
  %2411 = vst.msk [vmem:[#allocation4 + $0x180] sm:$0xff] %vm2362, %v2267
  %2412 = vst.msk [vmem:[#allocation4 + $0x188] sm:$0xff] %vm2362, %v2269
  %2413 = vst.msk [vmem:[#allocation4 + $0x190] sm:$0xff] %vm2362, %v2271
  %2414 = vst.msk [vmem:[#allocation4 + $0x198] sm:$0xff] %vm2362, %v2273
  %2415 = vst.msk [vmem:[#allocation4 + $0x1a0] sm:$0xff] %vm2362, %v2275
  %2416 = vst.msk [vmem:[#allocation4 + $0x1a8] sm:$0xff] %vm2362, %v2277
  %2417 = vst.msk [vmem:[#allocation4 + $0x1b0] sm:$0xff] %vm2362, %v2279
  %2418 = vst.msk [vmem:[#allocation4 + $0x1b8] sm:$0xff] %vm2362, %v2281
  %2419 = vst.msk [vmem:[#allocation4 + $0x1c0] sm:$0xff] %vm2362, %v2283
  %2420 = vst.msk [vmem:[#allocation4 + $0x1c8] sm:$0xff] %vm2362, %v2285
  %2421 = vst.msk [vmem:[#allocation4 + $0x1d0] sm:$0xff] %vm2362, %v2287
  %2422 = vst.msk [vmem:[#allocation4 + $0x1d8] sm:$0xff] %vm2362, %v2289
  %2423 = vst.msk [vmem:[#allocation4 + $0x1e0] sm:$0xff] %vm2362, %v2291
  %2424 = vst.msk [vmem:[#allocation4 + $0x1e8] sm:$0xff] %vm2362, %v2293
  %2425 = vst.msk [vmem:[#allocation4 + $0x1f0] sm:$0xff] %vm2362, %v2295
  %2426 = vst.msk [vmem:[#allocation4 + $0x1f8] sm:$0xff] %vm2362, %v2297
  %v2429 = vrot.slane %v316, 1
  %v2430 = vrot.slane %v317, 1
  %v2431 = vsel %vm533, %v2429, %v2430
  %v2432 = vrot.slane %v318, 1
  %v2433 = vsel %vm533, %v2430, %v2432
  %v2434 = vrot.slane %v370, 1
  %v2435 = vrot.slane %v371, 1
  %v2436 = vsel %vm533, %v2434, %v2435
  %v2437 = vrot.slane %v372, 1
  %v2438 = vsel %vm533, %v2435, %v2437
  %2439 = vrot.lane.b32.xlu0 %v546, 28
  %v2440 = vpop.permute.xlu0 %2439
  %2441 = vrot.lane.b32.xlu0 %v548, 28
  %v2442 = vpop.permute.xlu0 %2441
  %2443 = vrot.lane.b32.xlu0 %v551, 28
  %v2444 = vpop.permute.xlu0 %2443
  %2445 = vrot.lane.b32.xlu0 %v553, 28
  %v2446 = vpop.permute.xlu0 %2445
  %2447 = vrot.lane.b32.xlu0 %v556, 28
  %v2448 = vpop.permute.xlu0 %2447
  %2449 = vrot.lane.b32.xlu0 %v558, 28
  %v2450 = vpop.permute.xlu0 %2449
  %2451 = vrot.lane.b32.xlu0 %v561, 28
  %v2452 = vpop.permute.xlu0 %2451
  %2453 = vrot.lane.b32.xlu0 %v563, 28
  %v2454 = vpop.permute.xlu0 %2453
  %2455 = vrot.lane.b32.xlu0 %v566, 28
  %v2456 = vpop.permute.xlu0 %2455
  %2457 = vrot.lane.b32.xlu0 %v568, 28
  %v2458 = vpop.permute.xlu0 %2457
  %2459 = vrot.lane.b32.xlu0 %v571, 28
  %v2460 = vpop.permute.xlu0 %2459
  %2461 = vrot.lane.b32.xlu0 %v573, 28
  %v2462 = vpop.permute.xlu0 %2461
  %2463 = vrot.lane.b32.xlu0 %v576, 28
  %v2464 = vpop.permute.xlu0 %2463
  %2465 = vrot.lane.b32.xlu0 %v578, 28
  %v2466 = vpop.permute.xlu0 %2465
  %2467 = vrot.lane.b32.xlu0 %v581, 28
  %v2468 = vpop.permute.xlu0 %2467
  %2469 = vrot.lane.b32.xlu0 %v583, 28
  %v2470 = vpop.permute.xlu0 %2469
  %2471 = vrot.lane.b32.xlu0 %v586, 28
  %v2472 = vpop.permute.xlu0 %2471
  %2473 = vrot.lane.b32.xlu0 %v588, 28
  %v2474 = vpop.permute.xlu0 %2473
  %2475 = vrot.lane.b32.xlu0 %v591, 28
  %v2476 = vpop.permute.xlu0 %2475
  %2477 = vrot.lane.b32.xlu0 %v593, 28
  %v2478 = vpop.permute.xlu0 %2477
  %2479 = vrot.lane.b32.xlu0 %v596, 28
  %v2480 = vpop.permute.xlu0 %2479
  %2481 = vrot.lane.b32.xlu0 %v598, 28
  %v2482 = vpop.permute.xlu0 %2481
  %2483 = vrot.lane.b32.xlu0 %v601, 28
  %v2484 = vpop.permute.xlu0 %2483
  %2485 = vrot.lane.b32.xlu0 %v603, 28
  %v2486 = vpop.permute.xlu0 %2485
  %2487 = vrot.lane.b32.xlu0 %v606, 28
  %v2488 = vpop.permute.xlu0 %2487
  %2489 = vrot.lane.b32.xlu0 %v608, 28
  %v2490 = vpop.permute.xlu0 %2489
  %2491 = vrot.lane.b32.xlu0 %v611, 28
  %v2492 = vpop.permute.xlu0 %2491
  %2493 = vrot.lane.b32.xlu0 %v613, 28
  %v2494 = vpop.permute.xlu0 %2493
  %2495 = vrot.lane.b32.xlu0 %v1634, 28
  %v2496 = vpop.permute.xlu0 %2495
  %2497 = vrot.lane.b32.xlu0 %v1636, 28
  %v2498 = vpop.permute.xlu0 %2497
  %2499 = vrot.lane.b32.xlu0 %v2431, 28
  %v2500 = vpop.permute.xlu0 %2499
  %2501 = vrot.lane.b32.xlu0 %v2433, 28
  %v2502 = vpop.permute.xlu0 %2501
  %2503 = vrot.lane.b32.xlu0 %v626, 28
  %v2504 = vpop.permute.xlu0 %2503
  %2505 = vrot.lane.b32.xlu0 %v628, 28
  %v2506 = vpop.permute.xlu0 %2505
  %2507 = vrot.lane.b32.xlu0 %v631, 28
  %v2508 = vpop.permute.xlu0 %2507
  %2509 = vrot.lane.b32.xlu0 %v633, 28
  %v2510 = vpop.permute.xlu0 %2509
  %2511 = vrot.lane.b32.xlu0 %v636, 28
  %v2512 = vpop.permute.xlu0 %2511
  %2513 = vrot.lane.b32.xlu0 %v638, 28
  %v2514 = vpop.permute.xlu0 %2513
  %2515 = vrot.lane.b32.xlu0 %v641, 28
  %v2516 = vpop.permute.xlu0 %2515
  %2517 = vrot.lane.b32.xlu0 %v643, 28
  %v2518 = vpop.permute.xlu0 %2517
  %2519 = vrot.lane.b32.xlu0 %v646, 28
  %v2520 = vpop.permute.xlu0 %2519
  %2521 = vrot.lane.b32.xlu0 %v648, 28
  %v2522 = vpop.permute.xlu0 %2521
  %2523 = vrot.lane.b32.xlu0 %v651, 28
  %v2524 = vpop.permute.xlu0 %2523
  %2525 = vrot.lane.b32.xlu0 %v653, 28
  %v2526 = vpop.permute.xlu0 %2525
  %2527 = vrot.lane.b32.xlu0 %v656, 28
  %v2528 = vpop.permute.xlu0 %2527
  %2529 = vrot.lane.b32.xlu0 %v658, 28
  %v2530 = vpop.permute.xlu0 %2529
  %2531 = vrot.lane.b32.xlu0 %v661, 28
  %v2532 = vpop.permute.xlu0 %2531
  %2533 = vrot.lane.b32.xlu0 %v663, 28
  %v2534 = vpop.permute.xlu0 %2533
  %2535 = vrot.lane.b32.xlu0 %v666, 28
  %v2536 = vpop.permute.xlu0 %2535
  %2537 = vrot.lane.b32.xlu0 %v668, 28
  %v2538 = vpop.permute.xlu0 %2537
  %2539 = vrot.lane.b32.xlu0 %v671, 28
  %v2540 = vpop.permute.xlu0 %2539
  %2541 = vrot.lane.b32.xlu0 %v673, 28
  %v2542 = vpop.permute.xlu0 %2541
  %2543 = vrot.lane.b32.xlu0 %v676, 28
  %v2544 = vpop.permute.xlu0 %2543
  %2545 = vrot.lane.b32.xlu0 %v678, 28
  %v2546 = vpop.permute.xlu0 %2545
  %2547 = vrot.lane.b32.xlu0 %v681, 28
  %v2548 = vpop.permute.xlu0 %2547
  %2549 = vrot.lane.b32.xlu0 %v683, 28
  %v2550 = vpop.permute.xlu0 %2549
  %2551 = vrot.lane.b32.xlu0 %v686, 28
  %v2552 = vpop.permute.xlu0 %2551
  %2553 = vrot.lane.b32.xlu0 %v688, 28
  %v2554 = vpop.permute.xlu0 %2553
  %2555 = vrot.lane.b32.xlu0 %v691, 28
  %v2556 = vpop.permute.xlu0 %2555
  %2557 = vrot.lane.b32.xlu0 %v693, 28
  %v2558 = vpop.permute.xlu0 %2557
  %2559 = vrot.lane.b32.xlu0 %v1639, 28
  %v2560 = vpop.permute.xlu0 %2559
  %2561 = vrot.lane.b32.xlu0 %v1641, 28
  %v2562 = vpop.permute.xlu0 %2561
  %2563 = vrot.lane.b32.xlu0 %v2436, 28
  %v2564 = vpop.permute.xlu0 %2563
  %2565 = vrot.lane.b32.xlu0 %v2438, 28
  %v2566 = vpop.permute.xlu0 %2565
  %vm2631 = vcmask 261344
  %2632 = vst.msk [vmem:[#allocation4] sm:$0xff] %vm2631, %v2440
  %2633 = vst.msk [vmem:[#allocation4 + $0x8] sm:$0xff] %vm2631, %v2442
  %2634 = vst.msk [vmem:[#allocation4 + $0x10] sm:$0xff] %vm2631, %v2444
  %2635 = vst.msk [vmem:[#allocation4 + $0x18] sm:$0xff] %vm2631, %v2446
  %2636 = vst.msk [vmem:[#allocation4 + $0x20] sm:$0xff] %vm2631, %v2448
  %2637 = vst.msk [vmem:[#allocation4 + $0x28] sm:$0xff] %vm2631, %v2450
  %2638 = vst.msk [vmem:[#allocation4 + $0x30] sm:$0xff] %vm2631, %v2452
  %2639 = vst.msk [vmem:[#allocation4 + $0x38] sm:$0xff] %vm2631, %v2454
  %2640 = vst.msk [vmem:[#allocation4 + $0x40] sm:$0xff] %vm2631, %v2456
  %2641 = vst.msk [vmem:[#allocation4 + $0x48] sm:$0xff] %vm2631, %v2458
  %2642 = vst.msk [vmem:[#allocation4 + $0x50] sm:$0xff] %vm2631, %v2460
  %2643 = vst.msk [vmem:[#allocation4 + $0x58] sm:$0xff] %vm2631, %v2462
  %2644 = vst.msk [vmem:[#allocation4 + $0x60] sm:$0xff] %vm2631, %v2464
  %2645 = vst.msk [vmem:[#allocation4 + $0x68] sm:$0xff] %vm2631, %v2466
  %2646 = vst.msk [vmem:[#allocation4 + $0x70] sm:$0xff] %vm2631, %v2468
  %2647 = vst.msk [vmem:[#allocation4 + $0x78] sm:$0xff] %vm2631, %v2470
  %2648 = vst.msk [vmem:[#allocation4 + $0x80] sm:$0xff] %vm2631, %v2472
  %2649 = vst.msk [vmem:[#allocation4 + $0x88] sm:$0xff] %vm2631, %v2474
  %2650 = vst.msk [vmem:[#allocation4 + $0x90] sm:$0xff] %vm2631, %v2476
  %2651 = vst.msk [vmem:[#allocation4 + $0x98] sm:$0xff] %vm2631, %v2478
  %2652 = vst.msk [vmem:[#allocation4 + $0xa0] sm:$0xff] %vm2631, %v2480
  %2653 = vst.msk [vmem:[#allocation4 + $0xa8] sm:$0xff] %vm2631, %v2482
  %2654 = vst.msk [vmem:[#allocation4 + $0xb0] sm:$0xff] %vm2631, %v2484
  %2655 = vst.msk [vmem:[#allocation4 + $0xb8] sm:$0xff] %vm2631, %v2486
  %2656 = vst.msk [vmem:[#allocation4 + $0xc0] sm:$0xff] %vm2631, %v2488
  %2657 = vst.msk [vmem:[#allocation4 + $0xc8] sm:$0xff] %vm2631, %v2490
  %2658 = vst.msk [vmem:[#allocation4 + $0xd0] sm:$0xff] %vm2631, %v2492
  %2659 = vst.msk [vmem:[#allocation4 + $0xd8] sm:$0xff] %vm2631, %v2494
  %2660 = vst.msk [vmem:[#allocation4 + $0xe0] sm:$0xff] %vm2631, %v2496
  %2661 = vst.msk [vmem:[#allocation4 + $0xe8] sm:$0xff] %vm2631, %v2498
  %2662 = vst.msk [vmem:[#allocation4 + $0xf0] sm:$0xff] %vm2631, %v2500
  %2663 = vst.msk [vmem:[#allocation4 + $0xf8] sm:$0xff] %vm2631, %v2502
  %2664 = vst.msk [vmem:[#allocation4 + $0x100] sm:$0xff] %vm2631, %v2504
  %2665 = vst.msk [vmem:[#allocation4 + $0x108] sm:$0xff] %vm2631, %v2506
  %2666 = vst.msk [vmem:[#allocation4 + $0x110] sm:$0xff] %vm2631, %v2508
  %2667 = vst.msk [vmem:[#allocation4 + $0x118] sm:$0xff] %vm2631, %v2510
  %2668 = vst.msk [vmem:[#allocation4 + $0x120] sm:$0xff] %vm2631, %v2512
  %2669 = vst.msk [vmem:[#allocation4 + $0x128] sm:$0xff] %vm2631, %v2514
  %2670 = vst.msk [vmem:[#allocation4 + $0x130] sm:$0xff] %vm2631, %v2516
  %2671 = vst.msk [vmem:[#allocation4 + $0x138] sm:$0xff] %vm2631, %v2518
  %2672 = vst.msk [vmem:[#allocation4 + $0x140] sm:$0xff] %vm2631, %v2520
  %2673 = vst.msk [vmem:[#allocation4 + $0x148] sm:$0xff] %vm2631, %v2522
  %2674 = vst.msk [vmem:[#allocation4 + $0x150] sm:$0xff] %vm2631, %v2524
  %2675 = vst.msk [vmem:[#allocation4 + $0x158] sm:$0xff] %vm2631, %v2526
  %2676 = vst.msk [vmem:[#allocation4 + $0x160] sm:$0xff] %vm2631, %v2528
  %2677 = vst.msk [vmem:[#allocation4 + $0x168] sm:$0xff] %vm2631, %v2530
  %2678 = vst.msk [vmem:[#allocation4 + $0x170] sm:$0xff] %vm2631, %v2532
  %2679 = vst.msk [vmem:[#allocation4 + $0x178] sm:$0xff] %vm2631, %v2534
  %2680 = vst.msk [vmem:[#allocation4 + $0x180] sm:$0xff] %vm2631, %v2536
  %2681 = vst.msk [vmem:[#allocation4 + $0x188] sm:$0xff] %vm2631, %v2538
  %2682 = vst.msk [vmem:[#allocation4 + $0x190] sm:$0xff] %vm2631, %v2540
  %2683 = vst.msk [vmem:[#allocation4 + $0x198] sm:$0xff] %vm2631, %v2542
  %2684 = vst.msk [vmem:[#allocation4 + $0x1a0] sm:$0xff] %vm2631, %v2544
  %2685 = vst.msk [vmem:[#allocation4 + $0x1a8] sm:$0xff] %vm2631, %v2546
  %2686 = vst.msk [vmem:[#allocation4 + $0x1b0] sm:$0xff] %vm2631, %v2548
  %2687 = vst.msk [vmem:[#allocation4 + $0x1b8] sm:$0xff] %vm2631, %v2550
  %2688 = vst.msk [vmem:[#allocation4 + $0x1c0] sm:$0xff] %vm2631, %v2552
  %2689 = vst.msk [vmem:[#allocation4 + $0x1c8] sm:$0xff] %vm2631, %v2554
  %2690 = vst.msk [vmem:[#allocation4 + $0x1d0] sm:$0xff] %vm2631, %v2556
  %2691 = vst.msk [vmem:[#allocation4 + $0x1d8] sm:$0xff] %vm2631, %v2558
  %2692 = vst.msk [vmem:[#allocation4 + $0x1e0] sm:$0xff] %vm2631, %v2560
  %2693 = vst.msk [vmem:[#allocation4 + $0x1e8] sm:$0xff] %vm2631, %v2562
  %2694 = vst.msk [vmem:[#allocation4 + $0x1f0] sm:$0xff] %vm2631, %v2564
  %2695 = vst.msk [vmem:[#allocation4 + $0x1f8] sm:$0xff] %vm2631, %v2566
  %v2696 = vrot.slane %v316, 2
  %v2697 = vrot.slane %v317, 2
  %v2698 = vsel %vm951, %v2696, %v2697
  %v2699 = vrot.slane %v318, 2
  %v2700 = vsel %vm951, %v2697, %v2699
  %v2701 = vrot.slane %v370, 2
  %v2702 = vrot.slane %v371, 2
  %v2703 = vsel %vm951, %v2701, %v2702
  %v2704 = vrot.slane %v372, 2
  %v2705 = vsel %vm951, %v2702, %v2704
  %2706 = vrot.lane.b32.xlu0 %v964, 32
  %v2707 = vpop.permute.xlu0 %2706
  %2708 = vrot.lane.b32.xlu0 %v966, 32
  %v2709 = vpop.permute.xlu0 %2708
  %2710 = vrot.lane.b32.xlu0 %v969, 32
  %v2711 = vpop.permute.xlu0 %2710
  %2712 = vrot.lane.b32.xlu0 %v971, 32
  %v2713 = vpop.permute.xlu0 %2712
  %2714 = vrot.lane.b32.xlu0 %v974, 32
  %v2715 = vpop.permute.xlu0 %2714
  %2716 = vrot.lane.b32.xlu0 %v976, 32
  %v2717 = vpop.permute.xlu0 %2716
  %2718 = vrot.lane.b32.xlu0 %v979, 32
  %v2719 = vpop.permute.xlu0 %2718
  %2720 = vrot.lane.b32.xlu0 %v981, 32
  %v2721 = vpop.permute.xlu0 %2720
  %2722 = vrot.lane.b32.xlu0 %v984, 32
  %v2723 = vpop.permute.xlu0 %2722
  %2724 = vrot.lane.b32.xlu0 %v986, 32
  %v2725 = vpop.permute.xlu0 %2724
  %2726 = vrot.lane.b32.xlu0 %v989, 32
  %v2727 = vpop.permute.xlu0 %2726
  %2728 = vrot.lane.b32.xlu0 %v991, 32
  %v2729 = vpop.permute.xlu0 %2728
  %2730 = vrot.lane.b32.xlu0 %v994, 32
  %v2731 = vpop.permute.xlu0 %2730
  %2732 = vrot.lane.b32.xlu0 %v996, 32
  %v2733 = vpop.permute.xlu0 %2732
  %2734 = vrot.lane.b32.xlu0 %v999, 32
  %v2735 = vpop.permute.xlu0 %2734
  %2736 = vrot.lane.b32.xlu0 %v1001, 32
  %v2737 = vpop.permute.xlu0 %2736
  %2738 = vrot.lane.b32.xlu0 %v1004, 32
  %v2739 = vpop.permute.xlu0 %2738
  %2740 = vrot.lane.b32.xlu0 %v1006, 32
  %v2741 = vpop.permute.xlu0 %2740
  %2742 = vrot.lane.b32.xlu0 %v1009, 32
  %v2743 = vpop.permute.xlu0 %2742
  %2744 = vrot.lane.b32.xlu0 %v1011, 32
  %v2745 = vpop.permute.xlu0 %2744
  %2746 = vrot.lane.b32.xlu0 %v1014, 32
  %v2747 = vpop.permute.xlu0 %2746
  %2748 = vrot.lane.b32.xlu0 %v1016, 32
  %v2749 = vpop.permute.xlu0 %2748
  %2750 = vrot.lane.b32.xlu0 %v1019, 32
  %v2751 = vpop.permute.xlu0 %2750
  %2752 = vrot.lane.b32.xlu0 %v1021, 32
  %v2753 = vpop.permute.xlu0 %2752
  %2754 = vrot.lane.b32.xlu0 %v1024, 32
  %v2755 = vpop.permute.xlu0 %2754
  %2756 = vrot.lane.b32.xlu0 %v1026, 32
  %v2757 = vpop.permute.xlu0 %2756
  %2758 = vrot.lane.b32.xlu0 %v1029, 32
  %v2759 = vpop.permute.xlu0 %2758
  %2760 = vrot.lane.b32.xlu0 %v1031, 32
  %v2761 = vpop.permute.xlu0 %2760
  %2762 = vrot.lane.b32.xlu0 %v1901, 32
  %v2763 = vpop.permute.xlu0 %2762
  %2764 = vrot.lane.b32.xlu0 %v1903, 32
  %v2765 = vpop.permute.xlu0 %2764
  %2766 = vrot.lane.b32.xlu0 %v2698, 32
  %v2767 = vpop.permute.xlu0 %2766
  %2768 = vrot.lane.b32.xlu0 %v2700, 32
  %v2769 = vpop.permute.xlu0 %2768
  %2770 = vrot.lane.b32.xlu0 %v1044, 32
  %v2771 = vpop.permute.xlu0 %2770
  %2772 = vrot.lane.b32.xlu0 %v1046, 32
  %v2773 = vpop.permute.xlu0 %2772
  %2774 = vrot.lane.b32.xlu0 %v1049, 32
  %v2775 = vpop.permute.xlu0 %2774
  %2776 = vrot.lane.b32.xlu0 %v1051, 32
  %v2777 = vpop.permute.xlu0 %2776
  %2778 = vrot.lane.b32.xlu0 %v1054, 32
  %v2779 = vpop.permute.xlu0 %2778
  %2780 = vrot.lane.b32.xlu0 %v1056, 32
  %v2781 = vpop.permute.xlu0 %2780
  %2782 = vrot.lane.b32.xlu0 %v1059, 32
  %v2783 = vpop.permute.xlu0 %2782
  %2784 = vrot.lane.b32.xlu0 %v1061, 32
  %v2785 = vpop.permute.xlu0 %2784
  %2786 = vrot.lane.b32.xlu0 %v1064, 32
  %v2787 = vpop.permute.xlu0 %2786
  %2788 = vrot.lane.b32.xlu0 %v1066, 32
  %v2789 = vpop.permute.xlu0 %2788
  %2790 = vrot.lane.b32.xlu0 %v1069, 32
  %v2791 = vpop.permute.xlu0 %2790
  %2792 = vrot.lane.b32.xlu0 %v1071, 32
  %v2793 = vpop.permute.xlu0 %2792
  %2794 = vrot.lane.b32.xlu0 %v1074, 32
  %v2795 = vpop.permute.xlu0 %2794
  %2796 = vrot.lane.b32.xlu0 %v1076, 32
  %v2797 = vpop.permute.xlu0 %2796
  %2798 = vrot.lane.b32.xlu0 %v1079, 32
  %v2799 = vpop.permute.xlu0 %2798
  %2800 = vrot.lane.b32.xlu0 %v1081, 32
  %v2801 = vpop.permute.xlu0 %2800
  %2802 = vrot.lane.b32.xlu0 %v1084, 32
  %v2803 = vpop.permute.xlu0 %2802
  %2804 = vrot.lane.b32.xlu0 %v1086, 32
  %v2805 = vpop.permute.xlu0 %2804
  %2806 = vrot.lane.b32.xlu0 %v1089, 32
  %v2807 = vpop.permute.xlu0 %2806
  %2808 = vrot.lane.b32.xlu0 %v1091, 32
  %v2809 = vpop.permute.xlu0 %2808
  %2810 = vrot.lane.b32.xlu0 %v1094, 32
  %v2811 = vpop.permute.xlu0 %2810
  %2812 = vrot.lane.b32.xlu0 %v1096, 32
  %v2813 = vpop.permute.xlu0 %2812
  %2814 = vrot.lane.b32.xlu0 %v1099, 32
  %v2815 = vpop.permute.xlu0 %2814
  %2816 = vrot.lane.b32.xlu0 %v1101, 32
  %v2817 = vpop.permute.xlu0 %2816
  %2818 = vrot.lane.b32.xlu0 %v1104, 32
  %v2819 = vpop.permute.xlu0 %2818
  %2820 = vrot.lane.b32.xlu0 %v1106, 32
  %v2821 = vpop.permute.xlu0 %2820
  %2822 = vrot.lane.b32.xlu0 %v1109, 32
  %v2823 = vpop.permute.xlu0 %2822
  %2824 = vrot.lane.b32.xlu0 %v1111, 32
  %v2825 = vpop.permute.xlu0 %2824
  %2826 = vrot.lane.b32.xlu0 %v1906, 32
  %v2827 = vpop.permute.xlu0 %2826
  %2828 = vrot.lane.b32.xlu0 %v1908, 32
  %v2829 = vpop.permute.xlu0 %2828
  %2830 = vrot.lane.b32.xlu0 %v2703, 32
  %v2831 = vpop.permute.xlu0 %2830
  %2832 = vrot.lane.b32.xlu0 %v2705, 32
  %v2833 = vpop.permute.xlu0 %2832
  %vm2898 = vcmask 294144
  %2899 = vst.msk [vmem:[#allocation4] sm:$0xff] %vm2898, %v2707
  %2900 = vst.msk [vmem:[#allocation4 + $0x8] sm:$0xff] %vm2898, %v2709
  %2901 = vst.msk [vmem:[#allocation4 + $0x10] sm:$0xff] %vm2898, %v2711
  %2902 = vst.msk [vmem:[#allocation4 + $0x18] sm:$0xff] %vm2898, %v2713
  %2903 = vst.msk [vmem:[#allocation4 + $0x20] sm:$0xff] %vm2898, %v2715
  %2904 = vst.msk [vmem:[#allocation4 + $0x28] sm:$0xff] %vm2898, %v2717
  %2905 = vst.msk [vmem:[#allocation4 + $0x30] sm:$0xff] %vm2898, %v2719
  %2906 = vst.msk [vmem:[#allocation4 + $0x38] sm:$0xff] %vm2898, %v2721
  %2907 = vst.msk [vmem:[#allocation4 + $0x40] sm:$0xff] %vm2898, %v2723
  %2908 = vst.msk [vmem:[#allocation4 + $0x48] sm:$0xff] %vm2898, %v2725
  %2909 = vst.msk [vmem:[#allocation4 + $0x50] sm:$0xff] %vm2898, %v2727
  %2910 = vst.msk [vmem:[#allocation4 + $0x58] sm:$0xff] %vm2898, %v2729
  %2911 = vst.msk [vmem:[#allocation4 + $0x60] sm:$0xff] %vm2898, %v2731
  %2912 = vst.msk [vmem:[#allocation4 + $0x68] sm:$0xff] %vm2898, %v2733
  %2913 = vst.msk [vmem:[#allocation4 + $0x70] sm:$0xff] %vm2898, %v2735
  %2914 = vst.msk [vmem:[#allocation4 + $0x78] sm:$0xff] %vm2898, %v2737
  %2915 = vst.msk [vmem:[#allocation4 + $0x80] sm:$0xff] %vm2898, %v2739
  %2916 = vst.msk [vmem:[#allocation4 + $0x88] sm:$0xff] %vm2898, %v2741
  %2917 = vst.msk [vmem:[#allocation4 + $0x90] sm:$0xff] %vm2898, %v2743
  %2918 = vst.msk [vmem:[#allocation4 + $0x98] sm:$0xff] %vm2898, %v2745
  %2919 = vst.msk [vmem:[#allocation4 + $0xa0] sm:$0xff] %vm2898, %v2747
  %2920 = vst.msk [vmem:[#allocation4 + $0xa8] sm:$0xff] %vm2898, %v2749
  %2921 = vst.msk [vmem:[#allocation4 + $0xb0] sm:$0xff] %vm2898, %v2751
  %2922 = vst.msk [vmem:[#allocation4 + $0xb8] sm:$0xff] %vm2898, %v2753
  %2923 = vst.msk [vmem:[#allocation4 + $0xc0] sm:$0xff] %vm2898, %v2755
  %2924 = vst.msk [vmem:[#allocation4 + $0xc8] sm:$0xff] %vm2898, %v2757
  %2925 = vst.msk [vmem:[#allocation4 + $0xd0] sm:$0xff] %vm2898, %v2759
  %2926 = vst.msk [vmem:[#allocation4 + $0xd8] sm:$0xff] %vm2898, %v2761
  %2927 = vst.msk [vmem:[#allocation4 + $0xe0] sm:$0xff] %vm2898, %v2763
  %2928 = vst.msk [vmem:[#allocation4 + $0xe8] sm:$0xff] %vm2898, %v2765
  %2929 = vst.msk [vmem:[#allocation4 + $0xf0] sm:$0xff] %vm2898, %v2767
  %2930 = vst.msk [vmem:[#allocation4 + $0xf8] sm:$0xff] %vm2898, %v2769
  %2931 = vst.msk [vmem:[#allocation4 + $0x100] sm:$0xff] %vm2898, %v2771
  %2932 = vst.msk [vmem:[#allocation4 + $0x108] sm:$0xff] %vm2898, %v2773
  %2933 = vst.msk [vmem:[#allocation4 + $0x110] sm:$0xff] %vm2898, %v2775
  %2934 = vst.msk [vmem:[#allocation4 + $0x118] sm:$0xff] %vm2898, %v2777
  %2935 = vst.msk [vmem:[#allocation4 + $0x120] sm:$0xff] %vm2898, %v2779
  %2936 = vst.msk [vmem:[#allocation4 + $0x128] sm:$0xff] %vm2898, %v2781
  %2937 = vst.msk [vmem:[#allocation4 + $0x130] sm:$0xff] %vm2898, %v2783
  %2938 = vst.msk [vmem:[#allocation4 + $0x138] sm:$0xff] %vm2898, %v2785
  %2939 = vst.msk [vmem:[#allocation4 + $0x140] sm:$0xff] %vm2898, %v2787
  %2940 = vst.msk [vmem:[#allocation4 + $0x148] sm:$0xff] %vm2898, %v2789
  %2941 = vst.msk [vmem:[#allocation4 + $0x150] sm:$0xff] %vm2898, %v2791
  %2942 = vst.msk [vmem:[#allocation4 + $0x158] sm:$0xff] %vm2898, %v2793
  %2943 = vst.msk [vmem:[#allocation4 + $0x160] sm:$0xff] %vm2898, %v2795
  %2944 = vst.msk [vmem:[#allocation4 + $0x168] sm:$0xff] %vm2898, %v2797
  %2945 = vst.msk [vmem:[#allocation4 + $0x170] sm:$0xff] %vm2898, %v2799
  %2946 = vst.msk [vmem:[#allocation4 + $0x178] sm:$0xff] %vm2898, %v2801
  %2947 = vst.msk [vmem:[#allocation4 + $0x180] sm:$0xff] %vm2898, %v2803
  %2948 = vst.msk [vmem:[#allocation4 + $0x188] sm:$0xff] %vm2898, %v2805
  %2949 = vst.msk [vmem:[#allocation4 + $0x190] sm:$0xff] %vm2898, %v2807
  %2950 = vst.msk [vmem:[#allocation4 + $0x198] sm:$0xff] %vm2898, %v2809
  %2951 = vst.msk [vmem:[#allocation4 + $0x1a0] sm:$0xff] %vm2898, %v2811
  %2952 = vst.msk [vmem:[#allocation4 + $0x1a8] sm:$0xff] %vm2898, %v2813
  %2953 = vst.msk [vmem:[#allocation4 + $0x1b0] sm:$0xff] %vm2898, %v2815
  %2954 = vst.msk [vmem:[#allocation4 + $0x1b8] sm:$0xff] %vm2898, %v2817
  %2955 = vst.msk [vmem:[#allocation4 + $0x1c0] sm:$0xff] %vm2898, %v2819
  %2956 = vst.msk [vmem:[#allocation4 + $0x1c8] sm:$0xff] %vm2898, %v2821
  %2957 = vst.msk [vmem:[#allocation4 + $0x1d0] sm:$0xff] %vm2898, %v2823
  %2958 = vst.msk [vmem:[#allocation4 + $0x1d8] sm:$0xff] %vm2898, %v2825
  %2959 = vst.msk [vmem:[#allocation4 + $0x1e0] sm:$0xff] %vm2898, %v2827
  %2960 = vst.msk [vmem:[#allocation4 + $0x1e8] sm:$0xff] %vm2898, %v2829
  %2961 = vst.msk [vmem:[#allocation4 + $0x1f0] sm:$0xff] %vm2898, %v2831
  %2962 = vst.msk [vmem:[#allocation4 + $0x1f8] sm:$0xff] %vm2898, %v2833
  %v2963 = vld [vmem:[#allocation4] sm:$0xff]
  %v2964 = vld [vmem:[#allocation4 + $0x8] sm:$0xff]
  %v2965 = vld [vmem:[#allocation4 + $0x10] sm:$0xff]
  %v2966 = vld [vmem:[#allocation4 + $0x18] sm:$0xff]
  %v2967 = vld [vmem:[#allocation4 + $0x20] sm:$0xff]
  %v2968 = vld [vmem:[#allocation4 + $0x28] sm:$0xff]
  %v2969 = vld [vmem:[#allocation4 + $0x30] sm:$0xff]
  %v2970 = vld [vmem:[#allocation4 + $0x38] sm:$0xff]
  %v2971 = vld [vmem:[#allocation4 + $0x40] sm:$0xff]
  %v2972 = vld [vmem:[#allocation4 + $0x48] sm:$0xff]
  %v2973 = vld [vmem:[#allocation4 + $0x50] sm:$0xff]
  %v2974 = vld [vmem:[#allocation4 + $0x58] sm:$0xff]
  %v2975 = vld [vmem:[#allocation4 + $0x60] sm:$0xff]
  %v2976 = vld [vmem:[#allocation4 + $0x68] sm:$0xff]
  %v2977 = vld [vmem:[#allocation4 + $0x70] sm:$0xff]
  %v2978 = vld [vmem:[#allocation4 + $0x78] sm:$0xff]
  %v2979 = vld [vmem:[#allocation4 + $0x80] sm:$0xff]
  %v2980 = vld [vmem:[#allocation4 + $0x88] sm:$0xff]
  %v2981 = vld [vmem:[#allocation4 + $0x90] sm:$0xff]
  %v2982 = vld [vmem:[#allocation4 + $0x98] sm:$0xff]
  %v2983 = vld [vmem:[#allocation4 + $0xa0] sm:$0xff]
  %v2984 = vld [vmem:[#allocation4 + $0xa8] sm:$0xff]
  %v2985 = vld [vmem:[#allocation4 + $0xb0] sm:$0xff]
  %v2986 = vld [vmem:[#allocation4 + $0xb8] sm:$0xff]
  %v2987 = vld [vmem:[#allocation4 + $0xc0] sm:$0xff]
  %v2988 = vld [vmem:[#allocation4 + $0xc8] sm:$0xff]
  %v2989 = vld [vmem:[#allocation4 + $0xd0] sm:$0xff]
  %v2990 = vld [vmem:[#allocation4 + $0xd8] sm:$0xff]
  %v2991 = vld [vmem:[#allocation4 + $0xe0] sm:$0xff]
  %v2992 = vld [vmem:[#allocation4 + $0xe8] sm:$0xff]
  %v2993 = vld [vmem:[#allocation4 + $0xf0] sm:$0xff]
  %v2994 = vld [vmem:[#allocation4 + $0xf8] sm:$0xff]
  %v2995 = vld [vmem:[#allocation4 + $0x100] sm:$0xff]
  %v2996 = vld [vmem:[#allocation4 + $0x108] sm:$0xff]
  %v2997 = vld [vmem:[#allocation4 + $0x110] sm:$0xff]
  %v2998 = vld [vmem:[#allocation4 + $0x118] sm:$0xff]
  %v2999 = vld [vmem:[#allocation4 + $0x120] sm:$0xff]
  %v3000 = vld [vmem:[#allocation4 + $0x128] sm:$0xff]
  %v3001 = vld [vmem:[#allocation4 + $0x130] sm:$0xff]
  %v3002 = vld [vmem:[#allocation4 + $0x138] sm:$0xff]
  %v3003 = vld [vmem:[#allocation4 + $0x140] sm:$0xff]
  %v3004 = vld [vmem:[#allocation4 + $0x148] sm:$0xff]
  %v3005 = vld [vmem:[#allocation4 + $0x150] sm:$0xff]
  %v3006 = vld [vmem:[#allocation4 + $0x158] sm:$0xff]
  %v3007 = vld [vmem:[#allocation4 + $0x160] sm:$0xff]
  %v3008 = vld [vmem:[#allocation4 + $0x168] sm:$0xff]
  %v3009 = vld [vmem:[#allocation4 + $0x170] sm:$0xff]
  %v3010 = vld [vmem:[#allocation4 + $0x178] sm:$0xff]
  %v3011 = vld [vmem:[#allocation4 + $0x180] sm:$0xff]
  %v3012 = vld [vmem:[#allocation4 + $0x188] sm:$0xff]
  %v3013 = vld [vmem:[#allocation4 + $0x190] sm:$0xff]
  %v3014 = vld [vmem:[#allocation4 + $0x198] sm:$0xff]
  %v3015 = vld [vmem:[#allocation4 + $0x1a0] sm:$0xff]
  %v3016 = vld [vmem:[#allocation4 + $0x1a8] sm:$0xff]
  %v3017 = vld [vmem:[#allocation4 + $0x1b0] sm:$0xff]
  %v3018 = vld [vmem:[#allocation4 + $0x1b8] sm:$0xff]
  %v3019 = vld [vmem:[#allocation4 + $0x1c0] sm:$0xff]
  %v3020 = vld [vmem:[#allocation4 + $0x1c8] sm:$0xff]
  %v3021 = vld [vmem:[#allocation4 + $0x1d0] sm:$0xff]
  %v3022 = vld [vmem:[#allocation4 + $0x1d8] sm:$0xff]
  %v3023 = vld [vmem:[#allocation4 + $0x1e0] sm:$0xff]
  %v3024 = vld [vmem:[#allocation4 + $0x1e8] sm:$0xff]
  %v3025 = vld [vmem:[#allocation4 + $0x1f0] sm:$0xff]
  %v3026 = vld [vmem:[#allocation4 + $0x1f8] sm:$0xff]
  %v3027 = vld [vmem:[%s1] sm:$0xff]
  %v3028 = vld [vmem:[%s1 + $0x8] sm:$0xff]
  %v3029 = vld [vmem:[%s1 + $0x10] sm:$0xff]
  %v3030 = vld [vmem:[%s1 + $0x18] sm:$0xff]
  %v3031 = vld [vmem:[%s1 + $0x20] sm:$0xf]
  %vm3032 = vcmask 293888
  %v3034 = vsel %vm3032, %v2963, 0
  %v3037 = vsel %vm3032, %v2964, 0
  %v3040 = vsel %vm3032, %v2965, 0
  %v3043 = vsel %vm3032, %v2966, 0
  %v3046 = vsel %vm3032, %v2967, 0
  %v3049 = vsel %vm3032, %v2968, 0
  %v3052 = vsel %vm3032, %v2969, 0
  %v3055 = vsel %vm3032, %v2970, 0
  %v3058 = vsel %vm3032, %v2971, 0
  %v3061 = vsel %vm3032, %v2972, 0
  %v3064 = vsel %vm3032, %v2973, 0
  %v3067 = vsel %vm3032, %v2974, 0
  %v3070 = vsel %vm3032, %v2975, 0
  %v3073 = vsel %vm3032, %v2976, 0
  %v3076 = vsel %vm3032, %v2977, 0
  %v3079 = vsel %vm3032, %v2978, 0
  %v3082 = vsel %vm3032, %v2979, 0
  %v3085 = vsel %vm3032, %v2980, 0
  %v3088 = vsel %vm3032, %v2981, 0
  %v3091 = vsel %vm3032, %v2982, 0
  %v3094 = vsel %vm3032, %v2983, 0
  %v3097 = vsel %vm3032, %v2984, 0
  %v3100 = vsel %vm3032, %v2985, 0
  %v3103 = vsel %vm3032, %v2986, 0
  %v3106 = vsel %vm3032, %v2987, 0
  %v3109 = vsel %vm3032, %v2988, 0
  %v3112 = vsel %vm3032, %v2989, 0
  %v3115 = vsel %vm3032, %v2990, 0
  %v3118 = vsel %vm3032, %v2991, 0
  %v3121 = vsel %vm3032, %v2992, 0
  %v3124 = vsel %vm3032, %v2993, 0
  %v3127 = vsel %vm3032, %v2994, 0
  %v3130 = vsel %vm3032, %v2995, 0
  %v3133 = vsel %vm3032, %v2996, 0
  %v3136 = vsel %vm3032, %v2997, 0
  %v3139 = vsel %vm3032, %v2998, 0
  %v3142 = vsel %vm3032, %v2999, 0
  %v3145 = vsel %vm3032, %v3000, 0
  %v3148 = vsel %vm3032, %v3001, 0
  %v3151 = vsel %vm3032, %v3002, 0
  %v3154 = vsel %vm3032, %v3003, 0
  %v3157 = vsel %vm3032, %v3004, 0
  %v3160 = vsel %vm3032, %v3005, 0
  %v3163 = vsel %vm3032, %v3006, 0
  %v3166 = vsel %vm3032, %v3007, 0
  %v3169 = vsel %vm3032, %v3008, 0
  %v3172 = vsel %vm3032, %v3009, 0
  %v3175 = vsel %vm3032, %v3010, 0
  %v3178 = vsel %vm3032, %v3011, 0
  %v3181 = vsel %vm3032, %v3012, 0
  %v3184 = vsel %vm3032, %v3013, 0
  %v3187 = vsel %vm3032, %v3014, 0
  %v3190 = vsel %vm3032, %v3015, 0
  %v3193 = vsel %vm3032, %v3016, 0
  %v3196 = vsel %vm3032, %v3017, 0
  %v3199 = vsel %vm3032, %v3018, 0
  %v3202 = vsel %vm3032, %v3019, 0
  %v3205 = vsel %vm3032, %v3020, 0
  %v3208 = vsel %vm3032, %v3021, 0
  %v3211 = vsel %vm3032, %v3022, 0
  %v3214 = vsel %vm3032, %v3023, 0
  %v3217 = vsel %vm3032, %v3024, 0
  %v3220 = vsel %vm3032, %v3025, 0
  %v3223 = vsel %vm3032, %v3026, 0
  %vm3225 = vcmask 1043456
  %v3227 = vsel %vm3225, %v3031, 0
  %3229 = vmatpush.msra.mxu0 0.0
  %3230 = vmatpush.msra.mxu0 0.0
  %3231 = vmatpush.msra.mxu0 0.0
  %3232 = vmatpush.msra.mxu0 0.0
  %3233 = vmatpush.msra.mxu0 0.0
  %3234 = vmatpush.msra.mxu0 0.0
  %3235 = vmatpush.msra.mxu0 0.0
  %3236 = vmatpush.msra.mxu0 0.0
  %3237 = vmatpush.msra.mxu0 0.0
  %3238 = vmatpush.msra.mxu0 0.0
  %3239 = vmatpush.msra.mxu0 0.0
  %3240 = vmatpush.msra.mxu0 %v3227
  %3241 = vmatpush.msra.mxu0 %v3030
  %3242 = vmatpush.msra.mxu0 %v3029
  %3243 = vmatpush.msra.mxu0 %v3028
  %3244 = vmatpush.msra.mxu0 %v3027
  %3245 = vmatmul.f32.gmra.mxu0 %v3034
  %v3246 = vpop.f32.mrf.mxu0
  %v3247 = vadd.f32 0.0, %v3246
  %3248 = vmatmul.f32.gmra.mxu0 %v3037
  %v3249 = vpop.f32.mrf.mxu0
  %v3250 = vadd.f32 0.0, %v3249
  %3251 = vmatmul.f32.gmra.mxu0 %v3040
  %v3252 = vpop.f32.mrf.mxu0
  %v3253 = vadd.f32 0.0, %v3252
  %3254 = vmatmul.f32.gmra.mxu0 %v3043
  %v3255 = vpop.f32.mrf.mxu0
  %v3256 = vadd.f32 0.0, %v3255
  %3257 = vmatmul.f32.gmra.mxu0 %v3046
  %v3258 = vpop.f32.mrf.mxu0
  %v3259 = vadd.f32 0.0, %v3258
  %3260 = vmatmul.f32.gmra.mxu0 %v3049
  %v3261 = vpop.f32.mrf.mxu0
  %v3262 = vadd.f32 0.0, %v3261
  %3263 = vmatmul.f32.gmra.mxu0 %v3052
  %v3264 = vpop.f32.mrf.mxu0
  %v3265 = vadd.f32 0.0, %v3264
  %3266 = vmatmul.f32.gmra.mxu0 %v3055
  %v3267 = vpop.f32.mrf.mxu0
  %v3268 = vadd.f32 0.0, %v3267
  %3269 = vmatmul.f32.gmra.mxu0 %v3058
  %v3270 = vpop.f32.mrf.mxu0
  %v3271 = vadd.f32 0.0, %v3270
  %3272 = vmatmul.f32.gmra.mxu0 %v3061
  %v3273 = vpop.f32.mrf.mxu0
  %v3274 = vadd.f32 0.0, %v3273
  %3275 = vmatmul.f32.gmra.mxu0 %v3064
  %v3276 = vpop.f32.mrf.mxu0
  %v3277 = vadd.f32 0.0, %v3276
  %3278 = vmatmul.f32.gmra.mxu0 %v3067
  %v3279 = vpop.f32.mrf.mxu0
  %v3280 = vadd.f32 0.0, %v3279
  %3281 = vmatmul.f32.gmra.mxu0 %v3070
  %v3282 = vpop.f32.mrf.mxu0
  %v3283 = vadd.f32 0.0, %v3282
  %3284 = vmatmul.f32.gmra.mxu0 %v3073
  %v3285 = vpop.f32.mrf.mxu0
  %v3286 = vadd.f32 0.0, %v3285
  %3287 = vmatmul.f32.gmra.mxu0 %v3076
  %v3288 = vpop.f32.mrf.mxu0
  %v3289 = vadd.f32 0.0, %v3288
  %3290 = vmatmul.f32.gmra.mxu0 %v3079
  %v3291 = vpop.f32.mrf.mxu0
  %v3292 = vadd.f32 0.0, %v3291
  %3293 = vmatmul.f32.gmra.mxu0 %v3082
  %v3294 = vpop.f32.mrf.mxu0
  %v3295 = vadd.f32 0.0, %v3294
  %3296 = vmatmul.f32.gmra.mxu0 %v3085
  %v3297 = vpop.f32.mrf.mxu0
  %v3298 = vadd.f32 0.0, %v3297
  %3299 = vmatmul.f32.gmra.mxu0 %v3088
  %v3300 = vpop.f32.mrf.mxu0
  %v3301 = vadd.f32 0.0, %v3300
  %3302 = vmatmul.f32.gmra.mxu0 %v3091
  %v3303 = vpop.f32.mrf.mxu0
  %v3304 = vadd.f32 0.0, %v3303
  %3305 = vmatmul.f32.gmra.mxu0 %v3094
  %v3306 = vpop.f32.mrf.mxu0
  %v3307 = vadd.f32 0.0, %v3306
  %3308 = vmatmul.f32.gmra.mxu0 %v3097
  %v3309 = vpop.f32.mrf.mxu0
  %v3310 = vadd.f32 0.0, %v3309
  %3311 = vmatmul.f32.gmra.mxu0 %v3100
  %v3312 = vpop.f32.mrf.mxu0
  %v3313 = vadd.f32 0.0, %v3312
  %3314 = vmatmul.f32.gmra.mxu0 %v3103
  %v3315 = vpop.f32.mrf.mxu0
  %v3316 = vadd.f32 0.0, %v3315
  %3317 = vmatmul.f32.gmra.mxu0 %v3106
  %v3318 = vpop.f32.mrf.mxu0
  %v3319 = vadd.f32 0.0, %v3318
  %3320 = vmatmul.f32.gmra.mxu0 %v3109
  %v3321 = vpop.f32.mrf.mxu0
  %v3322 = vadd.f32 0.0, %v3321
  %3323 = vmatmul.f32.gmra.mxu0 %v3112
  %v3324 = vpop.f32.mrf.mxu0
  %v3325 = vadd.f32 0.0, %v3324
  %3326 = vmatmul.f32.gmra.mxu0 %v3115
  %v3327 = vpop.f32.mrf.mxu0
  %v3328 = vadd.f32 0.0, %v3327
  %3329 = vmatmul.f32.gmra.mxu0 %v3118
  %v3330 = vpop.f32.mrf.mxu0
  %v3331 = vadd.f32 0.0, %v3330
  %3332 = vmatmul.f32.gmra.mxu0 %v3121
  %v3333 = vpop.f32.mrf.mxu0
  %v3334 = vadd.f32 0.0, %v3333
  %3335 = vmatmul.f32.gmra.mxu0 %v3124
  %v3336 = vpop.f32.mrf.mxu0
  %v3337 = vadd.f32 0.0, %v3336
  %3338 = vmatmul.f32.gmra.mxu0 %v3127
  %v3339 = vpop.f32.mrf.mxu0
  %v3340 = vadd.f32 0.0, %v3339
  %3341 = vmatmul.f32.gmra.mxu0 %v3130
  %v3342 = vpop.f32.mrf.mxu0
  %v3343 = vadd.f32 0.0, %v3342
  %3344 = vmatmul.f32.gmra.mxu0 %v3133
  %v3345 = vpop.f32.mrf.mxu0
  %v3346 = vadd.f32 0.0, %v3345
  %3347 = vmatmul.f32.gmra.mxu0 %v3136
  %v3348 = vpop.f32.mrf.mxu0
  %v3349 = vadd.f32 0.0, %v3348
  %3350 = vmatmul.f32.gmra.mxu0 %v3139
  %v3351 = vpop.f32.mrf.mxu0
  %v3352 = vadd.f32 0.0, %v3351
  %3353 = vmatmul.f32.gmra.mxu0 %v3142
  %v3354 = vpop.f32.mrf.mxu0
  %v3355 = vadd.f32 0.0, %v3354
  %3356 = vmatmul.f32.gmra.mxu0 %v3145
  %v3357 = vpop.f32.mrf.mxu0
  %v3358 = vadd.f32 0.0, %v3357
  %3359 = vmatmul.f32.gmra.mxu0 %v3148
  %v3360 = vpop.f32.mrf.mxu0
  %v3361 = vadd.f32 0.0, %v3360
  %3362 = vmatmul.f32.gmra.mxu0 %v3151
  %v3363 = vpop.f32.mrf.mxu0
  %v3364 = vadd.f32 0.0, %v3363
  %3365 = vmatmul.f32.gmra.mxu0 %v3154
  %v3366 = vpop.f32.mrf.mxu0
  %v3367 = vadd.f32 0.0, %v3366
  %3368 = vmatmul.f32.gmra.mxu0 %v3157
  %v3369 = vpop.f32.mrf.mxu0
  %v3370 = vadd.f32 0.0, %v3369
  %3371 = vmatmul.f32.gmra.mxu0 %v3160
  %v3372 = vpop.f32.mrf.mxu0
  %v3373 = vadd.f32 0.0, %v3372
  %3374 = vmatmul.f32.gmra.mxu0 %v3163
  %v3375 = vpop.f32.mrf.mxu0
  %v3376 = vadd.f32 0.0, %v3375
  %3377 = vmatmul.f32.gmra.mxu0 %v3166
  %v3378 = vpop.f32.mrf.mxu0
  %v3379 = vadd.f32 0.0, %v3378
  %3380 = vmatmul.f32.gmra.mxu0 %v3169
  %v3381 = vpop.f32.mrf.mxu0
  %v3382 = vadd.f32 0.0, %v3381
  %3383 = vmatmul.f32.gmra.mxu0 %v3172
  %v3384 = vpop.f32.mrf.mxu0
  %v3385 = vadd.f32 0.0, %v3384
  %3386 = vmatmul.f32.gmra.mxu0 %v3175
  %v3387 = vpop.f32.mrf.mxu0
  %v3388 = vadd.f32 0.0, %v3387
  %3389 = vmatmul.f32.gmra.mxu0 %v3178
  %v3390 = vpop.f32.mrf.mxu0
  %v3391 = vadd.f32 0.0, %v3390
  %3392 = vmatmul.f32.gmra.mxu0 %v3181
  %v3393 = vpop.f32.mrf.mxu0
  %v3394 = vadd.f32 0.0, %v3393
  %3395 = vmatmul.f32.gmra.mxu0 %v3184
  %v3396 = vpop.f32.mrf.mxu0
  %v3397 = vadd.f32 0.0, %v3396
  %3398 = vmatmul.f32.gmra.mxu0 %v3187
  %v3399 = vpop.f32.mrf.mxu0
  %v3400 = vadd.f32 0.0, %v3399
  %3401 = vmatmul.f32.gmra.mxu0 %v3190
  %v3402 = vpop.f32.mrf.mxu0
  %v3403 = vadd.f32 0.0, %v3402
  %3404 = vmatmul.f32.gmra.mxu0 %v3193
  %v3405 = vpop.f32.mrf.mxu0
  %v3406 = vadd.f32 0.0, %v3405
  %3407 = vmatmul.f32.gmra.mxu0 %v3196
  %v3408 = vpop.f32.mrf.mxu0
  %v3409 = vadd.f32 0.0, %v3408
  %3410 = vmatmul.f32.gmra.mxu0 %v3199
  %v3411 = vpop.f32.mrf.mxu0
  %v3412 = vadd.f32 0.0, %v3411
  %3413 = vmatmul.f32.gmra.mxu0 %v3202
  %v3414 = vpop.f32.mrf.mxu0
  %v3415 = vadd.f32 0.0, %v3414
  %3416 = vmatmul.f32.gmra.mxu0 %v3205
  %v3417 = vpop.f32.mrf.mxu0
  %v3418 = vadd.f32 0.0, %v3417
  %3419 = vmatmul.f32.gmra.mxu0 %v3208
  %v3420 = vpop.f32.mrf.mxu0
  %v3421 = vadd.f32 0.0, %v3420
  %3422 = vmatmul.f32.gmra.mxu0 %v3211
  %v3423 = vpop.f32.mrf.mxu0
  %v3424 = vadd.f32 0.0, %v3423
  %3425 = vmatmul.f32.gmra.mxu0 %v3214
  %v3426 = vpop.f32.mrf.mxu0
  %v3427 = vadd.f32 0.0, %v3426
  %3428 = vmatmul.f32.gmra.mxu0 %v3217
  %v3429 = vpop.f32.mrf.mxu0
  %v3430 = vadd.f32 0.0, %v3429
  %3431 = vmatmul.f32.gmra.mxu0 %v3220
  %v3432 = vpop.f32.mrf.mxu0
  %v3433 = vadd.f32 0.0, %v3432
  %3434 = vmatmul.f32.gmra.mxu0 %v3223
  %v3435 = vpop.f32.mrf.mxu0
  %v3436 = vadd.f32 0.0, %v3435
  %3437 = vdwg.mxu0
  %v3438 = vsel %vm90, %v3247, 0.0
  %v3439 = vsel %vm90, %v3250, 0.0
  %v3440 = vadd.f32 %v3438, %v3439
  %v3441 = vsel %vm90, %v3253, 0.0
  %v3442 = vadd.f32 %v3440, %v3441
  %v3443 = vsel %vm90, %v3256, 0.0
  %v3444 = vadd.f32 %v3442, %v3443
  %v3445 = vsel %vm90, %v3259, 0.0
  %v3446 = vadd.f32 %v3444, %v3445
  %v3447 = vsel %vm90, %v3262, 0.0
  %v3448 = vadd.f32 %v3446, %v3447
  %v3449 = vsel %vm90, %v3265, 0.0
  %v3450 = vadd.f32 %v3448, %v3449
  %v3451 = vsel %vm90, %v3268, 0.0
  %v3452 = vadd.f32 %v3450, %v3451
  %v3453 = vsel %vm90, %v3271, 0.0
  %v3454 = vadd.f32 %v3452, %v3453
  %v3455 = vsel %vm90, %v3274, 0.0
  %v3456 = vadd.f32 %v3454, %v3455
  %v3457 = vsel %vm90, %v3277, 0.0
  %v3458 = vadd.f32 %v3456, %v3457
  %v3459 = vsel %vm90, %v3280, 0.0
  %v3460 = vadd.f32 %v3458, %v3459
  %v3461 = vsel %vm90, %v3283, 0.0
  %v3462 = vadd.f32 %v3460, %v3461
  %v3463 = vsel %vm90, %v3286, 0.0
  %v3464 = vadd.f32 %v3462, %v3463
  %v3465 = vsel %vm90, %v3289, 0.0
  %v3466 = vadd.f32 %v3464, %v3465
  %v3467 = vsel %vm90, %v3292, 0.0
  %v3468 = vadd.f32 %v3466, %v3467
  %v3469 = vsel %vm90, %v3295, 0.0
  %v3470 = vadd.f32 %v3468, %v3469
  %v3471 = vsel %vm90, %v3298, 0.0
  %v3472 = vadd.f32 %v3470, %v3471
  %v3473 = vsel %vm90, %v3301, 0.0
  %v3474 = vadd.f32 %v3472, %v3473
  %v3475 = vsel %vm90, %v3304, 0.0
  %v3476 = vadd.f32 %v3474, %v3475
  %v3477 = vsel %vm90, %v3307, 0.0
  %v3478 = vadd.f32 %v3476, %v3477
  %v3479 = vsel %vm90, %v3310, 0.0
  %v3480 = vadd.f32 %v3478, %v3479
  %v3481 = vsel %vm90, %v3313, 0.0
  %v3482 = vadd.f32 %v3480, %v3481
  %v3483 = vsel %vm90, %v3316, 0.0
  %v3484 = vadd.f32 %v3482, %v3483
  %v3485 = vsel %vm90, %v3319, 0.0
  %v3486 = vadd.f32 %v3484, %v3485
  %v3487 = vsel %vm90, %v3322, 0.0
  %v3488 = vadd.f32 %v3486, %v3487
  %v3489 = vsel %vm90, %v3325, 0.0
  %v3490 = vadd.f32 %v3488, %v3489
  %v3491 = vsel %vm90, %v3328, 0.0
  %v3492 = vadd.f32 %v3490, %v3491
  %v3493 = vsel %vm90, %v3331, 0.0
  %v3494 = vadd.f32 %v3492, %v3493
  %v3495 = vsel %vm90, %v3334, 0.0
  %v3496 = vadd.f32 %v3494, %v3495
  %v3497 = vsel %vm90, %v3337, 0.0
  %v3498 = vadd.f32 %v3496, %v3497
  %v3499 = vsel %vm90, %v3340, 0.0
  %v3500 = vadd.f32 %v3498, %v3499
  %v3501 = vsel %vm90, %v3343, 0.0
  %v3502 = vadd.f32 %v3500, %v3501
  %v3503 = vsel %vm90, %v3346, 0.0
  %v3504 = vadd.f32 %v3502, %v3503
  %v3505 = vsel %vm90, %v3349, 0.0
  %v3506 = vadd.f32 %v3504, %v3505
  %v3507 = vsel %vm90, %v3352, 0.0
  %v3508 = vadd.f32 %v3506, %v3507
  %v3509 = vsel %vm90, %v3355, 0.0
  %v3510 = vadd.f32 %v3508, %v3509
  %v3511 = vsel %vm90, %v3358, 0.0
  %v3512 = vadd.f32 %v3510, %v3511
  %v3513 = vsel %vm90, %v3361, 0.0
  %v3514 = vadd.f32 %v3512, %v3513
  %v3515 = vsel %vm90, %v3364, 0.0
  %v3516 = vadd.f32 %v3514, %v3515
  %v3517 = vsel %vm90, %v3367, 0.0
  %v3518 = vadd.f32 %v3516, %v3517
  %v3519 = vsel %vm90, %v3370, 0.0
  %v3520 = vadd.f32 %v3518, %v3519
  %v3521 = vsel %vm90, %v3373, 0.0
  %v3522 = vadd.f32 %v3520, %v3521
  %v3523 = vsel %vm90, %v3376, 0.0
  %v3524 = vadd.f32 %v3522, %v3523
  %v3525 = vsel %vm90, %v3379, 0.0
  %v3526 = vadd.f32 %v3524, %v3525
  %v3527 = vsel %vm90, %v3382, 0.0
  %v3528 = vadd.f32 %v3526, %v3527
  %v3529 = vsel %vm90, %v3385, 0.0
  %v3530 = vadd.f32 %v3528, %v3529
  %v3531 = vsel %vm90, %v3388, 0.0
  %v3532 = vadd.f32 %v3530, %v3531
  %v3533 = vsel %vm90, %v3391, 0.0
  %v3534 = vadd.f32 %v3532, %v3533
  %v3535 = vsel %vm90, %v3394, 0.0
  %v3536 = vadd.f32 %v3534, %v3535
  %v3537 = vsel %vm90, %v3397, 0.0
  %v3538 = vadd.f32 %v3536, %v3537
  %v3539 = vsel %vm90, %v3400, 0.0
  %v3540 = vadd.f32 %v3538, %v3539
  %v3541 = vsel %vm90, %v3403, 0.0
  %v3542 = vadd.f32 %v3540, %v3541
  %v3543 = vsel %vm90, %v3406, 0.0
  %v3544 = vadd.f32 %v3542, %v3543
  %v3545 = vsel %vm90, %v3409, 0.0
  %v3546 = vadd.f32 %v3544, %v3545
  %v3547 = vsel %vm90, %v3412, 0.0
  %v3548 = vadd.f32 %v3546, %v3547
  %v3549 = vsel %vm90, %v3415, 0.0
  %v3550 = vadd.f32 %v3548, %v3549
  %v3551 = vsel %vm90, %v3418, 0.0
  %v3552 = vadd.f32 %v3550, %v3551
  %v3553 = vsel %vm90, %v3421, 0.0
  %v3554 = vadd.f32 %v3552, %v3553
  %v3555 = vsel %vm90, %v3424, 0.0
  %v3556 = vadd.f32 %v3554, %v3555
  %v3557 = vsel %vm90, %v3427, 0.0
  %v3558 = vadd.f32 %v3556, %v3557
  %v3559 = vsel %vm90, %v3430, 0.0
  %v3560 = vadd.f32 %v3558, %v3559
  %v3561 = vsel %vm90, %v3433, 0.0
  %v3562 = vadd.f32 %v3560, %v3561
  %v3563 = vsel %vm90, %v3436, 0.0
  %v3564 = vadd.f32 %v3562, %v3563
  %v3565 = vrot.slane %v3564, 4
  %v3566 = vadd.f32 %v3564, %v3565
  %v3567 = vrot.slane %v3566, 2
  %v3568 = vadd.f32 %v3566, %v3567
  %v3569 = vrot.slane %v3568, 1
  %v3570 = vadd.f32 %v3568, %v3569
  %v3571 = vrcp.pop 512.0
  %v3572 = vmul.f32 512.0, %v3571
  %v3573 = vsub.f32 1.0, %v3572
  %v3574 = vmul.f32 %v3571, %v3573
  %v3575 = vadd.f32 %v3571, %v3574
  %vm3576 = vweird.f32 %v3571
  %v3577 = vsel %vm3576, %v3571, %v3575
  %v3578 = vmul.f32 %v3570, %v3577
  %v3579 = vsub.f32 %v3247, %v3578
  %v3580 = vsub.f32 %v3250, %v3578
  %v3581 = vsub.f32 %v3253, %v3578
  %v3582 = vsub.f32 %v3256, %v3578
  %v3583 = vsub.f32 %v3259, %v3578
  %v3584 = vsub.f32 %v3262, %v3578
  %v3585 = vsub.f32 %v3265, %v3578
  %v3586 = vsub.f32 %v3268, %v3578
  %v3587 = vsub.f32 %v3271, %v3578
  %v3588 = vsub.f32 %v3274, %v3578
  %v3589 = vsub.f32 %v3277, %v3578
  %v3590 = vsub.f32 %v3280, %v3578
  %v3591 = vsub.f32 %v3283, %v3578
  %v3592 = vsub.f32 %v3286, %v3578
  %v3593 = vsub.f32 %v3289, %v3578
  %v3594 = vsub.f32 %v3292, %v3578
  %v3595 = vsub.f32 %v3295, %v3578
  %v3596 = vsub.f32 %v3298, %v3578
  %v3597 = vsub.f32 %v3301, %v3578
  %v3598 = vsub.f32 %v3304, %v3578
  %v3599 = vsub.f32 %v3307, %v3578
  %v3600 = vsub.f32 %v3310, %v3578
  %v3601 = vsub.f32 %v3313, %v3578
  %v3602 = vsub.f32 %v3316, %v3578
  %v3603 = vsub.f32 %v3319, %v3578
  %v3604 = vsub.f32 %v3322, %v3578
  %v3605 = vsub.f32 %v3325, %v3578
  %v3606 = vsub.f32 %v3328, %v3578
  %v3607 = vsub.f32 %v3331, %v3578
  %v3608 = vsub.f32 %v3334, %v3578
  %v3609 = vsub.f32 %v3337, %v3578
  %v3610 = vsub.f32 %v3340, %v3578
  %v3611 = vsub.f32 %v3343, %v3578
  %v3612 = vsub.f32 %v3346, %v3578
  %v3613 = vsub.f32 %v3349, %v3578
  %v3614 = vsub.f32 %v3352, %v3578
  %v3615 = vsub.f32 %v3355, %v3578
  %v3616 = vsub.f32 %v3358, %v3578
  %v3617 = vsub.f32 %v3361, %v3578
  %v3618 = vsub.f32 %v3364, %v3578
  %v3619 = vsub.f32 %v3367, %v3578
  %v3620 = vsub.f32 %v3370, %v3578
  %v3621 = vsub.f32 %v3373, %v3578
  %v3622 = vsub.f32 %v3376, %v3578
  %v3623 = vsub.f32 %v3379, %v3578
  %v3624 = vsub.f32 %v3382, %v3578
  %v3625 = vsub.f32 %v3385, %v3578
  %v3626 = vsub.f32 %v3388, %v3578
  %v3627 = vsub.f32 %v3391, %v3578
  %v3628 = vsub.f32 %v3394, %v3578
  %v3629 = vsub.f32 %v3397, %v3578
  %v3630 = vsub.f32 %v3400, %v3578
  %v3631 = vsub.f32 %v3403, %v3578
  %v3632 = vsub.f32 %v3406, %v3578
  %v3633 = vsub.f32 %v3409, %v3578
  %v3634 = vsub.f32 %v3412, %v3578
  %v3635 = vsub.f32 %v3415, %v3578
  %v3636 = vsub.f32 %v3418, %v3578
  %v3637 = vsub.f32 %v3421, %v3578
  %v3638 = vsub.f32 %v3424, %v3578
  %v3639 = vsub.f32 %v3427, %v3578
  %v3640 = vsub.f32 %v3430, %v3578
  %v3641 = vsub.f32 %v3433, %v3578
  %v3642 = vsub.f32 %v3436, %v3578
  %v3643 = vmul.f32 %v3579, %v3579
  %v3644 = vmul.f32 %v3580, %v3580
  %v3645 = vmul.f32 %v3581, %v3581
  %v3646 = vmul.f32 %v3582, %v3582
  %v3647 = vmul.f32 %v3583, %v3583
  %v3648 = vmul.f32 %v3584, %v3584
  %v3649 = vmul.f32 %v3585, %v3585
  %v3650 = vmul.f32 %v3586, %v3586
  %v3651 = vmul.f32 %v3587, %v3587
  %v3652 = vmul.f32 %v3588, %v3588
  %v3653 = vmul.f32 %v3589, %v3589
  %v3654 = vmul.f32 %v3590, %v3590
  %v3655 = vmul.f32 %v3591, %v3591
  %v3656 = vmul.f32 %v3592, %v3592
  %v3657 = vmul.f32 %v3593, %v3593
  %v3658 = vmul.f32 %v3594, %v3594
  %v3659 = vmul.f32 %v3595, %v3595
  %v3660 = vmul.f32 %v3596, %v3596
  %v3661 = vmul.f32 %v3597, %v3597
  %v3662 = vmul.f32 %v3598, %v3598
  %v3663 = vmul.f32 %v3599, %v3599
  %v3664 = vmul.f32 %v3600, %v3600
  %v3665 = vmul.f32 %v3601, %v3601
  %v3666 = vmul.f32 %v3602, %v3602
  %v3667 = vmul.f32 %v3603, %v3603
  %v3668 = vmul.f32 %v3604, %v3604
  %v3669 = vmul.f32 %v3605, %v3605
  %v3670 = vmul.f32 %v3606, %v3606
  %v3671 = vmul.f32 %v3607, %v3607
  %v3672 = vmul.f32 %v3608, %v3608
  %v3673 = vmul.f32 %v3609, %v3609
  %v3674 = vmul.f32 %v3610, %v3610
  %v3675 = vmul.f32 %v3611, %v3611
  %v3676 = vmul.f32 %v3612, %v3612
  %v3677 = vmul.f32 %v3613, %v3613
  %v3678 = vmul.f32 %v3614, %v3614
  %v3679 = vmul.f32 %v3615, %v3615
  %v3680 = vmul.f32 %v3616, %v3616
  %v3681 = vmul.f32 %v3617, %v3617
  %v3682 = vmul.f32 %v3618, %v3618
  %v3683 = vmul.f32 %v3619, %v3619
  %v3684 = vmul.f32 %v3620, %v3620
  %v3685 = vmul.f32 %v3621, %v3621
  %v3686 = vmul.f32 %v3622, %v3622
  %v3687 = vmul.f32 %v3623, %v3623
  %v3688 = vmul.f32 %v3624, %v3624
  %v3689 = vmul.f32 %v3625, %v3625
  %v3690 = vmul.f32 %v3626, %v3626
  %v3691 = vmul.f32 %v3627, %v3627
  %v3692 = vmul.f32 %v3628, %v3628
  %v3693 = vmul.f32 %v3629, %v3629
  %v3694 = vmul.f32 %v3630, %v3630
  %v3695 = vmul.f32 %v3631, %v3631
  %v3696 = vmul.f32 %v3632, %v3632
  %v3697 = vmul.f32 %v3633, %v3633
  %v3698 = vmul.f32 %v3634, %v3634
  %v3699 = vmul.f32 %v3635, %v3635
  %v3700 = vmul.f32 %v3636, %v3636
  %v3701 = vmul.f32 %v3637, %v3637
  %v3702 = vmul.f32 %v3638, %v3638
  %v3703 = vmul.f32 %v3639, %v3639
  %v3704 = vmul.f32 %v3640, %v3640
  %v3705 = vmul.f32 %v3641, %v3641
  %v3706 = vmul.f32 %v3642, %v3642
  %v3707 = vsel %vm90, %v3643, 0.0
  %v3708 = vsel %vm90, %v3644, 0.0
  %v3709 = vadd.f32 %v3707, %v3708
  %v3710 = vsel %vm90, %v3645, 0.0
  %v3711 = vadd.f32 %v3709, %v3710
  %v3712 = vsel %vm90, %v3646, 0.0
  %v3713 = vadd.f32 %v3711, %v3712
  %v3714 = vsel %vm90, %v3647, 0.0
  %v3715 = vadd.f32 %v3713, %v3714
  %v3716 = vsel %vm90, %v3648, 0.0
  %v3717 = vadd.f32 %v3715, %v3716
  %v3718 = vsel %vm90, %v3649, 0.0
  %v3719 = vadd.f32 %v3717, %v3718
  %v3720 = vsel %vm90, %v3650, 0.0
  %v3721 = vadd.f32 %v3719, %v3720
  %v3722 = vsel %vm90, %v3651, 0.0
  %v3723 = vadd.f32 %v3721, %v3722
  %v3724 = vsel %vm90, %v3652, 0.0
  %v3725 = vadd.f32 %v3723, %v3724
  %v3726 = vsel %vm90, %v3653, 0.0
  %v3727 = vadd.f32 %v3725, %v3726
  %v3728 = vsel %vm90, %v3654, 0.0
  %v3729 = vadd.f32 %v3727, %v3728
  %v3730 = vsel %vm90, %v3655, 0.0
  %v3731 = vadd.f32 %v3729, %v3730
  %v3732 = vsel %vm90, %v3656, 0.0
  %v3733 = vadd.f32 %v3731, %v3732
  %v3734 = vsel %vm90, %v3657, 0.0
  %v3735 = vadd.f32 %v3733, %v3734
  %v3736 = vsel %vm90, %v3658, 0.0
  %v3737 = vadd.f32 %v3735, %v3736
  %v3738 = vsel %vm90, %v3659, 0.0
  %v3739 = vadd.f32 %v3737, %v3738
  %v3740 = vsel %vm90, %v3660, 0.0
  %v3741 = vadd.f32 %v3739, %v3740
  %v3742 = vsel %vm90, %v3661, 0.0
  %v3743 = vadd.f32 %v3741, %v3742
  %v3744 = vsel %vm90, %v3662, 0.0
  %v3745 = vadd.f32 %v3743, %v3744
  %v3746 = vsel %vm90, %v3663, 0.0
  %v3747 = vadd.f32 %v3745, %v3746
  %v3748 = vsel %vm90, %v3664, 0.0
  %v3749 = vadd.f32 %v3747, %v3748
  %v3750 = vsel %vm90, %v3665, 0.0
  %v3751 = vadd.f32 %v3749, %v3750
  %v3752 = vsel %vm90, %v3666, 0.0
  %v3753 = vadd.f32 %v3751, %v3752
  %v3754 = vsel %vm90, %v3667, 0.0
  %v3755 = vadd.f32 %v3753, %v3754
  %v3756 = vsel %vm90, %v3668, 0.0
  %v3757 = vadd.f32 %v3755, %v3756
  %v3758 = vsel %vm90, %v3669, 0.0
  %v3759 = vadd.f32 %v3757, %v3758
  %v3760 = vsel %vm90, %v3670, 0.0
  %v3761 = vadd.f32 %v3759, %v3760
  %v3762 = vsel %vm90, %v3671, 0.0
  %v3763 = vadd.f32 %v3761, %v3762
  %v3764 = vsel %vm90, %v3672, 0.0
  %v3765 = vadd.f32 %v3763, %v3764
  %v3766 = vsel %vm90, %v3673, 0.0
  %v3767 = vadd.f32 %v3765, %v3766
  %v3768 = vsel %vm90, %v3674, 0.0
  %v3769 = vadd.f32 %v3767, %v3768
  %v3770 = vsel %vm90, %v3675, 0.0
  %v3771 = vadd.f32 %v3769, %v3770
  %v3772 = vsel %vm90, %v3676, 0.0
  %v3773 = vadd.f32 %v3771, %v3772
  %v3774 = vsel %vm90, %v3677, 0.0
  %v3775 = vadd.f32 %v3773, %v3774
  %v3776 = vsel %vm90, %v3678, 0.0
  %v3777 = vadd.f32 %v3775, %v3776
  %v3778 = vsel %vm90, %v3679, 0.0
  %v3779 = vadd.f32 %v3777, %v3778
  %v3780 = vsel %vm90, %v3680, 0.0
  %v3781 = vadd.f32 %v3779, %v3780
  %v3782 = vsel %vm90, %v3681, 0.0
  %v3783 = vadd.f32 %v3781, %v3782
  %v3784 = vsel %vm90, %v3682, 0.0
  %v3785 = vadd.f32 %v3783, %v3784
  %v3786 = vsel %vm90, %v3683, 0.0
  %v3787 = vadd.f32 %v3785, %v3786
  %v3788 = vsel %vm90, %v3684, 0.0
  %v3789 = vadd.f32 %v3787, %v3788
  %v3790 = vsel %vm90, %v3685, 0.0
  %v3791 = vadd.f32 %v3789, %v3790
  %v3792 = vsel %vm90, %v3686, 0.0
  %v3793 = vadd.f32 %v3791, %v3792
  %v3794 = vsel %vm90, %v3687, 0.0
  %v3795 = vadd.f32 %v3793, %v3794
  %v3796 = vsel %vm90, %v3688, 0.0
  %v3797 = vadd.f32 %v3795, %v3796
  %v3798 = vsel %vm90, %v3689, 0.0
  %v3799 = vadd.f32 %v3797, %v3798
  %v3800 = vsel %vm90, %v3690, 0.0
  %v3801 = vadd.f32 %v3799, %v3800
  %v3802 = vsel %vm90, %v3691, 0.0
  %v3803 = vadd.f32 %v3801, %v3802
  %v3804 = vsel %vm90, %v3692, 0.0
  %v3805 = vadd.f32 %v3803, %v3804
  %v3806 = vsel %vm90, %v3693, 0.0
  %v3807 = vadd.f32 %v3805, %v3806
  %v3808 = vsel %vm90, %v3694, 0.0
  %v3809 = vadd.f32 %v3807, %v3808
  %v3810 = vsel %vm90, %v3695, 0.0
  %v3811 = vadd.f32 %v3809, %v3810
  %v3812 = vsel %vm90, %v3696, 0.0
  %v3813 = vadd.f32 %v3811, %v3812
  %v3814 = vsel %vm90, %v3697, 0.0
  %v3815 = vadd.f32 %v3813, %v3814
  %v3816 = vsel %vm90, %v3698, 0.0
  %v3817 = vadd.f32 %v3815, %v3816
  %v3818 = vsel %vm90, %v3699, 0.0
  %v3819 = vadd.f32 %v3817, %v3818
  %v3820 = vsel %vm90, %v3700, 0.0
  %v3821 = vadd.f32 %v3819, %v3820
  %v3822 = vsel %vm90, %v3701, 0.0
  %v3823 = vadd.f32 %v3821, %v3822
  %v3824 = vsel %vm90, %v3702, 0.0
  %v3825 = vadd.f32 %v3823, %v3824
  %v3826 = vsel %vm90, %v3703, 0.0
  %v3827 = vadd.f32 %v3825, %v3826
  %v3828 = vsel %vm90, %v3704, 0.0
  %v3829 = vadd.f32 %v3827, %v3828
  %v3830 = vsel %vm90, %v3705, 0.0
  %v3831 = vadd.f32 %v3829, %v3830
  %v3832 = vsel %vm90, %v3706, 0.0
  %v3833 = vadd.f32 %v3831, %v3832
  %v3834 = vrot.slane %v3833, 4
  %v3835 = vadd.f32 %v3833, %v3834
  %v3836 = vrot.slane %v3835, 2
  %v3837 = vadd.f32 %v3835, %v3836
  %v3838 = vrot.slane %v3837, 1
  %v3839 = vadd.f32 %v3837, %v3838
  %v3840 = vmul.f32 %v3839, %v3577
  %v3841 = vld [vmem:[%s2] sm:$0x1]
  %v3842 = vadd.f32 %v3840, 1e-05
  %v3843 = vrsqrt.pop %v3842
  %v3844 = vmul.f32 %v3843, %v3842
  %v3845 = vmul.f32 %v3844, %v3843
  %v3846 = vmul.f32 0.5, %v3845
  %v3847 = vsub.f32 1.5, %v3846
  %v3848 = vmul.f32 %v3843, %v3847
  %vm3849 = vweird.f32 %v3842
  %vm3850 = vweird.f32 %v3843
  %vm3851 = vmor %vm3849, %vm3850
  %v3852 = vsel %vm3851, %v3843, %v3848
  %v3853 = vmul.f32 %v3841, %v3852
  %v3855 = vperm.slane %v3853, 0
  %v3857 = vmul.f32 %v3579, %v3855
  %v3858 = vmul.f32 %v3580, %v3855
  %v3859 = vmul.f32 %v3581, %v3855
  %v3860 = vmul.f32 %v3582, %v3855
  %v3861 = vmul.f32 %v3583, %v3855
  %v3862 = vmul.f32 %v3584, %v3855
  %v3863 = vmul.f32 %v3585, %v3855
  %v3864 = vmul.f32 %v3586, %v3855
  %v3865 = vmul.f32 %v3587, %v3855
  %v3866 = vmul.f32 %v3588, %v3855
  %v3867 = vmul.f32 %v3589, %v3855
  %v3868 = vmul.f32 %v3590, %v3855
  %v3869 = vmul.f32 %v3591, %v3855
  %v3870 = vmul.f32 %v3592, %v3855
  %v3871 = vmul.f32 %v3593, %v3855
  %v3872 = vmul.f32 %v3594, %v3855
  %v3873 = vmul.f32 %v3595, %v3855
  %v3874 = vmul.f32 %v3596, %v3855
  %v3875 = vmul.f32 %v3597, %v3855
  %v3876 = vmul.f32 %v3598, %v3855
  %v3877 = vmul.f32 %v3599, %v3855
  %v3878 = vmul.f32 %v3600, %v3855
  %v3879 = vmul.f32 %v3601, %v3855
  %v3880 = vmul.f32 %v3602, %v3855
  %v3881 = vmul.f32 %v3603, %v3855
  %v3882 = vmul.f32 %v3604, %v3855
  %v3883 = vmul.f32 %v3605, %v3855
  %v3884 = vmul.f32 %v3606, %v3855
  %v3885 = vmul.f32 %v3607, %v3855
  %v3886 = vmul.f32 %v3608, %v3855
  %v3887 = vmul.f32 %v3609, %v3855
  %v3888 = vmul.f32 %v3610, %v3855
  %v3889 = vmul.f32 %v3611, %v3855
  %v3890 = vmul.f32 %v3612, %v3855
  %v3891 = vmul.f32 %v3613, %v3855
  %v3892 = vmul.f32 %v3614, %v3855
  %v3893 = vmul.f32 %v3615, %v3855
  %v3894 = vmul.f32 %v3616, %v3855
  %v3895 = vmul.f32 %v3617, %v3855
  %v3896 = vmul.f32 %v3618, %v3855
  %v3897 = vmul.f32 %v3619, %v3855
  %v3898 = vmul.f32 %v3620, %v3855
  %v3899 = vmul.f32 %v3621, %v3855
  %v3900 = vmul.f32 %v3622, %v3855
  %v3901 = vmul.f32 %v3623, %v3855
  %v3902 = vmul.f32 %v3624, %v3855
  %v3903 = vmul.f32 %v3625, %v3855
  %v3904 = vmul.f32 %v3626, %v3855
  %v3905 = vmul.f32 %v3627, %v3855
  %v3906 = vmul.f32 %v3628, %v3855
  %v3907 = vmul.f32 %v3629, %v3855
  %v3908 = vmul.f32 %v3630, %v3855
  %v3909 = vmul.f32 %v3631, %v3855
  %v3910 = vmul.f32 %v3632, %v3855
  %v3911 = vmul.f32 %v3633, %v3855
  %v3912 = vmul.f32 %v3634, %v3855
  %v3913 = vmul.f32 %v3635, %v3855
  %v3914 = vmul.f32 %v3636, %v3855
  %v3915 = vmul.f32 %v3637, %v3855
  %v3916 = vmul.f32 %v3638, %v3855
  %v3917 = vmul.f32 %v3639, %v3855
  %v3918 = vmul.f32 %v3640, %v3855
  %v3919 = vmul.f32 %v3641, %v3855
  %v3920 = vmul.f32 %v3642, %v3855
  %v3921 = vld [vmem:[%s3] sm:$0x1]
  %v3923 = vperm.slane %v3921, 0
  %v3925 = vadd.f32 %v3857, %v3923
  %v3926 = vadd.f32 %v3858, %v3923
  %v3927 = vadd.f32 %v3859, %v3923
  %v3928 = vadd.f32 %v3860, %v3923
  %v3929 = vadd.f32 %v3861, %v3923
  %v3930 = vadd.f32 %v3862, %v3923
  %v3931 = vadd.f32 %v3863, %v3923
  %v3932 = vadd.f32 %v3864, %v3923
  %v3933 = vadd.f32 %v3865, %v3923
  %v3934 = vadd.f32 %v3866, %v3923
  %v3935 = vadd.f32 %v3867, %v3923
  %v3936 = vadd.f32 %v3868, %v3923
  %v3937 = vadd.f32 %v3869, %v3923
  %v3938 = vadd.f32 %v3870, %v3923
  %v3939 = vadd.f32 %v3871, %v3923
  %v3940 = vadd.f32 %v3872, %v3923
  %v3941 = vadd.f32 %v3873, %v3923
  %v3942 = vadd.f32 %v3874, %v3923
  %v3943 = vadd.f32 %v3875, %v3923
  %v3944 = vadd.f32 %v3876, %v3923
  %v3945 = vadd.f32 %v3877, %v3923
  %v3946 = vadd.f32 %v3878, %v3923
  %v3947 = vadd.f32 %v3879, %v3923
  %v3948 = vadd.f32 %v3880, %v3923
  %v3949 = vadd.f32 %v3881, %v3923
  %v3950 = vadd.f32 %v3882, %v3923
  %v3951 = vadd.f32 %v3883, %v3923
  %v3952 = vadd.f32 %v3884, %v3923
  %v3953 = vadd.f32 %v3885, %v3923
  %v3954 = vadd.f32 %v3886, %v3923
  %v3955 = vadd.f32 %v3887, %v3923
  %v3956 = vadd.f32 %v3888, %v3923
  %v3957 = vadd.f32 %v3889, %v3923
  %v3958 = vadd.f32 %v3890, %v3923
  %v3959 = vadd.f32 %v3891, %v3923
  %v3960 = vadd.f32 %v3892, %v3923
  %v3961 = vadd.f32 %v3893, %v3923
  %v3962 = vadd.f32 %v3894, %v3923
  %v3963 = vadd.f32 %v3895, %v3923
  %v3964 = vadd.f32 %v3896, %v3923
  %v3965 = vadd.f32 %v3897, %v3923
  %v3966 = vadd.f32 %v3898, %v3923
  %v3967 = vadd.f32 %v3899, %v3923
  %v3968 = vadd.f32 %v3900, %v3923
  %v3969 = vadd.f32 %v3901, %v3923
  %v3970 = vadd.f32 %v3902, %v3923
  %v3971 = vadd.f32 %v3903, %v3923
  %v3972 = vadd.f32 %v3904, %v3923
  %v3973 = vadd.f32 %v3905, %v3923
  %v3974 = vadd.f32 %v3906, %v3923
  %v3975 = vadd.f32 %v3907, %v3923
  %v3976 = vadd.f32 %v3908, %v3923
  %v3977 = vadd.f32 %v3909, %v3923
  %v3978 = vadd.f32 %v3910, %v3923
  %v3979 = vadd.f32 %v3911, %v3923
  %v3980 = vadd.f32 %v3912, %v3923
  %v3981 = vadd.f32 %v3913, %v3923
  %v3982 = vadd.f32 %v3914, %v3923
  %v3983 = vadd.f32 %v3915, %v3923
  %v3984 = vadd.f32 %v3916, %v3923
  %v3985 = vadd.f32 %v3917, %v3923
  %v3986 = vadd.f32 %v3918, %v3923
  %v3987 = vadd.f32 %v3919, %v3923
  %v3988 = vadd.f32 %v3920, %v3923
  %v3989 = vmax.f32 %v3925, 0.0
  %v3990 = vmax.f32 %v3926, 0.0
  %v3991 = vmax.f32 %v3927, 0.0
  %v3992 = vmax.f32 %v3928, 0.0
  %v3993 = vmax.f32 %v3929, 0.0
  %v3994 = vmax.f32 %v3930, 0.0
  %v3995 = vmax.f32 %v3931, 0.0
  %v3996 = vmax.f32 %v3932, 0.0
  %v3997 = vmax.f32 %v3933, 0.0
  %v3998 = vmax.f32 %v3934, 0.0
  %v3999 = vmax.f32 %v3935, 0.0
  %v4000 = vmax.f32 %v3936, 0.0
  %v4001 = vmax.f32 %v3937, 0.0
  %v4002 = vmax.f32 %v3938, 0.0
  %v4003 = vmax.f32 %v3939, 0.0
  %v4004 = vmax.f32 %v3940, 0.0
  %v4005 = vmax.f32 %v3941, 0.0
  %v4006 = vmax.f32 %v3942, 0.0
  %v4007 = vmax.f32 %v3943, 0.0
  %v4008 = vmax.f32 %v3944, 0.0
  %v4009 = vmax.f32 %v3945, 0.0
  %v4010 = vmax.f32 %v3946, 0.0
  %v4011 = vmax.f32 %v3947, 0.0
  %v4012 = vmax.f32 %v3948, 0.0
  %v4013 = vmax.f32 %v3949, 0.0
  %v4014 = vmax.f32 %v3950, 0.0
  %v4015 = vmax.f32 %v3951, 0.0
  %v4016 = vmax.f32 %v3952, 0.0
  %v4017 = vmax.f32 %v3953, 0.0
  %v4018 = vmax.f32 %v3954, 0.0
  %v4019 = vmax.f32 %v3955, 0.0
  %v4020 = vmax.f32 %v3956, 0.0
  %v4021 = vmax.f32 %v3957, 0.0
  %v4022 = vmax.f32 %v3958, 0.0
  %v4023 = vmax.f32 %v3959, 0.0
  %v4024 = vmax.f32 %v3960, 0.0
  %v4025 = vmax.f32 %v3961, 0.0
  %v4026 = vmax.f32 %v3962, 0.0
  %v4027 = vmax.f32 %v3963, 0.0
  %v4028 = vmax.f32 %v3964, 0.0
  %v4029 = vmax.f32 %v3965, 0.0
  %v4030 = vmax.f32 %v3966, 0.0
  %v4031 = vmax.f32 %v3967, 0.0
  %v4032 = vmax.f32 %v3968, 0.0
  %v4033 = vmax.f32 %v3969, 0.0
  %v4034 = vmax.f32 %v3970, 0.0
  %v4035 = vmax.f32 %v3971, 0.0
  %v4036 = vmax.f32 %v3972, 0.0
  %v4037 = vmax.f32 %v3973, 0.0
  %v4038 = vmax.f32 %v3974, 0.0
  %v4039 = vmax.f32 %v3975, 0.0
  %v4040 = vmax.f32 %v3976, 0.0
  %v4041 = vmax.f32 %v3977, 0.0
  %v4042 = vmax.f32 %v3978, 0.0
  %v4043 = vmax.f32 %v3979, 0.0
  %v4044 = vmax.f32 %v3980, 0.0
  %v4045 = vmax.f32 %v3981, 0.0
  %v4046 = vmax.f32 %v3982, 0.0
  %v4047 = vmax.f32 %v3983, 0.0
  %v4048 = vmax.f32 %v3984, 0.0
  %v4049 = vmax.f32 %v3985, 0.0
  %v4050 = vmax.f32 %v3986, 0.0
  %v4051 = vmax.f32 %v3987, 0.0
  %v4052 = vmax.f32 %v3988, 0.0
  %4053 = vst.msk [vmem:[#allocation3] sm:$0xff] %vm90, 0.0
  %4054 = vst.msk [vmem:[#allocation3 + $0x8] sm:$0xff] %vm90, 0.0
  %4055 = vst.msk [vmem:[#allocation3 + $0x10] sm:$0x3] %vm93, 0.0
  %4056 = vst.msk [vmem:[#allocation3 + $0x18] sm:$0xff] %vm90, 0.0
  %4057 = vst.msk [vmem:[#allocation3 + $0x20] sm:$0xff] %vm90, 0.0
  %4058 = vst.msk [vmem:[#allocation3 + $0x28] sm:$0x3] %vm93, 0.0
  %4059 = vst.msk [vmem:[#allocation3 + $0x30] sm:$0xff] %vm90, 0.0
  %4060 = vst.msk [vmem:[#allocation3 + $0x38] sm:$0xff] %vm90, 0.0
  %4061 = vst.msk [vmem:[#allocation3 + $0x40] sm:$0x3] %vm93, 0.0
  %4062 = vst.msk [vmem:[#allocation3 + $0x48] sm:$0xff] %vm90, 0.0
  %4063 = vst.msk [vmem:[#allocation3 + $0x50] sm:$0xff] %vm90, 0.0
  %4064 = vst.msk [vmem:[#allocation3 + $0x58] sm:$0x3] %vm93, 0.0
  %4065 = vst.msk [vmem:[#allocation3 + $0x60] sm:$0xff] %vm90, 0.0
  %4066 = vst.msk [vmem:[#allocation3 + $0x68] sm:$0xff] %vm90, 0.0
  %4067 = vst.msk [vmem:[#allocation3 + $0x70] sm:$0x3] %vm93, 0.0
  %4068 = vst.msk [vmem:[#allocation3 + $0x78] sm:$0xff] %vm90, 0.0
  %4069 = vst.msk [vmem:[#allocation3 + $0x80] sm:$0xff] %vm90, 0.0
  %4070 = vst.msk [vmem:[#allocation3 + $0x88] sm:$0x3] %vm93, 0.0
  %4071 = vst.msk [vmem:[#allocation3 + $0x90] sm:$0xff] %vm90, 0.0
  %4072 = vst.msk [vmem:[#allocation3 + $0x98] sm:$0xff] %vm90, 0.0
  %4073 = vst.msk [vmem:[#allocation3 + $0xa0] sm:$0x3] %vm93, 0.0
  %4074 = vst.msk [vmem:[#allocation3 + $0xa8] sm:$0xff] %vm90, 0.0
  %4075 = vst.msk [vmem:[#allocation3 + $0xb0] sm:$0xff] %vm90, 0.0
  %4076 = vst.msk [vmem:[#allocation3 + $0xb8] sm:$0x3] %vm93, 0.0
  %4077 = vst.msk [vmem:[#allocation3 + $0xc0] sm:$0xff] %vm90, 0.0
  %4078 = vst.msk [vmem:[#allocation3 + $0xc8] sm:$0xff] %vm90, 0.0
  %4079 = vst.msk [vmem:[#allocation3 + $0xd0] sm:$0x3] %vm93, 0.0
  %4080 = vst.msk [vmem:[#allocation3 + $0xd8] sm:$0xff] %vm90, 0.0
  %4081 = vst.msk [vmem:[#allocation3 + $0xe0] sm:$0xff] %vm90, 0.0
  %4082 = vst.msk [vmem:[#allocation3 + $0xe8] sm:$0x3] %vm93, 0.0
  %4083 = vst.msk [vmem:[#allocation3 + $0xf0] sm:$0xff] %vm90, 0.0
  %4084 = vst.msk [vmem:[#allocation3 + $0xf8] sm:$0xff] %vm90, 0.0
  %4085 = vst.msk [vmem:[#allocation3 + $0x100] sm:$0x3] %vm93, 0.0
  %4086 = vst.msk [vmem:[#allocation3 + $0x108] sm:$0xff] %vm90, 0.0
  %4087 = vst.msk [vmem:[#allocation3 + $0x110] sm:$0xff] %vm90, 0.0
  %4088 = vst.msk [vmem:[#allocation3 + $0x118] sm:$0x3] %vm93, 0.0
  %4089 = vst.msk [vmem:[#allocation3 + $0x120] sm:$0xff] %vm90, 0.0
  %4090 = vst.msk [vmem:[#allocation3 + $0x128] sm:$0xff] %vm90, 0.0
  %4091 = vst.msk [vmem:[#allocation3 + $0x130] sm:$0x3] %vm93, 0.0
  %4092 = vst.msk [vmem:[#allocation3 + $0x138] sm:$0xff] %vm90, 0.0
  %4093 = vst.msk [vmem:[#allocation3 + $0x140] sm:$0xff] %vm90, 0.0
  %4094 = vst.msk [vmem:[#allocation3 + $0x148] sm:$0x3] %vm93, 0.0
  %4095 = vst.msk [vmem:[#allocation3 + $0x150] sm:$0xff] %vm90, 0.0
  %4096 = vst.msk [vmem:[#allocation3 + $0x158] sm:$0xff] %vm90, 0.0
  %4097 = vst.msk [vmem:[#allocation3 + $0x160] sm:$0x3] %vm93, 0.0
  %4098 = vst.msk [vmem:[#allocation3 + $0x168] sm:$0xff] %vm90, 0.0
  %4099 = vst.msk [vmem:[#allocation3 + $0x170] sm:$0xff] %vm90, 0.0
  %4100 = vst.msk [vmem:[#allocation3 + $0x178] sm:$0x3] %vm93, 0.0
  %4101 = vst.msk [vmem:[#allocation3 + $0x180] sm:$0xff] %vm90, 0.0
  %4102 = vst.msk [vmem:[#allocation3 + $0x188] sm:$0xff] %vm90, 0.0
  %4103 = vst.msk [vmem:[#allocation3 + $0x190] sm:$0x3] %vm93, 0.0
  %4104 = vst.msk [vmem:[#allocation3 + $0x198] sm:$0xff] %vm90, 0.0
  %4105 = vst.msk [vmem:[#allocation3 + $0x1a0] sm:$0xff] %vm90, 0.0
  %4106 = vst.msk [vmem:[#allocation3 + $0x1a8] sm:$0x3] %vm93, 0.0
  %4107 = vst.msk [vmem:[#allocation3 + $0x1b0] sm:$0xff] %vm90, 0.0
  %4108 = vst.msk [vmem:[#allocation3 + $0x1b8] sm:$0xff] %vm90, 0.0
  %4109 = vst.msk [vmem:[#allocation3 + $0x1c0] sm:$0x3] %vm93, 0.0
  %4110 = vst.msk [vmem:[#allocation3 + $0x1c8] sm:$0xff] %vm90, 0.0
  %4111 = vst.msk [vmem:[#allocation3 + $0x1d0] sm:$0xff] %vm90, 0.0
  %4112 = vst.msk [vmem:[#allocation3 + $0x1d8] sm:$0x3] %vm93, 0.0
  %4113 = vst.msk [vmem:[#allocation3 + $0x1e0] sm:$0xff] %vm90, 0.0
  %4114 = vst.msk [vmem:[#allocation3 + $0x1e8] sm:$0xff] %vm90, 0.0
  %4115 = vst.msk [vmem:[#allocation3 + $0x1f0] sm:$0x3] %vm93, 0.0
  %4116 = vst.msk [vmem:[#allocation3 + $0x1f8] sm:$0xff] %vm90, 0.0
  %4117 = vst.msk [vmem:[#allocation3 + $0x200] sm:$0xff] %vm90, 0.0
  %4118 = vst.msk [vmem:[#allocation3 + $0x208] sm:$0x3] %vm93, 0.0
  %4119 = vst.msk [vmem:[#allocation3 + $0x210] sm:$0xff] %vm90, 0.0
  %4120 = vst.msk [vmem:[#allocation3 + $0x218] sm:$0xff] %vm90, 0.0
  %4121 = vst.msk [vmem:[#allocation3 + $0x220] sm:$0x3] %vm93, 0.0
  %4122 = vst.msk [vmem:[#allocation3 + $0x228] sm:$0xff] %vm90, 0.0
  %4123 = vst.msk [vmem:[#allocation3 + $0x230] sm:$0xff] %vm90, 0.0
  %4124 = vst.msk [vmem:[#allocation3 + $0x238] sm:$0x3] %vm93, 0.0
  %4125 = vst.msk [vmem:[#allocation3 + $0x240] sm:$0xff] %vm90, 0.0
  %4126 = vst.msk [vmem:[#allocation3 + $0x248] sm:$0xff] %vm90, 0.0
  %4127 = vst.msk [vmem:[#allocation3 + $0x250] sm:$0x3] %vm93, 0.0
  %4128 = vst.msk [vmem:[#allocation3 + $0x258] sm:$0xff] %vm90, 0.0
  %4129 = vst.msk [vmem:[#allocation3 + $0x260] sm:$0xff] %vm90, 0.0
  %4130 = vst.msk [vmem:[#allocation3 + $0x268] sm:$0x3] %vm93, 0.0
  %4131 = vst.msk [vmem:[#allocation3 + $0x270] sm:$0xff] %vm90, 0.0
  %4132 = vst.msk [vmem:[#allocation3 + $0x278] sm:$0xff] %vm90, 0.0
  %4133 = vst.msk [vmem:[#allocation3 + $0x280] sm:$0x3] %vm93, 0.0
  %4134 = vst.msk [vmem:[#allocation3 + $0x288] sm:$0xff] %vm90, 0.0
  %4135 = vst.msk [vmem:[#allocation3 + $0x290] sm:$0xff] %vm90, 0.0
  %4136 = vst.msk [vmem:[#allocation3 + $0x298] sm:$0x3] %vm93, 0.0
  %4137 = vst.msk [vmem:[#allocation3 + $0x2a0] sm:$0xff] %vm90, 0.0
  %4138 = vst.msk [vmem:[#allocation3 + $0x2a8] sm:$0xff] %vm90, 0.0
  %4139 = vst.msk [vmem:[#allocation3 + $0x2b0] sm:$0x3] %vm93, 0.0
  %4140 = vst.msk [vmem:[#allocation3 + $0x2b8] sm:$0xff] %vm90, 0.0
  %4141 = vst.msk [vmem:[#allocation3 + $0x2c0] sm:$0xff] %vm90, 0.0
  %4142 = vst.msk [vmem:[#allocation3 + $0x2c8] sm:$0x3] %vm93, 0.0
  %4143 = vst.msk [vmem:[#allocation3 + $0x2d0] sm:$0xff] %vm90, 0.0
  %4144 = vst.msk [vmem:[#allocation3 + $0x2d8] sm:$0xff] %vm90, 0.0
  %4145 = vst.msk [vmem:[#allocation3 + $0x2e0] sm:$0x3] %vm93, 0.0
  %4146 = vst.msk [vmem:[#allocation3 + $0x2e8] sm:$0xff] %vm90, 0.0
  %4147 = vst.msk [vmem:[#allocation3 + $0x2f0] sm:$0xff] %vm90, 0.0
  %4148 = vst.msk [vmem:[#allocation3 + $0x2f8] sm:$0x3] %vm93, 0.0
  %4149 = vst.msk [vmem:[#allocation3 + $0x300] sm:$0xff] %vm90, 0.0
  %4150 = vst.msk [vmem:[#allocation3 + $0x308] sm:$0xff] %vm90, 0.0
  %4151 = vst.msk [vmem:[#allocation3 + $0x310] sm:$0x3] %vm93, 0.0
  %4152 = vst.msk [vmem:[#allocation3 + $0x318] sm:$0xff] %vm90, 0.0
  %4153 = vst.msk [vmem:[#allocation3 + $0x320] sm:$0xff] %vm90, 0.0
  %4154 = vst.msk [vmem:[#allocation3 + $0x328] sm:$0x3] %vm93, 0.0
  %4155 = vst.msk [vmem:[#allocation3 + $0x330] sm:$0xff] %vm90, 0.0
  %4156 = vst.msk [vmem:[#allocation3 + $0x338] sm:$0xff] %vm90, 0.0
  %4157 = vst.msk [vmem:[#allocation3 + $0x340] sm:$0x3] %vm93, 0.0
  %4158 = vst.msk [vmem:[#allocation3 + $0x348] sm:$0xff] %vm90, 0.0
  %4159 = vst.msk [vmem:[#allocation3 + $0x350] sm:$0xff] %vm90, 0.0
  %4160 = vst.msk [vmem:[#allocation3 + $0x358] sm:$0x3] %vm93, 0.0
  %s4161 = scalar_lea.vmem [#allocation3], 24
  %4162 = vst.msk [vmem:[%s4161 + $0x1] sm:$0xff] %vm90, %v3989
  %4163 = vst.msk [vmem:[%s4161 + $0x9] sm:$0xff] %vm90, %v3990
  %4164 = vst.msk [vmem:[%s4161 + $0x19] sm:$0xff] %vm90, %v3991
  %4165 = vst.msk [vmem:[%s4161 + $0x21] sm:$0xff] %vm90, %v3992
  %4166 = vst.msk [vmem:[%s4161 + $0x31] sm:$0xff] %vm90, %v3993
  %4167 = vst.msk [vmem:[%s4161 + $0x39] sm:$0xff] %vm90, %v3994
  %4168 = vst.msk [vmem:[%s4161 + $0x49] sm:$0xff] %vm90, %v3995
  %4169 = vst.msk [vmem:[%s4161 + $0x51] sm:$0xff] %vm90, %v3996
  %4170 = vst.msk [vmem:[%s4161 + $0x61] sm:$0xff] %vm90, %v3997
  %4171 = vst.msk [vmem:[%s4161 + $0x69] sm:$0xff] %vm90, %v3998
  %4172 = vst.msk [vmem:[%s4161 + $0x79] sm:$0xff] %vm90, %v3999
  %4173 = vst.msk [vmem:[%s4161 + $0x81] sm:$0xff] %vm90, %v4000
  %4174 = vst.msk [vmem:[%s4161 + $0x91] sm:$0xff] %vm90, %v4001
  %4175 = vst.msk [vmem:[%s4161 + $0x99] sm:$0xff] %vm90, %v4002
  %4176 = vst.msk [vmem:[%s4161 + $0xa9] sm:$0xff] %vm90, %v4003
  %4177 = vst.msk [vmem:[%s4161 + $0xb1] sm:$0xff] %vm90, %v4004
  %4178 = vst.msk [vmem:[%s4161 + $0xc1] sm:$0xff] %vm90, %v4005
  %4179 = vst.msk [vmem:[%s4161 + $0xc9] sm:$0xff] %vm90, %v4006
  %4180 = vst.msk [vmem:[%s4161 + $0xd9] sm:$0xff] %vm90, %v4007
  %4181 = vst.msk [vmem:[%s4161 + $0xe1] sm:$0xff] %vm90, %v4008
  %4182 = vst.msk [vmem:[%s4161 + $0xf1] sm:$0xff] %vm90, %v4009
  %4183 = vst.msk [vmem:[%s4161 + $0xf9] sm:$0xff] %vm90, %v4010
  %4184 = vst.msk [vmem:[%s4161 + $0x109] sm:$0xff] %vm90, %v4011
  %4185 = vst.msk [vmem:[%s4161 + $0x111] sm:$0xff] %vm90, %v4012
  %4186 = vst.msk [vmem:[%s4161 + $0x121] sm:$0xff] %vm90, %v4013
  %4187 = vst.msk [vmem:[%s4161 + $0x129] sm:$0xff] %vm90, %v4014
  %4188 = vst.msk [vmem:[%s4161 + $0x139] sm:$0xff] %vm90, %v4015
  %4189 = vst.msk [vmem:[%s4161 + $0x141] sm:$0xff] %vm90, %v4016
  %4190 = vst.msk [vmem:[%s4161 + $0x151] sm:$0xff] %vm90, %v4017
  %4191 = vst.msk [vmem:[%s4161 + $0x159] sm:$0xff] %vm90, %v4018
  %4192 = vst.msk [vmem:[%s4161 + $0x169] sm:$0xff] %vm90, %v4019
  %4193 = vst.msk [vmem:[%s4161 + $0x171] sm:$0xff] %vm90, %v4020
  %4194 = vst.msk [vmem:[%s4161 + $0x1b1] sm:$0xff] %vm90, %v4021
  %4195 = vst.msk [vmem:[%s4161 + $0x1b9] sm:$0xff] %vm90, %v4022
  %4196 = vst.msk [vmem:[%s4161 + $0x1c9] sm:$0xff] %vm90, %v4023
  %4197 = vst.msk [vmem:[%s4161 + $0x1d1] sm:$0xff] %vm90, %v4024
  %4198 = vst.msk [vmem:[%s4161 + $0x1e1] sm:$0xff] %vm90, %v4025
  %4199 = vst.msk [vmem:[%s4161 + $0x1e9] sm:$0xff] %vm90, %v4026
  %4200 = vst.msk [vmem:[%s4161 + $0x1f9] sm:$0xff] %vm90, %v4027
  %4201 = vst.msk [vmem:[%s4161 + $0x201] sm:$0xff] %vm90, %v4028
  %4202 = vst.msk [vmem:[%s4161 + $0x211] sm:$0xff] %vm90, %v4029
  %4203 = vst.msk [vmem:[%s4161 + $0x219] sm:$0xff] %vm90, %v4030
  %4204 = vst.msk [vmem:[%s4161 + $0x229] sm:$0xff] %vm90, %v4031
  %4205 = vst.msk [vmem:[%s4161 + $0x231] sm:$0xff] %vm90, %v4032
  %4206 = vst.msk [vmem:[%s4161 + $0x241] sm:$0xff] %vm90, %v4033
  %4207 = vst.msk [vmem:[%s4161 + $0x249] sm:$0xff] %vm90, %v4034
  %4208 = vst.msk [vmem:[%s4161 + $0x259] sm:$0xff] %vm90, %v4035
  %4209 = vst.msk [vmem:[%s4161 + $0x261] sm:$0xff] %vm90, %v4036
  %4210 = vst.msk [vmem:[%s4161 + $0x271] sm:$0xff] %vm90, %v4037
  %4211 = vst.msk [vmem:[%s4161 + $0x279] sm:$0xff] %vm90, %v4038
  %4212 = vst.msk [vmem:[%s4161 + $0x289] sm:$0xff] %vm90, %v4039
  %4213 = vst.msk [vmem:[%s4161 + $0x291] sm:$0xff] %vm90, %v4040
  %4214 = vst.msk [vmem:[%s4161 + $0x2a1] sm:$0xff] %vm90, %v4041
  %4215 = vst.msk [vmem:[%s4161 + $0x2a9] sm:$0xff] %vm90, %v4042
  %4216 = vst.msk [vmem:[%s4161 + $0x2b9] sm:$0xff] %vm90, %v4043
  %4217 = vst.msk [vmem:[%s4161 + $0x2c1] sm:$0xff] %vm90, %v4044
  %4218 = vst.msk [vmem:[%s4161 + $0x2d1] sm:$0xff] %vm90, %v4045
  %4219 = vst.msk [vmem:[%s4161 + $0x2d9] sm:$0xff] %vm90, %v4046
  %4220 = vst.msk [vmem:[%s4161 + $0x2e9] sm:$0xff] %vm90, %v4047
  %4221 = vst.msk [vmem:[%s4161 + $0x2f1] sm:$0xff] %vm90, %v4048
  %4222 = vst.msk [vmem:[%s4161 + $0x301] sm:$0xff] %vm90, %v4049
  %4223 = vst.msk [vmem:[%s4161 + $0x309] sm:$0xff] %vm90, %v4050
  %4224 = vst.msk [vmem:[%s4161 + $0x319] sm:$0xff] %vm90, %v4051
  %4225 = vst.msk [vmem:[%s4161 + $0x321] sm:$0xff] %vm90, %v4052
  %v4226 = vld [vmem:[#allocation3] sm:$0xff]
  %v4227 = vld [vmem:[#allocation3 + $0x8] sm:$0xff]
  %v4228 = vld [vmem:[#allocation3 + $0x10] sm:$0x3]
  %v4229 = vld [vmem:[#allocation3 + $0x18] sm:$0xff]
  %v4230 = vld [vmem:[#allocation3 + $0x20] sm:$0xff]
  %v4231 = vld [vmem:[#allocation3 + $0x28] sm:$0x3]
  %v4232 = vld [vmem:[#allocation3 + $0x30] sm:$0xff]
  %v4233 = vld [vmem:[#allocation3 + $0x38] sm:$0xff]
  %v4234 = vld [vmem:[#allocation3 + $0x40] sm:$0x3]
  %v4235 = vld [vmem:[#allocation3 + $0x48] sm:$0xff]
  %v4236 = vld [vmem:[#allocation3 + $0x50] sm:$0xff]
  %v4237 = vld [vmem:[#allocation3 + $0x58] sm:$0x3]
  %v4238 = vld [vmem:[#allocation3 + $0x60] sm:$0xff]
  %v4239 = vld [vmem:[#allocation3 + $0x68] sm:$0xff]
  %v4240 = vld [vmem:[#allocation3 + $0x70] sm:$0x3]
  %v4241 = vld [vmem:[#allocation3 + $0x78] sm:$0xff]
  %v4242 = vld [vmem:[#allocation3 + $0x80] sm:$0xff]
  %v4243 = vld [vmem:[#allocation3 + $0x88] sm:$0x3]
  %v4244 = vld [vmem:[#allocation3 + $0x90] sm:$0xff]
  %v4245 = vld [vmem:[#allocation3 + $0x98] sm:$0xff]
  %v4246 = vld [vmem:[#allocation3 + $0xa0] sm:$0x3]
  %v4247 = vld [vmem:[#allocation3 + $0xa8] sm:$0xff]
  %v4248 = vld [vmem:[#allocation3 + $0xb0] sm:$0xff]
  %v4249 = vld [vmem:[#allocation3 + $0xb8] sm:$0x3]
  %v4250 = vld [vmem:[#allocation3 + $0xc0] sm:$0xff]
  %v4251 = vld [vmem:[#allocation3 + $0xc8] sm:$0xff]
  %v4252 = vld [vmem:[#allocation3 + $0xd0] sm:$0x3]
  %v4253 = vld [vmem:[#allocation3 + $0xd8] sm:$0xff]
  %v4254 = vld [vmem:[#allocation3 + $0xe0] sm:$0xff]
  %v4255 = vld [vmem:[#allocation3 + $0xe8] sm:$0x3]
  %v4256 = vld [vmem:[#allocation3 + $0xf0] sm:$0xff]
  %v4257 = vld [vmem:[#allocation3 + $0xf8] sm:$0xff]
  %v4258 = vld [vmem:[#allocation3 + $0x100] sm:$0x3]
  %v4259 = vld [vmem:[#allocation3 + $0x108] sm:$0xff]
  %v4260 = vld [vmem:[#allocation3 + $0x110] sm:$0xff]
  %v4261 = vld [vmem:[#allocation3 + $0x118] sm:$0x3]
  %v4262 = vld [vmem:[#allocation3 + $0x120] sm:$0xff]
  %v4263 = vld [vmem:[#allocation3 + $0x128] sm:$0xff]
  %v4264 = vld [vmem:[#allocation3 + $0x130] sm:$0x3]
  %v4265 = vld [vmem:[#allocation3 + $0x138] sm:$0xff]
  %v4266 = vld [vmem:[#allocation3 + $0x140] sm:$0xff]
  %v4267 = vld [vmem:[#allocation3 + $0x148] sm:$0x3]
  %v4268 = vld [vmem:[#allocation3 + $0x150] sm:$0xff]
  %v4269 = vld [vmem:[#allocation3 + $0x158] sm:$0xff]
  %v4270 = vld [vmem:[#allocation3 + $0x160] sm:$0x3]
  %v4271 = vld [vmem:[#allocation3 + $0x168] sm:$0xff]
  %v4272 = vld [vmem:[#allocation3 + $0x170] sm:$0xff]
  %v4273 = vld [vmem:[#allocation3 + $0x178] sm:$0x3]
  %v4274 = vld [vmem:[#allocation3 + $0x180] sm:$0xff]
  %v4275 = vld [vmem:[#allocation3 + $0x188] sm:$0xff]
  %v4276 = vld [vmem:[#allocation3 + $0x190] sm:$0x3]
  %v4277 = vld [vmem:[#allocation3 + $0x198] sm:$0xff]
  %v4278 = vld [vmem:[#allocation3 + $0x1a0] sm:$0xff]
  %v4279 = vld [vmem:[#allocation3 + $0x1a8] sm:$0x3]
  %v4280 = vld [vmem:[#allocation3 + $0x1b0] sm:$0xff]
  %v4281 = vld [vmem:[#allocation3 + $0x1b8] sm:$0xff]
  %v4282 = vld [vmem:[#allocation3 + $0x1c0] sm:$0x3]
  %v4283 = vld [vmem:[#allocation3 + $0x1c8] sm:$0xff]
  %v4284 = vld [vmem:[#allocation3 + $0x1d0] sm:$0xff]
  %v4285 = vld [vmem:[#allocation3 + $0x1d8] sm:$0x3]
  %v4286 = vld [vmem:[#allocation3 + $0x1e0] sm:$0xff]
  %v4287 = vld [vmem:[#allocation3 + $0x1e8] sm:$0xff]
  %v4288 = vld [vmem:[#allocation3 + $0x1f0] sm:$0x3]
  %v4289 = vld [vmem:[#allocation3 + $0x1f8] sm:$0xff]
  %v4290 = vld [vmem:[#allocation3 + $0x200] sm:$0xff]
  %v4291 = vld [vmem:[#allocation3 + $0x208] sm:$0x3]
  %v4292 = vld [vmem:[#allocation3 + $0x210] sm:$0xff]
  %v4293 = vld [vmem:[#allocation3 + $0x218] sm:$0xff]
  %v4294 = vld [vmem:[#allocation3 + $0x220] sm:$0x3]
  %v4295 = vld [vmem:[#allocation3 + $0x228] sm:$0xff]
  %v4296 = vld [vmem:[#allocation3 + $0x230] sm:$0xff]
  %v4297 = vld [vmem:[#allocation3 + $0x238] sm:$0x3]
  %v4298 = vld [vmem:[#allocation3 + $0x240] sm:$0xff]
  %v4299 = vld [vmem:[#allocation3 + $0x248] sm:$0xff]
  %v4300 = vld [vmem:[#allocation3 + $0x250] sm:$0x3]
  %v4301 = vld [vmem:[#allocation3 + $0x258] sm:$0xff]
  %v4302 = vld [vmem:[#allocation3 + $0x260] sm:$0xff]
  %v4303 = vld [vmem:[#allocation3 + $0x268] sm:$0x3]
  %v4304 = vld [vmem:[#allocation3 + $0x270] sm:$0xff]
  %v4305 = vld [vmem:[#allocation3 + $0x278] sm:$0xff]
  %v4306 = vld [vmem:[#allocation3 + $0x280] sm:$0x3]
  %v4307 = vld [vmem:[#allocation3 + $0x288] sm:$0xff]
  %v4308 = vld [vmem:[#allocation3 + $0x290] sm:$0xff]
  %v4309 = vld [vmem:[#allocation3 + $0x298] sm:$0x3]
  %v4310 = vld [vmem:[#allocation3 + $0x2a0] sm:$0xff]
  %v4311 = vld [vmem:[#allocation3 + $0x2a8] sm:$0xff]
  %v4312 = vld [vmem:[#allocation3 + $0x2b0] sm:$0x3]
  %v4313 = vld [vmem:[#allocation3 + $0x2b8] sm:$0xff]
  %v4314 = vld [vmem:[#allocation3 + $0x2c0] sm:$0xff]
  %v4315 = vld [vmem:[#allocation3 + $0x2c8] sm:$0x3]
  %v4316 = vld [vmem:[#allocation3 + $0x2d0] sm:$0xff]
  %v4317 = vld [vmem:[#allocation3 + $0x2d8] sm:$0xff]
  %v4318 = vld [vmem:[#allocation3 + $0x2e0] sm:$0x3]
  %v4319 = vld [vmem:[#allocation3 + $0x2e8] sm:$0xff]
  %v4320 = vld [vmem:[#allocation3 + $0x2f0] sm:$0xff]
  %v4321 = vld [vmem:[#allocation3 + $0x2f8] sm:$0x3]
  %v4322 = vld [vmem:[#allocation3 + $0x300] sm:$0xff]
  %v4323 = vld [vmem:[#allocation3 + $0x308] sm:$0xff]
  %v4324 = vld [vmem:[#allocation3 + $0x310] sm:$0x3]
  %v4325 = vld [vmem:[#allocation3 + $0x318] sm:$0xff]
  %v4326 = vld [vmem:[#allocation3 + $0x320] sm:$0xff]
  %v4327 = vld [vmem:[#allocation3 + $0x328] sm:$0x3]
  %v4328 = vld [vmem:[#allocation3 + $0x330] sm:$0xff]
  %v4329 = vld [vmem:[#allocation3 + $0x338] sm:$0xff]
  %v4330 = vld [vmem:[#allocation3 + $0x340] sm:$0x3]
  %v4331 = vld [vmem:[#allocation3 + $0x348] sm:$0xff]
  %v4332 = vld [vmem:[#allocation3 + $0x350] sm:$0xff]
  %v4333 = vld [vmem:[#allocation3 + $0x358] sm:$0x3]
  %4334 = vst.msk [vmem:[#allocation5] sm:$0xff] %vm90, %v4226
  %4335 = vst.msk [vmem:[#allocation5 + $0x8] sm:$0xff] %vm90, %v4227
  %4336 = vst.msk [vmem:[#allocation5 + $0x10] sm:$0xff] %vm90, %v4229
  %4337 = vst.msk [vmem:[#allocation5 + $0x18] sm:$0xff] %vm90, %v4230
  %4338 = vst.msk [vmem:[#allocation5 + $0x20] sm:$0xff] %vm90, %v4232
  %4339 = vst.msk [vmem:[#allocation5 + $0x28] sm:$0xff] %vm90, %v4233
  %4340 = vst.msk [vmem:[#allocation5 + $0x30] sm:$0xff] %vm90, %v4235
  %4341 = vst.msk [vmem:[#allocation5 + $0x38] sm:$0xff] %vm90, %v4236
  %4342 = vst.msk [vmem:[#allocation5 + $0x40] sm:$0xff] %vm90, %v4238
  %4343 = vst.msk [vmem:[#allocation5 + $0x48] sm:$0xff] %vm90, %v4239
  %4344 = vst.msk [vmem:[#allocation5 + $0x50] sm:$0xff] %vm90, %v4241
  %4345 = vst.msk [vmem:[#allocation5 + $0x58] sm:$0xff] %vm90, %v4242
  %4346 = vst.msk [vmem:[#allocation5 + $0x60] sm:$0xff] %vm90, %v4244
  %4347 = vst.msk [vmem:[#allocation5 + $0x68] sm:$0xff] %vm90, %v4245
  %4348 = vst.msk [vmem:[#allocation5 + $0x70] sm:$0xff] %vm90, %v4247
  %4349 = vst.msk [vmem:[#allocation5 + $0x78] sm:$0xff] %vm90, %v4248
  %4350 = vst.msk [vmem:[#allocation5 + $0x80] sm:$0xff] %vm90, %v4250
  %4351 = vst.msk [vmem:[#allocation5 + $0x88] sm:$0xff] %vm90, %v4251
  %4352 = vst.msk [vmem:[#allocation5 + $0x90] sm:$0xff] %vm90, %v4253
  %4353 = vst.msk [vmem:[#allocation5 + $0x98] sm:$0xff] %vm90, %v4254
  %4354 = vst.msk [vmem:[#allocation5 + $0xa0] sm:$0xff] %vm90, %v4256
  %4355 = vst.msk [vmem:[#allocation5 + $0xa8] sm:$0xff] %vm90, %v4257
  %4356 = vst.msk [vmem:[#allocation5 + $0xb0] sm:$0xff] %vm90, %v4259
  %4357 = vst.msk [vmem:[#allocation5 + $0xb8] sm:$0xff] %vm90, %v4260
  %4358 = vst.msk [vmem:[#allocation5 + $0xc0] sm:$0xff] %vm90, %v4262
  %4359 = vst.msk [vmem:[#allocation5 + $0xc8] sm:$0xff] %vm90, %v4263
  %4360 = vst.msk [vmem:[#allocation5 + $0xd0] sm:$0xff] %vm90, %v4265
  %4361 = vst.msk [vmem:[#allocation5 + $0xd8] sm:$0xff] %vm90, %v4266
  %4362 = vst.msk [vmem:[#allocation5 + $0xe0] sm:$0xff] %vm90, %v4268
  %4363 = vst.msk [vmem:[#allocation5 + $0xe8] sm:$0xff] %vm90, %v4269
  %4364 = vst.msk [vmem:[#allocation5 + $0xf0] sm:$0xff] %vm90, %v4271
  %4365 = vst.msk [vmem:[#allocation5 + $0xf8] sm:$0xff] %vm90, %v4272
  %4366 = vst.msk [vmem:[#allocation5 + $0x100] sm:$0xff] %vm90, %v4280
  %4367 = vst.msk [vmem:[#allocation5 + $0x108] sm:$0xff] %vm90, %v4281
  %4368 = vst.msk [vmem:[#allocation5 + $0x110] sm:$0xff] %vm90, %v4283
  %4369 = vst.msk [vmem:[#allocation5 + $0x118] sm:$0xff] %vm90, %v4284
  %4370 = vst.msk [vmem:[#allocation5 + $0x120] sm:$0xff] %vm90, %v4286
  %4371 = vst.msk [vmem:[#allocation5 + $0x128] sm:$0xff] %vm90, %v4287
  %4372 = vst.msk [vmem:[#allocation5 + $0x130] sm:$0xff] %vm90, %v4289
  %4373 = vst.msk [vmem:[#allocation5 + $0x138] sm:$0xff] %vm90, %v4290
  %4374 = vst.msk [vmem:[#allocation5 + $0x140] sm:$0xff] %vm90, %v4292
  %4375 = vst.msk [vmem:[#allocation5 + $0x148] sm:$0xff] %vm90, %v4293
  %4376 = vst.msk [vmem:[#allocation5 + $0x150] sm:$0xff] %vm90, %v4295
  %4377 = vst.msk [vmem:[#allocation5 + $0x158] sm:$0xff] %vm90, %v4296
  %4378 = vst.msk [vmem:[#allocation5 + $0x160] sm:$0xff] %vm90, %v4298
  %4379 = vst.msk [vmem:[#allocation5 + $0x168] sm:$0xff] %vm90, %v4299
  %4380 = vst.msk [vmem:[#allocation5 + $0x170] sm:$0xff] %vm90, %v4301
  %4381 = vst.msk [vmem:[#allocation5 + $0x178] sm:$0xff] %vm90, %v4302
  %4382 = vst.msk [vmem:[#allocation5 + $0x180] sm:$0xff] %vm90, %v4304
  %4383 = vst.msk [vmem:[#allocation5 + $0x188] sm:$0xff] %vm90, %v4305
  %4384 = vst.msk [vmem:[#allocation5 + $0x190] sm:$0xff] %vm90, %v4307
  %4385 = vst.msk [vmem:[#allocation5 + $0x198] sm:$0xff] %vm90, %v4308
  %4386 = vst.msk [vmem:[#allocation5 + $0x1a0] sm:$0xff] %vm90, %v4310
  %4387 = vst.msk [vmem:[#allocation5 + $0x1a8] sm:$0xff] %vm90, %v4311
  %4388 = vst.msk [vmem:[#allocation5 + $0x1b0] sm:$0xff] %vm90, %v4313
  %4389 = vst.msk [vmem:[#allocation5 + $0x1b8] sm:$0xff] %vm90, %v4314
  %4390 = vst.msk [vmem:[#allocation5 + $0x1c0] sm:$0xff] %vm90, %v4316
  %4391 = vst.msk [vmem:[#allocation5 + $0x1c8] sm:$0xff] %vm90, %v4317
  %4392 = vst.msk [vmem:[#allocation5 + $0x1d0] sm:$0xff] %vm90, %v4319
  %4393 = vst.msk [vmem:[#allocation5 + $0x1d8] sm:$0xff] %vm90, %v4320
  %4394 = vst.msk [vmem:[#allocation5 + $0x1e0] sm:$0xff] %vm90, %v4322
  %4395 = vst.msk [vmem:[#allocation5 + $0x1e8] sm:$0xff] %vm90, %v4323
  %4396 = vst.msk [vmem:[#allocation5 + $0x1f0] sm:$0xff] %vm90, %v4325
  %4397 = vst.msk [vmem:[#allocation5 + $0x1f8] sm:$0xff] %vm90, %v4326
  %v4494 = vrot.slane %v4226, 1
  %v4495 = vrot.slane %v4227, 1
  %v4496 = vsel %vm533, %v4494, %v4495
  %v4497 = vrot.slane %v4228, 1
  %v4498 = vsel %vm533, %v4495, %v4497
  %v4499 = vrot.slane %v4229, 1
  %v4500 = vrot.slane %v4230, 1
  %v4501 = vsel %vm533, %v4499, %v4500
  %v4502 = vrot.slane %v4231, 1
  %v4503 = vsel %vm533, %v4500, %v4502
  %v4504 = vrot.slane %v4232, 1
  %v4505 = vrot.slane %v4233, 1
  %v4506 = vsel %vm533, %v4504, %v4505
  %v4507 = vrot.slane %v4234, 1
  %v4508 = vsel %vm533, %v4505, %v4507
  %v4509 = vrot.slane %v4235, 1
  %v4510 = vrot.slane %v4236, 1
  %v4511 = vsel %vm533, %v4509, %v4510
  %v4512 = vrot.slane %v4237, 1
  %v4513 = vsel %vm533, %v4510, %v4512
  %v4514 = vrot.slane %v4238, 1
  %v4515 = vrot.slane %v4239, 1
  %v4516 = vsel %vm533, %v4514, %v4515
  %v4517 = vrot.slane %v4240, 1
  %v4518 = vsel %vm533, %v4515, %v4517
  %v4519 = vrot.slane %v4241, 1
  %v4520 = vrot.slane %v4242, 1
  %v4521 = vsel %vm533, %v4519, %v4520
  %v4522 = vrot.slane %v4243, 1
  %v4523 = vsel %vm533, %v4520, %v4522
  %v4524 = vrot.slane %v4244, 1
  %v4525 = vrot.slane %v4245, 1
  %v4526 = vsel %vm533, %v4524, %v4525
  %v4527 = vrot.slane %v4246, 1
  %v4528 = vsel %vm533, %v4525, %v4527
  %v4529 = vrot.slane %v4247, 1
  %v4530 = vrot.slane %v4248, 1
  %v4531 = vsel %vm533, %v4529, %v4530
  %v4532 = vrot.slane %v4249, 1
  %v4533 = vsel %vm533, %v4530, %v4532
  %v4534 = vrot.slane %v4250, 1
  %v4535 = vrot.slane %v4251, 1
  %v4536 = vsel %vm533, %v4534, %v4535
  %v4537 = vrot.slane %v4252, 1
  %v4538 = vsel %vm533, %v4535, %v4537
  %v4539 = vrot.slane %v4253, 1
  %v4540 = vrot.slane %v4254, 1
  %v4541 = vsel %vm533, %v4539, %v4540
  %v4542 = vrot.slane %v4255, 1
  %v4543 = vsel %vm533, %v4540, %v4542
  %v4544 = vrot.slane %v4256, 1
  %v4545 = vrot.slane %v4257, 1
  %v4546 = vsel %vm533, %v4544, %v4545
  %v4547 = vrot.slane %v4258, 1
  %v4548 = vsel %vm533, %v4545, %v4547
  %v4549 = vrot.slane %v4259, 1
  %v4550 = vrot.slane %v4260, 1
  %v4551 = vsel %vm533, %v4549, %v4550
  %v4552 = vrot.slane %v4261, 1
  %v4553 = vsel %vm533, %v4550, %v4552
  %v4554 = vrot.slane %v4262, 1
  %v4555 = vrot.slane %v4263, 1
  %v4556 = vsel %vm533, %v4554, %v4555
  %v4557 = vrot.slane %v4264, 1
  %v4558 = vsel %vm533, %v4555, %v4557
  %v4559 = vrot.slane %v4265, 1
  %v4560 = vrot.slane %v4266, 1
  %v4561 = vsel %vm533, %v4559, %v4560
  %v4562 = vrot.slane %v4267, 1
  %v4563 = vsel %vm533, %v4560, %v4562
  %v4564 = vrot.slane %v4268, 1
  %v4565 = vrot.slane %v4269, 1
  %v4566 = vsel %vm533, %v4564, %v4565
  %v4567 = vrot.slane %v4270, 1
  %v4568 = vsel %vm533, %v4565, %v4567
  %v4569 = vrot.slane %v4271, 1
  %v4570 = vrot.slane %v4272, 1
  %v4571 = vsel %vm533, %v4569, %v4570
  %v4572 = vrot.slane %v4273, 1
  %v4573 = vsel %vm533, %v4570, %v4572
  %v4574 = vrot.slane %v4280, 1
  %v4575 = vrot.slane %v4281, 1
  %v4576 = vsel %vm533, %v4574, %v4575
  %v4577 = vrot.slane %v4282, 1
  %v4578 = vsel %vm533, %v4575, %v4577
  %v4579 = vrot.slane %v4283, 1
  %v4580 = vrot.slane %v4284, 1
  %v4581 = vsel %vm533, %v4579, %v4580
  %v4582 = vrot.slane %v4285, 1
  %v4583 = vsel %vm533, %v4580, %v4582
  %v4584 = vrot.slane %v4286, 1
  %v4585 = vrot.slane %v4287, 1
  %v4586 = vsel %vm533, %v4584, %v4585
  %v4587 = vrot.slane %v4288, 1
  %v4588 = vsel %vm533, %v4585, %v4587
  %v4589 = vrot.slane %v4289, 1
  %v4590 = vrot.slane %v4290, 1
  %v4591 = vsel %vm533, %v4589, %v4590
  %v4592 = vrot.slane %v4291, 1
  %v4593 = vsel %vm533, %v4590, %v4592
  %v4594 = vrot.slane %v4292, 1
  %v4595 = vrot.slane %v4293, 1
  %v4596 = vsel %vm533, %v4594, %v4595
  %v4597 = vrot.slane %v4294, 1
  %v4598 = vsel %vm533, %v4595, %v4597
  %v4599 = vrot.slane %v4295, 1
  %v4600 = vrot.slane %v4296, 1
  %v4601 = vsel %vm533, %v4599, %v4600
  %v4602 = vrot.slane %v4297, 1
  %v4603 = vsel %vm533, %v4600, %v4602
  %v4604 = vrot.slane %v4298, 1
  %v4605 = vrot.slane %v4299, 1
  %v4606 = vsel %vm533, %v4604, %v4605
  %v4607 = vrot.slane %v4300, 1
  %v4608 = vsel %vm533, %v4605, %v4607
  %v4609 = vrot.slane %v4301, 1
  %v4610 = vrot.slane %v4302, 1
  %v4611 = vsel %vm533, %v4609, %v4610
  %v4612 = vrot.slane %v4303, 1
  %v4613 = vsel %vm533, %v4610, %v4612
  %v4614 = vrot.slane %v4304, 1
  %v4615 = vrot.slane %v4305, 1
  %v4616 = vsel %vm533, %v4614, %v4615
  %v4617 = vrot.slane %v4306, 1
  %v4618 = vsel %vm533, %v4615, %v4617
  %v4619 = vrot.slane %v4307, 1
  %v4620 = vrot.slane %v4308, 1
  %v4621 = vsel %vm533, %v4619, %v4620
  %v4622 = vrot.slane %v4309, 1
  %v4623 = vsel %vm533, %v4620, %v4622
  %v4624 = vrot.slane %v4310, 1
  %v4625 = vrot.slane %v4311, 1
  %v4626 = vsel %vm533, %v4624, %v4625
  %v4627 = vrot.slane %v4312, 1
  %v4628 = vsel %vm533, %v4625, %v4627
  %v4629 = vrot.slane %v4313, 1
  %v4630 = vrot.slane %v4314, 1
  %v4631 = vsel %vm533, %v4629, %v4630
  %v4632 = vrot.slane %v4315, 1
  %v4633 = vsel %vm533, %v4630, %v4632
  %v4634 = vrot.slane %v4316, 1
  %v4635 = vrot.slane %v4317, 1
  %v4636 = vsel %vm533, %v4634, %v4635
  %v4637 = vrot.slane %v4318, 1
  %v4638 = vsel %vm533, %v4635, %v4637
  %v4639 = vrot.slane %v4319, 1
  %v4640 = vrot.slane %v4320, 1
  %v4641 = vsel %vm533, %v4639, %v4640
  %v4642 = vrot.slane %v4321, 1
  %v4643 = vsel %vm533, %v4640, %v4642
  %v4644 = vrot.slane %v4322, 1
  %v4645 = vrot.slane %v4323, 1
  %v4646 = vsel %vm533, %v4644, %v4645
  %v4647 = vrot.slane %v4324, 1
  %v4648 = vsel %vm533, %v4645, %v4647
  %v4649 = vrot.slane %v4325, 1
  %v4650 = vrot.slane %v4326, 1
  %v4651 = vsel %vm533, %v4649, %v4650
  %v4652 = vrot.slane %v4327, 1
  %v4653 = vsel %vm533, %v4650, %v4652
  %4654 = vrot.lane.b32.xlu0 %v4496, 4
  %v4655 = vpop.permute.xlu0 %4654
  %4656 = vrot.lane.b32.xlu0 %v4498, 4
  %v4657 = vpop.permute.xlu0 %4656
  %4658 = vrot.lane.b32.xlu0 %v4501, 4
  %v4659 = vpop.permute.xlu0 %4658
  %4660 = vrot.lane.b32.xlu0 %v4503, 4
  %v4661 = vpop.permute.xlu0 %4660
  %4662 = vrot.lane.b32.xlu0 %v4506, 4
  %v4663 = vpop.permute.xlu0 %4662
  %4664 = vrot.lane.b32.xlu0 %v4508, 4
  %v4665 = vpop.permute.xlu0 %4664
  %4666 = vrot.lane.b32.xlu0 %v4511, 4
  %v4667 = vpop.permute.xlu0 %4666
  %4668 = vrot.lane.b32.xlu0 %v4513, 4
  %v4669 = vpop.permute.xlu0 %4668
  %4670 = vrot.lane.b32.xlu0 %v4516, 4
  %v4671 = vpop.permute.xlu0 %4670
  %4672 = vrot.lane.b32.xlu0 %v4518, 4
  %v4673 = vpop.permute.xlu0 %4672
  %4674 = vrot.lane.b32.xlu0 %v4521, 4
  %v4675 = vpop.permute.xlu0 %4674
  %4676 = vrot.lane.b32.xlu0 %v4523, 4
  %v4677 = vpop.permute.xlu0 %4676
  %4678 = vrot.lane.b32.xlu0 %v4526, 4
  %v4679 = vpop.permute.xlu0 %4678
  %4680 = vrot.lane.b32.xlu0 %v4528, 4
  %v4681 = vpop.permute.xlu0 %4680
  %4682 = vrot.lane.b32.xlu0 %v4531, 4
  %v4683 = vpop.permute.xlu0 %4682
  %4684 = vrot.lane.b32.xlu0 %v4533, 4
  %v4685 = vpop.permute.xlu0 %4684
  %4686 = vrot.lane.b32.xlu0 %v4536, 4
  %v4687 = vpop.permute.xlu0 %4686
  %4688 = vrot.lane.b32.xlu0 %v4538, 4
  %v4689 = vpop.permute.xlu0 %4688
  %4690 = vrot.lane.b32.xlu0 %v4541, 4
  %v4691 = vpop.permute.xlu0 %4690
  %4692 = vrot.lane.b32.xlu0 %v4543, 4
  %v4693 = vpop.permute.xlu0 %4692
  %4694 = vrot.lane.b32.xlu0 %v4546, 4
  %v4695 = vpop.permute.xlu0 %4694
  %4696 = vrot.lane.b32.xlu0 %v4548, 4
  %v4697 = vpop.permute.xlu0 %4696
  %4698 = vrot.lane.b32.xlu0 %v4551, 4
  %v4699 = vpop.permute.xlu0 %4698
  %4700 = vrot.lane.b32.xlu0 %v4553, 4
  %v4701 = vpop.permute.xlu0 %4700
  %4702 = vrot.lane.b32.xlu0 %v4556, 4
  %v4703 = vpop.permute.xlu0 %4702
  %4704 = vrot.lane.b32.xlu0 %v4558, 4
  %v4705 = vpop.permute.xlu0 %4704
  %4706 = vrot.lane.b32.xlu0 %v4561, 4
  %v4707 = vpop.permute.xlu0 %4706
  %4708 = vrot.lane.b32.xlu0 %v4563, 4
  %v4709 = vpop.permute.xlu0 %4708
  %4710 = vrot.lane.b32.xlu0 %v4566, 4
  %v4711 = vpop.permute.xlu0 %4710
  %4712 = vrot.lane.b32.xlu0 %v4568, 4
  %v4713 = vpop.permute.xlu0 %4712
  %4714 = vrot.lane.b32.xlu0 %v4571, 4
  %v4715 = vpop.permute.xlu0 %4714
  %4716 = vrot.lane.b32.xlu0 %v4573, 4
  %v4717 = vpop.permute.xlu0 %4716
  %4718 = vrot.lane.b32.xlu0 %v4576, 4
  %v4719 = vpop.permute.xlu0 %4718
  %4720 = vrot.lane.b32.xlu0 %v4578, 4
  %v4721 = vpop.permute.xlu0 %4720
  %4722 = vrot.lane.b32.xlu0 %v4581, 4
  %v4723 = vpop.permute.xlu0 %4722
  %4724 = vrot.lane.b32.xlu0 %v4583, 4
  %v4725 = vpop.permute.xlu0 %4724
  %4726 = vrot.lane.b32.xlu0 %v4586, 4
  %v4727 = vpop.permute.xlu0 %4726
  %4728 = vrot.lane.b32.xlu0 %v4588, 4
  %v4729 = vpop.permute.xlu0 %4728
  %4730 = vrot.lane.b32.xlu0 %v4591, 4
  %v4731 = vpop.permute.xlu0 %4730
  %4732 = vrot.lane.b32.xlu0 %v4593, 4
  %v4733 = vpop.permute.xlu0 %4732
  %4734 = vrot.lane.b32.xlu0 %v4596, 4
  %v4735 = vpop.permute.xlu0 %4734
  %4736 = vrot.lane.b32.xlu0 %v4598, 4
  %v4737 = vpop.permute.xlu0 %4736
  %4738 = vrot.lane.b32.xlu0 %v4601, 4
  %v4739 = vpop.permute.xlu0 %4738
  %4740 = vrot.lane.b32.xlu0 %v4603, 4
  %v4741 = vpop.permute.xlu0 %4740
  %4742 = vrot.lane.b32.xlu0 %v4606, 4
  %v4743 = vpop.permute.xlu0 %4742
  %4744 = vrot.lane.b32.xlu0 %v4608, 4
  %v4745 = vpop.permute.xlu0 %4744
  %4746 = vrot.lane.b32.xlu0 %v4611, 4
  %v4747 = vpop.permute.xlu0 %4746
  %4748 = vrot.lane.b32.xlu0 %v4613, 4
  %v4749 = vpop.permute.xlu0 %4748
  %4750 = vrot.lane.b32.xlu0 %v4616, 4
  %v4751 = vpop.permute.xlu0 %4750
  %4752 = vrot.lane.b32.xlu0 %v4618, 4
  %v4753 = vpop.permute.xlu0 %4752
  %4754 = vrot.lane.b32.xlu0 %v4621, 4
  %v4755 = vpop.permute.xlu0 %4754
  %4756 = vrot.lane.b32.xlu0 %v4623, 4
  %v4757 = vpop.permute.xlu0 %4756
  %4758 = vrot.lane.b32.xlu0 %v4626, 4
  %v4759 = vpop.permute.xlu0 %4758
  %4760 = vrot.lane.b32.xlu0 %v4628, 4
  %v4761 = vpop.permute.xlu0 %4760
  %4762 = vrot.lane.b32.xlu0 %v4631, 4
  %v4763 = vpop.permute.xlu0 %4762
  %4764 = vrot.lane.b32.xlu0 %v4633, 4
  %v4765 = vpop.permute.xlu0 %4764
  %4766 = vrot.lane.b32.xlu0 %v4636, 4
  %v4767 = vpop.permute.xlu0 %4766
  %4768 = vrot.lane.b32.xlu0 %v4638, 4
  %v4769 = vpop.permute.xlu0 %4768
  %4770 = vrot.lane.b32.xlu0 %v4641, 4
  %v4771 = vpop.permute.xlu0 %4770
  %4772 = vrot.lane.b32.xlu0 %v4643, 4
  %v4773 = vpop.permute.xlu0 %4772
  %4774 = vrot.lane.b32.xlu0 %v4646, 4
  %v4775 = vpop.permute.xlu0 %4774
  %4776 = vrot.lane.b32.xlu0 %v4648, 4
  %v4777 = vpop.permute.xlu0 %4776
  %4778 = vrot.lane.b32.xlu0 %v4651, 4
  %v4779 = vpop.permute.xlu0 %4778
  %4780 = vrot.lane.b32.xlu0 %v4653, 4
  %v4781 = vpop.permute.xlu0 %4780
  %4846 = vst.msk [vmem:[#allocation5] sm:$0xff] %vm886, %v4655
  %4847 = vst.msk [vmem:[#allocation5 + $0x8] sm:$0xff] %vm886, %v4657
  %4848 = vst.msk [vmem:[#allocation5 + $0x10] sm:$0xff] %vm886, %v4659
  %4849 = vst.msk [vmem:[#allocation5 + $0x18] sm:$0xff] %vm886, %v4661
  %4850 = vst.msk [vmem:[#allocation5 + $0x20] sm:$0xff] %vm886, %v4663
  %4851 = vst.msk [vmem:[#allocation5 + $0x28] sm:$0xff] %vm886, %v4665
  %4852 = vst.msk [vmem:[#allocation5 + $0x30] sm:$0xff] %vm886, %v4667
  %4853 = vst.msk [vmem:[#allocation5 + $0x38] sm:$0xff] %vm886, %v4669
  %4854 = vst.msk [vmem:[#allocation5 + $0x40] sm:$0xff] %vm886, %v4671
  %4855 = vst.msk [vmem:[#allocation5 + $0x48] sm:$0xff] %vm886, %v4673
  %4856 = vst.msk [vmem:[#allocation5 + $0x50] sm:$0xff] %vm886, %v4675
  %4857 = vst.msk [vmem:[#allocation5 + $0x58] sm:$0xff] %vm886, %v4677
  %4858 = vst.msk [vmem:[#allocation5 + $0x60] sm:$0xff] %vm886, %v4679
  %4859 = vst.msk [vmem:[#allocation5 + $0x68] sm:$0xff] %vm886, %v4681
  %4860 = vst.msk [vmem:[#allocation5 + $0x70] sm:$0xff] %vm886, %v4683
  %4861 = vst.msk [vmem:[#allocation5 + $0x78] sm:$0xff] %vm886, %v4685
  %4862 = vst.msk [vmem:[#allocation5 + $0x80] sm:$0xff] %vm886, %v4687
  %4863 = vst.msk [vmem:[#allocation5 + $0x88] sm:$0xff] %vm886, %v4689
  %4864 = vst.msk [vmem:[#allocation5 + $0x90] sm:$0xff] %vm886, %v4691
  %4865 = vst.msk [vmem:[#allocation5 + $0x98] sm:$0xff] %vm886, %v4693
  %4866 = vst.msk [vmem:[#allocation5 + $0xa0] sm:$0xff] %vm886, %v4695
  %4867 = vst.msk [vmem:[#allocation5 + $0xa8] sm:$0xff] %vm886, %v4697
  %4868 = vst.msk [vmem:[#allocation5 + $0xb0] sm:$0xff] %vm886, %v4699
  %4869 = vst.msk [vmem:[#allocation5 + $0xb8] sm:$0xff] %vm886, %v4701
  %4870 = vst.msk [vmem:[#allocation5 + $0xc0] sm:$0xff] %vm886, %v4703
  %4871 = vst.msk [vmem:[#allocation5 + $0xc8] sm:$0xff] %vm886, %v4705
  %4872 = vst.msk [vmem:[#allocation5 + $0xd0] sm:$0xff] %vm886, %v4707
  %4873 = vst.msk [vmem:[#allocation5 + $0xd8] sm:$0xff] %vm886, %v4709
  %4874 = vst.msk [vmem:[#allocation5 + $0xe0] sm:$0xff] %vm886, %v4711
  %4875 = vst.msk [vmem:[#allocation5 + $0xe8] sm:$0xff] %vm886, %v4713
  %4876 = vst.msk [vmem:[#allocation5 + $0xf0] sm:$0xff] %vm886, %v4715
  %4877 = vst.msk [vmem:[#allocation5 + $0xf8] sm:$0xff] %vm886, %v4717
  %4878 = vst.msk [vmem:[#allocation5 + $0x100] sm:$0xff] %vm886, %v4719
  %4879 = vst.msk [vmem:[#allocation5 + $0x108] sm:$0xff] %vm886, %v4721
  %4880 = vst.msk [vmem:[#allocation5 + $0x110] sm:$0xff] %vm886, %v4723
  %4881 = vst.msk [vmem:[#allocation5 + $0x118] sm:$0xff] %vm886, %v4725
  %4882 = vst.msk [vmem:[#allocation5 + $0x120] sm:$0xff] %vm886, %v4727
  %4883 = vst.msk [vmem:[#allocation5 + $0x128] sm:$0xff] %vm886, %v4729
  %4884 = vst.msk [vmem:[#allocation5 + $0x130] sm:$0xff] %vm886, %v4731
  %4885 = vst.msk [vmem:[#allocation5 + $0x138] sm:$0xff] %vm886, %v4733
  %4886 = vst.msk [vmem:[#allocation5 + $0x140] sm:$0xff] %vm886, %v4735
  %4887 = vst.msk [vmem:[#allocation5 + $0x148] sm:$0xff] %vm886, %v4737
  %4888 = vst.msk [vmem:[#allocation5 + $0x150] sm:$0xff] %vm886, %v4739
  %4889 = vst.msk [vmem:[#allocation5 + $0x158] sm:$0xff] %vm886, %v4741
  %4890 = vst.msk [vmem:[#allocation5 + $0x160] sm:$0xff] %vm886, %v4743
  %4891 = vst.msk [vmem:[#allocation5 + $0x168] sm:$0xff] %vm886, %v4745
  %4892 = vst.msk [vmem:[#allocation5 + $0x170] sm:$0xff] %vm886, %v4747
  %4893 = vst.msk [vmem:[#allocation5 + $0x178] sm:$0xff] %vm886, %v4749
  %4894 = vst.msk [vmem:[#allocation5 + $0x180] sm:$0xff] %vm886, %v4751
  %4895 = vst.msk [vmem:[#allocation5 + $0x188] sm:$0xff] %vm886, %v4753
  %4896 = vst.msk [vmem:[#allocation5 + $0x190] sm:$0xff] %vm886, %v4755
  %4897 = vst.msk [vmem:[#allocation5 + $0x198] sm:$0xff] %vm886, %v4757
  %4898 = vst.msk [vmem:[#allocation5 + $0x1a0] sm:$0xff] %vm886, %v4759
  %4899 = vst.msk [vmem:[#allocation5 + $0x1a8] sm:$0xff] %vm886, %v4761
  %4900 = vst.msk [vmem:[#allocation5 + $0x1b0] sm:$0xff] %vm886, %v4763
  %4901 = vst.msk [vmem:[#allocation5 + $0x1b8] sm:$0xff] %vm886, %v4765
  %4902 = vst.msk [vmem:[#allocation5 + $0x1c0] sm:$0xff] %vm886, %v4767
  %4903 = vst.msk [vmem:[#allocation5 + $0x1c8] sm:$0xff] %vm886, %v4769
  %4904 = vst.msk [vmem:[#allocation5 + $0x1d0] sm:$0xff] %vm886, %v4771
  %4905 = vst.msk [vmem:[#allocation5 + $0x1d8] sm:$0xff] %vm886, %v4773
  %4906 = vst.msk [vmem:[#allocation5 + $0x1e0] sm:$0xff] %vm886, %v4775
  %4907 = vst.msk [vmem:[#allocation5 + $0x1e8] sm:$0xff] %vm886, %v4777
  %4908 = vst.msk [vmem:[#allocation5 + $0x1f0] sm:$0xff] %vm886, %v4779
  %4909 = vst.msk [vmem:[#allocation5 + $0x1f8] sm:$0xff] %vm886, %v4781
  %v4910 = vrot.slane %v4226, 2
  %v4911 = vrot.slane %v4227, 2
  %v4912 = vsel %vm951, %v4910, %v4911
  %v4913 = vrot.slane %v4228, 2
  %v4914 = vsel %vm951, %v4911, %v4913
  %v4915 = vrot.slane %v4229, 2
  %v4916 = vrot.slane %v4230, 2
  %v4917 = vsel %vm951, %v4915, %v4916
  %v4918 = vrot.slane %v4231, 2
  %v4919 = vsel %vm951, %v4916, %v4918
  %v4920 = vrot.slane %v4232, 2
  %v4921 = vrot.slane %v4233, 2
  %v4922 = vsel %vm951, %v4920, %v4921
  %v4923 = vrot.slane %v4234, 2
  %v4924 = vsel %vm951, %v4921, %v4923
  %v4925 = vrot.slane %v4235, 2
  %v4926 = vrot.slane %v4236, 2
  %v4927 = vsel %vm951, %v4925, %v4926
  %v4928 = vrot.slane %v4237, 2
  %v4929 = vsel %vm951, %v4926, %v4928
  %v4930 = vrot.slane %v4238, 2
  %v4931 = vrot.slane %v4239, 2
  %v4932 = vsel %vm951, %v4930, %v4931
  %v4933 = vrot.slane %v4240, 2
  %v4934 = vsel %vm951, %v4931, %v4933
  %v4935 = vrot.slane %v4241, 2
  %v4936 = vrot.slane %v4242, 2
  %v4937 = vsel %vm951, %v4935, %v4936
  %v4938 = vrot.slane %v4243, 2
  %v4939 = vsel %vm951, %v4936, %v4938
  %v4940 = vrot.slane %v4244, 2
  %v4941 = vrot.slane %v4245, 2
  %v4942 = vsel %vm951, %v4940, %v4941
  %v4943 = vrot.slane %v4246, 2
  %v4944 = vsel %vm951, %v4941, %v4943
  %v4945 = vrot.slane %v4247, 2
  %v4946 = vrot.slane %v4248, 2
  %v4947 = vsel %vm951, %v4945, %v4946
  %v4948 = vrot.slane %v4249, 2
  %v4949 = vsel %vm951, %v4946, %v4948
  %v4950 = vrot.slane %v4250, 2
  %v4951 = vrot.slane %v4251, 2
  %v4952 = vsel %vm951, %v4950, %v4951
  %v4953 = vrot.slane %v4252, 2
  %v4954 = vsel %vm951, %v4951, %v4953
  %v4955 = vrot.slane %v4253, 2
  %v4956 = vrot.slane %v4254, 2
  %v4957 = vsel %vm951, %v4955, %v4956
  %v4958 = vrot.slane %v4255, 2
  %v4959 = vsel %vm951, %v4956, %v4958
  %v4960 = vrot.slane %v4256, 2
  %v4961 = vrot.slane %v4257, 2
  %v4962 = vsel %vm951, %v4960, %v4961
  %v4963 = vrot.slane %v4258, 2
  %v4964 = vsel %vm951, %v4961, %v4963
  %v4965 = vrot.slane %v4259, 2
  %v4966 = vrot.slane %v4260, 2
  %v4967 = vsel %vm951, %v4965, %v4966
  %v4968 = vrot.slane %v4261, 2
  %v4969 = vsel %vm951, %v4966, %v4968
  %v4970 = vrot.slane %v4262, 2
  %v4971 = vrot.slane %v4263, 2
  %v4972 = vsel %vm951, %v4970, %v4971
  %v4973 = vrot.slane %v4264, 2
  %v4974 = vsel %vm951, %v4971, %v4973
  %v4975 = vrot.slane %v4265, 2
  %v4976 = vrot.slane %v4266, 2
  %v4977 = vsel %vm951, %v4975, %v4976
  %v4978 = vrot.slane %v4267, 2
  %v4979 = vsel %vm951, %v4976, %v4978
  %v4980 = vrot.slane %v4268, 2
  %v4981 = vrot.slane %v4269, 2
  %v4982 = vsel %vm951, %v4980, %v4981
  %v4983 = vrot.slane %v4270, 2
  %v4984 = vsel %vm951, %v4981, %v4983
  %v4985 = vrot.slane %v4271, 2
  %v4986 = vrot.slane %v4272, 2
  %v4987 = vsel %vm951, %v4985, %v4986
  %v4988 = vrot.slane %v4273, 2
  %v4989 = vsel %vm951, %v4986, %v4988
  %v4990 = vrot.slane %v4280, 2
  %v4991 = vrot.slane %v4281, 2
  %v4992 = vsel %vm951, %v4990, %v4991
  %v4993 = vrot.slane %v4282, 2
  %v4994 = vsel %vm951, %v4991, %v4993
  %v4995 = vrot.slane %v4283, 2
  %v4996 = vrot.slane %v4284, 2
  %v4997 = vsel %vm951, %v4995, %v4996
  %v4998 = vrot.slane %v4285, 2
  %v4999 = vsel %vm951, %v4996, %v4998
  %v5000 = vrot.slane %v4286, 2
  %v5001 = vrot.slane %v4287, 2
  %v5002 = vsel %vm951, %v5000, %v5001
  %v5003 = vrot.slane %v4288, 2
  %v5004 = vsel %vm951, %v5001, %v5003
  %v5005 = vrot.slane %v4289, 2
  %v5006 = vrot.slane %v4290, 2
  %v5007 = vsel %vm951, %v5005, %v5006
  %v5008 = vrot.slane %v4291, 2
  %v5009 = vsel %vm951, %v5006, %v5008
  %v5010 = vrot.slane %v4292, 2
  %v5011 = vrot.slane %v4293, 2
  %v5012 = vsel %vm951, %v5010, %v5011
  %v5013 = vrot.slane %v4294, 2
  %v5014 = vsel %vm951, %v5011, %v5013
  %v5015 = vrot.slane %v4295, 2
  %v5016 = vrot.slane %v4296, 2
  %v5017 = vsel %vm951, %v5015, %v5016
  %v5018 = vrot.slane %v4297, 2
  %v5019 = vsel %vm951, %v5016, %v5018
  %v5020 = vrot.slane %v4298, 2
  %v5021 = vrot.slane %v4299, 2
  %v5022 = vsel %vm951, %v5020, %v5021
  %v5023 = vrot.slane %v4300, 2
  %v5024 = vsel %vm951, %v5021, %v5023
  %v5025 = vrot.slane %v4301, 2
  %v5026 = vrot.slane %v4302, 2
  %v5027 = vsel %vm951, %v5025, %v5026
  %v5028 = vrot.slane %v4303, 2
  %v5029 = vsel %vm951, %v5026, %v5028
  %v5030 = vrot.slane %v4304, 2
  %v5031 = vrot.slane %v4305, 2
  %v5032 = vsel %vm951, %v5030, %v5031
  %v5033 = vrot.slane %v4306, 2
  %v5034 = vsel %vm951, %v5031, %v5033
  %v5035 = vrot.slane %v4307, 2
  %v5036 = vrot.slane %v4308, 2
  %v5037 = vsel %vm951, %v5035, %v5036
  %v5038 = vrot.slane %v4309, 2
  %v5039 = vsel %vm951, %v5036, %v5038
  %v5040 = vrot.slane %v4310, 2
  %v5041 = vrot.slane %v4311, 2
  %v5042 = vsel %vm951, %v5040, %v5041
  %v5043 = vrot.slane %v4312, 2
  %v5044 = vsel %vm951, %v5041, %v5043
  %v5045 = vrot.slane %v4313, 2
  %v5046 = vrot.slane %v4314, 2
  %v5047 = vsel %vm951, %v5045, %v5046
  %v5048 = vrot.slane %v4315, 2
  %v5049 = vsel %vm951, %v5046, %v5048
  %v5050 = vrot.slane %v4316, 2
  %v5051 = vrot.slane %v4317, 2
  %v5052 = vsel %vm951, %v5050, %v5051
  %v5053 = vrot.slane %v4318, 2
  %v5054 = vsel %vm951, %v5051, %v5053
  %v5055 = vrot.slane %v4319, 2
  %v5056 = vrot.slane %v4320, 2
  %v5057 = vsel %vm951, %v5055, %v5056
  %v5058 = vrot.slane %v4321, 2
  %v5059 = vsel %vm951, %v5056, %v5058
  %v5060 = vrot.slane %v4322, 2
  %v5061 = vrot.slane %v4323, 2
  %v5062 = vsel %vm951, %v5060, %v5061
  %v5063 = vrot.slane %v4324, 2
  %v5064 = vsel %vm951, %v5061, %v5063
  %v5065 = vrot.slane %v4325, 2
  %v5066 = vrot.slane %v4326, 2
  %v5067 = vsel %vm951, %v5065, %v5066
  %v5068 = vrot.slane %v4327, 2
  %v5069 = vsel %vm951, %v5066, %v5068
  %5070 = vrot.lane.b32.xlu0 %v4912, 8
  %v5071 = vpop.permute.xlu0 %5070
  %5072 = vrot.lane.b32.xlu0 %v4914, 8
  %v5073 = vpop.permute.xlu0 %5072
  %5074 = vrot.lane.b32.xlu0 %v4917, 8
  %v5075 = vpop.permute.xlu0 %5074
  %5076 = vrot.lane.b32.xlu0 %v4919, 8
  %v5077 = vpop.permute.xlu0 %5076
  %5078 = vrot.lane.b32.xlu0 %v4922, 8
  %v5079 = vpop.permute.xlu0 %5078
  %5080 = vrot.lane.b32.xlu0 %v4924, 8
  %v5081 = vpop.permute.xlu0 %5080
  %5082 = vrot.lane.b32.xlu0 %v4927, 8
  %v5083 = vpop.permute.xlu0 %5082
  %5084 = vrot.lane.b32.xlu0 %v4929, 8
  %v5085 = vpop.permute.xlu0 %5084
  %5086 = vrot.lane.b32.xlu0 %v4932, 8
  %v5087 = vpop.permute.xlu0 %5086
  %5088 = vrot.lane.b32.xlu0 %v4934, 8
  %v5089 = vpop.permute.xlu0 %5088
  %5090 = vrot.lane.b32.xlu0 %v4937, 8
  %v5091 = vpop.permute.xlu0 %5090
  %5092 = vrot.lane.b32.xlu0 %v4939, 8
  %v5093 = vpop.permute.xlu0 %5092
  %5094 = vrot.lane.b32.xlu0 %v4942, 8
  %v5095 = vpop.permute.xlu0 %5094
  %5096 = vrot.lane.b32.xlu0 %v4944, 8
  %v5097 = vpop.permute.xlu0 %5096
  %5098 = vrot.lane.b32.xlu0 %v4947, 8
  %v5099 = vpop.permute.xlu0 %5098
  %5100 = vrot.lane.b32.xlu0 %v4949, 8
  %v5101 = vpop.permute.xlu0 %5100
  %5102 = vrot.lane.b32.xlu0 %v4952, 8
  %v5103 = vpop.permute.xlu0 %5102
  %5104 = vrot.lane.b32.xlu0 %v4954, 8
  %v5105 = vpop.permute.xlu0 %5104
  %5106 = vrot.lane.b32.xlu0 %v4957, 8
  %v5107 = vpop.permute.xlu0 %5106
  %5108 = vrot.lane.b32.xlu0 %v4959, 8
  %v5109 = vpop.permute.xlu0 %5108
  %5110 = vrot.lane.b32.xlu0 %v4962, 8
  %v5111 = vpop.permute.xlu0 %5110
  %5112 = vrot.lane.b32.xlu0 %v4964, 8
  %v5113 = vpop.permute.xlu0 %5112
  %5114 = vrot.lane.b32.xlu0 %v4967, 8
  %v5115 = vpop.permute.xlu0 %5114
  %5116 = vrot.lane.b32.xlu0 %v4969, 8
  %v5117 = vpop.permute.xlu0 %5116
  %5118 = vrot.lane.b32.xlu0 %v4972, 8
  %v5119 = vpop.permute.xlu0 %5118
  %5120 = vrot.lane.b32.xlu0 %v4974, 8
  %v5121 = vpop.permute.xlu0 %5120
  %5122 = vrot.lane.b32.xlu0 %v4977, 8
  %v5123 = vpop.permute.xlu0 %5122
  %5124 = vrot.lane.b32.xlu0 %v4979, 8
  %v5125 = vpop.permute.xlu0 %5124
  %5126 = vrot.lane.b32.xlu0 %v4982, 8
  %v5127 = vpop.permute.xlu0 %5126
  %5128 = vrot.lane.b32.xlu0 %v4984, 8
  %v5129 = vpop.permute.xlu0 %5128
  %5130 = vrot.lane.b32.xlu0 %v4987, 8
  %v5131 = vpop.permute.xlu0 %5130
  %5132 = vrot.lane.b32.xlu0 %v4989, 8
  %v5133 = vpop.permute.xlu0 %5132
  %5134 = vrot.lane.b32.xlu0 %v4992, 8
  %v5135 = vpop.permute.xlu0 %5134
  %5136 = vrot.lane.b32.xlu0 %v4994, 8
  %v5137 = vpop.permute.xlu0 %5136
  %5138 = vrot.lane.b32.xlu0 %v4997, 8
  %v5139 = vpop.permute.xlu0 %5138
  %5140 = vrot.lane.b32.xlu0 %v4999, 8
  %v5141 = vpop.permute.xlu0 %5140
  %5142 = vrot.lane.b32.xlu0 %v5002, 8
  %v5143 = vpop.permute.xlu0 %5142
  %5144 = vrot.lane.b32.xlu0 %v5004, 8
  %v5145 = vpop.permute.xlu0 %5144
  %5146 = vrot.lane.b32.xlu0 %v5007, 8
  %v5147 = vpop.permute.xlu0 %5146
  %5148 = vrot.lane.b32.xlu0 %v5009, 8
  %v5149 = vpop.permute.xlu0 %5148
  %5150 = vrot.lane.b32.xlu0 %v5012, 8
  %v5151 = vpop.permute.xlu0 %5150
  %5152 = vrot.lane.b32.xlu0 %v5014, 8
  %v5153 = vpop.permute.xlu0 %5152
  %5154 = vrot.lane.b32.xlu0 %v5017, 8
  %v5155 = vpop.permute.xlu0 %5154
  %5156 = vrot.lane.b32.xlu0 %v5019, 8
  %v5157 = vpop.permute.xlu0 %5156
  %5158 = vrot.lane.b32.xlu0 %v5022, 8
  %v5159 = vpop.permute.xlu0 %5158
  %5160 = vrot.lane.b32.xlu0 %v5024, 8
  %v5161 = vpop.permute.xlu0 %5160
  %5162 = vrot.lane.b32.xlu0 %v5027, 8
  %v5163 = vpop.permute.xlu0 %5162
  %5164 = vrot.lane.b32.xlu0 %v5029, 8
  %v5165 = vpop.permute.xlu0 %5164
  %5166 = vrot.lane.b32.xlu0 %v5032, 8
  %v5167 = vpop.permute.xlu0 %5166
  %5168 = vrot.lane.b32.xlu0 %v5034, 8
  %v5169 = vpop.permute.xlu0 %5168
  %5170 = vrot.lane.b32.xlu0 %v5037, 8
  %v5171 = vpop.permute.xlu0 %5170
  %5172 = vrot.lane.b32.xlu0 %v5039, 8
  %v5173 = vpop.permute.xlu0 %5172
  %5174 = vrot.lane.b32.xlu0 %v5042, 8
  %v5175 = vpop.permute.xlu0 %5174
  %5176 = vrot.lane.b32.xlu0 %v5044, 8
  %v5177 = vpop.permute.xlu0 %5176
  %5178 = vrot.lane.b32.xlu0 %v5047, 8
  %v5179 = vpop.permute.xlu0 %5178
  %5180 = vrot.lane.b32.xlu0 %v5049, 8
  %v5181 = vpop.permute.xlu0 %5180
  %5182 = vrot.lane.b32.xlu0 %v5052, 8
  %v5183 = vpop.permute.xlu0 %5182
  %5184 = vrot.lane.b32.xlu0 %v5054, 8
  %v5185 = vpop.permute.xlu0 %5184
  %5186 = vrot.lane.b32.xlu0 %v5057, 8
  %v5187 = vpop.permute.xlu0 %5186
  %5188 = vrot.lane.b32.xlu0 %v5059, 8
  %v5189 = vpop.permute.xlu0 %5188
  %5190 = vrot.lane.b32.xlu0 %v5062, 8
  %v5191 = vpop.permute.xlu0 %5190
  %5192 = vrot.lane.b32.xlu0 %v5064, 8
  %v5193 = vpop.permute.xlu0 %5192
  %5194 = vrot.lane.b32.xlu0 %v5067, 8
  %v5195 = vpop.permute.xlu0 %5194
  %5196 = vrot.lane.b32.xlu0 %v5069, 8
  %v5197 = vpop.permute.xlu0 %5196
  %5262 = vst.msk [vmem:[#allocation5] sm:$0xff] %vm1304, %v5071
  %5263 = vst.msk [vmem:[#allocation5 + $0x8] sm:$0xff] %vm1304, %v5073
  %5264 = vst.msk [vmem:[#allocation5 + $0x10] sm:$0xff] %vm1304, %v5075
  %5265 = vst.msk [vmem:[#allocation5 + $0x18] sm:$0xff] %vm1304, %v5077
  %5266 = vst.msk [vmem:[#allocation5 + $0x20] sm:$0xff] %vm1304, %v5079
  %5267 = vst.msk [vmem:[#allocation5 + $0x28] sm:$0xff] %vm1304, %v5081
  %5268 = vst.msk [vmem:[#allocation5 + $0x30] sm:$0xff] %vm1304, %v5083
  %5269 = vst.msk [vmem:[#allocation5 + $0x38] sm:$0xff] %vm1304, %v5085
  %5270 = vst.msk [vmem:[#allocation5 + $0x40] sm:$0xff] %vm1304, %v5087
  %5271 = vst.msk [vmem:[#allocation5 + $0x48] sm:$0xff] %vm1304, %v5089
  %5272 = vst.msk [vmem:[#allocation5 + $0x50] sm:$0xff] %vm1304, %v5091
  %5273 = vst.msk [vmem:[#allocation5 + $0x58] sm:$0xff] %vm1304, %v5093
  %5274 = vst.msk [vmem:[#allocation5 + $0x60] sm:$0xff] %vm1304, %v5095
  %5275 = vst.msk [vmem:[#allocation5 + $0x68] sm:$0xff] %vm1304, %v5097
  %5276 = vst.msk [vmem:[#allocation5 + $0x70] sm:$0xff] %vm1304, %v5099
  %5277 = vst.msk [vmem:[#allocation5 + $0x78] sm:$0xff] %vm1304, %v5101
  %5278 = vst.msk [vmem:[#allocation5 + $0x80] sm:$0xff] %vm1304, %v5103
  %5279 = vst.msk [vmem:[#allocation5 + $0x88] sm:$0xff] %vm1304, %v5105
  %5280 = vst.msk [vmem:[#allocation5 + $0x90] sm:$0xff] %vm1304, %v5107
  %5281 = vst.msk [vmem:[#allocation5 + $0x98] sm:$0xff] %vm1304, %v5109
  %5282 = vst.msk [vmem:[#allocation5 + $0xa0] sm:$0xff] %vm1304, %v5111
  %5283 = vst.msk [vmem:[#allocation5 + $0xa8] sm:$0xff] %vm1304, %v5113
  %5284 = vst.msk [vmem:[#allocation5 + $0xb0] sm:$0xff] %vm1304, %v5115
  %5285 = vst.msk [vmem:[#allocation5 + $0xb8] sm:$0xff] %vm1304, %v5117
  %5286 = vst.msk [vmem:[#allocation5 + $0xc0] sm:$0xff] %vm1304, %v5119
  %5287 = vst.msk [vmem:[#allocation5 + $0xc8] sm:$0xff] %vm1304, %v5121
  %5288 = vst.msk [vmem:[#allocation5 + $0xd0] sm:$0xff] %vm1304, %v5123
  %5289 = vst.msk [vmem:[#allocation5 + $0xd8] sm:$0xff] %vm1304, %v5125
  %5290 = vst.msk [vmem:[#allocation5 + $0xe0] sm:$0xff] %vm1304, %v5127
  %5291 = vst.msk [vmem:[#allocation5 + $0xe8] sm:$0xff] %vm1304, %v5129
  %5292 = vst.msk [vmem:[#allocation5 + $0xf0] sm:$0xff] %vm1304, %v5131
  %5293 = vst.msk [vmem:[#allocation5 + $0xf8] sm:$0xff] %vm1304, %v5133
  %5294 = vst.msk [vmem:[#allocation5 + $0x100] sm:$0xff] %vm1304, %v5135
  %5295 = vst.msk [vmem:[#allocation5 + $0x108] sm:$0xff] %vm1304, %v5137
  %5296 = vst.msk [vmem:[#allocation5 + $0x110] sm:$0xff] %vm1304, %v5139
  %5297 = vst.msk [vmem:[#allocation5 + $0x118] sm:$0xff] %vm1304, %v5141
  %5298 = vst.msk [vmem:[#allocation5 + $0x120] sm:$0xff] %vm1304, %v5143
  %5299 = vst.msk [vmem:[#allocation5 + $0x128] sm:$0xff] %vm1304, %v5145
  %5300 = vst.msk [vmem:[#allocation5 + $0x130] sm:$0xff] %vm1304, %v5147
  %5301 = vst.msk [vmem:[#allocation5 + $0x138] sm:$0xff] %vm1304, %v5149
  %5302 = vst.msk [vmem:[#allocation5 + $0x140] sm:$0xff] %vm1304, %v5151
  %5303 = vst.msk [vmem:[#allocation5 + $0x148] sm:$0xff] %vm1304, %v5153
  %5304 = vst.msk [vmem:[#allocation5 + $0x150] sm:$0xff] %vm1304, %v5155
  %5305 = vst.msk [vmem:[#allocation5 + $0x158] sm:$0xff] %vm1304, %v5157
  %5306 = vst.msk [vmem:[#allocation5 + $0x160] sm:$0xff] %vm1304, %v5159
  %5307 = vst.msk [vmem:[#allocation5 + $0x168] sm:$0xff] %vm1304, %v5161
  %5308 = vst.msk [vmem:[#allocation5 + $0x170] sm:$0xff] %vm1304, %v5163
  %5309 = vst.msk [vmem:[#allocation5 + $0x178] sm:$0xff] %vm1304, %v5165
  %5310 = vst.msk [vmem:[#allocation5 + $0x180] sm:$0xff] %vm1304, %v5167
  %5311 = vst.msk [vmem:[#allocation5 + $0x188] sm:$0xff] %vm1304, %v5169
  %5312 = vst.msk [vmem:[#allocation5 + $0x190] sm:$0xff] %vm1304, %v5171
  %5313 = vst.msk [vmem:[#allocation5 + $0x198] sm:$0xff] %vm1304, %v5173
  %5314 = vst.msk [vmem:[#allocation5 + $0x1a0] sm:$0xff] %vm1304, %v5175
  %5315 = vst.msk [vmem:[#allocation5 + $0x1a8] sm:$0xff] %vm1304, %v5177
  %5316 = vst.msk [vmem:[#allocation5 + $0x1b0] sm:$0xff] %vm1304, %v5179
  %5317 = vst.msk [vmem:[#allocation5 + $0x1b8] sm:$0xff] %vm1304, %v5181
  %5318 = vst.msk [vmem:[#allocation5 + $0x1c0] sm:$0xff] %vm1304, %v5183
  %5319 = vst.msk [vmem:[#allocation5 + $0x1c8] sm:$0xff] %vm1304, %v5185
  %5320 = vst.msk [vmem:[#allocation5 + $0x1d0] sm:$0xff] %vm1304, %v5187
  %5321 = vst.msk [vmem:[#allocation5 + $0x1d8] sm:$0xff] %vm1304, %v5189
  %5322 = vst.msk [vmem:[#allocation5 + $0x1e0] sm:$0xff] %vm1304, %v5191
  %5323 = vst.msk [vmem:[#allocation5 + $0x1e8] sm:$0xff] %vm1304, %v5193
  %5324 = vst.msk [vmem:[#allocation5 + $0x1f0] sm:$0xff] %vm1304, %v5195
  %5325 = vst.msk [vmem:[#allocation5 + $0x1f8] sm:$0xff] %vm1304, %v5197
  %5330 = vrot.lane.b32.xlu0 %v4229, 12
  %v5331 = vpop.permute.xlu0 %5330
  %5332 = vrot.lane.b32.xlu0 %v4230, 12
  %v5333 = vpop.permute.xlu0 %5332
  %5334 = vrot.lane.b32.xlu0 %v4232, 12
  %v5335 = vpop.permute.xlu0 %5334
  %5336 = vrot.lane.b32.xlu0 %v4233, 12
  %v5337 = vpop.permute.xlu0 %5336
  %5338 = vrot.lane.b32.xlu0 %v4235, 12
  %v5339 = vpop.permute.xlu0 %5338
  %5340 = vrot.lane.b32.xlu0 %v4236, 12
  %v5341 = vpop.permute.xlu0 %5340
  %5342 = vrot.lane.b32.xlu0 %v4238, 12
  %v5343 = vpop.permute.xlu0 %5342
  %5344 = vrot.lane.b32.xlu0 %v4239, 12
  %v5345 = vpop.permute.xlu0 %5344
  %5346 = vrot.lane.b32.xlu0 %v4241, 12
  %v5347 = vpop.permute.xlu0 %5346
  %5348 = vrot.lane.b32.xlu0 %v4242, 12
  %v5349 = vpop.permute.xlu0 %5348
  %5350 = vrot.lane.b32.xlu0 %v4244, 12
  %v5351 = vpop.permute.xlu0 %5350
  %5352 = vrot.lane.b32.xlu0 %v4245, 12
  %v5353 = vpop.permute.xlu0 %5352
  %5354 = vrot.lane.b32.xlu0 %v4247, 12
  %v5355 = vpop.permute.xlu0 %5354
  %5356 = vrot.lane.b32.xlu0 %v4248, 12
  %v5357 = vpop.permute.xlu0 %5356
  %5358 = vrot.lane.b32.xlu0 %v4250, 12
  %v5359 = vpop.permute.xlu0 %5358
  %5360 = vrot.lane.b32.xlu0 %v4251, 12
  %v5361 = vpop.permute.xlu0 %5360
  %5362 = vrot.lane.b32.xlu0 %v4253, 12
  %v5363 = vpop.permute.xlu0 %5362
  %5364 = vrot.lane.b32.xlu0 %v4254, 12
  %v5365 = vpop.permute.xlu0 %5364
  %5366 = vrot.lane.b32.xlu0 %v4256, 12
  %v5367 = vpop.permute.xlu0 %5366
  %5368 = vrot.lane.b32.xlu0 %v4257, 12
  %v5369 = vpop.permute.xlu0 %5368
  %5370 = vrot.lane.b32.xlu0 %v4259, 12
  %v5371 = vpop.permute.xlu0 %5370
  %5372 = vrot.lane.b32.xlu0 %v4260, 12
  %v5373 = vpop.permute.xlu0 %5372
  %5374 = vrot.lane.b32.xlu0 %v4262, 12
  %v5375 = vpop.permute.xlu0 %5374
  %5376 = vrot.lane.b32.xlu0 %v4263, 12
  %v5377 = vpop.permute.xlu0 %5376
  %5378 = vrot.lane.b32.xlu0 %v4265, 12
  %v5379 = vpop.permute.xlu0 %5378
  %5380 = vrot.lane.b32.xlu0 %v4266, 12
  %v5381 = vpop.permute.xlu0 %5380
  %5382 = vrot.lane.b32.xlu0 %v4268, 12
  %v5383 = vpop.permute.xlu0 %5382
  %5384 = vrot.lane.b32.xlu0 %v4269, 12
  %v5385 = vpop.permute.xlu0 %5384
  %5386 = vrot.lane.b32.xlu0 %v4271, 12
  %v5387 = vpop.permute.xlu0 %5386
  %5388 = vrot.lane.b32.xlu0 %v4272, 12
  %v5389 = vpop.permute.xlu0 %5388
  %5390 = vrot.lane.b32.xlu0 %v4274, 12
  %v5391 = vpop.permute.xlu0 %5390
  %5392 = vrot.lane.b32.xlu0 %v4275, 12
  %v5393 = vpop.permute.xlu0 %5392
  %5394 = vrot.lane.b32.xlu0 %v4283, 12
  %v5395 = vpop.permute.xlu0 %5394
  %5396 = vrot.lane.b32.xlu0 %v4284, 12
  %v5397 = vpop.permute.xlu0 %5396
  %5398 = vrot.lane.b32.xlu0 %v4286, 12
  %v5399 = vpop.permute.xlu0 %5398
  %5400 = vrot.lane.b32.xlu0 %v4287, 12
  %v5401 = vpop.permute.xlu0 %5400
  %5402 = vrot.lane.b32.xlu0 %v4289, 12
  %v5403 = vpop.permute.xlu0 %5402
  %5404 = vrot.lane.b32.xlu0 %v4290, 12
  %v5405 = vpop.permute.xlu0 %5404
  %5406 = vrot.lane.b32.xlu0 %v4292, 12
  %v5407 = vpop.permute.xlu0 %5406
  %5408 = vrot.lane.b32.xlu0 %v4293, 12
  %v5409 = vpop.permute.xlu0 %5408
  %5410 = vrot.lane.b32.xlu0 %v4295, 12
  %v5411 = vpop.permute.xlu0 %5410
  %5412 = vrot.lane.b32.xlu0 %v4296, 12
  %v5413 = vpop.permute.xlu0 %5412
  %5414 = vrot.lane.b32.xlu0 %v4298, 12
  %v5415 = vpop.permute.xlu0 %5414
  %5416 = vrot.lane.b32.xlu0 %v4299, 12
  %v5417 = vpop.permute.xlu0 %5416
  %5418 = vrot.lane.b32.xlu0 %v4301, 12
  %v5419 = vpop.permute.xlu0 %5418
  %5420 = vrot.lane.b32.xlu0 %v4302, 12
  %v5421 = vpop.permute.xlu0 %5420
  %5422 = vrot.lane.b32.xlu0 %v4304, 12
  %v5423 = vpop.permute.xlu0 %5422
  %5424 = vrot.lane.b32.xlu0 %v4305, 12
  %v5425 = vpop.permute.xlu0 %5424
  %5426 = vrot.lane.b32.xlu0 %v4307, 12
  %v5427 = vpop.permute.xlu0 %5426
  %5428 = vrot.lane.b32.xlu0 %v4308, 12
  %v5429 = vpop.permute.xlu0 %5428
  %5430 = vrot.lane.b32.xlu0 %v4310, 12
  %v5431 = vpop.permute.xlu0 %5430
  %5432 = vrot.lane.b32.xlu0 %v4311, 12
  %v5433 = vpop.permute.xlu0 %5432
  %5434 = vrot.lane.b32.xlu0 %v4313, 12
  %v5435 = vpop.permute.xlu0 %5434
  %5436 = vrot.lane.b32.xlu0 %v4314, 12
  %v5437 = vpop.permute.xlu0 %5436
  %5438 = vrot.lane.b32.xlu0 %v4316, 12
  %v5439 = vpop.permute.xlu0 %5438
  %5440 = vrot.lane.b32.xlu0 %v4317, 12
  %v5441 = vpop.permute.xlu0 %5440
  %5442 = vrot.lane.b32.xlu0 %v4319, 12
  %v5443 = vpop.permute.xlu0 %5442
  %5444 = vrot.lane.b32.xlu0 %v4320, 12
  %v5445 = vpop.permute.xlu0 %5444
  %5446 = vrot.lane.b32.xlu0 %v4322, 12
  %v5447 = vpop.permute.xlu0 %5446
  %5448 = vrot.lane.b32.xlu0 %v4323, 12
  %v5449 = vpop.permute.xlu0 %5448
  %5450 = vrot.lane.b32.xlu0 %v4325, 12
  %v5451 = vpop.permute.xlu0 %5450
  %5452 = vrot.lane.b32.xlu0 %v4326, 12
  %v5453 = vpop.permute.xlu0 %5452
  %5454 = vrot.lane.b32.xlu0 %v4328, 12
  %v5455 = vpop.permute.xlu0 %5454
  %5456 = vrot.lane.b32.xlu0 %v4329, 12
  %v5457 = vpop.permute.xlu0 %5456
  %5522 = vst.msk [vmem:[#allocation5] sm:$0xff] %vm1565, %v5331
  %5523 = vst.msk [vmem:[#allocation5 + $0x8] sm:$0xff] %vm1565, %v5333
  %5524 = vst.msk [vmem:[#allocation5 + $0x10] sm:$0xff] %vm1565, %v5335
  %5525 = vst.msk [vmem:[#allocation5 + $0x18] sm:$0xff] %vm1565, %v5337
  %5526 = vst.msk [vmem:[#allocation5 + $0x20] sm:$0xff] %vm1565, %v5339
  %5527 = vst.msk [vmem:[#allocation5 + $0x28] sm:$0xff] %vm1565, %v5341
  %5528 = vst.msk [vmem:[#allocation5 + $0x30] sm:$0xff] %vm1565, %v5343
  %5529 = vst.msk [vmem:[#allocation5 + $0x38] sm:$0xff] %vm1565, %v5345
  %5530 = vst.msk [vmem:[#allocation5 + $0x40] sm:$0xff] %vm1565, %v5347
  %5531 = vst.msk [vmem:[#allocation5 + $0x48] sm:$0xff] %vm1565, %v5349
  %5532 = vst.msk [vmem:[#allocation5 + $0x50] sm:$0xff] %vm1565, %v5351
  %5533 = vst.msk [vmem:[#allocation5 + $0x58] sm:$0xff] %vm1565, %v5353
  %5534 = vst.msk [vmem:[#allocation5 + $0x60] sm:$0xff] %vm1565, %v5355
  %5535 = vst.msk [vmem:[#allocation5 + $0x68] sm:$0xff] %vm1565, %v5357
  %5536 = vst.msk [vmem:[#allocation5 + $0x70] sm:$0xff] %vm1565, %v5359
  %5537 = vst.msk [vmem:[#allocation5 + $0x78] sm:$0xff] %vm1565, %v5361
  %5538 = vst.msk [vmem:[#allocation5 + $0x80] sm:$0xff] %vm1565, %v5363
  %5539 = vst.msk [vmem:[#allocation5 + $0x88] sm:$0xff] %vm1565, %v5365
  %5540 = vst.msk [vmem:[#allocation5 + $0x90] sm:$0xff] %vm1565, %v5367
  %5541 = vst.msk [vmem:[#allocation5 + $0x98] sm:$0xff] %vm1565, %v5369
  %5542 = vst.msk [vmem:[#allocation5 + $0xa0] sm:$0xff] %vm1565, %v5371
  %5543 = vst.msk [vmem:[#allocation5 + $0xa8] sm:$0xff] %vm1565, %v5373
  %5544 = vst.msk [vmem:[#allocation5 + $0xb0] sm:$0xff] %vm1565, %v5375
  %5545 = vst.msk [vmem:[#allocation5 + $0xb8] sm:$0xff] %vm1565, %v5377
  %5546 = vst.msk [vmem:[#allocation5 + $0xc0] sm:$0xff] %vm1565, %v5379
  %5547 = vst.msk [vmem:[#allocation5 + $0xc8] sm:$0xff] %vm1565, %v5381
  %5548 = vst.msk [vmem:[#allocation5 + $0xd0] sm:$0xff] %vm1565, %v5383
  %5549 = vst.msk [vmem:[#allocation5 + $0xd8] sm:$0xff] %vm1565, %v5385
  %5550 = vst.msk [vmem:[#allocation5 + $0xe0] sm:$0xff] %vm1565, %v5387
  %5551 = vst.msk [vmem:[#allocation5 + $0xe8] sm:$0xff] %vm1565, %v5389
  %5552 = vst.msk [vmem:[#allocation5 + $0xf0] sm:$0xff] %vm1565, %v5391
  %5553 = vst.msk [vmem:[#allocation5 + $0xf8] sm:$0xff] %vm1565, %v5393
  %5554 = vst.msk [vmem:[#allocation5 + $0x100] sm:$0xff] %vm1565, %v5395
  %5555 = vst.msk [vmem:[#allocation5 + $0x108] sm:$0xff] %vm1565, %v5397
  %5556 = vst.msk [vmem:[#allocation5 + $0x110] sm:$0xff] %vm1565, %v5399
  %5557 = vst.msk [vmem:[#allocation5 + $0x118] sm:$0xff] %vm1565, %v5401
  %5558 = vst.msk [vmem:[#allocation5 + $0x120] sm:$0xff] %vm1565, %v5403
  %5559 = vst.msk [vmem:[#allocation5 + $0x128] sm:$0xff] %vm1565, %v5405
  %5560 = vst.msk [vmem:[#allocation5 + $0x130] sm:$0xff] %vm1565, %v5407
  %5561 = vst.msk [vmem:[#allocation5 + $0x138] sm:$0xff] %vm1565, %v5409
  %5562 = vst.msk [vmem:[#allocation5 + $0x140] sm:$0xff] %vm1565, %v5411
  %5563 = vst.msk [vmem:[#allocation5 + $0x148] sm:$0xff] %vm1565, %v5413
  %5564 = vst.msk [vmem:[#allocation5 + $0x150] sm:$0xff] %vm1565, %v5415
  %5565 = vst.msk [vmem:[#allocation5 + $0x158] sm:$0xff] %vm1565, %v5417
  %5566 = vst.msk [vmem:[#allocation5 + $0x160] sm:$0xff] %vm1565, %v5419
  %5567 = vst.msk [vmem:[#allocation5 + $0x168] sm:$0xff] %vm1565, %v5421
  %5568 = vst.msk [vmem:[#allocation5 + $0x170] sm:$0xff] %vm1565, %v5423
  %5569 = vst.msk [vmem:[#allocation5 + $0x178] sm:$0xff] %vm1565, %v5425
  %5570 = vst.msk [vmem:[#allocation5 + $0x180] sm:$0xff] %vm1565, %v5427
  %5571 = vst.msk [vmem:[#allocation5 + $0x188] sm:$0xff] %vm1565, %v5429
  %5572 = vst.msk [vmem:[#allocation5 + $0x190] sm:$0xff] %vm1565, %v5431
  %5573 = vst.msk [vmem:[#allocation5 + $0x198] sm:$0xff] %vm1565, %v5433
  %5574 = vst.msk [vmem:[#allocation5 + $0x1a0] sm:$0xff] %vm1565, %v5435
  %5575 = vst.msk [vmem:[#allocation5 + $0x1a8] sm:$0xff] %vm1565, %v5437
  %5576 = vst.msk [vmem:[#allocation5 + $0x1b0] sm:$0xff] %vm1565, %v5439
  %5577 = vst.msk [vmem:[#allocation5 + $0x1b8] sm:$0xff] %vm1565, %v5441
  %5578 = vst.msk [vmem:[#allocation5 + $0x1c0] sm:$0xff] %vm1565, %v5443
  %5579 = vst.msk [vmem:[#allocation5 + $0x1c8] sm:$0xff] %vm1565, %v5445
  %5580 = vst.msk [vmem:[#allocation5 + $0x1d0] sm:$0xff] %vm1565, %v5447
  %5581 = vst.msk [vmem:[#allocation5 + $0x1d8] sm:$0xff] %vm1565, %v5449
  %5582 = vst.msk [vmem:[#allocation5 + $0x1e0] sm:$0xff] %vm1565, %v5451
  %5583 = vst.msk [vmem:[#allocation5 + $0x1e8] sm:$0xff] %vm1565, %v5453
  %5584 = vst.msk [vmem:[#allocation5 + $0x1f0] sm:$0xff] %vm1565, %v5455
  %5585 = vst.msk [vmem:[#allocation5 + $0x1f8] sm:$0xff] %vm1565, %v5457
  %v5588 = vrot.slane %v4274, 1
  %v5589 = vrot.slane %v4275, 1
  %v5590 = vsel %vm533, %v5588, %v5589
  %v5591 = vrot.slane %v4276, 1
  %v5592 = vsel %vm533, %v5589, %v5591
  %v5593 = vrot.slane %v4328, 1
  %v5594 = vrot.slane %v4329, 1
  %v5595 = vsel %vm533, %v5593, %v5594
  %v5596 = vrot.slane %v4330, 1
  %v5597 = vsel %vm533, %v5594, %v5596
  %5598 = vrot.lane.b32.xlu0 %v4501, 16
  %v5599 = vpop.permute.xlu0 %5598
  %5600 = vrot.lane.b32.xlu0 %v4503, 16
  %v5601 = vpop.permute.xlu0 %5600
  %5602 = vrot.lane.b32.xlu0 %v4506, 16
  %v5603 = vpop.permute.xlu0 %5602
  %5604 = vrot.lane.b32.xlu0 %v4508, 16
  %v5605 = vpop.permute.xlu0 %5604
  %5606 = vrot.lane.b32.xlu0 %v4511, 16
  %v5607 = vpop.permute.xlu0 %5606
  %5608 = vrot.lane.b32.xlu0 %v4513, 16
  %v5609 = vpop.permute.xlu0 %5608
  %5610 = vrot.lane.b32.xlu0 %v4516, 16
  %v5611 = vpop.permute.xlu0 %5610
  %5612 = vrot.lane.b32.xlu0 %v4518, 16
  %v5613 = vpop.permute.xlu0 %5612
  %5614 = vrot.lane.b32.xlu0 %v4521, 16
  %v5615 = vpop.permute.xlu0 %5614
  %5616 = vrot.lane.b32.xlu0 %v4523, 16
  %v5617 = vpop.permute.xlu0 %5616
  %5618 = vrot.lane.b32.xlu0 %v4526, 16
  %v5619 = vpop.permute.xlu0 %5618
  %5620 = vrot.lane.b32.xlu0 %v4528, 16
  %v5621 = vpop.permute.xlu0 %5620
  %5622 = vrot.lane.b32.xlu0 %v4531, 16
  %v5623 = vpop.permute.xlu0 %5622
  %5624 = vrot.lane.b32.xlu0 %v4533, 16
  %v5625 = vpop.permute.xlu0 %5624
  %5626 = vrot.lane.b32.xlu0 %v4536, 16
  %v5627 = vpop.permute.xlu0 %5626
  %5628 = vrot.lane.b32.xlu0 %v4538, 16
  %v5629 = vpop.permute.xlu0 %5628
  %5630 = vrot.lane.b32.xlu0 %v4541, 16
  %v5631 = vpop.permute.xlu0 %5630
  %5632 = vrot.lane.b32.xlu0 %v4543, 16
  %v5633 = vpop.permute.xlu0 %5632
  %5634 = vrot.lane.b32.xlu0 %v4546, 16
  %v5635 = vpop.permute.xlu0 %5634
  %5636 = vrot.lane.b32.xlu0 %v4548, 16
  %v5637 = vpop.permute.xlu0 %5636
  %5638 = vrot.lane.b32.xlu0 %v4551, 16
  %v5639 = vpop.permute.xlu0 %5638
  %5640 = vrot.lane.b32.xlu0 %v4553, 16
  %v5641 = vpop.permute.xlu0 %5640
  %5642 = vrot.lane.b32.xlu0 %v4556, 16
  %v5643 = vpop.permute.xlu0 %5642
  %5644 = vrot.lane.b32.xlu0 %v4558, 16
  %v5645 = vpop.permute.xlu0 %5644
  %5646 = vrot.lane.b32.xlu0 %v4561, 16
  %v5647 = vpop.permute.xlu0 %5646
  %5648 = vrot.lane.b32.xlu0 %v4563, 16
  %v5649 = vpop.permute.xlu0 %5648
  %5650 = vrot.lane.b32.xlu0 %v4566, 16
  %v5651 = vpop.permute.xlu0 %5650
  %5652 = vrot.lane.b32.xlu0 %v4568, 16
  %v5653 = vpop.permute.xlu0 %5652
  %5654 = vrot.lane.b32.xlu0 %v4571, 16
  %v5655 = vpop.permute.xlu0 %5654
  %5656 = vrot.lane.b32.xlu0 %v4573, 16
  %v5657 = vpop.permute.xlu0 %5656
  %5658 = vrot.lane.b32.xlu0 %v5590, 16
  %v5659 = vpop.permute.xlu0 %5658
  %5660 = vrot.lane.b32.xlu0 %v5592, 16
  %v5661 = vpop.permute.xlu0 %5660
  %5662 = vrot.lane.b32.xlu0 %v4581, 16
  %v5663 = vpop.permute.xlu0 %5662
  %5664 = vrot.lane.b32.xlu0 %v4583, 16
  %v5665 = vpop.permute.xlu0 %5664
  %5666 = vrot.lane.b32.xlu0 %v4586, 16
  %v5667 = vpop.permute.xlu0 %5666
  %5668 = vrot.lane.b32.xlu0 %v4588, 16
  %v5669 = vpop.permute.xlu0 %5668
  %5670 = vrot.lane.b32.xlu0 %v4591, 16
  %v5671 = vpop.permute.xlu0 %5670
  %5672 = vrot.lane.b32.xlu0 %v4593, 16
  %v5673 = vpop.permute.xlu0 %5672
  %5674 = vrot.lane.b32.xlu0 %v4596, 16
  %v5675 = vpop.permute.xlu0 %5674
  %5676 = vrot.lane.b32.xlu0 %v4598, 16
  %v5677 = vpop.permute.xlu0 %5676
  %5678 = vrot.lane.b32.xlu0 %v4601, 16
  %v5679 = vpop.permute.xlu0 %5678
  %5680 = vrot.lane.b32.xlu0 %v4603, 16
  %v5681 = vpop.permute.xlu0 %5680
  %5682 = vrot.lane.b32.xlu0 %v4606, 16
  %v5683 = vpop.permute.xlu0 %5682
  %5684 = vrot.lane.b32.xlu0 %v4608, 16
  %v5685 = vpop.permute.xlu0 %5684
  %5686 = vrot.lane.b32.xlu0 %v4611, 16
  %v5687 = vpop.permute.xlu0 %5686
  %5688 = vrot.lane.b32.xlu0 %v4613, 16
  %v5689 = vpop.permute.xlu0 %5688
  %5690 = vrot.lane.b32.xlu0 %v4616, 16
  %v5691 = vpop.permute.xlu0 %5690
  %5692 = vrot.lane.b32.xlu0 %v4618, 16
  %v5693 = vpop.permute.xlu0 %5692
  %5694 = vrot.lane.b32.xlu0 %v4621, 16
  %v5695 = vpop.permute.xlu0 %5694
  %5696 = vrot.lane.b32.xlu0 %v4623, 16
  %v5697 = vpop.permute.xlu0 %5696
  %5698 = vrot.lane.b32.xlu0 %v4626, 16
  %v5699 = vpop.permute.xlu0 %5698
  %5700 = vrot.lane.b32.xlu0 %v4628, 16
  %v5701 = vpop.permute.xlu0 %5700
  %5702 = vrot.lane.b32.xlu0 %v4631, 16
  %v5703 = vpop.permute.xlu0 %5702
  %5704 = vrot.lane.b32.xlu0 %v4633, 16
  %v5705 = vpop.permute.xlu0 %5704
  %5706 = vrot.lane.b32.xlu0 %v4636, 16
  %v5707 = vpop.permute.xlu0 %5706
  %5708 = vrot.lane.b32.xlu0 %v4638, 16
  %v5709 = vpop.permute.xlu0 %5708
  %5710 = vrot.lane.b32.xlu0 %v4641, 16
  %v5711 = vpop.permute.xlu0 %5710
  %5712 = vrot.lane.b32.xlu0 %v4643, 16
  %v5713 = vpop.permute.xlu0 %5712
  %5714 = vrot.lane.b32.xlu0 %v4646, 16
  %v5715 = vpop.permute.xlu0 %5714
  %5716 = vrot.lane.b32.xlu0 %v4648, 16
  %v5717 = vpop.permute.xlu0 %5716
  %5718 = vrot.lane.b32.xlu0 %v4651, 16
  %v5719 = vpop.permute.xlu0 %5718
  %5720 = vrot.lane.b32.xlu0 %v4653, 16
  %v5721 = vpop.permute.xlu0 %5720
  %5722 = vrot.lane.b32.xlu0 %v5595, 16
  %v5723 = vpop.permute.xlu0 %5722
  %5724 = vrot.lane.b32.xlu0 %v5597, 16
  %v5725 = vpop.permute.xlu0 %5724
  %5790 = vst.msk [vmem:[#allocation5] sm:$0xff] %vm1834, %v5599
  %5791 = vst.msk [vmem:[#allocation5 + $0x8] sm:$0xff] %vm1834, %v5601
  %5792 = vst.msk [vmem:[#allocation5 + $0x10] sm:$0xff] %vm1834, %v5603
  %5793 = vst.msk [vmem:[#allocation5 + $0x18] sm:$0xff] %vm1834, %v5605
  %5794 = vst.msk [vmem:[#allocation5 + $0x20] sm:$0xff] %vm1834, %v5607
  %5795 = vst.msk [vmem:[#allocation5 + $0x28] sm:$0xff] %vm1834, %v5609
  %5796 = vst.msk [vmem:[#allocation5 + $0x30] sm:$0xff] %vm1834, %v5611
  %5797 = vst.msk [vmem:[#allocation5 + $0x38] sm:$0xff] %vm1834, %v5613
  %5798 = vst.msk [vmem:[#allocation5 + $0x40] sm:$0xff] %vm1834, %v5615
  %5799 = vst.msk [vmem:[#allocation5 + $0x48] sm:$0xff] %vm1834, %v5617
  %5800 = vst.msk [vmem:[#allocation5 + $0x50] sm:$0xff] %vm1834, %v5619
  %5801 = vst.msk [vmem:[#allocation5 + $0x58] sm:$0xff] %vm1834, %v5621
  %5802 = vst.msk [vmem:[#allocation5 + $0x60] sm:$0xff] %vm1834, %v5623
  %5803 = vst.msk [vmem:[#allocation5 + $0x68] sm:$0xff] %vm1834, %v5625
  %5804 = vst.msk [vmem:[#allocation5 + $0x70] sm:$0xff] %vm1834, %v5627
  %5805 = vst.msk [vmem:[#allocation5 + $0x78] sm:$0xff] %vm1834, %v5629
  %5806 = vst.msk [vmem:[#allocation5 + $0x80] sm:$0xff] %vm1834, %v5631
  %5807 = vst.msk [vmem:[#allocation5 + $0x88] sm:$0xff] %vm1834, %v5633
  %5808 = vst.msk [vmem:[#allocation5 + $0x90] sm:$0xff] %vm1834, %v5635
  %5809 = vst.msk [vmem:[#allocation5 + $0x98] sm:$0xff] %vm1834, %v5637
  %5810 = vst.msk [vmem:[#allocation5 + $0xa0] sm:$0xff] %vm1834, %v5639
  %5811 = vst.msk [vmem:[#allocation5 + $0xa8] sm:$0xff] %vm1834, %v5641
  %5812 = vst.msk [vmem:[#allocation5 + $0xb0] sm:$0xff] %vm1834, %v5643
  %5813 = vst.msk [vmem:[#allocation5 + $0xb8] sm:$0xff] %vm1834, %v5645
  %5814 = vst.msk [vmem:[#allocation5 + $0xc0] sm:$0xff] %vm1834, %v5647
  %5815 = vst.msk [vmem:[#allocation5 + $0xc8] sm:$0xff] %vm1834, %v5649
  %5816 = vst.msk [vmem:[#allocation5 + $0xd0] sm:$0xff] %vm1834, %v5651
  %5817 = vst.msk [vmem:[#allocation5 + $0xd8] sm:$0xff] %vm1834, %v5653
  %5818 = vst.msk [vmem:[#allocation5 + $0xe0] sm:$0xff] %vm1834, %v5655
  %5819 = vst.msk [vmem:[#allocation5 + $0xe8] sm:$0xff] %vm1834, %v5657
  %5820 = vst.msk [vmem:[#allocation5 + $0xf0] sm:$0xff] %vm1834, %v5659
  %5821 = vst.msk [vmem:[#allocation5 + $0xf8] sm:$0xff] %vm1834, %v5661
  %5822 = vst.msk [vmem:[#allocation5 + $0x100] sm:$0xff] %vm1834, %v5663
  %5823 = vst.msk [vmem:[#allocation5 + $0x108] sm:$0xff] %vm1834, %v5665
  %5824 = vst.msk [vmem:[#allocation5 + $0x110] sm:$0xff] %vm1834, %v5667
  %5825 = vst.msk [vmem:[#allocation5 + $0x118] sm:$0xff] %vm1834, %v5669
  %5826 = vst.msk [vmem:[#allocation5 + $0x120] sm:$0xff] %vm1834, %v5671
  %5827 = vst.msk [vmem:[#allocation5 + $0x128] sm:$0xff] %vm1834, %v5673
  %5828 = vst.msk [vmem:[#allocation5 + $0x130] sm:$0xff] %vm1834, %v5675
  %5829 = vst.msk [vmem:[#allocation5 + $0x138] sm:$0xff] %vm1834, %v5677
  %5830 = vst.msk [vmem:[#allocation5 + $0x140] sm:$0xff] %vm1834, %v5679
  %5831 = vst.msk [vmem:[#allocation5 + $0x148] sm:$0xff] %vm1834, %v5681
  %5832 = vst.msk [vmem:[#allocation5 + $0x150] sm:$0xff] %vm1834, %v5683
  %5833 = vst.msk [vmem:[#allocation5 + $0x158] sm:$0xff] %vm1834, %v5685
  %5834 = vst.msk [vmem:[#allocation5 + $0x160] sm:$0xff] %vm1834, %v5687
  %5835 = vst.msk [vmem:[#allocation5 + $0x168] sm:$0xff] %vm1834, %v5689
  %5836 = vst.msk [vmem:[#allocation5 + $0x170] sm:$0xff] %vm1834, %v5691
  %5837 = vst.msk [vmem:[#allocation5 + $0x178] sm:$0xff] %vm1834, %v5693
  %5838 = vst.msk [vmem:[#allocation5 + $0x180] sm:$0xff] %vm1834, %v5695
  %5839 = vst.msk [vmem:[#allocation5 + $0x188] sm:$0xff] %vm1834, %v5697
  %5840 = vst.msk [vmem:[#allocation5 + $0x190] sm:$0xff] %vm1834, %v5699
  %5841 = vst.msk [vmem:[#allocation5 + $0x198] sm:$0xff] %vm1834, %v5701
  %5842 = vst.msk [vmem:[#allocation5 + $0x1a0] sm:$0xff] %vm1834, %v5703
  %5843 = vst.msk [vmem:[#allocation5 + $0x1a8] sm:$0xff] %vm1834, %v5705
  %5844 = vst.msk [vmem:[#allocation5 + $0x1b0] sm:$0xff] %vm1834, %v5707
  %5845 = vst.msk [vmem:[#allocation5 + $0x1b8] sm:$0xff] %vm1834, %v5709
  %5846 = vst.msk [vmem:[#allocation5 + $0x1c0] sm:$0xff] %vm1834, %v5711
  %5847 = vst.msk [vmem:[#allocation5 + $0x1c8] sm:$0xff] %vm1834, %v5713
  %5848 = vst.msk [vmem:[#allocation5 + $0x1d0] sm:$0xff] %vm1834, %v5715
  %5849 = vst.msk [vmem:[#allocation5 + $0x1d8] sm:$0xff] %vm1834, %v5717
  %5850 = vst.msk [vmem:[#allocation5 + $0x1e0] sm:$0xff] %vm1834, %v5719
  %5851 = vst.msk [vmem:[#allocation5 + $0x1e8] sm:$0xff] %vm1834, %v5721
  %5852 = vst.msk [vmem:[#allocation5 + $0x1f0] sm:$0xff] %vm1834, %v5723
  %5853 = vst.msk [vmem:[#allocation5 + $0x1f8] sm:$0xff] %vm1834, %v5725
  %v5854 = vrot.slane %v4274, 2
  %v5855 = vrot.slane %v4275, 2
  %v5856 = vsel %vm951, %v5854, %v5855
  %v5857 = vrot.slane %v4276, 2
  %v5858 = vsel %vm951, %v5855, %v5857
  %v5859 = vrot.slane %v4328, 2
  %v5860 = vrot.slane %v4329, 2
  %v5861 = vsel %vm951, %v5859, %v5860
  %v5862 = vrot.slane %v4330, 2
  %v5863 = vsel %vm951, %v5860, %v5862
  %5864 = vrot.lane.b32.xlu0 %v4917, 20
  %v5865 = vpop.permute.xlu0 %5864
  %5866 = vrot.lane.b32.xlu0 %v4919, 20
  %v5867 = vpop.permute.xlu0 %5866
  %5868 = vrot.lane.b32.xlu0 %v4922, 20
  %v5869 = vpop.permute.xlu0 %5868
  %5870 = vrot.lane.b32.xlu0 %v4924, 20
  %v5871 = vpop.permute.xlu0 %5870
  %5872 = vrot.lane.b32.xlu0 %v4927, 20
  %v5873 = vpop.permute.xlu0 %5872
  %5874 = vrot.lane.b32.xlu0 %v4929, 20
  %v5875 = vpop.permute.xlu0 %5874
  %5876 = vrot.lane.b32.xlu0 %v4932, 20
  %v5877 = vpop.permute.xlu0 %5876
  %5878 = vrot.lane.b32.xlu0 %v4934, 20
  %v5879 = vpop.permute.xlu0 %5878
  %5880 = vrot.lane.b32.xlu0 %v4937, 20
  %v5881 = vpop.permute.xlu0 %5880
  %5882 = vrot.lane.b32.xlu0 %v4939, 20
  %v5883 = vpop.permute.xlu0 %5882
  %5884 = vrot.lane.b32.xlu0 %v4942, 20
  %v5885 = vpop.permute.xlu0 %5884
  %5886 = vrot.lane.b32.xlu0 %v4944, 20
  %v5887 = vpop.permute.xlu0 %5886
  %5888 = vrot.lane.b32.xlu0 %v4947, 20
  %v5889 = vpop.permute.xlu0 %5888
  %5890 = vrot.lane.b32.xlu0 %v4949, 20
  %v5891 = vpop.permute.xlu0 %5890
  %5892 = vrot.lane.b32.xlu0 %v4952, 20
  %v5893 = vpop.permute.xlu0 %5892
  %5894 = vrot.lane.b32.xlu0 %v4954, 20
  %v5895 = vpop.permute.xlu0 %5894
  %5896 = vrot.lane.b32.xlu0 %v4957, 20
  %v5897 = vpop.permute.xlu0 %5896
  %5898 = vrot.lane.b32.xlu0 %v4959, 20
  %v5899 = vpop.permute.xlu0 %5898
  %5900 = vrot.lane.b32.xlu0 %v4962, 20
  %v5901 = vpop.permute.xlu0 %5900
  %5902 = vrot.lane.b32.xlu0 %v4964, 20
  %v5903 = vpop.permute.xlu0 %5902
  %5904 = vrot.lane.b32.xlu0 %v4967, 20
  %v5905 = vpop.permute.xlu0 %5904
  %5906 = vrot.lane.b32.xlu0 %v4969, 20
  %v5907 = vpop.permute.xlu0 %5906
  %5908 = vrot.lane.b32.xlu0 %v4972, 20
  %v5909 = vpop.permute.xlu0 %5908
  %5910 = vrot.lane.b32.xlu0 %v4974, 20
  %v5911 = vpop.permute.xlu0 %5910
  %5912 = vrot.lane.b32.xlu0 %v4977, 20
  %v5913 = vpop.permute.xlu0 %5912
  %5914 = vrot.lane.b32.xlu0 %v4979, 20
  %v5915 = vpop.permute.xlu0 %5914
  %5916 = vrot.lane.b32.xlu0 %v4982, 20
  %v5917 = vpop.permute.xlu0 %5916
  %5918 = vrot.lane.b32.xlu0 %v4984, 20
  %v5919 = vpop.permute.xlu0 %5918
  %5920 = vrot.lane.b32.xlu0 %v4987, 20
  %v5921 = vpop.permute.xlu0 %5920
  %5922 = vrot.lane.b32.xlu0 %v4989, 20
  %v5923 = vpop.permute.xlu0 %5922
  %5924 = vrot.lane.b32.xlu0 %v5856, 20
  %v5925 = vpop.permute.xlu0 %5924
  %5926 = vrot.lane.b32.xlu0 %v5858, 20
  %v5927 = vpop.permute.xlu0 %5926
  %5928 = vrot.lane.b32.xlu0 %v4997, 20
  %v5929 = vpop.permute.xlu0 %5928
  %5930 = vrot.lane.b32.xlu0 %v4999, 20
  %v5931 = vpop.permute.xlu0 %5930
  %5932 = vrot.lane.b32.xlu0 %v5002, 20
  %v5933 = vpop.permute.xlu0 %5932
  %5934 = vrot.lane.b32.xlu0 %v5004, 20
  %v5935 = vpop.permute.xlu0 %5934
  %5936 = vrot.lane.b32.xlu0 %v5007, 20
  %v5937 = vpop.permute.xlu0 %5936
  %5938 = vrot.lane.b32.xlu0 %v5009, 20
  %v5939 = vpop.permute.xlu0 %5938
  %5940 = vrot.lane.b32.xlu0 %v5012, 20
  %v5941 = vpop.permute.xlu0 %5940
  %5942 = vrot.lane.b32.xlu0 %v5014, 20
  %v5943 = vpop.permute.xlu0 %5942
  %5944 = vrot.lane.b32.xlu0 %v5017, 20
  %v5945 = vpop.permute.xlu0 %5944
  %5946 = vrot.lane.b32.xlu0 %v5019, 20
  %v5947 = vpop.permute.xlu0 %5946
  %5948 = vrot.lane.b32.xlu0 %v5022, 20
  %v5949 = vpop.permute.xlu0 %5948
  %5950 = vrot.lane.b32.xlu0 %v5024, 20
  %v5951 = vpop.permute.xlu0 %5950
  %5952 = vrot.lane.b32.xlu0 %v5027, 20
  %v5953 = vpop.permute.xlu0 %5952
  %5954 = vrot.lane.b32.xlu0 %v5029, 20
  %v5955 = vpop.permute.xlu0 %5954
  %5956 = vrot.lane.b32.xlu0 %v5032, 20
  %v5957 = vpop.permute.xlu0 %5956
  %5958 = vrot.lane.b32.xlu0 %v5034, 20
  %v5959 = vpop.permute.xlu0 %5958
  %5960 = vrot.lane.b32.xlu0 %v5037, 20
  %v5961 = vpop.permute.xlu0 %5960
  %5962 = vrot.lane.b32.xlu0 %v5039, 20
  %v5963 = vpop.permute.xlu0 %5962
  %5964 = vrot.lane.b32.xlu0 %v5042, 20
  %v5965 = vpop.permute.xlu0 %5964
  %5966 = vrot.lane.b32.xlu0 %v5044, 20
  %v5967 = vpop.permute.xlu0 %5966
  %5968 = vrot.lane.b32.xlu0 %v5047, 20
  %v5969 = vpop.permute.xlu0 %5968
  %5970 = vrot.lane.b32.xlu0 %v5049, 20
  %v5971 = vpop.permute.xlu0 %5970
  %5972 = vrot.lane.b32.xlu0 %v5052, 20
  %v5973 = vpop.permute.xlu0 %5972
  %5974 = vrot.lane.b32.xlu0 %v5054, 20
  %v5975 = vpop.permute.xlu0 %5974
  %5976 = vrot.lane.b32.xlu0 %v5057, 20
  %v5977 = vpop.permute.xlu0 %5976
  %5978 = vrot.lane.b32.xlu0 %v5059, 20
  %v5979 = vpop.permute.xlu0 %5978
  %5980 = vrot.lane.b32.xlu0 %v5062, 20
  %v5981 = vpop.permute.xlu0 %5980
  %5982 = vrot.lane.b32.xlu0 %v5064, 20
  %v5983 = vpop.permute.xlu0 %5982
  %5984 = vrot.lane.b32.xlu0 %v5067, 20
  %v5985 = vpop.permute.xlu0 %5984
  %5986 = vrot.lane.b32.xlu0 %v5069, 20
  %v5987 = vpop.permute.xlu0 %5986
  %5988 = vrot.lane.b32.xlu0 %v5861, 20
  %v5989 = vpop.permute.xlu0 %5988
  %5990 = vrot.lane.b32.xlu0 %v5863, 20
  %v5991 = vpop.permute.xlu0 %5990
  %6056 = vst.msk [vmem:[#allocation5] sm:$0xff] %vm2101, %v5865
  %6057 = vst.msk [vmem:[#allocation5 + $0x8] sm:$0xff] %vm2101, %v5867
  %6058 = vst.msk [vmem:[#allocation5 + $0x10] sm:$0xff] %vm2101, %v5869
  %6059 = vst.msk [vmem:[#allocation5 + $0x18] sm:$0xff] %vm2101, %v5871
  %6060 = vst.msk [vmem:[#allocation5 + $0x20] sm:$0xff] %vm2101, %v5873
  %6061 = vst.msk [vmem:[#allocation5 + $0x28] sm:$0xff] %vm2101, %v5875
  %6062 = vst.msk [vmem:[#allocation5 + $0x30] sm:$0xff] %vm2101, %v5877
  %6063 = vst.msk [vmem:[#allocation5 + $0x38] sm:$0xff] %vm2101, %v5879
  %6064 = vst.msk [vmem:[#allocation5 + $0x40] sm:$0xff] %vm2101, %v5881
  %6065 = vst.msk [vmem:[#allocation5 + $0x48] sm:$0xff] %vm2101, %v5883
  %6066 = vst.msk [vmem:[#allocation5 + $0x50] sm:$0xff] %vm2101, %v5885
  %6067 = vst.msk [vmem:[#allocation5 + $0x58] sm:$0xff] %vm2101, %v5887
  %6068 = vst.msk [vmem:[#allocation5 + $0x60] sm:$0xff] %vm2101, %v5889
  %6069 = vst.msk [vmem:[#allocation5 + $0x68] sm:$0xff] %vm2101, %v5891
  %6070 = vst.msk [vmem:[#allocation5 + $0x70] sm:$0xff] %vm2101, %v5893
  %6071 = vst.msk [vmem:[#allocation5 + $0x78] sm:$0xff] %vm2101, %v5895
  %6072 = vst.msk [vmem:[#allocation5 + $0x80] sm:$0xff] %vm2101, %v5897
  %6073 = vst.msk [vmem:[#allocation5 + $0x88] sm:$0xff] %vm2101, %v5899
  %6074 = vst.msk [vmem:[#allocation5 + $0x90] sm:$0xff] %vm2101, %v5901
  %6075 = vst.msk [vmem:[#allocation5 + $0x98] sm:$0xff] %vm2101, %v5903
  %6076 = vst.msk [vmem:[#allocation5 + $0xa0] sm:$0xff] %vm2101, %v5905
  %6077 = vst.msk [vmem:[#allocation5 + $0xa8] sm:$0xff] %vm2101, %v5907
  %6078 = vst.msk [vmem:[#allocation5 + $0xb0] sm:$0xff] %vm2101, %v5909
  %6079 = vst.msk [vmem:[#allocation5 + $0xb8] sm:$0xff] %vm2101, %v5911
  %6080 = vst.msk [vmem:[#allocation5 + $0xc0] sm:$0xff] %vm2101, %v5913
  %6081 = vst.msk [vmem:[#allocation5 + $0xc8] sm:$0xff] %vm2101, %v5915
  %6082 = vst.msk [vmem:[#allocation5 + $0xd0] sm:$0xff] %vm2101, %v5917
  %6083 = vst.msk [vmem:[#allocation5 + $0xd8] sm:$0xff] %vm2101, %v5919
  %6084 = vst.msk [vmem:[#allocation5 + $0xe0] sm:$0xff] %vm2101, %v5921
  %6085 = vst.msk [vmem:[#allocation5 + $0xe8] sm:$0xff] %vm2101, %v5923
  %6086 = vst.msk [vmem:[#allocation5 + $0xf0] sm:$0xff] %vm2101, %v5925
  %6087 = vst.msk [vmem:[#allocation5 + $0xf8] sm:$0xff] %vm2101, %v5927
  %6088 = vst.msk [vmem:[#allocation5 + $0x100] sm:$0xff] %vm2101, %v5929
  %6089 = vst.msk [vmem:[#allocation5 + $0x108] sm:$0xff] %vm2101, %v5931
  %6090 = vst.msk [vmem:[#allocation5 + $0x110] sm:$0xff] %vm2101, %v5933
  %6091 = vst.msk [vmem:[#allocation5 + $0x118] sm:$0xff] %vm2101, %v5935
  %6092 = vst.msk [vmem:[#allocation5 + $0x120] sm:$0xff] %vm2101, %v5937
  %6093 = vst.msk [vmem:[#allocation5 + $0x128] sm:$0xff] %vm2101, %v5939
  %6094 = vst.msk [vmem:[#allocation5 + $0x130] sm:$0xff] %vm2101, %v5941
  %6095 = vst.msk [vmem:[#allocation5 + $0x138] sm:$0xff] %vm2101, %v5943
  %6096 = vst.msk [vmem:[#allocation5 + $0x140] sm:$0xff] %vm2101, %v5945
  %6097 = vst.msk [vmem:[#allocation5 + $0x148] sm:$0xff] %vm2101, %v5947
  %6098 = vst.msk [vmem:[#allocation5 + $0x150] sm:$0xff] %vm2101, %v5949
  %6099 = vst.msk [vmem:[#allocation5 + $0x158] sm:$0xff] %vm2101, %v5951
  %6100 = vst.msk [vmem:[#allocation5 + $0x160] sm:$0xff] %vm2101, %v5953
  %6101 = vst.msk [vmem:[#allocation5 + $0x168] sm:$0xff] %vm2101, %v5955
  %6102 = vst.msk [vmem:[#allocation5 + $0x170] sm:$0xff] %vm2101, %v5957
  %6103 = vst.msk [vmem:[#allocation5 + $0x178] sm:$0xff] %vm2101, %v5959
  %6104 = vst.msk [vmem:[#allocation5 + $0x180] sm:$0xff] %vm2101, %v5961
  %6105 = vst.msk [vmem:[#allocation5 + $0x188] sm:$0xff] %vm2101, %v5963
  %6106 = vst.msk [vmem:[#allocation5 + $0x190] sm:$0xff] %vm2101, %v5965
  %6107 = vst.msk [vmem:[#allocation5 + $0x198] sm:$0xff] %vm2101, %v5967
  %6108 = vst.msk [vmem:[#allocation5 + $0x1a0] sm:$0xff] %vm2101, %v5969
  %6109 = vst.msk [vmem:[#allocation5 + $0x1a8] sm:$0xff] %vm2101, %v5971
  %6110 = vst.msk [vmem:[#allocation5 + $0x1b0] sm:$0xff] %vm2101, %v5973
  %6111 = vst.msk [vmem:[#allocation5 + $0x1b8] sm:$0xff] %vm2101, %v5975
  %6112 = vst.msk [vmem:[#allocation5 + $0x1c0] sm:$0xff] %vm2101, %v5977
  %6113 = vst.msk [vmem:[#allocation5 + $0x1c8] sm:$0xff] %vm2101, %v5979
  %6114 = vst.msk [vmem:[#allocation5 + $0x1d0] sm:$0xff] %vm2101, %v5981
  %6115 = vst.msk [vmem:[#allocation5 + $0x1d8] sm:$0xff] %vm2101, %v5983
  %6116 = vst.msk [vmem:[#allocation5 + $0x1e0] sm:$0xff] %vm2101, %v5985
  %6117 = vst.msk [vmem:[#allocation5 + $0x1e8] sm:$0xff] %vm2101, %v5987
  %6118 = vst.msk [vmem:[#allocation5 + $0x1f0] sm:$0xff] %vm2101, %v5989
  %6119 = vst.msk [vmem:[#allocation5 + $0x1f8] sm:$0xff] %vm2101, %v5991
  %6124 = vrot.lane.b32.xlu0 %v4232, 24
  %v6125 = vpop.permute.xlu0 %6124
  %6126 = vrot.lane.b32.xlu0 %v4233, 24
  %v6127 = vpop.permute.xlu0 %6126
  %6128 = vrot.lane.b32.xlu0 %v4235, 24
  %v6129 = vpop.permute.xlu0 %6128
  %6130 = vrot.lane.b32.xlu0 %v4236, 24
  %v6131 = vpop.permute.xlu0 %6130
  %6132 = vrot.lane.b32.xlu0 %v4238, 24
  %v6133 = vpop.permute.xlu0 %6132
  %6134 = vrot.lane.b32.xlu0 %v4239, 24
  %v6135 = vpop.permute.xlu0 %6134
  %6136 = vrot.lane.b32.xlu0 %v4241, 24
  %v6137 = vpop.permute.xlu0 %6136
  %6138 = vrot.lane.b32.xlu0 %v4242, 24
  %v6139 = vpop.permute.xlu0 %6138
  %6140 = vrot.lane.b32.xlu0 %v4244, 24
  %v6141 = vpop.permute.xlu0 %6140
  %6142 = vrot.lane.b32.xlu0 %v4245, 24
  %v6143 = vpop.permute.xlu0 %6142
  %6144 = vrot.lane.b32.xlu0 %v4247, 24
  %v6145 = vpop.permute.xlu0 %6144
  %6146 = vrot.lane.b32.xlu0 %v4248, 24
  %v6147 = vpop.permute.xlu0 %6146
  %6148 = vrot.lane.b32.xlu0 %v4250, 24
  %v6149 = vpop.permute.xlu0 %6148
  %6150 = vrot.lane.b32.xlu0 %v4251, 24
  %v6151 = vpop.permute.xlu0 %6150
  %6152 = vrot.lane.b32.xlu0 %v4253, 24
  %v6153 = vpop.permute.xlu0 %6152
  %6154 = vrot.lane.b32.xlu0 %v4254, 24
  %v6155 = vpop.permute.xlu0 %6154
  %6156 = vrot.lane.b32.xlu0 %v4256, 24
  %v6157 = vpop.permute.xlu0 %6156
  %6158 = vrot.lane.b32.xlu0 %v4257, 24
  %v6159 = vpop.permute.xlu0 %6158
  %6160 = vrot.lane.b32.xlu0 %v4259, 24
  %v6161 = vpop.permute.xlu0 %6160
  %6162 = vrot.lane.b32.xlu0 %v4260, 24
  %v6163 = vpop.permute.xlu0 %6162
  %6164 = vrot.lane.b32.xlu0 %v4262, 24
  %v6165 = vpop.permute.xlu0 %6164
  %6166 = vrot.lane.b32.xlu0 %v4263, 24
  %v6167 = vpop.permute.xlu0 %6166
  %6168 = vrot.lane.b32.xlu0 %v4265, 24
  %v6169 = vpop.permute.xlu0 %6168
  %6170 = vrot.lane.b32.xlu0 %v4266, 24
  %v6171 = vpop.permute.xlu0 %6170
  %6172 = vrot.lane.b32.xlu0 %v4268, 24
  %v6173 = vpop.permute.xlu0 %6172
  %6174 = vrot.lane.b32.xlu0 %v4269, 24
  %v6175 = vpop.permute.xlu0 %6174
  %6176 = vrot.lane.b32.xlu0 %v4271, 24
  %v6177 = vpop.permute.xlu0 %6176
  %6178 = vrot.lane.b32.xlu0 %v4272, 24
  %v6179 = vpop.permute.xlu0 %6178
  %6180 = vrot.lane.b32.xlu0 %v4274, 24
  %v6181 = vpop.permute.xlu0 %6180
  %6182 = vrot.lane.b32.xlu0 %v4275, 24
  %v6183 = vpop.permute.xlu0 %6182
  %6184 = vrot.lane.b32.xlu0 %v4277, 24
  %v6185 = vpop.permute.xlu0 %6184
  %6186 = vrot.lane.b32.xlu0 %v4278, 24
  %v6187 = vpop.permute.xlu0 %6186
  %6188 = vrot.lane.b32.xlu0 %v4286, 24
  %v6189 = vpop.permute.xlu0 %6188
  %6190 = vrot.lane.b32.xlu0 %v4287, 24
  %v6191 = vpop.permute.xlu0 %6190
  %6192 = vrot.lane.b32.xlu0 %v4289, 24
  %v6193 = vpop.permute.xlu0 %6192
  %6194 = vrot.lane.b32.xlu0 %v4290, 24
  %v6195 = vpop.permute.xlu0 %6194
  %6196 = vrot.lane.b32.xlu0 %v4292, 24
  %v6197 = vpop.permute.xlu0 %6196
  %6198 = vrot.lane.b32.xlu0 %v4293, 24
  %v6199 = vpop.permute.xlu0 %6198
  %6200 = vrot.lane.b32.xlu0 %v4295, 24
  %v6201 = vpop.permute.xlu0 %6200
  %6202 = vrot.lane.b32.xlu0 %v4296, 24
  %v6203 = vpop.permute.xlu0 %6202
  %6204 = vrot.lane.b32.xlu0 %v4298, 24
  %v6205 = vpop.permute.xlu0 %6204
  %6206 = vrot.lane.b32.xlu0 %v4299, 24
  %v6207 = vpop.permute.xlu0 %6206
  %6208 = vrot.lane.b32.xlu0 %v4301, 24
  %v6209 = vpop.permute.xlu0 %6208
  %6210 = vrot.lane.b32.xlu0 %v4302, 24
  %v6211 = vpop.permute.xlu0 %6210
  %6212 = vrot.lane.b32.xlu0 %v4304, 24
  %v6213 = vpop.permute.xlu0 %6212
  %6214 = vrot.lane.b32.xlu0 %v4305, 24
  %v6215 = vpop.permute.xlu0 %6214
  %6216 = vrot.lane.b32.xlu0 %v4307, 24
  %v6217 = vpop.permute.xlu0 %6216
  %6218 = vrot.lane.b32.xlu0 %v4308, 24
  %v6219 = vpop.permute.xlu0 %6218
  %6220 = vrot.lane.b32.xlu0 %v4310, 24
  %v6221 = vpop.permute.xlu0 %6220
  %6222 = vrot.lane.b32.xlu0 %v4311, 24
  %v6223 = vpop.permute.xlu0 %6222
  %6224 = vrot.lane.b32.xlu0 %v4313, 24
  %v6225 = vpop.permute.xlu0 %6224
  %6226 = vrot.lane.b32.xlu0 %v4314, 24
  %v6227 = vpop.permute.xlu0 %6226
  %6228 = vrot.lane.b32.xlu0 %v4316, 24
  %v6229 = vpop.permute.xlu0 %6228
  %6230 = vrot.lane.b32.xlu0 %v4317, 24
  %v6231 = vpop.permute.xlu0 %6230
  %6232 = vrot.lane.b32.xlu0 %v4319, 24
  %v6233 = vpop.permute.xlu0 %6232
  %6234 = vrot.lane.b32.xlu0 %v4320, 24
  %v6235 = vpop.permute.xlu0 %6234
  %6236 = vrot.lane.b32.xlu0 %v4322, 24
  %v6237 = vpop.permute.xlu0 %6236
  %6238 = vrot.lane.b32.xlu0 %v4323, 24
  %v6239 = vpop.permute.xlu0 %6238
  %6240 = vrot.lane.b32.xlu0 %v4325, 24
  %v6241 = vpop.permute.xlu0 %6240
  %6242 = vrot.lane.b32.xlu0 %v4326, 24
  %v6243 = vpop.permute.xlu0 %6242
  %6244 = vrot.lane.b32.xlu0 %v4328, 24
  %v6245 = vpop.permute.xlu0 %6244
  %6246 = vrot.lane.b32.xlu0 %v4329, 24
  %v6247 = vpop.permute.xlu0 %6246
  %6248 = vrot.lane.b32.xlu0 %v4331, 24
  %v6249 = vpop.permute.xlu0 %6248
  %6250 = vrot.lane.b32.xlu0 %v4332, 24
  %v6251 = vpop.permute.xlu0 %6250
  %6316 = vst.msk [vmem:[#allocation5] sm:$0xff] %vm2362, %v6125
  %6317 = vst.msk [vmem:[#allocation5 + $0x8] sm:$0xff] %vm2362, %v6127
  %6318 = vst.msk [vmem:[#allocation5 + $0x10] sm:$0xff] %vm2362, %v6129
  %6319 = vst.msk [vmem:[#allocation5 + $0x18] sm:$0xff] %vm2362, %v6131
  %6320 = vst.msk [vmem:[#allocation5 + $0x20] sm:$0xff] %vm2362, %v6133
  %6321 = vst.msk [vmem:[#allocation5 + $0x28] sm:$0xff] %vm2362, %v6135
  %6322 = vst.msk [vmem:[#allocation5 + $0x30] sm:$0xff] %vm2362, %v6137
  %6323 = vst.msk [vmem:[#allocation5 + $0x38] sm:$0xff] %vm2362, %v6139
  %6324 = vst.msk [vmem:[#allocation5 + $0x40] sm:$0xff] %vm2362, %v6141
  %6325 = vst.msk [vmem:[#allocation5 + $0x48] sm:$0xff] %vm2362, %v6143
  %6326 = vst.msk [vmem:[#allocation5 + $0x50] sm:$0xff] %vm2362, %v6145
  %6327 = vst.msk [vmem:[#allocation5 + $0x58] sm:$0xff] %vm2362, %v6147
  %6328 = vst.msk [vmem:[#allocation5 + $0x60] sm:$0xff] %vm2362, %v6149
  %6329 = vst.msk [vmem:[#allocation5 + $0x68] sm:$0xff] %vm2362, %v6151
  %6330 = vst.msk [vmem:[#allocation5 + $0x70] sm:$0xff] %vm2362, %v6153
  %6331 = vst.msk [vmem:[#allocation5 + $0x78] sm:$0xff] %vm2362, %v6155
  %6332 = vst.msk [vmem:[#allocation5 + $0x80] sm:$0xff] %vm2362, %v6157
  %6333 = vst.msk [vmem:[#allocation5 + $0x88] sm:$0xff] %vm2362, %v6159
  %6334 = vst.msk [vmem:[#allocation5 + $0x90] sm:$0xff] %vm2362, %v6161
  %6335 = vst.msk [vmem:[#allocation5 + $0x98] sm:$0xff] %vm2362, %v6163
  %6336 = vst.msk [vmem:[#allocation5 + $0xa0] sm:$0xff] %vm2362, %v6165
  %6337 = vst.msk [vmem:[#allocation5 + $0xa8] sm:$0xff] %vm2362, %v6167
  %6338 = vst.msk [vmem:[#allocation5 + $0xb0] sm:$0xff] %vm2362, %v6169
  %6339 = vst.msk [vmem:[#allocation5 + $0xb8] sm:$0xff] %vm2362, %v6171
  %6340 = vst.msk [vmem:[#allocation5 + $0xc0] sm:$0xff] %vm2362, %v6173
  %6341 = vst.msk [vmem:[#allocation5 + $0xc8] sm:$0xff] %vm2362, %v6175
  %6342 = vst.msk [vmem:[#allocation5 + $0xd0] sm:$0xff] %vm2362, %v6177
  %6343 = vst.msk [vmem:[#allocation5 + $0xd8] sm:$0xff] %vm2362, %v6179
  %6344 = vst.msk [vmem:[#allocation5 + $0xe0] sm:$0xff] %vm2362, %v6181
  %6345 = vst.msk [vmem:[#allocation5 + $0xe8] sm:$0xff] %vm2362, %v6183
  %6346 = vst.msk [vmem:[#allocation5 + $0xf0] sm:$0xff] %vm2362, %v6185
  %6347 = vst.msk [vmem:[#allocation5 + $0xf8] sm:$0xff] %vm2362, %v6187
  %6348 = vst.msk [vmem:[#allocation5 + $0x100] sm:$0xff] %vm2362, %v6189
  %6349 = vst.msk [vmem:[#allocation5 + $0x108] sm:$0xff] %vm2362, %v6191
  %6350 = vst.msk [vmem:[#allocation5 + $0x110] sm:$0xff] %vm2362, %v6193
  %6351 = vst.msk [vmem:[#allocation5 + $0x118] sm:$0xff] %vm2362, %v6195
  %6352 = vst.msk [vmem:[#allocation5 + $0x120] sm:$0xff] %vm2362, %v6197
  %6353 = vst.msk [vmem:[#allocation5 + $0x128] sm:$0xff] %vm2362, %v6199
  %6354 = vst.msk [vmem:[#allocation5 + $0x130] sm:$0xff] %vm2362, %v6201
  %6355 = vst.msk [vmem:[#allocation5 + $0x138] sm:$0xff] %vm2362, %v6203
  %6356 = vst.msk [vmem:[#allocation5 + $0x140] sm:$0xff] %vm2362, %v6205
  %6357 = vst.msk [vmem:[#allocation5 + $0x148] sm:$0xff] %vm2362, %v6207
  %6358 = vst.msk [vmem:[#allocation5 + $0x150] sm:$0xff] %vm2362, %v6209
  %6359 = vst.msk [vmem:[#allocation5 + $0x158] sm:$0xff] %vm2362, %v6211
  %6360 = vst.msk [vmem:[#allocation5 + $0x160] sm:$0xff] %vm2362, %v6213
  %6361 = vst.msk [vmem:[#allocation5 + $0x168] sm:$0xff] %vm2362, %v6215
  %6362 = vst.msk [vmem:[#allocation5 + $0x170] sm:$0xff] %vm2362, %v6217
  %6363 = vst.msk [vmem:[#allocation5 + $0x178] sm:$0xff] %vm2362, %v6219
  %6364 = vst.msk [vmem:[#allocation5 + $0x180] sm:$0xff] %vm2362, %v6221
  %6365 = vst.msk [vmem:[#allocation5 + $0x188] sm:$0xff] %vm2362, %v6223
  %6366 = vst.msk [vmem:[#allocation5 + $0x190] sm:$0xff] %vm2362, %v6225
  %6367 = vst.msk [vmem:[#allocation5 + $0x198] sm:$0xff] %vm2362, %v6227
  %6368 = vst.msk [vmem:[#allocation5 + $0x1a0] sm:$0xff] %vm2362, %v6229
  %6369 = vst.msk [vmem:[#allocation5 + $0x1a8] sm:$0xff] %vm2362, %v6231
  %6370 = vst.msk [vmem:[#allocation5 + $0x1b0] sm:$0xff] %vm2362, %v6233
  %6371 = vst.msk [vmem:[#allocation5 + $0x1b8] sm:$0xff] %vm2362, %v6235
  %6372 = vst.msk [vmem:[#allocation5 + $0x1c0] sm:$0xff] %vm2362, %v6237
  %6373 = vst.msk [vmem:[#allocation5 + $0x1c8] sm:$0xff] %vm2362, %v6239
  %6374 = vst.msk [vmem:[#allocation5 + $0x1d0] sm:$0xff] %vm2362, %v6241
  %6375 = vst.msk [vmem:[#allocation5 + $0x1d8] sm:$0xff] %vm2362, %v6243
  %6376 = vst.msk [vmem:[#allocation5 + $0x1e0] sm:$0xff] %vm2362, %v6245
  %6377 = vst.msk [vmem:[#allocation5 + $0x1e8] sm:$0xff] %vm2362, %v6247
  %6378 = vst.msk [vmem:[#allocation5 + $0x1f0] sm:$0xff] %vm2362, %v6249
  %6379 = vst.msk [vmem:[#allocation5 + $0x1f8] sm:$0xff] %vm2362, %v6251
  %v6382 = vrot.slane %v4277, 1
  %v6383 = vrot.slane %v4278, 1
  %v6384 = vsel %vm533, %v6382, %v6383
  %v6385 = vrot.slane %v4279, 1
  %v6386 = vsel %vm533, %v6383, %v6385
  %v6387 = vrot.slane %v4331, 1
  %v6388 = vrot.slane %v4332, 1
  %v6389 = vsel %vm533, %v6387, %v6388
  %v6390 = vrot.slane %v4333, 1
  %v6391 = vsel %vm533, %v6388, %v6390
  %6392 = vrot.lane.b32.xlu0 %v4506, 28
  %v6393 = vpop.permute.xlu0 %6392
  %6394 = vrot.lane.b32.xlu0 %v4508, 28
  %v6395 = vpop.permute.xlu0 %6394
  %6396 = vrot.lane.b32.xlu0 %v4511, 28
  %v6397 = vpop.permute.xlu0 %6396
  %6398 = vrot.lane.b32.xlu0 %v4513, 28
  %v6399 = vpop.permute.xlu0 %6398
  %6400 = vrot.lane.b32.xlu0 %v4516, 28
  %v6401 = vpop.permute.xlu0 %6400
  %6402 = vrot.lane.b32.xlu0 %v4518, 28
  %v6403 = vpop.permute.xlu0 %6402
  %6404 = vrot.lane.b32.xlu0 %v4521, 28
  %v6405 = vpop.permute.xlu0 %6404
  %6406 = vrot.lane.b32.xlu0 %v4523, 28
  %v6407 = vpop.permute.xlu0 %6406
  %6408 = vrot.lane.b32.xlu0 %v4526, 28
  %v6409 = vpop.permute.xlu0 %6408
  %6410 = vrot.lane.b32.xlu0 %v4528, 28
  %v6411 = vpop.permute.xlu0 %6410
  %6412 = vrot.lane.b32.xlu0 %v4531, 28
  %v6413 = vpop.permute.xlu0 %6412
  %6414 = vrot.lane.b32.xlu0 %v4533, 28
  %v6415 = vpop.permute.xlu0 %6414
  %6416 = vrot.lane.b32.xlu0 %v4536, 28
  %v6417 = vpop.permute.xlu0 %6416
  %6418 = vrot.lane.b32.xlu0 %v4538, 28
  %v6419 = vpop.permute.xlu0 %6418
  %6420 = vrot.lane.b32.xlu0 %v4541, 28
  %v6421 = vpop.permute.xlu0 %6420
  %6422 = vrot.lane.b32.xlu0 %v4543, 28
  %v6423 = vpop.permute.xlu0 %6422
  %6424 = vrot.lane.b32.xlu0 %v4546, 28
  %v6425 = vpop.permute.xlu0 %6424
  %6426 = vrot.lane.b32.xlu0 %v4548, 28
  %v6427 = vpop.permute.xlu0 %6426
  %6428 = vrot.lane.b32.xlu0 %v4551, 28
  %v6429 = vpop.permute.xlu0 %6428
  %6430 = vrot.lane.b32.xlu0 %v4553, 28
  %v6431 = vpop.permute.xlu0 %6430
  %6432 = vrot.lane.b32.xlu0 %v4556, 28
  %v6433 = vpop.permute.xlu0 %6432
  %6434 = vrot.lane.b32.xlu0 %v4558, 28
  %v6435 = vpop.permute.xlu0 %6434
  %6436 = vrot.lane.b32.xlu0 %v4561, 28
  %v6437 = vpop.permute.xlu0 %6436
  %6438 = vrot.lane.b32.xlu0 %v4563, 28
  %v6439 = vpop.permute.xlu0 %6438
  %6440 = vrot.lane.b32.xlu0 %v4566, 28
  %v6441 = vpop.permute.xlu0 %6440
  %6442 = vrot.lane.b32.xlu0 %v4568, 28
  %v6443 = vpop.permute.xlu0 %6442
  %6444 = vrot.lane.b32.xlu0 %v4571, 28
  %v6445 = vpop.permute.xlu0 %6444
  %6446 = vrot.lane.b32.xlu0 %v4573, 28
  %v6447 = vpop.permute.xlu0 %6446
  %6448 = vrot.lane.b32.xlu0 %v5590, 28
  %v6449 = vpop.permute.xlu0 %6448
  %6450 = vrot.lane.b32.xlu0 %v5592, 28
  %v6451 = vpop.permute.xlu0 %6450
  %6452 = vrot.lane.b32.xlu0 %v6384, 28
  %v6453 = vpop.permute.xlu0 %6452
  %6454 = vrot.lane.b32.xlu0 %v6386, 28
  %v6455 = vpop.permute.xlu0 %6454
  %6456 = vrot.lane.b32.xlu0 %v4586, 28
  %v6457 = vpop.permute.xlu0 %6456
  %6458 = vrot.lane.b32.xlu0 %v4588, 28
  %v6459 = vpop.permute.xlu0 %6458
  %6460 = vrot.lane.b32.xlu0 %v4591, 28
  %v6461 = vpop.permute.xlu0 %6460
  %6462 = vrot.lane.b32.xlu0 %v4593, 28
  %v6463 = vpop.permute.xlu0 %6462
  %6464 = vrot.lane.b32.xlu0 %v4596, 28
  %v6465 = vpop.permute.xlu0 %6464
  %6466 = vrot.lane.b32.xlu0 %v4598, 28
  %v6467 = vpop.permute.xlu0 %6466
  %6468 = vrot.lane.b32.xlu0 %v4601, 28
  %v6469 = vpop.permute.xlu0 %6468
  %6470 = vrot.lane.b32.xlu0 %v4603, 28
  %v6471 = vpop.permute.xlu0 %6470
  %6472 = vrot.lane.b32.xlu0 %v4606, 28
  %v6473 = vpop.permute.xlu0 %6472
  %6474 = vrot.lane.b32.xlu0 %v4608, 28
  %v6475 = vpop.permute.xlu0 %6474
  %6476 = vrot.lane.b32.xlu0 %v4611, 28
  %v6477 = vpop.permute.xlu0 %6476
  %6478 = vrot.lane.b32.xlu0 %v4613, 28
  %v6479 = vpop.permute.xlu0 %6478
  %6480 = vrot.lane.b32.xlu0 %v4616, 28
  %v6481 = vpop.permute.xlu0 %6480
  %6482 = vrot.lane.b32.xlu0 %v4618, 28
  %v6483 = vpop.permute.xlu0 %6482
  %6484 = vrot.lane.b32.xlu0 %v4621, 28
  %v6485 = vpop.permute.xlu0 %6484
  %6486 = vrot.lane.b32.xlu0 %v4623, 28
  %v6487 = vpop.permute.xlu0 %6486
  %6488 = vrot.lane.b32.xlu0 %v4626, 28
  %v6489 = vpop.permute.xlu0 %6488
  %6490 = vrot.lane.b32.xlu0 %v4628, 28
  %v6491 = vpop.permute.xlu0 %6490
  %6492 = vrot.lane.b32.xlu0 %v4631, 28
  %v6493 = vpop.permute.xlu0 %6492
  %6494 = vrot.lane.b32.xlu0 %v4633, 28
  %v6495 = vpop.permute.xlu0 %6494
  %6496 = vrot.lane.b32.xlu0 %v4636, 28
  %v6497 = vpop.permute.xlu0 %6496
  %6498 = vrot.lane.b32.xlu0 %v4638, 28
  %v6499 = vpop.permute.xlu0 %6498
  %6500 = vrot.lane.b32.xlu0 %v4641, 28
  %v6501 = vpop.permute.xlu0 %6500
  %6502 = vrot.lane.b32.xlu0 %v4643, 28
  %v6503 = vpop.permute.xlu0 %6502
  %6504 = vrot.lane.b32.xlu0 %v4646, 28
  %v6505 = vpop.permute.xlu0 %6504
  %6506 = vrot.lane.b32.xlu0 %v4648, 28
  %v6507 = vpop.permute.xlu0 %6506
  %6508 = vrot.lane.b32.xlu0 %v4651, 28
  %v6509 = vpop.permute.xlu0 %6508
  %6510 = vrot.lane.b32.xlu0 %v4653, 28
  %v6511 = vpop.permute.xlu0 %6510
  %6512 = vrot.lane.b32.xlu0 %v5595, 28
  %v6513 = vpop.permute.xlu0 %6512
  %6514 = vrot.lane.b32.xlu0 %v5597, 28
  %v6515 = vpop.permute.xlu0 %6514
  %6516 = vrot.lane.b32.xlu0 %v6389, 28
  %v6517 = vpop.permute.xlu0 %6516
  %6518 = vrot.lane.b32.xlu0 %v6391, 28
  %v6519 = vpop.permute.xlu0 %6518
  %6584 = vst.msk [vmem:[#allocation5] sm:$0xff] %vm2631, %v6393
  %6585 = vst.msk [vmem:[#allocation5 + $0x8] sm:$0xff] %vm2631, %v6395
  %6586 = vst.msk [vmem:[#allocation5 + $0x10] sm:$0xff] %vm2631, %v6397
  %6587 = vst.msk [vmem:[#allocation5 + $0x18] sm:$0xff] %vm2631, %v6399
  %6588 = vst.msk [vmem:[#allocation5 + $0x20] sm:$0xff] %vm2631, %v6401
  %6589 = vst.msk [vmem:[#allocation5 + $0x28] sm:$0xff] %vm2631, %v6403
  %6590 = vst.msk [vmem:[#allocation5 + $0x30] sm:$0xff] %vm2631, %v6405
  %6591 = vst.msk [vmem:[#allocation5 + $0x38] sm:$0xff] %vm2631, %v6407
  %6592 = vst.msk [vmem:[#allocation5 + $0x40] sm:$0xff] %vm2631, %v6409
  %6593 = vst.msk [vmem:[#allocation5 + $0x48] sm:$0xff] %vm2631, %v6411
  %6594 = vst.msk [vmem:[#allocation5 + $0x50] sm:$0xff] %vm2631, %v6413
  %6595 = vst.msk [vmem:[#allocation5 + $0x58] sm:$0xff] %vm2631, %v6415
  %6596 = vst.msk [vmem:[#allocation5 + $0x60] sm:$0xff] %vm2631, %v6417
  %6597 = vst.msk [vmem:[#allocation5 + $0x68] sm:$0xff] %vm2631, %v6419
  %6598 = vst.msk [vmem:[#allocation5 + $0x70] sm:$0xff] %vm2631, %v6421
  %6599 = vst.msk [vmem:[#allocation5 + $0x78] sm:$0xff] %vm2631, %v6423
  %6600 = vst.msk [vmem:[#allocation5 + $0x80] sm:$0xff] %vm2631, %v6425
  %6601 = vst.msk [vmem:[#allocation5 + $0x88] sm:$0xff] %vm2631, %v6427
  %6602 = vst.msk [vmem:[#allocation5 + $0x90] sm:$0xff] %vm2631, %v6429
  %6603 = vst.msk [vmem:[#allocation5 + $0x98] sm:$0xff] %vm2631, %v6431
  %6604 = vst.msk [vmem:[#allocation5 + $0xa0] sm:$0xff] %vm2631, %v6433
  %6605 = vst.msk [vmem:[#allocation5 + $0xa8] sm:$0xff] %vm2631, %v6435
  %6606 = vst.msk [vmem:[#allocation5 + $0xb0] sm:$0xff] %vm2631, %v6437
  %6607 = vst.msk [vmem:[#allocation5 + $0xb8] sm:$0xff] %vm2631, %v6439
  %6608 = vst.msk [vmem:[#allocation5 + $0xc0] sm:$0xff] %vm2631, %v6441
  %6609 = vst.msk [vmem:[#allocation5 + $0xc8] sm:$0xff] %vm2631, %v6443
  %6610 = vst.msk [vmem:[#allocation5 + $0xd0] sm:$0xff] %vm2631, %v6445
  %6611 = vst.msk [vmem:[#allocation5 + $0xd8] sm:$0xff] %vm2631, %v6447
  %6612 = vst.msk [vmem:[#allocation5 + $0xe0] sm:$0xff] %vm2631, %v6449
  %6613 = vst.msk [vmem:[#allocation5 + $0xe8] sm:$0xff] %vm2631, %v6451
  %6614 = vst.msk [vmem:[#allocation5 + $0xf0] sm:$0xff] %vm2631, %v6453
  %6615 = vst.msk [vmem:[#allocation5 + $0xf8] sm:$0xff] %vm2631, %v6455
  %6616 = vst.msk [vmem:[#allocation5 + $0x100] sm:$0xff] %vm2631, %v6457
  %6617 = vst.msk [vmem:[#allocation5 + $0x108] sm:$0xff] %vm2631, %v6459
  %6618 = vst.msk [vmem:[#allocation5 + $0x110] sm:$0xff] %vm2631, %v6461
  %6619 = vst.msk [vmem:[#allocation5 + $0x118] sm:$0xff] %vm2631, %v6463
  %6620 = vst.msk [vmem:[#allocation5 + $0x120] sm:$0xff] %vm2631, %v6465
  %6621 = vst.msk [vmem:[#allocation5 + $0x128] sm:$0xff] %vm2631, %v6467
  %6622 = vst.msk [vmem:[#allocation5 + $0x130] sm:$0xff] %vm2631, %v6469
  %6623 = vst.msk [vmem:[#allocation5 + $0x138] sm:$0xff] %vm2631, %v6471
  %6624 = vst.msk [vmem:[#allocation5 + $0x140] sm:$0xff] %vm2631, %v6473
  %6625 = vst.msk [vmem:[#allocation5 + $0x148] sm:$0xff] %vm2631, %v6475
  %6626 = vst.msk [vmem:[#allocation5 + $0x150] sm:$0xff] %vm2631, %v6477
  %6627 = vst.msk [vmem:[#allocation5 + $0x158] sm:$0xff] %vm2631, %v6479
  %6628 = vst.msk [vmem:[#allocation5 + $0x160] sm:$0xff] %vm2631, %v6481
  %6629 = vst.msk [vmem:[#allocation5 + $0x168] sm:$0xff] %vm2631, %v6483
  %6630 = vst.msk [vmem:[#allocation5 + $0x170] sm:$0xff] %vm2631, %v6485
  %6631 = vst.msk [vmem:[#allocation5 + $0x178] sm:$0xff] %vm2631, %v6487
  %6632 = vst.msk [vmem:[#allocation5 + $0x180] sm:$0xff] %vm2631, %v6489
  %6633 = vst.msk [vmem:[#allocation5 + $0x188] sm:$0xff] %vm2631, %v6491
  %6634 = vst.msk [vmem:[#allocation5 + $0x190] sm:$0xff] %vm2631, %v6493
  %6635 = vst.msk [vmem:[#allocation5 + $0x198] sm:$0xff] %vm2631, %v6495
  %6636 = vst.msk [vmem:[#allocation5 + $0x1a0] sm:$0xff] %vm2631, %v6497
  %6637 = vst.msk [vmem:[#allocation5 + $0x1a8] sm:$0xff] %vm2631, %v6499
  %6638 = vst.msk [vmem:[#allocation5 + $0x1b0] sm:$0xff] %vm2631, %v6501
  %6639 = vst.msk [vmem:[#allocation5 + $0x1b8] sm:$0xff] %vm2631, %v6503
  %6640 = vst.msk [vmem:[#allocation5 + $0x1c0] sm:$0xff] %vm2631, %v6505
  %6641 = vst.msk [vmem:[#allocation5 + $0x1c8] sm:$0xff] %vm2631, %v6507
  %6642 = vst.msk [vmem:[#allocation5 + $0x1d0] sm:$0xff] %vm2631, %v6509
  %6643 = vst.msk [vmem:[#allocation5 + $0x1d8] sm:$0xff] %vm2631, %v6511
  %6644 = vst.msk [vmem:[#allocation5 + $0x1e0] sm:$0xff] %vm2631, %v6513
  %6645 = vst.msk [vmem:[#allocation5 + $0x1e8] sm:$0xff] %vm2631, %v6515
  %6646 = vst.msk [vmem:[#allocation5 + $0x1f0] sm:$0xff] %vm2631, %v6517
  %6647 = vst.msk [vmem:[#allocation5 + $0x1f8] sm:$0xff] %vm2631, %v6519
  %v6648 = vrot.slane %v4277, 2
  %v6649 = vrot.slane %v4278, 2
  %v6650 = vsel %vm951, %v6648, %v6649
  %v6651 = vrot.slane %v4279, 2
  %v6652 = vsel %vm951, %v6649, %v6651
  %v6653 = vrot.slane %v4331, 2
  %v6654 = vrot.slane %v4332, 2
  %v6655 = vsel %vm951, %v6653, %v6654
  %v6656 = vrot.slane %v4333, 2
  %v6657 = vsel %vm951, %v6654, %v6656
  %6658 = vrot.lane.b32.xlu0 %v4922, 32
  %v6659 = vpop.permute.xlu0 %6658
  %6660 = vrot.lane.b32.xlu0 %v4924, 32
  %v6661 = vpop.permute.xlu0 %6660
  %6662 = vrot.lane.b32.xlu0 %v4927, 32
  %v6663 = vpop.permute.xlu0 %6662
  %6664 = vrot.lane.b32.xlu0 %v4929, 32
  %v6665 = vpop.permute.xlu0 %6664
  %6666 = vrot.lane.b32.xlu0 %v4932, 32
  %v6667 = vpop.permute.xlu0 %6666
  %6668 = vrot.lane.b32.xlu0 %v4934, 32
  %v6669 = vpop.permute.xlu0 %6668
  %6670 = vrot.lane.b32.xlu0 %v4937, 32
  %v6671 = vpop.permute.xlu0 %6670
  %6672 = vrot.lane.b32.xlu0 %v4939, 32
  %v6673 = vpop.permute.xlu0 %6672
  %6674 = vrot.lane.b32.xlu0 %v4942, 32
  %v6675 = vpop.permute.xlu0 %6674
  %6676 = vrot.lane.b32.xlu0 %v4944, 32
  %v6677 = vpop.permute.xlu0 %6676
  %6678 = vrot.lane.b32.xlu0 %v4947, 32
  %v6679 = vpop.permute.xlu0 %6678
  %6680 = vrot.lane.b32.xlu0 %v4949, 32
  %v6681 = vpop.permute.xlu0 %6680
  %6682 = vrot.lane.b32.xlu0 %v4952, 32
  %v6683 = vpop.permute.xlu0 %6682
  %6684 = vrot.lane.b32.xlu0 %v4954, 32
  %v6685 = vpop.permute.xlu0 %6684
  %6686 = vrot.lane.b32.xlu0 %v4957, 32
  %v6687 = vpop.permute.xlu0 %6686
  %6688 = vrot.lane.b32.xlu0 %v4959, 32
  %v6689 = vpop.permute.xlu0 %6688
  %6690 = vrot.lane.b32.xlu0 %v4962, 32
  %v6691 = vpop.permute.xlu0 %6690
  %6692 = vrot.lane.b32.xlu0 %v4964, 32
  %v6693 = vpop.permute.xlu0 %6692
  %6694 = vrot.lane.b32.xlu0 %v4967, 32
  %v6695 = vpop.permute.xlu0 %6694
  %6696 = vrot.lane.b32.xlu0 %v4969, 32
  %v6697 = vpop.permute.xlu0 %6696
  %6698 = vrot.lane.b32.xlu0 %v4972, 32
  %v6699 = vpop.permute.xlu0 %6698
  %6700 = vrot.lane.b32.xlu0 %v4974, 32
  %v6701 = vpop.permute.xlu0 %6700
  %6702 = vrot.lane.b32.xlu0 %v4977, 32
  %v6703 = vpop.permute.xlu0 %6702
  %6704 = vrot.lane.b32.xlu0 %v4979, 32
  %v6705 = vpop.permute.xlu0 %6704
  %6706 = vrot.lane.b32.xlu0 %v4982, 32
  %v6707 = vpop.permute.xlu0 %6706
  %6708 = vrot.lane.b32.xlu0 %v4984, 32
  %v6709 = vpop.permute.xlu0 %6708
  %6710 = vrot.lane.b32.xlu0 %v4987, 32
  %v6711 = vpop.permute.xlu0 %6710
  %6712 = vrot.lane.b32.xlu0 %v4989, 32
  %v6713 = vpop.permute.xlu0 %6712
  %6714 = vrot.lane.b32.xlu0 %v5856, 32
  %v6715 = vpop.permute.xlu0 %6714
  %6716 = vrot.lane.b32.xlu0 %v5858, 32
  %v6717 = vpop.permute.xlu0 %6716
  %6718 = vrot.lane.b32.xlu0 %v6650, 32
  %v6719 = vpop.permute.xlu0 %6718
  %6720 = vrot.lane.b32.xlu0 %v6652, 32
  %v6721 = vpop.permute.xlu0 %6720
  %6722 = vrot.lane.b32.xlu0 %v5002, 32
  %v6723 = vpop.permute.xlu0 %6722
  %6724 = vrot.lane.b32.xlu0 %v5004, 32
  %v6725 = vpop.permute.xlu0 %6724
  %6726 = vrot.lane.b32.xlu0 %v5007, 32
  %v6727 = vpop.permute.xlu0 %6726
  %6728 = vrot.lane.b32.xlu0 %v5009, 32
  %v6729 = vpop.permute.xlu0 %6728
  %6730 = vrot.lane.b32.xlu0 %v5012, 32
  %v6731 = vpop.permute.xlu0 %6730
  %6732 = vrot.lane.b32.xlu0 %v5014, 32
  %v6733 = vpop.permute.xlu0 %6732
  %6734 = vrot.lane.b32.xlu0 %v5017, 32
  %v6735 = vpop.permute.xlu0 %6734
  %6736 = vrot.lane.b32.xlu0 %v5019, 32
  %v6737 = vpop.permute.xlu0 %6736
  %6738 = vrot.lane.b32.xlu0 %v5022, 32
  %v6739 = vpop.permute.xlu0 %6738
  %6740 = vrot.lane.b32.xlu0 %v5024, 32
  %v6741 = vpop.permute.xlu0 %6740
  %6742 = vrot.lane.b32.xlu0 %v5027, 32
  %v6743 = vpop.permute.xlu0 %6742
  %6744 = vrot.lane.b32.xlu0 %v5029, 32
  %v6745 = vpop.permute.xlu0 %6744
  %6746 = vrot.lane.b32.xlu0 %v5032, 32
  %v6747 = vpop.permute.xlu0 %6746
  %6748 = vrot.lane.b32.xlu0 %v5034, 32
  %v6749 = vpop.permute.xlu0 %6748
  %6750 = vrot.lane.b32.xlu0 %v5037, 32
  %v6751 = vpop.permute.xlu0 %6750
  %6752 = vrot.lane.b32.xlu0 %v5039, 32
  %v6753 = vpop.permute.xlu0 %6752
  %6754 = vrot.lane.b32.xlu0 %v5042, 32
  %v6755 = vpop.permute.xlu0 %6754
  %6756 = vrot.lane.b32.xlu0 %v5044, 32
  %v6757 = vpop.permute.xlu0 %6756
  %6758 = vrot.lane.b32.xlu0 %v5047, 32
  %v6759 = vpop.permute.xlu0 %6758
  %6760 = vrot.lane.b32.xlu0 %v5049, 32
  %v6761 = vpop.permute.xlu0 %6760
  %6762 = vrot.lane.b32.xlu0 %v5052, 32
  %v6763 = vpop.permute.xlu0 %6762
  %6764 = vrot.lane.b32.xlu0 %v5054, 32
  %v6765 = vpop.permute.xlu0 %6764
  %6766 = vrot.lane.b32.xlu0 %v5057, 32
  %v6767 = vpop.permute.xlu0 %6766
  %6768 = vrot.lane.b32.xlu0 %v5059, 32
  %v6769 = vpop.permute.xlu0 %6768
  %6770 = vrot.lane.b32.xlu0 %v5062, 32
  %v6771 = vpop.permute.xlu0 %6770
  %6772 = vrot.lane.b32.xlu0 %v5064, 32
  %v6773 = vpop.permute.xlu0 %6772
  %6774 = vrot.lane.b32.xlu0 %v5067, 32
  %v6775 = vpop.permute.xlu0 %6774
  %6776 = vrot.lane.b32.xlu0 %v5069, 32
  %v6777 = vpop.permute.xlu0 %6776
  %6778 = vrot.lane.b32.xlu0 %v5861, 32
  %v6779 = vpop.permute.xlu0 %6778
  %6780 = vrot.lane.b32.xlu0 %v5863, 32
  %v6781 = vpop.permute.xlu0 %6780
  %6782 = vrot.lane.b32.xlu0 %v6655, 32
  %v6783 = vpop.permute.xlu0 %6782
  %6784 = vrot.lane.b32.xlu0 %v6657, 32
  %v6785 = vpop.permute.xlu0 %6784
  %6850 = vst.msk [vmem:[#allocation5] sm:$0xff] %vm2898, %v6659
  %6851 = vst.msk [vmem:[#allocation5 + $0x8] sm:$0xff] %vm2898, %v6661
  %6852 = vst.msk [vmem:[#allocation5 + $0x10] sm:$0xff] %vm2898, %v6663
  %6853 = vst.msk [vmem:[#allocation5 + $0x18] sm:$0xff] %vm2898, %v6665
  %6854 = vst.msk [vmem:[#allocation5 + $0x20] sm:$0xff] %vm2898, %v6667
  %6855 = vst.msk [vmem:[#allocation5 + $0x28] sm:$0xff] %vm2898, %v6669
  %6856 = vst.msk [vmem:[#allocation5 + $0x30] sm:$0xff] %vm2898, %v6671
  %6857 = vst.msk [vmem:[#allocation5 + $0x38] sm:$0xff] %vm2898, %v6673
  %6858 = vst.msk [vmem:[#allocation5 + $0x40] sm:$0xff] %vm2898, %v6675
  %6859 = vst.msk [vmem:[#allocation5 + $0x48] sm:$0xff] %vm2898, %v6677
  %6860 = vst.msk [vmem:[#allocation5 + $0x50] sm:$0xff] %vm2898, %v6679
  %6861 = vst.msk [vmem:[#allocation5 + $0x58] sm:$0xff] %vm2898, %v6681
  %6862 = vst.msk [vmem:[#allocation5 + $0x60] sm:$0xff] %vm2898, %v6683
  %6863 = vst.msk [vmem:[#allocation5 + $0x68] sm:$0xff] %vm2898, %v6685
  %6864 = vst.msk [vmem:[#allocation5 + $0x70] sm:$0xff] %vm2898, %v6687
  %6865 = vst.msk [vmem:[#allocation5 + $0x78] sm:$0xff] %vm2898, %v6689
  %6866 = vst.msk [vmem:[#allocation5 + $0x80] sm:$0xff] %vm2898, %v6691
  %6867 = vst.msk [vmem:[#allocation5 + $0x88] sm:$0xff] %vm2898, %v6693
  %6868 = vst.msk [vmem:[#allocation5 + $0x90] sm:$0xff] %vm2898, %v6695
  %6869 = vst.msk [vmem:[#allocation5 + $0x98] sm:$0xff] %vm2898, %v6697
  %6870 = vst.msk [vmem:[#allocation5 + $0xa0] sm:$0xff] %vm2898, %v6699
  %6871 = vst.msk [vmem:[#allocation5 + $0xa8] sm:$0xff] %vm2898, %v6701
  %6872 = vst.msk [vmem:[#allocation5 + $0xb0] sm:$0xff] %vm2898, %v6703
  %6873 = vst.msk [vmem:[#allocation5 + $0xb8] sm:$0xff] %vm2898, %v6705
  %6874 = vst.msk [vmem:[#allocation5 + $0xc0] sm:$0xff] %vm2898, %v6707
  %6875 = vst.msk [vmem:[#allocation5 + $0xc8] sm:$0xff] %vm2898, %v6709
  %6876 = vst.msk [vmem:[#allocation5 + $0xd0] sm:$0xff] %vm2898, %v6711
  %6877 = vst.msk [vmem:[#allocation5 + $0xd8] sm:$0xff] %vm2898, %v6713
  %6878 = vst.msk [vmem:[#allocation5 + $0xe0] sm:$0xff] %vm2898, %v6715
  %6879 = vst.msk [vmem:[#allocation5 + $0xe8] sm:$0xff] %vm2898, %v6717
  %6880 = vst.msk [vmem:[#allocation5 + $0xf0] sm:$0xff] %vm2898, %v6719
  %6881 = vst.msk [vmem:[#allocation5 + $0xf8] sm:$0xff] %vm2898, %v6721
  %6882 = vst.msk [vmem:[#allocation5 + $0x100] sm:$0xff] %vm2898, %v6723
  %6883 = vst.msk [vmem:[#allocation5 + $0x108] sm:$0xff] %vm2898, %v6725
  %6884 = vst.msk [vmem:[#allocation5 + $0x110] sm:$0xff] %vm2898, %v6727
  %6885 = vst.msk [vmem:[#allocation5 + $0x118] sm:$0xff] %vm2898, %v6729
  %6886 = vst.msk [vmem:[#allocation5 + $0x120] sm:$0xff] %vm2898, %v6731
  %6887 = vst.msk [vmem:[#allocation5 + $0x128] sm:$0xff] %vm2898, %v6733
  %6888 = vst.msk [vmem:[#allocation5 + $0x130] sm:$0xff] %vm2898, %v6735
  %6889 = vst.msk [vmem:[#allocation5 + $0x138] sm:$0xff] %vm2898, %v6737
  %6890 = vst.msk [vmem:[#allocation5 + $0x140] sm:$0xff] %vm2898, %v6739
  %6891 = vst.msk [vmem:[#allocation5 + $0x148] sm:$0xff] %vm2898, %v6741
  %6892 = vst.msk [vmem:[#allocation5 + $0x150] sm:$0xff] %vm2898, %v6743
  %6893 = vst.msk [vmem:[#allocation5 + $0x158] sm:$0xff] %vm2898, %v6745
  %6894 = vst.msk [vmem:[#allocation5 + $0x160] sm:$0xff] %vm2898, %v6747
  %6895 = vst.msk [vmem:[#allocation5 + $0x168] sm:$0xff] %vm2898, %v6749
  %6896 = vst.msk [vmem:[#allocation5 + $0x170] sm:$0xff] %vm2898, %v6751
  %6897 = vst.msk [vmem:[#allocation5 + $0x178] sm:$0xff] %vm2898, %v6753
  %6898 = vst.msk [vmem:[#allocation5 + $0x180] sm:$0xff] %vm2898, %v6755
  %6899 = vst.msk [vmem:[#allocation5 + $0x188] sm:$0xff] %vm2898, %v6757
  %6900 = vst.msk [vmem:[#allocation5 + $0x190] sm:$0xff] %vm2898, %v6759
  %6901 = vst.msk [vmem:[#allocation5 + $0x198] sm:$0xff] %vm2898, %v6761
  %6902 = vst.msk [vmem:[#allocation5 + $0x1a0] sm:$0xff] %vm2898, %v6763
  %6903 = vst.msk [vmem:[#allocation5 + $0x1a8] sm:$0xff] %vm2898, %v6765
  %6904 = vst.msk [vmem:[#allocation5 + $0x1b0] sm:$0xff] %vm2898, %v6767
  %6905 = vst.msk [vmem:[#allocation5 + $0x1b8] sm:$0xff] %vm2898, %v6769
  %6906 = vst.msk [vmem:[#allocation5 + $0x1c0] sm:$0xff] %vm2898, %v6771
  %6907 = vst.msk [vmem:[#allocation5 + $0x1c8] sm:$0xff] %vm2898, %v6773
  %6908 = vst.msk [vmem:[#allocation5 + $0x1d0] sm:$0xff] %vm2898, %v6775
  %6909 = vst.msk [vmem:[#allocation5 + $0x1d8] sm:$0xff] %vm2898, %v6777
  %6910 = vst.msk [vmem:[#allocation5 + $0x1e0] sm:$0xff] %vm2898, %v6779
  %6911 = vst.msk [vmem:[#allocation5 + $0x1e8] sm:$0xff] %vm2898, %v6781
  %6912 = vst.msk [vmem:[#allocation5 + $0x1f0] sm:$0xff] %vm2898, %v6783
  %6913 = vst.msk [vmem:[#allocation5 + $0x1f8] sm:$0xff] %vm2898, %v6785
  %v6914 = vld [vmem:[#allocation5] sm:$0xff]
  %v6915 = vld [vmem:[#allocation5 + $0x8] sm:$0xff]
  %v6916 = vld [vmem:[#allocation5 + $0x10] sm:$0xff]
  %v6917 = vld [vmem:[#allocation5 + $0x18] sm:$0xff]
  %v6918 = vld [vmem:[#allocation5 + $0x20] sm:$0xff]
  %v6919 = vld [vmem:[#allocation5 + $0x28] sm:$0xff]
  %v6920 = vld [vmem:[#allocation5 + $0x30] sm:$0xff]
  %v6921 = vld [vmem:[#allocation5 + $0x38] sm:$0xff]
  %v6922 = vld [vmem:[#allocation5 + $0x40] sm:$0xff]
  %v6923 = vld [vmem:[#allocation5 + $0x48] sm:$0xff]
  %v6924 = vld [vmem:[#allocation5 + $0x50] sm:$0xff]
  %v6925 = vld [vmem:[#allocation5 + $0x58] sm:$0xff]
  %v6926 = vld [vmem:[#allocation5 + $0x60] sm:$0xff]
  %v6927 = vld [vmem:[#allocation5 + $0x68] sm:$0xff]
  %v6928 = vld [vmem:[#allocation5 + $0x70] sm:$0xff]
  %v6929 = vld [vmem:[#allocation5 + $0x78] sm:$0xff]
  %v6930 = vld [vmem:[#allocation5 + $0x80] sm:$0xff]
  %v6931 = vld [vmem:[#allocation5 + $0x88] sm:$0xff]
  %v6932 = vld [vmem:[#allocation5 + $0x90] sm:$0xff]
  %v6933 = vld [vmem:[#allocation5 + $0x98] sm:$0xff]
  %v6934 = vld [vmem:[#allocation5 + $0xa0] sm:$0xff]
  %v6935 = vld [vmem:[#allocation5 + $0xa8] sm:$0xff]
  %v6936 = vld [vmem:[#allocation5 + $0xb0] sm:$0xff]
  %v6937 = vld [vmem:[#allocation5 + $0xb8] sm:$0xff]
  %v6938 = vld [vmem:[#allocation5 + $0xc0] sm:$0xff]
  %v6939 = vld [vmem:[#allocation5 + $0xc8] sm:$0xff]
  %v6940 = vld [vmem:[#allocation5 + $0xd0] sm:$0xff]
  %v6941 = vld [vmem:[#allocation5 + $0xd8] sm:$0xff]
  %v6942 = vld [vmem:[#allocation5 + $0xe0] sm:$0xff]
  %v6943 = vld [vmem:[#allocation5 + $0xe8] sm:$0xff]
  %v6944 = vld [vmem:[#allocation5 + $0xf0] sm:$0xff]
  %v6945 = vld [vmem:[#allocation5 + $0xf8] sm:$0xff]
  %v6946 = vld [vmem:[#allocation5 + $0x100] sm:$0xff]
  %v6947 = vld [vmem:[#allocation5 + $0x108] sm:$0xff]
  %v6948 = vld [vmem:[#allocation5 + $0x110] sm:$0xff]
  %v6949 = vld [vmem:[#allocation5 + $0x118] sm:$0xff]
  %v6950 = vld [vmem:[#allocation5 + $0x120] sm:$0xff]
  %v6951 = vld [vmem:[#allocation5 + $0x128] sm:$0xff]
  %v6952 = vld [vmem:[#allocation5 + $0x130] sm:$0xff]
  %v6953 = vld [vmem:[#allocation5 + $0x138] sm:$0xff]
  %v6954 = vld [vmem:[#allocation5 + $0x140] sm:$0xff]
  %v6955 = vld [vmem:[#allocation5 + $0x148] sm:$0xff]
  %v6956 = vld [vmem:[#allocation5 + $0x150] sm:$0xff]
  %v6957 = vld [vmem:[#allocation5 + $0x158] sm:$0xff]
  %v6958 = vld [vmem:[#allocation5 + $0x160] sm:$0xff]
  %v6959 = vld [vmem:[#allocation5 + $0x168] sm:$0xff]
  %v6960 = vld [vmem:[#allocation5 + $0x170] sm:$0xff]
  %v6961 = vld [vmem:[#allocation5 + $0x178] sm:$0xff]
  %v6962 = vld [vmem:[#allocation5 + $0x180] sm:$0xff]
  %v6963 = vld [vmem:[#allocation5 + $0x188] sm:$0xff]
  %v6964 = vld [vmem:[#allocation5 + $0x190] sm:$0xff]
  %v6965 = vld [vmem:[#allocation5 + $0x198] sm:$0xff]
  %v6966 = vld [vmem:[#allocation5 + $0x1a0] sm:$0xff]
  %v6967 = vld [vmem:[#allocation5 + $0x1a8] sm:$0xff]
  %v6968 = vld [vmem:[#allocation5 + $0x1b0] sm:$0xff]
  %v6969 = vld [vmem:[#allocation5 + $0x1b8] sm:$0xff]
  %v6970 = vld [vmem:[#allocation5 + $0x1c0] sm:$0xff]
  %v6971 = vld [vmem:[#allocation5 + $0x1c8] sm:$0xff]
  %v6972 = vld [vmem:[#allocation5 + $0x1d0] sm:$0xff]
  %v6973 = vld [vmem:[#allocation5 + $0x1d8] sm:$0xff]
  %v6974 = vld [vmem:[#allocation5 + $0x1e0] sm:$0xff]
  %v6975 = vld [vmem:[#allocation5 + $0x1e8] sm:$0xff]
  %v6976 = vld [vmem:[#allocation5 + $0x1f0] sm:$0xff]
  %v6977 = vld [vmem:[#allocation5 + $0x1f8] sm:$0xff]
  %v6978 = vld [vmem:[%s4] sm:$0xff]
  %v6979 = vld [vmem:[%s4 + $0x8] sm:$0xff]
  %v6980 = vld [vmem:[%s4 + $0x10] sm:$0xff]
  %v6981 = vld [vmem:[%s4 + $0x18] sm:$0xff]
  %v6982 = vld [vmem:[%s4 + $0x20] sm:$0xf]
  %v6984 = vsel %vm3032, %v6914, 0
  %v6987 = vsel %vm3032, %v6915, 0
  %v6990 = vsel %vm3032, %v6916, 0
  %v6993 = vsel %vm3032, %v6917, 0
  %v6996 = vsel %vm3032, %v6918, 0
  %v6999 = vsel %vm3032, %v6919, 0
  %v7002 = vsel %vm3032, %v6920, 0
  %v7005 = vsel %vm3032, %v6921, 0
  %v7008 = vsel %vm3032, %v6922, 0
  %v7011 = vsel %vm3032, %v6923, 0
  %v7014 = vsel %vm3032, %v6924, 0
  %v7017 = vsel %vm3032, %v6925, 0
  %v7020 = vsel %vm3032, %v6926, 0
  %v7023 = vsel %vm3032, %v6927, 0
  %v7026 = vsel %vm3032, %v6928, 0
  %v7029 = vsel %vm3032, %v6929, 0
  %v7032 = vsel %vm3032, %v6930, 0
  %v7035 = vsel %vm3032, %v6931, 0
  %v7038 = vsel %vm3032, %v6932, 0
  %v7041 = vsel %vm3032, %v6933, 0
  %v7044 = vsel %vm3032, %v6934, 0
  %v7047 = vsel %vm3032, %v6935, 0
  %v7050 = vsel %vm3032, %v6936, 0
  %v7053 = vsel %vm3032, %v6937, 0
  %v7056 = vsel %vm3032, %v6938, 0
  %v7059 = vsel %vm3032, %v6939, 0
  %v7062 = vsel %vm3032, %v6940, 0
  %v7065 = vsel %vm3032, %v6941, 0
  %v7068 = vsel %vm3032, %v6942, 0
  %v7071 = vsel %vm3032, %v6943, 0
  %v7074 = vsel %vm3032, %v6944, 0
  %v7077 = vsel %vm3032, %v6945, 0
  %v7080 = vsel %vm3032, %v6946, 0
  %v7083 = vsel %vm3032, %v6947, 0
  %v7086 = vsel %vm3032, %v6948, 0
  %v7089 = vsel %vm3032, %v6949, 0
  %v7092 = vsel %vm3032, %v6950, 0
  %v7095 = vsel %vm3032, %v6951, 0
  %v7098 = vsel %vm3032, %v6952, 0
  %v7101 = vsel %vm3032, %v6953, 0
  %v7104 = vsel %vm3032, %v6954, 0
  %v7107 = vsel %vm3032, %v6955, 0
  %v7110 = vsel %vm3032, %v6956, 0
  %v7113 = vsel %vm3032, %v6957, 0
  %v7116 = vsel %vm3032, %v6958, 0
  %v7119 = vsel %vm3032, %v6959, 0
  %v7122 = vsel %vm3032, %v6960, 0
  %v7125 = vsel %vm3032, %v6961, 0
  %v7128 = vsel %vm3032, %v6962, 0
  %v7131 = vsel %vm3032, %v6963, 0
  %v7134 = vsel %vm3032, %v6964, 0
  %v7137 = vsel %vm3032, %v6965, 0
  %v7140 = vsel %vm3032, %v6966, 0
  %v7143 = vsel %vm3032, %v6967, 0
  %v7146 = vsel %vm3032, %v6968, 0
  %v7149 = vsel %vm3032, %v6969, 0
  %v7152 = vsel %vm3032, %v6970, 0
  %v7155 = vsel %vm3032, %v6971, 0
  %v7158 = vsel %vm3032, %v6972, 0
  %v7161 = vsel %vm3032, %v6973, 0
  %v7164 = vsel %vm3032, %v6974, 0
  %v7167 = vsel %vm3032, %v6975, 0
  %v7170 = vsel %vm3032, %v6976, 0
  %v7173 = vsel %vm3032, %v6977, 0
  %v7176 = vsel %vm3225, %v6982, 0
  %7178 = vmatpush.msra.mxu0 0.0
  %7179 = vmatpush.msra.mxu0 0.0
  %7180 = vmatpush.msra.mxu0 0.0
  %7181 = vmatpush.msra.mxu0 0.0
  %7182 = vmatpush.msra.mxu0 0.0
  %7183 = vmatpush.msra.mxu0 0.0
  %7184 = vmatpush.msra.mxu0 0.0
  %7185 = vmatpush.msra.mxu0 0.0
  %7186 = vmatpush.msra.mxu0 0.0
  %7187 = vmatpush.msra.mxu0 0.0
  %7188 = vmatpush.msra.mxu0 0.0
  %7189 = vmatpush.msra.mxu0 %v7176
  %7190 = vmatpush.msra.mxu0 %v6981
  %7191 = vmatpush.msra.mxu0 %v6980
  %7192 = vmatpush.msra.mxu0 %v6979
  %7193 = vmatpush.msra.mxu0 %v6978
  %7194 = vmatmul.f32.gmra.mxu0 %v6984
  %v7195 = vpop.f32.mrf.mxu0
  %v7196 = vadd.f32 0.0, %v7195
  %7197 = vmatmul.f32.gmra.mxu0 %v6987
  %v7198 = vpop.f32.mrf.mxu0
  %v7199 = vadd.f32 0.0, %v7198
  %7200 = vmatmul.f32.gmra.mxu0 %v6990
  %v7201 = vpop.f32.mrf.mxu0
  %v7202 = vadd.f32 0.0, %v7201
  %7203 = vmatmul.f32.gmra.mxu0 %v6993
  %v7204 = vpop.f32.mrf.mxu0
  %v7205 = vadd.f32 0.0, %v7204
  %7206 = vmatmul.f32.gmra.mxu0 %v6996
  %v7207 = vpop.f32.mrf.mxu0
  %v7208 = vadd.f32 0.0, %v7207
  %7209 = vmatmul.f32.gmra.mxu0 %v6999
  %v7210 = vpop.f32.mrf.mxu0
  %v7211 = vadd.f32 0.0, %v7210
  %7212 = vmatmul.f32.gmra.mxu0 %v7002
  %v7213 = vpop.f32.mrf.mxu0
  %v7214 = vadd.f32 0.0, %v7213
  %7215 = vmatmul.f32.gmra.mxu0 %v7005
  %v7216 = vpop.f32.mrf.mxu0
  %v7217 = vadd.f32 0.0, %v7216
  %7218 = vmatmul.f32.gmra.mxu0 %v7008
  %v7219 = vpop.f32.mrf.mxu0
  %v7220 = vadd.f32 0.0, %v7219
  %7221 = vmatmul.f32.gmra.mxu0 %v7011
  %v7222 = vpop.f32.mrf.mxu0
  %v7223 = vadd.f32 0.0, %v7222
  %7224 = vmatmul.f32.gmra.mxu0 %v7014
  %v7225 = vpop.f32.mrf.mxu0
  %v7226 = vadd.f32 0.0, %v7225
  %7227 = vmatmul.f32.gmra.mxu0 %v7017
  %v7228 = vpop.f32.mrf.mxu0
  %v7229 = vadd.f32 0.0, %v7228
  %7230 = vmatmul.f32.gmra.mxu0 %v7020
  %v7231 = vpop.f32.mrf.mxu0
  %v7232 = vadd.f32 0.0, %v7231
  %7233 = vmatmul.f32.gmra.mxu0 %v7023
  %v7234 = vpop.f32.mrf.mxu0
  %v7235 = vadd.f32 0.0, %v7234
  %7236 = vmatmul.f32.gmra.mxu0 %v7026
  %v7237 = vpop.f32.mrf.mxu0
  %v7238 = vadd.f32 0.0, %v7237
  %7239 = vmatmul.f32.gmra.mxu0 %v7029
  %v7240 = vpop.f32.mrf.mxu0
  %v7241 = vadd.f32 0.0, %v7240
  %7242 = vmatmul.f32.gmra.mxu0 %v7032
  %v7243 = vpop.f32.mrf.mxu0
  %v7244 = vadd.f32 0.0, %v7243
  %7245 = vmatmul.f32.gmra.mxu0 %v7035
  %v7246 = vpop.f32.mrf.mxu0
  %v7247 = vadd.f32 0.0, %v7246
  %7248 = vmatmul.f32.gmra.mxu0 %v7038
  %v7249 = vpop.f32.mrf.mxu0
  %v7250 = vadd.f32 0.0, %v7249
  %7251 = vmatmul.f32.gmra.mxu0 %v7041
  %v7252 = vpop.f32.mrf.mxu0
  %v7253 = vadd.f32 0.0, %v7252
  %7254 = vmatmul.f32.gmra.mxu0 %v7044
  %v7255 = vpop.f32.mrf.mxu0
  %v7256 = vadd.f32 0.0, %v7255
  %7257 = vmatmul.f32.gmra.mxu0 %v7047
  %v7258 = vpop.f32.mrf.mxu0
  %v7259 = vadd.f32 0.0, %v7258
  %7260 = vmatmul.f32.gmra.mxu0 %v7050
  %v7261 = vpop.f32.mrf.mxu0
  %v7262 = vadd.f32 0.0, %v7261
  %7263 = vmatmul.f32.gmra.mxu0 %v7053
  %v7264 = vpop.f32.mrf.mxu0
  %v7265 = vadd.f32 0.0, %v7264
  %7266 = vmatmul.f32.gmra.mxu0 %v7056
  %v7267 = vpop.f32.mrf.mxu0
  %v7268 = vadd.f32 0.0, %v7267
  %7269 = vmatmul.f32.gmra.mxu0 %v7059
  %v7270 = vpop.f32.mrf.mxu0
  %v7271 = vadd.f32 0.0, %v7270
  %7272 = vmatmul.f32.gmra.mxu0 %v7062
  %v7273 = vpop.f32.mrf.mxu0
  %v7274 = vadd.f32 0.0, %v7273
  %7275 = vmatmul.f32.gmra.mxu0 %v7065
  %v7276 = vpop.f32.mrf.mxu0
  %v7277 = vadd.f32 0.0, %v7276
  %7278 = vmatmul.f32.gmra.mxu0 %v7068
  %v7279 = vpop.f32.mrf.mxu0
  %v7280 = vadd.f32 0.0, %v7279
  %7281 = vmatmul.f32.gmra.mxu0 %v7071
  %v7282 = vpop.f32.mrf.mxu0
  %v7283 = vadd.f32 0.0, %v7282
  %7284 = vmatmul.f32.gmra.mxu0 %v7074
  %v7285 = vpop.f32.mrf.mxu0
  %v7286 = vadd.f32 0.0, %v7285
  %7287 = vmatmul.f32.gmra.mxu0 %v7077
  %v7288 = vpop.f32.mrf.mxu0
  %v7289 = vadd.f32 0.0, %v7288
  %7290 = vmatmul.f32.gmra.mxu0 %v7080
  %v7291 = vpop.f32.mrf.mxu0
  %v7292 = vadd.f32 0.0, %v7291
  %7293 = vmatmul.f32.gmra.mxu0 %v7083
  %v7294 = vpop.f32.mrf.mxu0
  %v7295 = vadd.f32 0.0, %v7294
  %7296 = vmatmul.f32.gmra.mxu0 %v7086
  %v7297 = vpop.f32.mrf.mxu0
  %v7298 = vadd.f32 0.0, %v7297
  %7299 = vmatmul.f32.gmra.mxu0 %v7089
  %v7300 = vpop.f32.mrf.mxu0
  %v7301 = vadd.f32 0.0, %v7300
  %7302 = vmatmul.f32.gmra.mxu0 %v7092
  %v7303 = vpop.f32.mrf.mxu0
  %v7304 = vadd.f32 0.0, %v7303
  %7305 = vmatmul.f32.gmra.mxu0 %v7095
  %v7306 = vpop.f32.mrf.mxu0
  %v7307 = vadd.f32 0.0, %v7306
  %7308 = vmatmul.f32.gmra.mxu0 %v7098
  %v7309 = vpop.f32.mrf.mxu0
  %v7310 = vadd.f32 0.0, %v7309
  %7311 = vmatmul.f32.gmra.mxu0 %v7101
  %v7312 = vpop.f32.mrf.mxu0
  %v7313 = vadd.f32 0.0, %v7312
  %7314 = vmatmul.f32.gmra.mxu0 %v7104
  %v7315 = vpop.f32.mrf.mxu0
  %v7316 = vadd.f32 0.0, %v7315
  %7317 = vmatmul.f32.gmra.mxu0 %v7107
  %v7318 = vpop.f32.mrf.mxu0
  %v7319 = vadd.f32 0.0, %v7318
  %7320 = vmatmul.f32.gmra.mxu0 %v7110
  %v7321 = vpop.f32.mrf.mxu0
  %v7322 = vadd.f32 0.0, %v7321
  %7323 = vmatmul.f32.gmra.mxu0 %v7113
  %v7324 = vpop.f32.mrf.mxu0
  %v7325 = vadd.f32 0.0, %v7324
  %7326 = vmatmul.f32.gmra.mxu0 %v7116
  %v7327 = vpop.f32.mrf.mxu0
  %v7328 = vadd.f32 0.0, %v7327
  %7329 = vmatmul.f32.gmra.mxu0 %v7119
  %v7330 = vpop.f32.mrf.mxu0
  %v7331 = vadd.f32 0.0, %v7330
  %7332 = vmatmul.f32.gmra.mxu0 %v7122
  %v7333 = vpop.f32.mrf.mxu0
  %v7334 = vadd.f32 0.0, %v7333
  %7335 = vmatmul.f32.gmra.mxu0 %v7125
  %v7336 = vpop.f32.mrf.mxu0
  %v7337 = vadd.f32 0.0, %v7336
  %7338 = vmatmul.f32.gmra.mxu0 %v7128
  %v7339 = vpop.f32.mrf.mxu0
  %v7340 = vadd.f32 0.0, %v7339
  %7341 = vmatmul.f32.gmra.mxu0 %v7131
  %v7342 = vpop.f32.mrf.mxu0
  %v7343 = vadd.f32 0.0, %v7342
  %7344 = vmatmul.f32.gmra.mxu0 %v7134
  %v7345 = vpop.f32.mrf.mxu0
  %v7346 = vadd.f32 0.0, %v7345
  %7347 = vmatmul.f32.gmra.mxu0 %v7137
  %v7348 = vpop.f32.mrf.mxu0
  %v7349 = vadd.f32 0.0, %v7348
  %7350 = vmatmul.f32.gmra.mxu0 %v7140
  %v7351 = vpop.f32.mrf.mxu0
  %v7352 = vadd.f32 0.0, %v7351
  %7353 = vmatmul.f32.gmra.mxu0 %v7143
  %v7354 = vpop.f32.mrf.mxu0
  %v7355 = vadd.f32 0.0, %v7354
  %7356 = vmatmul.f32.gmra.mxu0 %v7146
  %v7357 = vpop.f32.mrf.mxu0
  %v7358 = vadd.f32 0.0, %v7357
  %7359 = vmatmul.f32.gmra.mxu0 %v7149
  %v7360 = vpop.f32.mrf.mxu0
  %v7361 = vadd.f32 0.0, %v7360
  %7362 = vmatmul.f32.gmra.mxu0 %v7152
  %v7363 = vpop.f32.mrf.mxu0
  %v7364 = vadd.f32 0.0, %v7363
  %7365 = vmatmul.f32.gmra.mxu0 %v7155
  %v7366 = vpop.f32.mrf.mxu0
  %v7367 = vadd.f32 0.0, %v7366
  %7368 = vmatmul.f32.gmra.mxu0 %v7158
  %v7369 = vpop.f32.mrf.mxu0
  %v7370 = vadd.f32 0.0, %v7369
  %7371 = vmatmul.f32.gmra.mxu0 %v7161
  %v7372 = vpop.f32.mrf.mxu0
  %v7373 = vadd.f32 0.0, %v7372
  %7374 = vmatmul.f32.gmra.mxu0 %v7164
  %v7375 = vpop.f32.mrf.mxu0
  %v7376 = vadd.f32 0.0, %v7375
  %7377 = vmatmul.f32.gmra.mxu0 %v7167
  %v7378 = vpop.f32.mrf.mxu0
  %v7379 = vadd.f32 0.0, %v7378
  %7380 = vmatmul.f32.gmra.mxu0 %v7170
  %v7381 = vpop.f32.mrf.mxu0
  %v7382 = vadd.f32 0.0, %v7381
  %7383 = vmatmul.f32.gmra.mxu0 %v7173
  %v7384 = vpop.f32.mrf.mxu0
  %v7385 = vadd.f32 0.0, %v7384
  %7386 = vdwg.mxu0
  %vm7387 = vcmask 64512
  %v7388 = vsel %vm7387, %v7196, 0.0
  %v7389 = vsel %vm7387, %v7199, 0.0
  %v7390 = vadd.f32 %v7388, %v7389
  %v7391 = vsel %vm7387, %v7202, 0.0
  %v7392 = vadd.f32 %v7390, %v7391
  %v7393 = vsel %vm7387, %v7205, 0.0
  %v7394 = vadd.f32 %v7392, %v7393
  %v7395 = vsel %vm7387, %v7208, 0.0
  %v7396 = vadd.f32 %v7394, %v7395
  %v7397 = vsel %vm7387, %v7211, 0.0
  %v7398 = vadd.f32 %v7396, %v7397
  %v7399 = vsel %vm7387, %v7214, 0.0
  %v7400 = vadd.f32 %v7398, %v7399
  %v7401 = vsel %vm7387, %v7217, 0.0
  %v7402 = vadd.f32 %v7400, %v7401
  %v7403 = vsel %vm7387, %v7220, 0.0
  %v7404 = vadd.f32 %v7402, %v7403
  %v7405 = vsel %vm7387, %v7223, 0.0
  %v7406 = vadd.f32 %v7404, %v7405
  %v7407 = vsel %vm7387, %v7226, 0.0
  %v7408 = vadd.f32 %v7406, %v7407
  %v7409 = vsel %vm7387, %v7229, 0.0
  %v7410 = vadd.f32 %v7408, %v7409
  %v7411 = vsel %vm7387, %v7232, 0.0
  %v7412 = vadd.f32 %v7410, %v7411
  %v7413 = vsel %vm7387, %v7235, 0.0
  %v7414 = vadd.f32 %v7412, %v7413
  %v7415 = vsel %vm7387, %v7238, 0.0
  %v7416 = vadd.f32 %v7414, %v7415
  %v7417 = vsel %vm7387, %v7241, 0.0
  %v7418 = vadd.f32 %v7416, %v7417
  %v7419 = vsel %vm7387, %v7244, 0.0
  %v7420 = vadd.f32 %v7418, %v7419
  %v7421 = vsel %vm7387, %v7247, 0.0
  %v7422 = vadd.f32 %v7420, %v7421
  %v7423 = vsel %vm7387, %v7250, 0.0
  %v7424 = vadd.f32 %v7422, %v7423
  %v7425 = vsel %vm7387, %v7253, 0.0
  %v7426 = vadd.f32 %v7424, %v7425
  %v7427 = vsel %vm7387, %v7256, 0.0
  %v7428 = vadd.f32 %v7426, %v7427
  %v7429 = vsel %vm7387, %v7259, 0.0
  %v7430 = vadd.f32 %v7428, %v7429
  %v7431 = vsel %vm7387, %v7262, 0.0
  %v7432 = vadd.f32 %v7430, %v7431
  %v7433 = vsel %vm7387, %v7265, 0.0
  %v7434 = vadd.f32 %v7432, %v7433
  %v7435 = vsel %vm7387, %v7268, 0.0
  %v7436 = vadd.f32 %v7434, %v7435
  %v7437 = vsel %vm7387, %v7271, 0.0
  %v7438 = vadd.f32 %v7436, %v7437
  %v7439 = vsel %vm7387, %v7274, 0.0
  %v7440 = vadd.f32 %v7438, %v7439
  %v7441 = vsel %vm7387, %v7277, 0.0
  %v7442 = vadd.f32 %v7440, %v7441
  %v7443 = vsel %vm7387, %v7280, 0.0
  %v7444 = vadd.f32 %v7442, %v7443
  %v7445 = vsel %vm7387, %v7283, 0.0
  %v7446 = vadd.f32 %v7444, %v7445
  %v7447 = vsel %vm7387, %v7286, 0.0
  %v7448 = vadd.f32 %v7446, %v7447
  %v7449 = vsel %vm7387, %v7289, 0.0
  %v7450 = vadd.f32 %v7448, %v7449
  %v7451 = vsel %vm7387, %v7292, 0.0
  %v7452 = vadd.f32 %v7450, %v7451
  %v7453 = vsel %vm7387, %v7295, 0.0
  %v7454 = vadd.f32 %v7452, %v7453
  %v7455 = vsel %vm7387, %v7298, 0.0
  %v7456 = vadd.f32 %v7454, %v7455
  %v7457 = vsel %vm7387, %v7301, 0.0
  %v7458 = vadd.f32 %v7456, %v7457
  %v7459 = vsel %vm7387, %v7304, 0.0
  %v7460 = vadd.f32 %v7458, %v7459
  %v7461 = vsel %vm7387, %v7307, 0.0
  %v7462 = vadd.f32 %v7460, %v7461
  %v7463 = vsel %vm7387, %v7310, 0.0
  %v7464 = vadd.f32 %v7462, %v7463
  %v7465 = vsel %vm7387, %v7313, 0.0
  %v7466 = vadd.f32 %v7464, %v7465
  %v7467 = vsel %vm7387, %v7316, 0.0
  %v7468 = vadd.f32 %v7466, %v7467
  %v7469 = vsel %vm7387, %v7319, 0.0
  %v7470 = vadd.f32 %v7468, %v7469
  %v7471 = vsel %vm7387, %v7322, 0.0
  %v7472 = vadd.f32 %v7470, %v7471
  %v7473 = vsel %vm7387, %v7325, 0.0
  %v7474 = vadd.f32 %v7472, %v7473
  %v7475 = vsel %vm7387, %v7328, 0.0
  %v7476 = vadd.f32 %v7474, %v7475
  %v7477 = vsel %vm7387, %v7331, 0.0
  %v7478 = vadd.f32 %v7476, %v7477
  %v7479 = vsel %vm7387, %v7334, 0.0
  %v7480 = vadd.f32 %v7478, %v7479
  %v7481 = vsel %vm7387, %v7337, 0.0
  %v7482 = vadd.f32 %v7480, %v7481
  %v7483 = vsel %vm7387, %v7340, 0.0
  %v7484 = vadd.f32 %v7482, %v7483
  %v7485 = vsel %vm7387, %v7343, 0.0
  %v7486 = vadd.f32 %v7484, %v7485
  %v7487 = vsel %vm7387, %v7346, 0.0
  %v7488 = vadd.f32 %v7486, %v7487
  %v7489 = vsel %vm7387, %v7349, 0.0
  %v7490 = vadd.f32 %v7488, %v7489
  %v7491 = vsel %vm7387, %v7352, 0.0
  %v7492 = vadd.f32 %v7490, %v7491
  %v7493 = vsel %vm7387, %v7355, 0.0
  %v7494 = vadd.f32 %v7492, %v7493
  %v7495 = vsel %vm7387, %v7358, 0.0
  %v7496 = vadd.f32 %v7494, %v7495
  %v7497 = vsel %vm7387, %v7361, 0.0
  %v7498 = vadd.f32 %v7496, %v7497
  %v7499 = vsel %vm7387, %v7364, 0.0
  %v7500 = vadd.f32 %v7498, %v7499
  %v7501 = vsel %vm7387, %v7367, 0.0
  %v7502 = vadd.f32 %v7500, %v7501
  %v7503 = vsel %vm7387, %v7370, 0.0
  %v7504 = vadd.f32 %v7502, %v7503
  %v7505 = vsel %vm7387, %v7373, 0.0
  %v7506 = vadd.f32 %v7504, %v7505
  %v7507 = vsel %vm7387, %v7376, 0.0
  %v7508 = vadd.f32 %v7506, %v7507
  %v7509 = vsel %vm7387, %v7379, 0.0
  %v7510 = vadd.f32 %v7508, %v7509
  %v7511 = vsel %vm7387, %v7382, 0.0
  %v7512 = vadd.f32 %v7510, %v7511
  %v7513 = vsel %vm7387, %v7385, 0.0
  %v7514 = vadd.f32 %v7512, %v7513
  %v7515 = vrot.slane %v7514, 4
  %v7516 = vadd.f32 %v7514, %v7515
  %v7517 = vrot.slane %v7516, 2
  %v7518 = vadd.f32 %v7516, %v7517
  %v7519 = vrot.slane %v7518, 1
  %v7520 = vadd.f32 %v7518, %v7519
  %v7521 = vmul.f32 %v7520, %v3577
  %v7522 = vsub.f32 %v7196, %v7521
  %v7523 = vsub.f32 %v7199, %v7521
  %v7524 = vsub.f32 %v7202, %v7521
  %v7525 = vsub.f32 %v7205, %v7521
  %v7526 = vsub.f32 %v7208, %v7521
  %v7527 = vsub.f32 %v7211, %v7521
  %v7528 = vsub.f32 %v7214, %v7521
  %v7529 = vsub.f32 %v7217, %v7521
  %v7530 = vsub.f32 %v7220, %v7521
  %v7531 = vsub.f32 %v7223, %v7521
  %v7532 = vsub.f32 %v7226, %v7521
  %v7533 = vsub.f32 %v7229, %v7521
  %v7534 = vsub.f32 %v7232, %v7521
  %v7535 = vsub.f32 %v7235, %v7521
  %v7536 = vsub.f32 %v7238, %v7521
  %v7537 = vsub.f32 %v7241, %v7521
  %v7538 = vsub.f32 %v7244, %v7521
  %v7539 = vsub.f32 %v7247, %v7521
  %v7540 = vsub.f32 %v7250, %v7521
  %v7541 = vsub.f32 %v7253, %v7521
  %v7542 = vsub.f32 %v7256, %v7521
  %v7543 = vsub.f32 %v7259, %v7521
  %v7544 = vsub.f32 %v7262, %v7521
  %v7545 = vsub.f32 %v7265, %v7521
  %v7546 = vsub.f32 %v7268, %v7521
  %v7547 = vsub.f32 %v7271, %v7521
  %v7548 = vsub.f32 %v7274, %v7521
  %v7549 = vsub.f32 %v7277, %v7521
  %v7550 = vsub.f32 %v7280, %v7521
  %v7551 = vsub.f32 %v7283, %v7521
  %v7552 = vsub.f32 %v7286, %v7521
  %v7553 = vsub.f32 %v7289, %v7521
  %v7554 = vsub.f32 %v7292, %v7521
  %v7555 = vsub.f32 %v7295, %v7521
  %v7556 = vsub.f32 %v7298, %v7521
  %v7557 = vsub.f32 %v7301, %v7521
  %v7558 = vsub.f32 %v7304, %v7521
  %v7559 = vsub.f32 %v7307, %v7521
  %v7560 = vsub.f32 %v7310, %v7521
  %v7561 = vsub.f32 %v7313, %v7521
  %v7562 = vsub.f32 %v7316, %v7521
  %v7563 = vsub.f32 %v7319, %v7521
  %v7564 = vsub.f32 %v7322, %v7521
  %v7565 = vsub.f32 %v7325, %v7521
  %v7566 = vsub.f32 %v7328, %v7521
  %v7567 = vsub.f32 %v7331, %v7521
  %v7568 = vsub.f32 %v7334, %v7521
  %v7569 = vsub.f32 %v7337, %v7521
  %v7570 = vsub.f32 %v7340, %v7521
  %v7571 = vsub.f32 %v7343, %v7521
  %v7572 = vsub.f32 %v7346, %v7521
  %v7573 = vsub.f32 %v7349, %v7521
  %v7574 = vsub.f32 %v7352, %v7521
  %v7575 = vsub.f32 %v7355, %v7521
  %v7576 = vsub.f32 %v7358, %v7521
  %v7577 = vsub.f32 %v7361, %v7521
  %v7578 = vsub.f32 %v7364, %v7521
  %v7579 = vsub.f32 %v7367, %v7521
  %v7580 = vsub.f32 %v7370, %v7521
  %v7581 = vsub.f32 %v7373, %v7521
  %v7582 = vsub.f32 %v7376, %v7521
  %v7583 = vsub.f32 %v7379, %v7521
  %v7584 = vsub.f32 %v7382, %v7521
  %v7585 = vsub.f32 %v7385, %v7521
  %v7586 = vmul.f32 %v7522, %v7522
  %v7587 = vmul.f32 %v7523, %v7523
  %v7588 = vmul.f32 %v7524, %v7524
  %v7589 = vmul.f32 %v7525, %v7525
  %v7590 = vmul.f32 %v7526, %v7526
  %v7591 = vmul.f32 %v7527, %v7527
  %v7592 = vmul.f32 %v7528, %v7528
  %v7593 = vmul.f32 %v7529, %v7529
  %v7594 = vmul.f32 %v7530, %v7530
  %v7595 = vmul.f32 %v7531, %v7531
  %v7596 = vmul.f32 %v7532, %v7532
  %v7597 = vmul.f32 %v7533, %v7533
  %v7598 = vmul.f32 %v7534, %v7534
  %v7599 = vmul.f32 %v7535, %v7535
  %v7600 = vmul.f32 %v7536, %v7536
  %v7601 = vmul.f32 %v7537, %v7537
  %v7602 = vmul.f32 %v7538, %v7538
  %v7603 = vmul.f32 %v7539, %v7539
  %v7604 = vmul.f32 %v7540, %v7540
  %v7605 = vmul.f32 %v7541, %v7541
  %v7606 = vmul.f32 %v7542, %v7542
  %v7607 = vmul.f32 %v7543, %v7543
  %v7608 = vmul.f32 %v7544, %v7544
  %v7609 = vmul.f32 %v7545, %v7545
  %v7610 = vmul.f32 %v7546, %v7546
  %v7611 = vmul.f32 %v7547, %v7547
  %v7612 = vmul.f32 %v7548, %v7548
  %v7613 = vmul.f32 %v7549, %v7549
  %v7614 = vmul.f32 %v7550, %v7550
  %v7615 = vmul.f32 %v7551, %v7551
  %v7616 = vmul.f32 %v7552, %v7552
  %v7617 = vmul.f32 %v7553, %v7553
  %v7618 = vmul.f32 %v7554, %v7554
  %v7619 = vmul.f32 %v7555, %v7555
  %v7620 = vmul.f32 %v7556, %v7556
  %v7621 = vmul.f32 %v7557, %v7557
  %v7622 = vmul.f32 %v7558, %v7558
  %v7623 = vmul.f32 %v7559, %v7559
  %v7624 = vmul.f32 %v7560, %v7560
  %v7625 = vmul.f32 %v7561, %v7561
  %v7626 = vmul.f32 %v7562, %v7562
  %v7627 = vmul.f32 %v7563, %v7563
  %v7628 = vmul.f32 %v7564, %v7564
  %v7629 = vmul.f32 %v7565, %v7565
  %v7630 = vmul.f32 %v7566, %v7566
  %v7631 = vmul.f32 %v7567, %v7567
  %v7632 = vmul.f32 %v7568, %v7568
  %v7633 = vmul.f32 %v7569, %v7569
  %v7634 = vmul.f32 %v7570, %v7570
  %v7635 = vmul.f32 %v7571, %v7571
  %v7636 = vmul.f32 %v7572, %v7572
  %v7637 = vmul.f32 %v7573, %v7573
  %v7638 = vmul.f32 %v7574, %v7574
  %v7639 = vmul.f32 %v7575, %v7575
  %v7640 = vmul.f32 %v7576, %v7576
  %v7641 = vmul.f32 %v7577, %v7577
  %v7642 = vmul.f32 %v7578, %v7578
  %v7643 = vmul.f32 %v7579, %v7579
  %v7644 = vmul.f32 %v7580, %v7580
  %v7645 = vmul.f32 %v7581, %v7581
  %v7646 = vmul.f32 %v7582, %v7582
  %v7647 = vmul.f32 %v7583, %v7583
  %v7648 = vmul.f32 %v7584, %v7584
  %v7649 = vmul.f32 %v7585, %v7585
  %v7650 = vsel %vm7387, %v7586, 0.0
  %v7651 = vsel %vm7387, %v7587, 0.0
  %v7652 = vadd.f32 %v7650, %v7651
  %v7653 = vsel %vm7387, %v7588, 0.0
  %v7654 = vadd.f32 %v7652, %v7653
  %v7655 = vsel %vm7387, %v7589, 0.0
  %v7656 = vadd.f32 %v7654, %v7655
  %v7657 = vsel %vm7387, %v7590, 0.0
  %v7658 = vadd.f32 %v7656, %v7657
  %v7659 = vsel %vm7387, %v7591, 0.0
  %v7660 = vadd.f32 %v7658, %v7659
  %v7661 = vsel %vm7387, %v7592, 0.0
  %v7662 = vadd.f32 %v7660, %v7661
  %v7663 = vsel %vm7387, %v7593, 0.0
  %v7664 = vadd.f32 %v7662, %v7663
  %v7665 = vsel %vm7387, %v7594, 0.0
  %v7666 = vadd.f32 %v7664, %v7665
  %v7667 = vsel %vm7387, %v7595, 0.0
  %v7668 = vadd.f32 %v7666, %v7667
  %v7669 = vsel %vm7387, %v7596, 0.0
  %v7670 = vadd.f32 %v7668, %v7669
  %v7671 = vsel %vm7387, %v7597, 0.0
  %v7672 = vadd.f32 %v7670, %v7671
  %v7673 = vsel %vm7387, %v7598, 0.0
  %v7674 = vadd.f32 %v7672, %v7673
  %v7675 = vsel %vm7387, %v7599, 0.0
  %v7676 = vadd.f32 %v7674, %v7675
  %v7677 = vsel %vm7387, %v7600, 0.0
  %v7678 = vadd.f32 %v7676, %v7677
  %v7679 = vsel %vm7387, %v7601, 0.0
  %v7680 = vadd.f32 %v7678, %v7679
  %v7681 = vsel %vm7387, %v7602, 0.0
  %v7682 = vadd.f32 %v7680, %v7681
  %v7683 = vsel %vm7387, %v7603, 0.0
  %v7684 = vadd.f32 %v7682, %v7683
  %v7685 = vsel %vm7387, %v7604, 0.0
  %v7686 = vadd.f32 %v7684, %v7685
  %v7687 = vsel %vm7387, %v7605, 0.0
  %v7688 = vadd.f32 %v7686, %v7687
  %v7689 = vsel %vm7387, %v7606, 0.0
  %v7690 = vadd.f32 %v7688, %v7689
  %v7691 = vsel %vm7387, %v7607, 0.0
  %v7692 = vadd.f32 %v7690, %v7691
  %v7693 = vsel %vm7387, %v7608, 0.0
  %v7694 = vadd.f32 %v7692, %v7693
  %v7695 = vsel %vm7387, %v7609, 0.0
  %v7696 = vadd.f32 %v7694, %v7695
  %v7697 = vsel %vm7387, %v7610, 0.0
  %v7698 = vadd.f32 %v7696, %v7697
  %v7699 = vsel %vm7387, %v7611, 0.0
  %v7700 = vadd.f32 %v7698, %v7699
  %v7701 = vsel %vm7387, %v7612, 0.0
  %v7702 = vadd.f32 %v7700, %v7701
  %v7703 = vsel %vm7387, %v7613, 0.0
  %v7704 = vadd.f32 %v7702, %v7703
  %v7705 = vsel %vm7387, %v7614, 0.0
  %v7706 = vadd.f32 %v7704, %v7705
  %v7707 = vsel %vm7387, %v7615, 0.0
  %v7708 = vadd.f32 %v7706, %v7707
  %v7709 = vsel %vm7387, %v7616, 0.0
  %v7710 = vadd.f32 %v7708, %v7709
  %v7711 = vsel %vm7387, %v7617, 0.0
  %v7712 = vadd.f32 %v7710, %v7711
  %v7713 = vsel %vm7387, %v7618, 0.0
  %v7714 = vadd.f32 %v7712, %v7713
  %v7715 = vsel %vm7387, %v7619, 0.0
  %v7716 = vadd.f32 %v7714, %v7715
  %v7717 = vsel %vm7387, %v7620, 0.0
  %v7718 = vadd.f32 %v7716, %v7717
  %v7719 = vsel %vm7387, %v7621, 0.0
  %v7720 = vadd.f32 %v7718, %v7719
  %v7721 = vsel %vm7387, %v7622, 0.0
  %v7722 = vadd.f32 %v7720, %v7721
  %v7723 = vsel %vm7387, %v7623, 0.0
  %v7724 = vadd.f32 %v7722, %v7723
  %v7725 = vsel %vm7387, %v7624, 0.0
  %v7726 = vadd.f32 %v7724, %v7725
  %v7727 = vsel %vm7387, %v7625, 0.0
  %v7728 = vadd.f32 %v7726, %v7727
  %v7729 = vsel %vm7387, %v7626, 0.0
  %v7730 = vadd.f32 %v7728, %v7729
  %v7731 = vsel %vm7387, %v7627, 0.0
  %v7732 = vadd.f32 %v7730, %v7731
  %v7733 = vsel %vm7387, %v7628, 0.0
  %v7734 = vadd.f32 %v7732, %v7733
  %v7735 = vsel %vm7387, %v7629, 0.0
  %v7736 = vadd.f32 %v7734, %v7735
  %v7737 = vsel %vm7387, %v7630, 0.0
  %v7738 = vadd.f32 %v7736, %v7737
  %v7739 = vsel %vm7387, %v7631, 0.0
  %v7740 = vadd.f32 %v7738, %v7739
  %v7741 = vsel %vm7387, %v7632, 0.0
  %v7742 = vadd.f32 %v7740, %v7741
  %v7743 = vsel %vm7387, %v7633, 0.0
  %v7744 = vadd.f32 %v7742, %v7743
  %v7745 = vsel %vm7387, %v7634, 0.0
  %v7746 = vadd.f32 %v7744, %v7745
  %v7747 = vsel %vm7387, %v7635, 0.0
  %v7748 = vadd.f32 %v7746, %v7747
  %v7749 = vsel %vm7387, %v7636, 0.0
  %v7750 = vadd.f32 %v7748, %v7749
  %v7751 = vsel %vm7387, %v7637, 0.0
  %v7752 = vadd.f32 %v7750, %v7751
  %v7753 = vsel %vm7387, %v7638, 0.0
  %v7754 = vadd.f32 %v7752, %v7753
  %v7755 = vsel %vm7387, %v7639, 0.0
  %v7756 = vadd.f32 %v7754, %v7755
  %v7757 = vsel %vm7387, %v7640, 0.0
  %v7758 = vadd.f32 %v7756, %v7757
  %v7759 = vsel %vm7387, %v7641, 0.0
  %v7760 = vadd.f32 %v7758, %v7759
  %v7761 = vsel %vm7387, %v7642, 0.0
  %v7762 = vadd.f32 %v7760, %v7761
  %v7763 = vsel %vm7387, %v7643, 0.0
  %v7764 = vadd.f32 %v7762, %v7763
  %v7765 = vsel %vm7387, %v7644, 0.0
  %v7766 = vadd.f32 %v7764, %v7765
  %v7767 = vsel %vm7387, %v7645, 0.0
  %v7768 = vadd.f32 %v7766, %v7767
  %v7769 = vsel %vm7387, %v7646, 0.0
  %v7770 = vadd.f32 %v7768, %v7769
  %v7771 = vsel %vm7387, %v7647, 0.0
  %v7772 = vadd.f32 %v7770, %v7771
  %v7773 = vsel %vm7387, %v7648, 0.0
  %v7774 = vadd.f32 %v7772, %v7773
  %v7775 = vsel %vm7387, %v7649, 0.0
  %v7776 = vadd.f32 %v7774, %v7775
  %v7777 = vrot.slane %v7776, 4
  %v7778 = vadd.f32 %v7776, %v7777
  %v7779 = vrot.slane %v7778, 2
  %v7780 = vadd.f32 %v7778, %v7779
  %v7781 = vrot.slane %v7780, 1
  %v7782 = vadd.f32 %v7780, %v7781
  %v7783 = vmul.f32 %v7782, %v3577
  %v7784 = vld [vmem:[%s5] sm:$0x1]
  %v7785 = vadd.f32 %v7783, 1e-05
  %v7786 = vrsqrt.pop %v7785
  %v7787 = vmul.f32 %v7786, %v7785
  %v7788 = vmul.f32 %v7787, %v7786
  %v7789 = vmul.f32 0.5, %v7788
  %v7790 = vsub.f32 1.5, %v7789
  %v7791 = vmul.f32 %v7786, %v7790
  %vm7792 = vweird.f32 %v7785
  %vm7793 = vweird.f32 %v7786
  %vm7794 = vmor %vm7792, %vm7793
  %v7795 = vsel %vm7794, %v7786, %v7791
  %v7796 = vmul.f32 %v7784, %v7795
  %v7798 = vperm.slane %v7796, 0
  %v7800 = vmul.f32 %v7522, %v7798
  %v7801 = vmul.f32 %v7523, %v7798
  %v7802 = vmul.f32 %v7524, %v7798
  %v7803 = vmul.f32 %v7525, %v7798
  %v7804 = vmul.f32 %v7526, %v7798
  %v7805 = vmul.f32 %v7527, %v7798
  %v7806 = vmul.f32 %v7528, %v7798
  %v7807 = vmul.f32 %v7529, %v7798
  %v7808 = vmul.f32 %v7530, %v7798
  %v7809 = vmul.f32 %v7531, %v7798
  %v7810 = vmul.f32 %v7532, %v7798
  %v7811 = vmul.f32 %v7533, %v7798
  %v7812 = vmul.f32 %v7534, %v7798
  %v7813 = vmul.f32 %v7535, %v7798
  %v7814 = vmul.f32 %v7536, %v7798
  %v7815 = vmul.f32 %v7537, %v7798
  %v7816 = vmul.f32 %v7538, %v7798
  %v7817 = vmul.f32 %v7539, %v7798
  %v7818 = vmul.f32 %v7540, %v7798
  %v7819 = vmul.f32 %v7541, %v7798
  %v7820 = vmul.f32 %v7542, %v7798
  %v7821 = vmul.f32 %v7543, %v7798
  %v7822 = vmul.f32 %v7544, %v7798
  %v7823 = vmul.f32 %v7545, %v7798
  %v7824 = vmul.f32 %v7546, %v7798
  %v7825 = vmul.f32 %v7547, %v7798
  %v7826 = vmul.f32 %v7548, %v7798
  %v7827 = vmul.f32 %v7549, %v7798
  %v7828 = vmul.f32 %v7550, %v7798
  %v7829 = vmul.f32 %v7551, %v7798
  %v7830 = vmul.f32 %v7552, %v7798
  %v7831 = vmul.f32 %v7553, %v7798
  %v7832 = vmul.f32 %v7554, %v7798
  %v7833 = vmul.f32 %v7555, %v7798
  %v7834 = vmul.f32 %v7556, %v7798
  %v7835 = vmul.f32 %v7557, %v7798
  %v7836 = vmul.f32 %v7558, %v7798
  %v7837 = vmul.f32 %v7559, %v7798
  %v7838 = vmul.f32 %v7560, %v7798
  %v7839 = vmul.f32 %v7561, %v7798
  %v7840 = vmul.f32 %v7562, %v7798
  %v7841 = vmul.f32 %v7563, %v7798
  %v7842 = vmul.f32 %v7564, %v7798
  %v7843 = vmul.f32 %v7565, %v7798
  %v7844 = vmul.f32 %v7566, %v7798
  %v7845 = vmul.f32 %v7567, %v7798
  %v7846 = vmul.f32 %v7568, %v7798
  %v7847 = vmul.f32 %v7569, %v7798
  %v7848 = vmul.f32 %v7570, %v7798
  %v7849 = vmul.f32 %v7571, %v7798
  %v7850 = vmul.f32 %v7572, %v7798
  %v7851 = vmul.f32 %v7573, %v7798
  %v7852 = vmul.f32 %v7574, %v7798
  %v7853 = vmul.f32 %v7575, %v7798
  %v7854 = vmul.f32 %v7576, %v7798
  %v7855 = vmul.f32 %v7577, %v7798
  %v7856 = vmul.f32 %v7578, %v7798
  %v7857 = vmul.f32 %v7579, %v7798
  %v7858 = vmul.f32 %v7580, %v7798
  %v7859 = vmul.f32 %v7581, %v7798
  %v7860 = vmul.f32 %v7582, %v7798
  %v7861 = vmul.f32 %v7583, %v7798
  %v7862 = vmul.f32 %v7584, %v7798
  %v7863 = vmul.f32 %v7585, %v7798
  %v7864 = vld [vmem:[%s6] sm:$0x1]
  %v7866 = vperm.slane %v7864, 0
  %v7868 = vadd.f32 %v7800, %v7866
  %v7869 = vadd.f32 %v7801, %v7866
  %v7870 = vadd.f32 %v7802, %v7866
  %v7871 = vadd.f32 %v7803, %v7866
  %v7872 = vadd.f32 %v7804, %v7866
  %v7873 = vadd.f32 %v7805, %v7866
  %v7874 = vadd.f32 %v7806, %v7866
  %v7875 = vadd.f32 %v7807, %v7866
  %v7876 = vadd.f32 %v7808, %v7866
  %v7877 = vadd.f32 %v7809, %v7866
  %v7878 = vadd.f32 %v7810, %v7866
  %v7879 = vadd.f32 %v7811, %v7866
  %v7880 = vadd.f32 %v7812, %v7866
  %v7881 = vadd.f32 %v7813, %v7866
  %v7882 = vadd.f32 %v7814, %v7866
  %v7883 = vadd.f32 %v7815, %v7866
  %v7884 = vadd.f32 %v7816, %v7866
  %v7885 = vadd.f32 %v7817, %v7866
  %v7886 = vadd.f32 %v7818, %v7866
  %v7887 = vadd.f32 %v7819, %v7866
  %v7888 = vadd.f32 %v7820, %v7866
  %v7889 = vadd.f32 %v7821, %v7866
  %v7890 = vadd.f32 %v7822, %v7866
  %v7891 = vadd.f32 %v7823, %v7866
  %v7892 = vadd.f32 %v7824, %v7866
  %v7893 = vadd.f32 %v7825, %v7866
  %v7894 = vadd.f32 %v7826, %v7866
  %v7895 = vadd.f32 %v7827, %v7866
  %v7896 = vadd.f32 %v7828, %v7866
  %v7897 = vadd.f32 %v7829, %v7866
  %v7898 = vadd.f32 %v7830, %v7866
  %v7899 = vadd.f32 %v7831, %v7866
  %v7900 = vadd.f32 %v7832, %v7866
  %v7901 = vadd.f32 %v7833, %v7866
  %v7902 = vadd.f32 %v7834, %v7866
  %v7903 = vadd.f32 %v7835, %v7866
  %v7904 = vadd.f32 %v7836, %v7866
  %v7905 = vadd.f32 %v7837, %v7866
  %v7906 = vadd.f32 %v7838, %v7866
  %v7907 = vadd.f32 %v7839, %v7866
  %v7908 = vadd.f32 %v7840, %v7866
  %v7909 = vadd.f32 %v7841, %v7866
  %v7910 = vadd.f32 %v7842, %v7866
  %v7911 = vadd.f32 %v7843, %v7866
  %v7912 = vadd.f32 %v7844, %v7866
  %v7913 = vadd.f32 %v7845, %v7866
  %v7914 = vadd.f32 %v7846, %v7866
  %v7915 = vadd.f32 %v7847, %v7866
  %v7916 = vadd.f32 %v7848, %v7866
  %v7917 = vadd.f32 %v7849, %v7866
  %v7918 = vadd.f32 %v7850, %v7866
  %v7919 = vadd.f32 %v7851, %v7866
  %v7920 = vadd.f32 %v7852, %v7866
  %v7921 = vadd.f32 %v7853, %v7866
  %v7922 = vadd.f32 %v7854, %v7866
  %v7923 = vadd.f32 %v7855, %v7866
  %v7924 = vadd.f32 %v7856, %v7866
  %v7925 = vadd.f32 %v7857, %v7866
  %v7926 = vadd.f32 %v7858, %v7866
  %v7927 = vadd.f32 %v7859, %v7866
  %v7928 = vadd.f32 %v7860, %v7866
  %v7929 = vadd.f32 %v7861, %v7866
  %v7930 = vadd.f32 %v7862, %v7866
  %v7931 = vadd.f32 %v7863, %v7866
  %v7932 = vmax.f32 %v7868, 0.0
  %v7933 = vmax.f32 %v7869, 0.0
  %v7934 = vmax.f32 %v7870, 0.0
  %v7935 = vmax.f32 %v7871, 0.0
  %v7936 = vmax.f32 %v7872, 0.0
  %v7937 = vmax.f32 %v7873, 0.0
  %v7938 = vmax.f32 %v7874, 0.0
  %v7939 = vmax.f32 %v7875, 0.0
  %v7940 = vmax.f32 %v7876, 0.0
  %v7941 = vmax.f32 %v7877, 0.0
  %v7942 = vmax.f32 %v7878, 0.0
  %v7943 = vmax.f32 %v7879, 0.0
  %v7944 = vmax.f32 %v7880, 0.0
  %v7945 = vmax.f32 %v7881, 0.0
  %v7946 = vmax.f32 %v7882, 0.0
  %v7947 = vmax.f32 %v7883, 0.0
  %v7948 = vmax.f32 %v7884, 0.0
  %v7949 = vmax.f32 %v7885, 0.0
  %v7950 = vmax.f32 %v7886, 0.0
  %v7951 = vmax.f32 %v7887, 0.0
  %v7952 = vmax.f32 %v7888, 0.0
  %v7953 = vmax.f32 %v7889, 0.0
  %v7954 = vmax.f32 %v7890, 0.0
  %v7955 = vmax.f32 %v7891, 0.0
  %v7956 = vmax.f32 %v7892, 0.0
  %v7957 = vmax.f32 %v7893, 0.0
  %v7958 = vmax.f32 %v7894, 0.0
  %v7959 = vmax.f32 %v7895, 0.0
  %v7960 = vmax.f32 %v7896, 0.0
  %v7961 = vmax.f32 %v7897, 0.0
  %v7962 = vmax.f32 %v7898, 0.0
  %v7963 = vmax.f32 %v7899, 0.0
  %v7964 = vmax.f32 %v7900, 0.0
  %v7965 = vmax.f32 %v7901, 0.0
  %v7966 = vmax.f32 %v7902, 0.0
  %v7967 = vmax.f32 %v7903, 0.0
  %v7968 = vmax.f32 %v7904, 0.0
  %v7969 = vmax.f32 %v7905, 0.0
  %v7970 = vmax.f32 %v7906, 0.0
  %v7971 = vmax.f32 %v7907, 0.0
  %v7972 = vmax.f32 %v7908, 0.0
  %v7973 = vmax.f32 %v7909, 0.0
  %v7974 = vmax.f32 %v7910, 0.0
  %v7975 = vmax.f32 %v7911, 0.0
  %v7976 = vmax.f32 %v7912, 0.0
  %v7977 = vmax.f32 %v7913, 0.0
  %v7978 = vmax.f32 %v7914, 0.0
  %v7979 = vmax.f32 %v7915, 0.0
  %v7980 = vmax.f32 %v7916, 0.0
  %v7981 = vmax.f32 %v7917, 0.0
  %v7982 = vmax.f32 %v7918, 0.0
  %v7983 = vmax.f32 %v7919, 0.0
  %v7984 = vmax.f32 %v7920, 0.0
  %v7985 = vmax.f32 %v7921, 0.0
  %v7986 = vmax.f32 %v7922, 0.0
  %v7987 = vmax.f32 %v7923, 0.0
  %v7988 = vmax.f32 %v7924, 0.0
  %v7989 = vmax.f32 %v7925, 0.0
  %v7990 = vmax.f32 %v7926, 0.0
  %v7991 = vmax.f32 %v7927, 0.0
  %v7992 = vmax.f32 %v7928, 0.0
  %v7993 = vmax.f32 %v7929, 0.0
  %v7994 = vmax.f32 %v7930, 0.0
  %v7995 = vmax.f32 %v7931, 0.0
  %v7996 = vld [vmem:[%s0] sm:$0xff]
  %v7997 = vld [vmem:[%s0 + $0x8] sm:$0xff]
  %v7998 = vld [vmem:[%s0 + $0x10] sm:$0xff]
  %v7999 = vld [vmem:[%s0 + $0x18] sm:$0xff]
  %v8000 = vld [vmem:[%s0 + $0x20] sm:$0xff]
  %v8001 = vld [vmem:[%s0 + $0x28] sm:$0xff]
  %v8002 = vld [vmem:[%s0 + $0x30] sm:$0xff]
  %v8003 = vld [vmem:[%s0 + $0x38] sm:$0xff]
  %v8004 = vld [vmem:[%s0 + $0x40] sm:$0xff]
  %v8005 = vld [vmem:[%s0 + $0x48] sm:$0xff]
  %v8006 = vld [vmem:[%s0 + $0x50] sm:$0xff]
  %v8007 = vld [vmem:[%s0 + $0x58] sm:$0xff]
  %v8008 = vld [vmem:[%s0 + $0x60] sm:$0xff]
  %v8009 = vld [vmem:[%s0 + $0x68] sm:$0xff]
  %v8010 = vld [vmem:[%s0 + $0x70] sm:$0xff]
  %v8011 = vld [vmem:[%s0 + $0x78] sm:$0xff]
  %v8012 = vld [vmem:[%s0 + $0x80] sm:$0xff]
  %v8013 = vld [vmem:[%s0 + $0x88] sm:$0xff]
  %v8014 = vld [vmem:[%s0 + $0x90] sm:$0xff]
  %v8015 = vld [vmem:[%s0 + $0x98] sm:$0xff]
  %v8016 = vld [vmem:[%s0 + $0xa0] sm:$0xff]
  %v8017 = vld [vmem:[%s0 + $0xa8] sm:$0xff]
  %v8018 = vld [vmem:[%s0 + $0xb0] sm:$0xff]
  %v8019 = vld [vmem:[%s0 + $0xb8] sm:$0xff]
  %v8020 = vld [vmem:[%s0 + $0xc0] sm:$0xff]
  %v8021 = vld [vmem:[%s0 + $0xc8] sm:$0xff]
  %v8022 = vld [vmem:[%s0 + $0xd0] sm:$0xff]
  %v8023 = vld [vmem:[%s0 + $0xd8] sm:$0xff]
  %v8024 = vld [vmem:[%s0 + $0xe0] sm:$0xff]
  %v8025 = vld [vmem:[%s0 + $0xe8] sm:$0xff]
  %v8026 = vld [vmem:[%s0 + $0xf0] sm:$0xff]
  %v8027 = vld [vmem:[%s0 + $0xf8] sm:$0xff]
  %v8028 = vld [vmem:[%s0 + $0x100] sm:$0xff]
  %v8029 = vld [vmem:[%s0 + $0x108] sm:$0xff]
  %v8030 = vld [vmem:[%s0 + $0x110] sm:$0xff]
  %v8031 = vld [vmem:[%s0 + $0x118] sm:$0xff]
  %v8032 = vld [vmem:[%s0 + $0x120] sm:$0xff]
  %v8033 = vld [vmem:[%s0 + $0x128] sm:$0xff]
  %v8034 = vld [vmem:[%s0 + $0x130] sm:$0xff]
  %v8035 = vld [vmem:[%s0 + $0x138] sm:$0xff]
  %v8036 = vld [vmem:[%s0 + $0x140] sm:$0xff]
  %v8037 = vld [vmem:[%s0 + $0x148] sm:$0xff]
  %v8038 = vld [vmem:[%s0 + $0x150] sm:$0xff]
  %v8039 = vld [vmem:[%s0 + $0x158] sm:$0xff]
  %v8040 = vld [vmem:[%s0 + $0x160] sm:$0xff]
  %v8041 = vld [vmem:[%s0 + $0x168] sm:$0xff]
  %v8042 = vld [vmem:[%s0 + $0x170] sm:$0xff]
  %v8043 = vld [vmem:[%s0 + $0x178] sm:$0xff]
  %v8044 = vld [vmem:[%s0 + $0x180] sm:$0xff]
  %v8045 = vld [vmem:[%s0 + $0x188] sm:$0xff]
  %v8046 = vld [vmem:[%s0 + $0x190] sm:$0xff]
  %v8047 = vld [vmem:[%s0 + $0x198] sm:$0xff]
  %v8048 = vld [vmem:[%s0 + $0x1a0] sm:$0xff]
  %v8049 = vld [vmem:[%s0 + $0x1a8] sm:$0xff]
  %v8050 = vld [vmem:[%s0 + $0x1b0] sm:$0xff]
  %v8051 = vld [vmem:[%s0 + $0x1b8] sm:$0xff]
  %v8052 = vld [vmem:[%s0 + $0x1c0] sm:$0xff]
  %v8053 = vld [vmem:[%s0 + $0x1c8] sm:$0xff]
  %v8054 = vld [vmem:[%s0 + $0x1d0] sm:$0xff]
  %v8055 = vld [vmem:[%s0 + $0x1d8] sm:$0xff]
  %v8056 = vld [vmem:[%s0 + $0x1e0] sm:$0xff]
  %v8057 = vld [vmem:[%s0 + $0x1e8] sm:$0xff]
  %v8058 = vld [vmem:[%s0 + $0x1f0] sm:$0xff]
  %v8059 = vld [vmem:[%s0 + $0x1f8] sm:$0xff]
  %8060 = vxpose.xlu0.b32.start [1/16] %v7996, 128
  %8061 = vxpose.xlu0.b32.cont [2/16] %v7997, 128
  %8062 = vxpose.xlu0.b32.cont [3/16] %v7998, 128
  %8063 = vxpose.xlu0.b32.cont [4/16] %v7999, 128
  %8064 = vxpose.xlu0.b32.cont [5/16] %v8000, 128
  %8065 = vxpose.xlu0.b32.cont [6/16] %v8001, 128
  %8066 = vxpose.xlu0.b32.cont [7/16] %v8002, 128
  %8067 = vxpose.xlu0.b32.cont [8/16] %v8003, 128
  %8068 = vxpose.xlu0.b32.cont [9/16] %v8004, 128
  %8069 = vxpose.xlu0.b32.cont [10/16] %v8005, 128
  %8070 = vxpose.xlu0.b32.cont [11/16] %v8006, 128
  %8071 = vxpose.xlu0.b32.cont [12/16] %v8007, 128
  %8072 = vxpose.xlu0.b32.cont [13/16] %v8008, 128
  %8073 = vxpose.xlu0.b32.cont [14/16] %v8009, 128
  %8074 = vxpose.xlu0.b32.cont [15/16] %v8010, 128
  %8075 = vxpose.xlu0.b32.end [16/16] %v8011, 128
  %v8076 = vpop.trf.xlu0
  %v8077 = vpop.trf.xlu0
  %v8078 = vpop.trf.xlu0
  %v8079 = vpop.trf.xlu0
  %v8080 = vpop.trf.xlu0
  %v8081 = vpop.trf.xlu0
  %v8082 = vpop.trf.xlu0
  %v8083 = vpop.trf.xlu0
  %v8084 = vpop.trf.xlu0
  %v8085 = vpop.trf.xlu0
  %v8086 = vpop.trf.xlu0
  %v8087 = vpop.trf.xlu0
  %v8088 = vpop.trf.xlu0
  %v8089 = vpop.trf.xlu0
  %v8090 = vpop.trf.xlu0
  %v8091 = vpop.trf.xlu0
  %8092 = vxpose.xlu0.b32.start [1/16] %v8012, 128
  %8093 = vxpose.xlu0.b32.cont [2/16] %v8013, 128
  %8094 = vxpose.xlu0.b32.cont [3/16] %v8014, 128
  %8095 = vxpose.xlu0.b32.cont [4/16] %v8015, 128
  %8096 = vxpose.xlu0.b32.cont [5/16] %v8016, 128
  %8097 = vxpose.xlu0.b32.cont [6/16] %v8017, 128
  %8098 = vxpose.xlu0.b32.cont [7/16] %v8018, 128
  %8099 = vxpose.xlu0.b32.cont [8/16] %v8019, 128
  %8100 = vxpose.xlu0.b32.cont [9/16] %v8020, 128
  %8101 = vxpose.xlu0.b32.cont [10/16] %v8021, 128
  %8102 = vxpose.xlu0.b32.cont [11/16] %v8022, 128
  %8103 = vxpose.xlu0.b32.cont [12/16] %v8023, 128
  %8104 = vxpose.xlu0.b32.cont [13/16] %v8024, 128
  %8105 = vxpose.xlu0.b32.cont [14/16] %v8025, 128
  %8106 = vxpose.xlu0.b32.cont [15/16] %v8026, 128
  %8107 = vxpose.xlu0.b32.end [16/16] %v8027, 128
  %v8108 = vpop.trf.xlu0
  %v8109 = vpop.trf.xlu0
  %v8110 = vpop.trf.xlu0
  %v8111 = vpop.trf.xlu0
  %v8112 = vpop.trf.xlu0
  %v8113 = vpop.trf.xlu0
  %v8114 = vpop.trf.xlu0
  %v8115 = vpop.trf.xlu0
  %v8116 = vpop.trf.xlu0
  %v8117 = vpop.trf.xlu0
  %v8118 = vpop.trf.xlu0
  %v8119 = vpop.trf.xlu0
  %v8120 = vpop.trf.xlu0
  %v8121 = vpop.trf.xlu0
  %v8122 = vpop.trf.xlu0
  %v8123 = vpop.trf.xlu0
  %8124 = vxpose.xlu0.b32.start [1/16] %v8028, 128
  %8125 = vxpose.xlu0.b32.cont [2/16] %v8029, 128
  %8126 = vxpose.xlu0.b32.cont [3/16] %v8030, 128
  %8127 = vxpose.xlu0.b32.cont [4/16] %v8031, 128
  %8128 = vxpose.xlu0.b32.cont [5/16] %v8032, 128
  %8129 = vxpose.xlu0.b32.cont [6/16] %v8033, 128
  %8130 = vxpose.xlu0.b32.cont [7/16] %v8034, 128
  %8131 = vxpose.xlu0.b32.cont [8/16] %v8035, 128
  %8132 = vxpose.xlu0.b32.cont [9/16] %v8036, 128
  %8133 = vxpose.xlu0.b32.cont [10/16] %v8037, 128
  %8134 = vxpose.xlu0.b32.cont [11/16] %v8038, 128
  %8135 = vxpose.xlu0.b32.cont [12/16] %v8039, 128
  %8136 = vxpose.xlu0.b32.cont [13/16] %v8040, 128
  %8137 = vxpose.xlu0.b32.cont [14/16] %v8041, 128
  %8138 = vxpose.xlu0.b32.cont [15/16] %v8042, 128
  %8139 = vxpose.xlu0.b32.end [16/16] %v8043, 128
  %v8140 = vpop.trf.xlu0
  %v8141 = vpop.trf.xlu0
  %v8142 = vpop.trf.xlu0
  %v8143 = vpop.trf.xlu0
  %v8144 = vpop.trf.xlu0
  %v8145 = vpop.trf.xlu0
  %v8146 = vpop.trf.xlu0
  %v8147 = vpop.trf.xlu0
  %v8148 = vpop.trf.xlu0
  %v8149 = vpop.trf.xlu0
  %v8150 = vpop.trf.xlu0
  %v8151 = vpop.trf.xlu0
  %v8152 = vpop.trf.xlu0
  %v8153 = vpop.trf.xlu0
  %v8154 = vpop.trf.xlu0
  %v8155 = vpop.trf.xlu0
  %8156 = vxpose.xlu0.b32.start [1/16] %v8044, 128
  %8157 = vxpose.xlu0.b32.cont [2/16] %v8045, 128
  %8158 = vxpose.xlu0.b32.cont [3/16] %v8046, 128
  %8159 = vxpose.xlu0.b32.cont [4/16] %v8047, 128
  %8160 = vxpose.xlu0.b32.cont [5/16] %v8048, 128
  %8161 = vxpose.xlu0.b32.cont [6/16] %v8049, 128
  %8162 = vxpose.xlu0.b32.cont [7/16] %v8050, 128
  %8163 = vxpose.xlu0.b32.cont [8/16] %v8051, 128
  %8164 = vxpose.xlu0.b32.cont [9/16] %v8052, 128
  %8165 = vxpose.xlu0.b32.cont [10/16] %v8053, 128
  %8166 = vxpose.xlu0.b32.cont [11/16] %v8054, 128
  %8167 = vxpose.xlu0.b32.cont [12/16] %v8055, 128
  %8168 = vxpose.xlu0.b32.cont [13/16] %v8056, 128
  %8169 = vxpose.xlu0.b32.cont [14/16] %v8057, 128
  %8170 = vxpose.xlu0.b32.cont [15/16] %v8058, 128
  %8171 = vxpose.xlu0.b32.end [16/16] %v8059, 128
  %v8172 = vpop.trf.xlu0
  %v8173 = vpop.trf.xlu0
  %v8174 = vpop.trf.xlu0
  %v8175 = vpop.trf.xlu0
  %v8176 = vpop.trf.xlu0
  %v8177 = vpop.trf.xlu0
  %v8178 = vpop.trf.xlu0
  %v8179 = vpop.trf.xlu0
  %v8180 = vpop.trf.xlu0
  %v8181 = vpop.trf.xlu0
  %v8182 = vpop.trf.xlu0
  %v8183 = vpop.trf.xlu0
  %v8184 = vpop.trf.xlu0
  %v8185 = vpop.trf.xlu0
  %v8186 = vpop.trf.xlu0
  %v8187 = vpop.trf.xlu0
  %8188 = vst [vmem:[%s7] sm:$0xf] %v8076
  %8189 = vst [vmem:[%s7 + $0x8] sm:$0xf] %v8108
  %8190 = vst [vmem:[%s7 + $0x10] sm:$0xf] %v8140
  %8191 = vst [vmem:[%s7 + $0x18] sm:$0xf] %v8172
  %8192 = vxpose.xlu0.b32.start [1/16] %v7932, 128
  %8193 = vxpose.xlu0.b32.cont [2/16] %v7933, 128
  %8194 = vxpose.xlu0.b32.cont [3/16] %v7934, 128
  %8195 = vxpose.xlu0.b32.cont [4/16] %v7935, 128
  %8196 = vxpose.xlu0.b32.cont [5/16] %v7936, 128
  %8197 = vxpose.xlu0.b32.cont [6/16] %v7937, 128
  %8198 = vxpose.xlu0.b32.cont [7/16] %v7938, 128
  %8199 = vxpose.xlu0.b32.cont [8/16] %v7939, 128
  %8200 = vxpose.xlu0.b32.cont [9/16] %v7940, 128
  %8201 = vxpose.xlu0.b32.cont [10/16] %v7941, 128
  %8202 = vxpose.xlu0.b32.cont [11/16] %v7942, 128
  %8203 = vxpose.xlu0.b32.cont [12/16] %v7943, 128
  %8204 = vxpose.xlu0.b32.cont [13/16] %v7944, 128
  %8205 = vxpose.xlu0.b32.cont [14/16] %v7945, 128
  %8206 = vxpose.xlu0.b32.cont [15/16] %v7946, 128
  %8207 = vxpose.xlu0.b32.end [16/16] %v7947, 128
  %v8208 = vpop.trf.xlu0
  %v8209 = vpop.trf.xlu0
  %v8210 = vpop.trf.xlu0
  %v8211 = vpop.trf.xlu0
  %v8212 = vpop.trf.xlu0
  %v8213 = vpop.trf.xlu0
  %v8214 = vpop.trf.xlu0
  %v8215 = vpop.trf.xlu0
  %v8216 = vpop.trf.xlu0
  %v8217 = vpop.trf.xlu0
  %v8218 = vpop.trf.xlu0
  %v8219 = vpop.trf.xlu0
  %v8220 = vpop.trf.xlu0
  %v8221 = vpop.trf.xlu0
  %v8222 = vpop.trf.xlu0
  %v8223 = vpop.trf.xlu0
  %8224 = vxpose.xlu0.b32.start [1/16] %v7948, 128
  %8225 = vxpose.xlu0.b32.cont [2/16] %v7949, 128
  %8226 = vxpose.xlu0.b32.cont [3/16] %v7950, 128
  %8227 = vxpose.xlu0.b32.cont [4/16] %v7951, 128
  %8228 = vxpose.xlu0.b32.cont [5/16] %v7952, 128
  %8229 = vxpose.xlu0.b32.cont [6/16] %v7953, 128
  %8230 = vxpose.xlu0.b32.cont [7/16] %v7954, 128
  %8231 = vxpose.xlu0.b32.cont [8/16] %v7955, 128
  %8232 = vxpose.xlu0.b32.cont [9/16] %v7956, 128
  %8233 = vxpose.xlu0.b32.cont [10/16] %v7957, 128
  %8234 = vxpose.xlu0.b32.cont [11/16] %v7958, 128
  %8235 = vxpose.xlu0.b32.cont [12/16] %v7959, 128
  %8236 = vxpose.xlu0.b32.cont [13/16] %v7960, 128
  %8237 = vxpose.xlu0.b32.cont [14/16] %v7961, 128
  %8238 = vxpose.xlu0.b32.cont [15/16] %v7962, 128
  %8239 = vxpose.xlu0.b32.end [16/16] %v7963, 128
  %v8240 = vpop.trf.xlu0
  %v8241 = vpop.trf.xlu0
  %v8242 = vpop.trf.xlu0
  %v8243 = vpop.trf.xlu0
  %v8244 = vpop.trf.xlu0
  %v8245 = vpop.trf.xlu0
  %v8246 = vpop.trf.xlu0
  %v8247 = vpop.trf.xlu0
  %v8248 = vpop.trf.xlu0
  %v8249 = vpop.trf.xlu0
  %v8250 = vpop.trf.xlu0
  %v8251 = vpop.trf.xlu0
  %v8252 = vpop.trf.xlu0
  %v8253 = vpop.trf.xlu0
  %v8254 = vpop.trf.xlu0
  %v8255 = vpop.trf.xlu0
  %8256 = vxpose.xlu0.b32.start [1/16] %v7964, 128
  %8257 = vxpose.xlu0.b32.cont [2/16] %v7965, 128
  %8258 = vxpose.xlu0.b32.cont [3/16] %v7966, 128
  %8259 = vxpose.xlu0.b32.cont [4/16] %v7967, 128
  %8260 = vxpose.xlu0.b32.cont [5/16] %v7968, 128
  %8261 = vxpose.xlu0.b32.cont [6/16] %v7969, 128
  %8262 = vxpose.xlu0.b32.cont [7/16] %v7970, 128
  %8263 = vxpose.xlu0.b32.cont [8/16] %v7971, 128
  %8264 = vxpose.xlu0.b32.cont [9/16] %v7972, 128
  %8265 = vxpose.xlu0.b32.cont [10/16] %v7973, 128
  %8266 = vxpose.xlu0.b32.cont [11/16] %v7974, 128
  %8267 = vxpose.xlu0.b32.cont [12/16] %v7975, 128
  %8268 = vxpose.xlu0.b32.cont [13/16] %v7976, 128
  %8269 = vxpose.xlu0.b32.cont [14/16] %v7977, 128
  %8270 = vxpose.xlu0.b32.cont [15/16] %v7978, 128
  %8271 = vxpose.xlu0.b32.end [16/16] %v7979, 128
  %v8272 = vpop.trf.xlu0
  %v8273 = vpop.trf.xlu0
  %v8274 = vpop.trf.xlu0
  %v8275 = vpop.trf.xlu0
  %v8276 = vpop.trf.xlu0
  %v8277 = vpop.trf.xlu0
  %v8278 = vpop.trf.xlu0
  %v8279 = vpop.trf.xlu0
  %v8280 = vpop.trf.xlu0
  %v8281 = vpop.trf.xlu0
  %v8282 = vpop.trf.xlu0
  %v8283 = vpop.trf.xlu0
  %v8284 = vpop.trf.xlu0
  %v8285 = vpop.trf.xlu0
  %v8286 = vpop.trf.xlu0
  %v8287 = vpop.trf.xlu0
  %8288 = vxpose.xlu0.b32.start [1/16] %v7980, 128
  %8289 = vxpose.xlu0.b32.cont [2/16] %v7981, 128
  %8290 = vxpose.xlu0.b32.cont [3/16] %v7982, 128
  %8291 = vxpose.xlu0.b32.cont [4/16] %v7983, 128
  %8292 = vxpose.xlu0.b32.cont [5/16] %v7984, 128
  %8293 = vxpose.xlu0.b32.cont [6/16] %v7985, 128
  %8294 = vxpose.xlu0.b32.cont [7/16] %v7986, 128
  %8295 = vxpose.xlu0.b32.cont [8/16] %v7987, 128
  %8296 = vxpose.xlu0.b32.cont [9/16] %v7988, 128
  %8297 = vxpose.xlu0.b32.cont [10/16] %v7989, 128
  %8298 = vxpose.xlu0.b32.cont [11/16] %v7990, 128
  %8299 = vxpose.xlu0.b32.cont [12/16] %v7991, 128
  %8300 = vxpose.xlu0.b32.cont [13/16] %v7992, 128
  %8301 = vxpose.xlu0.b32.cont [14/16] %v7993, 128
  %8302 = vxpose.xlu0.b32.cont [15/16] %v7994, 128
  %8303 = vxpose.xlu0.b32.end [16/16] %v7995, 128
  %v8304 = vpop.trf.xlu0
  %v8305 = vpop.trf.xlu0
  %v8306 = vpop.trf.xlu0
  %v8307 = vpop.trf.xlu0
  %v8308 = vpop.trf.xlu0
  %v8309 = vpop.trf.xlu0
  %v8310 = vpop.trf.xlu0
  %v8311 = vpop.trf.xlu0
  %v8312 = vpop.trf.xlu0
  %v8313 = vpop.trf.xlu0
  %v8314 = vpop.trf.xlu0
  %v8315 = vpop.trf.xlu0
  %v8316 = vpop.trf.xlu0
  %v8317 = vpop.trf.xlu0
  %v8318 = vpop.trf.xlu0
  %v8319 = vpop.trf.xlu0
  %v8324 = vrot.slane %v8208, 4
  %v8325 = vrot.slane %v8240, 4
  %v8326 = vrot.slane %v8272, 4
  %v8327 = vrot.slane %v8304, 4
  %8332 = vst [vmem:[%s7] sm:$0xf0] %v8324
  %8333 = vst [vmem:[%s7 + $0x8] sm:$0xf0] %v8325
  %8334 = vst [vmem:[%s7 + $0x10] sm:$0xf0] %v8326
  %8335 = vst [vmem:[%s7 + $0x18] sm:$0xf0] %v8327
  %8336 = vst [vmem:[%s7 + $0x20] sm:$0xf] %v8324
  %8337 = vst [vmem:[%s7 + $0x28] sm:$0xf] %v8325
  %8338 = vst [vmem:[%s7 + $0x30] sm:$0xf] %v8326
  %8339 = vst [vmem:[%s7 + $0x38] sm:$0xf] %v8327
  // Predicated region
  $region30: #{conv_block2_forward.1} parent=0 // pred_check
    _
  $region31: #{conv_block2_forward.1} parent=0 // pred_check_branch
    %8341 = sbr.rel (0) target = $region33
  $region32: #{conv_block2_forward.1} parent=0 // pred_region
    _
  $region33: #{conv_block2_forward.1} parent=0 // pred_fallthru
    _
  // Predicated region
  $region34: #{conv_block2_forward.1} parent=0 // pred_check
    _
  $region35: #{conv_block2_forward.1} parent=0 // pred_check_branch
    %8343 = sbr.rel (0) target = $region37
  $region36: #{conv_block2_forward.1} parent=0 // pred_region
    _
  $region37: #{conv_block2_forward.1} parent=0 // pred_fallthru
    _

</llo_original>
